<compile_context>
chip_gen: v7x
topology: tpu7x:2x2x1
jax: 0.10.0
libtpu: 0.0.40
codegen_flags: <defaults>
</compile_context>

<pallas_src>
import functools

import jax
import jax.numpy as jnp
from jax import lax
from jax.experimental import pallas as pl
from jax.experimental.pallas import tpu as pltpu

EPS = 1e-5
VMEM_LIMIT = 48 * 1024 * 1024   # explicit scoped VMEM, headroom under v7x 64 MiB


# ----------------------------- in-kernel helpers -----------------------------

def _conv3x3_folded(xpad, w_ref, b_ref, *, stride, oh, ow):
    """xpad: (H+2, W+2, Cin) bf16 value with a zero halo ring.
    Folds all 9 taps into the contraction dim (im2col in VMEM) and runs ONE
    (oh*ow, 9*Cin) x (9*Cin, Cout) MXU matmul, f32 accumulation, + bias."""
    cin = xpad.shape[-1]
    taps = []
    for kh in range(3):
        for kw in range(3):
            taps.append(xpad[kh:kh + stride * (oh - 1) + 1:stride,
                             kw:kw + stride * (ow - 1) + 1:stride, :])
    patch = jnp.concatenate(taps, axis=-1).reshape(oh * ow, 9 * cin)
    y = jnp.dot(patch, w_ref[...], preferred_element_type=jnp.float32)
    return y + b_ref[...]                                   # (oh*ow, Cout) f32


# ----------------------------- Pallas kernels --------------------------------

def _stage1_kernel(x_ref, s1_ref, t1_ref, w1_ref, b1_ref, ws_ref, bs_ref,
                   y1_ref, ys_ref, y1sum_ref, y1sq_ref, yssum_ref, yssq_ref,
                   pad_bn, pad_raw, *, stride, oh, ow):
    """Per image: BN1+ReLU -> conv1 (stride, pad=1) and conv_skip (stride, pad=1)
    from a single input load; emits both bf16 activations + BN partial stats."""
    _, h, w, _ = x_ref.shape
    cout = y1_ref.shape[3]

    x = x_ref[0]                                            # (h, w, cin) bf16
    a1 = jnp.maximum(x.astype(jnp.float32) * s1_ref[...] + t1_ref[...], 0.0)

    # Build both halo-padded conv inputs in VMEM: zero ring, store interiors.
    pad_bn[...] = jnp.zeros_like(pad_bn)
    pad_raw[...] = jnp.zeros_like(pad_raw)
    pad_bn[1:h + 1, 1:w + 1, :] = a1.astype(jnp.bfloat16)
    pad_raw[1:h + 1, 1:w + 1, :] = x

    y1 = _conv3x3_folded(pad_bn[...], w1_ref, b1_ref, stride=stride, oh=oh, ow=ow)
    ys = _conv3x3_folded(pad_raw[...], ws_ref, bs_ref, stride=stride, oh=oh, ow=ow)

    # Per-image partial BN statistics (f32, single pass).
    # TODO(synk): E[x^2]-mean^2 can cancel for large-mean activations; switch to
    # a two-pass / Welford reduction if that regime ever shows up.
    y1sum_ref[...] = jnp.sum(y1, axis=0, keepdims=True)[None]
    y1sq_ref[...] = jnp.sum(y1 * y1, axis=0, keepdims=True)[None]
    yssum_ref[...] = jnp.sum(ys, axis=0, keepdims=True)[None]
    yssq_ref[...] = jnp.sum(ys * ys, axis=0, keepdims=True)[None]

    y1_ref[...] = y1.reshape(1, oh, ow, cout).astype(y1_ref.dtype)
    ys_ref[...] = ys.reshape(1, oh, ow, cout).astype(ys_ref.dtype)


def _stage2_kernel(y1_ref, ys_ref, s2_ref, t2_ref, ss_ref, ts_ref,
                   w2_ref, b2_ref, out_ref, pad_a2, *, oh, ow):
    """Per image: BN2+ReLU -> conv2 (stride 1, pad 1) -> + BN_skip(ys) residual."""
    cout = out_ref.shape[3]
    a2 = jnp.maximum(y1_ref[0].astype(jnp.float32) * s2_ref[...] + t2_ref[...], 0.0)

    pad_a2[...] = jnp.zeros_like(pad_a2)
    pad_a2[1:oh + 1, 1:ow + 1, :] = a2.astype(jnp.bfloat16)

    y2 = _conv3x3_folded(pad_a2[...], w2_ref, b2_ref, stride=1, oh=oh, ow=ow)

    skip = ys_ref[0].astype(jnp.float32).reshape(oh * ow, cout)
    out = y2 + skip * ss_ref[...] + ts_ref[...]
    out_ref[...] = out.reshape(1, oh, ow, cout).astype(out_ref.dtype)


# ----------------------------- Pallas wrappers --------------------------------

def _stage1(x, s1, t1, w1, b1, ws, bs, *, stride, oh, ow):
    n, h, w, cin = x.shape
    cout = w1.shape[1]
    kernel = functools.partial(_stage1_kernel, stride=stride, oh=oh, ow=ow)

    act_spec = pl.BlockSpec((1, oh, ow, cout), lambda i: (i, 0, 0, 0))
    stat_spec = pl.BlockSpec((1, 1, cout), lambda i: (i, 0, 0))
    vec_spec = lambda c: pl.BlockSpec((1, c), lambda i: (0, 0))
    wt_spec = pl.BlockSpec((9 * cin, cout), lambda i: (0, 0))

    flops = 2 * (2 * 9 * cin * cout) * n * oh * ow          # two 3x3 convs
    bytes_accessed = (x.size * 2 + 2 * 9 * cin * cout * 2
                      + 2 * n * oh * ow * cout * 2 + 4 * n * cout * 4)

    return pl.pallas_call(
        kernel,
        out_shape=(
            jax.ShapeDtypeStruct((n, oh, ow, cout), jnp.bfloat16),   # y1
            jax.ShapeDtypeStruct((n, oh, ow, cout), jnp.bfloat16),   # ys
            jax.ShapeDtypeStruct((n, 1, cout), jnp.float32),         # sum(y1)
            jax.ShapeDtypeStruct((n, 1, cout), jnp.float32),         # sum(y1^2)
            jax.ShapeDtypeStruct((n, 1, cout), jnp.float32),         # sum(ys)
            jax.ShapeDtypeStruct((n, 1, cout), jnp.float32),         # sum(ys^2)
        ),
        grid=(n,),
        in_specs=[
            pl.BlockSpec((1, h, w, cin), lambda i: (i, 0, 0, 0)),
            vec_spec(cin), vec_spec(cin),                     # BN1 scale / shift
            wt_spec, vec_spec(cout),                          # w1 (folded), b1
            wt_spec, vec_spec(cout),                          # ws (folded), bs
        ],
        out_specs=(act_spec, act_spec, stat_spec, stat_spec, stat_spec, stat_spec),
        scratch_shapes=[pltpu.VMEM((h + 2, w + 2, cin), jnp.bfloat16),
                        pltpu.VMEM((h + 2, w + 2, cin), jnp.bfloat16)],
        compiler_params=pltpu.CompilerParams(
            dimension_semantics=("parallel",), vmem_limit_bytes=VMEM_LIMIT),
        cost_estimate=pl.CostEstimate(flops=flops, transcendentals=0,
                                      bytes_accessed=bytes_accessed),
    )(x, s1, t1, w1, b1, ws, bs)


def _stage2(y1, ys, s2, t2, ss, ts, w2, b2, *, oh, ow):
    n = y1.shape[0]
    cout = w2.shape[1]
    kernel = functools.partial(_stage2_kernel, oh=oh, ow=ow)

    act_spec = pl.BlockSpec((1, oh, ow, cout), lambda i: (i, 0, 0, 0))
    vec_spec = pl.BlockSpec((1, cout), lambda i: (0, 0))

    flops = 2 * 9 * cout * cout * n * oh * ow
    bytes_accessed = (2 * n * oh * ow * cout * 2 + 9 * cout * cout * 2
                      + n * oh * ow * cout * 4)

    return pl.pallas_call(
        kernel,
        out_shape=jax.ShapeDtypeStruct((n, oh, ow, cout), jnp.float32),
        grid=(n,),
        in_specs=[act_spec, act_spec, vec_spec, vec_spec, vec_spec, vec_spec,
                  pl.BlockSpec((9 * cout, cout), lambda i: (0, 0)), vec_spec],
        out_specs=pl.BlockSpec((1, oh, ow, cout), lambda i: (i, 0, 0, 0)),
        scratch_shapes=[pltpu.VMEM((oh + 2, ow + 2, cout), jnp.bfloat16)],
        compiler_params=pltpu.CompilerParams(
            dimension_semantics=("parallel",), vmem_limit_bytes=VMEM_LIMIT),
        cost_estimate=pl.CostEstimate(flops=flops, transcendentals=0,
                                      bytes_accessed=bytes_accessed),
    )(y1, ys, s2, t2, ss, ts, w2, b2)


# ----------------------------- glue (XLA-side) --------------------------------

def _fold_w(w_oihw):
    # (Cout, Cin, 3, 3) -> (9*Cin, Cout) bf16 with k = (kh*3+kw)*Cin + c,
    # matching the tap/channel order produced by _conv3x3_folded.
    cout, cin, _, _ = w_oihw.shape
    return (jnp.transpose(w_oihw, (2, 3, 1, 0))
            .reshape(9 * cin, cout).astype(jnp.bfloat16))


def _vec(v):
    return v.astype(jnp.float32).reshape(1, -1)


def _bn_from_sums(ssum, ssq, count, gamma, beta):
    # Training-mode (biased) batch statistics, like a fresh nn.BatchNorm2d.
    mean = ssum / count
    var = jnp.maximum(ssq / count - mean * mean, 0.0)
    scale = gamma * lax.rsqrt(var + EPS)
    shift = beta - mean * scale
    return _vec(scale), _vec(shift)


# ----------------------------- forward pass -----------------------------------

def residual_conv_forward(x_nchw, params, stride, padding):
    n, cin, h, w = x_nchw.shape
    cout = params["w1"].shape[0]
    # conv_skip always pads by 1; the residual add requires conv_block's first
    # conv to match that spatial extent (padding == 1, as in every ResUNet++
    # instantiation of this module).
    assert padding == 1, "fused ResidualConv kernel assumes padding == 1"
    oh = (h + 2 * padding - 3) // stride + 1
    ow = (w + 2 * padding - 3) // stride + 1

    # BN1 training-mode stats on the raw, un-padded input: trivial XLA two-pass
    # reduction (no Pallas kernel, no lane-inflated re-read of x).
    xf = x_nchw.astype(jnp.float32)
    mean1 = jnp.mean(xf, axis=(0, 2, 3))
    var1 = jnp.mean(jnp.square(xf - mean1.reshape(1, cin, 1, 1)), axis=(0, 2, 3))
    s1 = params["bn1_gamma"].astype(jnp.float32) * lax.rsqrt(var1 + EPS)
    t1 = params["bn1_beta"].astype(jnp.float32) - mean1 * s1

    # Activations live in HBM as NHWC bf16 with true channel counts.
    x = jnp.transpose(x_nchw, (0, 2, 3, 1)).astype(jnp.bfloat16)

    w1 = _fold_w(params["w1"]); b1 = _vec(params["b1"])
    ws = _fold_w(params["ws"]); bs = _vec(params["bs"])
    w2 = _fold_w(params["w2"]); b2 = _vec(params["b2"])

    # Stage 1: fused BN1+ReLU -> conv1 AND conv_skip (+ BN partial stats).
    y1, ys, y1sum, y1sq, yssum, yssq = _stage1(
        x, _vec(s1), _vec(t1), w1, b1, ws, bs, stride=stride, oh=oh, ow=ow)

    count = n * oh * ow
    s2, t2 = _bn_from_sums(jnp.sum(y1sum, axis=(0, 1)), jnp.sum(y1sq, axis=(0, 1)),
                           count, params["bn2_gamma"].astype(jnp.float32),
                           params["bn2_beta"].astype(jnp.float32))
    ss, ts = _bn_from_sums(jnp.sum(yssum, axis=(0, 1)), jnp.sum(yssq, axis=(0, 1)),
                           count, params["bns_gamma"].astype(jnp.float32),
                           params["bns_beta"].astype(jnp.float32))

    # Stage 2: fused BN2+ReLU -> conv2 -> + BN_skip(ys) residual epilogue.
    out = _stage2(y1, ys, s2, t2, ss, ts, w2, b2, oh=oh, ow=ow)
    return jnp.transpose(out, (0, 3, 1, 2))                 # NHWC -> NCHW


# ----------------------------- params & reference -----------------------------

def init_params(key, cin, cout):
    ks = jax.random.split(key, 6)
    return dict(
        w1=0.1 * jax.random.normal(ks[0], (cout, cin, 3, 3), jnp.float32),
        b1=0.1 * jax.random.normal(ks[1], (cout,), jnp.float32),
        w2=0.1 * jax.random.normal(ks[2], (cout, cout, 3, 3), jnp.float32),
        b2=0.1 * jax.random.normal(ks[3], (cout,), jnp.float32),
        ws=0.1 * jax.random.normal(ks[4], (cout, cin, 3, 3), jnp.float32),
        bs=0.1 * jax.random.normal(ks[5], (cout,), jnp.float32),
        # nn.BatchNorm2d default affine init (weight=1, bias=0)
        bn1_gamma=jnp.ones((cin,), jnp.float32),
        bn1_beta=jnp.zeros((cin,), jnp.float32),
        bn2_gamma=jnp.ones((cout,), jnp.float32),
        bn2_beta=jnp.zeros((cout,), jnp.float32),
        bns_gamma=jnp.ones((cout,), jnp.float32),
        bns_beta=jnp.zeros((cout,), jnp.float32),
    )


def ref_forward(x, params, stride, padding):
    def bn(v, g, b):
        m = v.mean(axis=(0, 2, 3), keepdims=True)
        var = v.var(axis=(0, 2, 3), keepdims=True)
        return (v - m) / jnp.sqrt(var + EPS) * g.reshape(1, -1, 1, 1) \
            + b.reshape(1, -1, 1, 1)

    def conv(v, w, b, s, p):
        y = lax.conv_general_dilated(
            v, w, (s, s), [(p, p), (p, p)],
            dimension_numbers=("NCHW", "OIHW", "NCHW"))
        return y + b.reshape(1, -1, 1, 1)

    h = jax.nn.relu(bn(x, params["bn1_gamma"], params["bn1_beta"]))
    y = conv(h, params["w1"], params["b1"], stride, padding)
    h2 = jax.nn.relu(bn(y, params["bn2_gamma"], params["bn2_beta"]))
    y2 = conv(h2, params["w2"], params["b2"], 1, 1)
    ys = conv(x, params["ws"], params["bs"], stride, 1)
    ys = bn(ys, params["bns_gamma"], params["bns_beta"])
    return y2 + ys


if __name__ == "__main__":
    key = jax.random.PRNGKey(0)
    kx, kp = jax.random.split(key)

    cin, cout, stride, padding = 4, 8, 1, 1
    x = jax.random.normal(kx, (2, cin, 16, 16), jnp.float32)
    params = init_params(kp, cin, cout)

    fwd = jax.jit(functools.partial(residual_conv_forward,
                                    stride=stride, padding=padding))
    out = jax.block_until_ready(fwd(x, params))

    ref = ref_forward(x, params, stride, padding)
    assert out.shape == ref.shape == (2, cout, 16, 16), (out.shape, ref.shape)
    max_err = float(jnp.max(jnp.abs(out - ref)))
    # bf16 MXU inputs / bf16 activation storage vs f32 reference -> loose tol.
    assert jnp.allclose(out, ref, atol=5e-2, rtol=5e-2), max_err
    print("KERNEL_OK")
</pallas_src>

<mosaic_0001>
module attributes {stable_mosaic.version = 11 : i64} {
  func.func @_stage1_kernel(%arg0: i32, %arg1: memref<1x16x16x4xbf16, #tpu.memory_space<vmem>>, %arg2: memref<1x4xf32, #tpu.memory_space<vmem>>, %arg3: memref<1x4xf32, #tpu.memory_space<vmem>>, %arg4: memref<36x8xbf16, #tpu.memory_space<vmem>>, %arg5: memref<1x8xf32, #tpu.memory_space<vmem>>, %arg6: memref<36x8xbf16, #tpu.memory_space<vmem>>, %arg7: memref<1x8xf32, #tpu.memory_space<vmem>>, %arg8: memref<1x16x16x8xbf16, #tpu.memory_space<vmem>>, %arg9: memref<1x16x16x8xbf16, #tpu.memory_space<vmem>>, %arg10: memref<1x1x8xf32, #tpu.memory_space<vmem>>, %arg11: memref<1x1x8xf32, #tpu.memory_space<vmem>>, %arg12: memref<1x1x8xf32, #tpu.memory_space<vmem>>, %arg13: memref<1x1x8xf32, #tpu.memory_space<vmem>>, %arg14: memref<18x18x4xbf16, #tpu.memory_space<vmem>>, %arg15: memref<18x18x4xbf16, #tpu.memory_space<vmem>>) attributes {dimension_semantics = [#tpu.dimension_semantics<parallel>], iteration_bounds = array<i64: 2>, scalar_prefetch = 0 : i64, scratch_operands = 2 : i64, tpu.core_type = #tpu.core_type<tc>, window_params = [{transform_indices = @transform_0, window_bounds = array<i64: 1, 16, 16, 4>}, {pipeline_mode = #tpu.pipeline_mode<synchronous>, transform_indices = @transform_1, window_bounds = array<i64: 1, 4>}, {pipeline_mode = #tpu.pipeline_mode<synchronous>, transform_indices = @transform_2, window_bounds = array<i64: 1, 4>}, {pipeline_mode = #tpu.pipeline_mode<synchronous>, transform_indices = @transform_3, window_bounds = array<i64: 36, 8>}, {pipeline_mode = #tpu.pipeline_mode<synchronous>, transform_indices = @transform_4, window_bounds = array<i64: 1, 8>}, {pipeline_mode = #tpu.pipeline_mode<synchronous>, transform_indices = @transform_5, window_bounds = array<i64: 36, 8>}, {pipeline_mode = #tpu.pipeline_mode<synchronous>, transform_indices = @transform_6, window_bounds = array<i64: 1, 8>}, {transform_indices = @transform_7, window_bounds = array<i64: 1, 16, 16, 8>}, {transform_indices = @transform_8, window_bounds = array<i64: 1, 16, 16, 8>}, {transform_indices = @transform_9, window_bounds = array<i64: 1, 1, 8>}, {transform_indices = @transform_10, window_bounds = array<i64: 1, 1, 8>}, {transform_indices = @transform_11, window_bounds = array<i64: 1, 1, 8>}, {transform_indices = @transform_12, window_bounds = array<i64: 1, 1, 8>}]} {
    %c0 = arith.constant 0 : index
    %c0_0 = arith.constant 0 : index
    %c0_1 = arith.constant 0 : index
    %c0_2 = arith.constant 0 : index
    %0 = vector.load %arg1[%c0, %c0_0, %c0_1, %c0_2] : memref<1x16x16x4xbf16, #tpu.memory_space<vmem>>, vector<1x16x16x4xbf16>
    %1 = vector.shape_cast %0 : vector<1x16x16x4xbf16> to vector<16x16x4xbf16>
    %2 = arith.extf %1 : vector<16x16x4xbf16> to vector<16x16x4xf32>
    %c0_3 = arith.constant 0 : index
    %c0_4 = arith.constant 0 : index
    %3 = vector.load %arg2[%c0_3, %c0_4] : memref<1x4xf32, #tpu.memory_space<vmem>>, vector<1x4xf32>
    %4 = vector.shape_cast %3 : vector<1x4xf32> to vector<1x1x4xf32>
    %5 = vector.broadcast %4 : vector<1x1x4xf32> to vector<16x16x4xf32>
    %6 = arith.mulf %2, %5 : vector<16x16x4xf32>
    %c0_5 = arith.constant 0 : index
    %c0_6 = arith.constant 0 : index
    %7 = vector.load %arg3[%c0_5, %c0_6] : memref<1x4xf32, #tpu.memory_space<vmem>>, vector<1x4xf32>
    %8 = vector.shape_cast %7 : vector<1x4xf32> to vector<1x1x4xf32>
    %9 = vector.broadcast %8 : vector<1x1x4xf32> to vector<16x16x4xf32>
    %10 = arith.addf %6, %9 : vector<16x16x4xf32>
    %cst = arith.constant 0.000000e+00 : f32
    %11 = vector.broadcast %cst : f32 to vector<16x16x4xf32>
    %12 = arith.maximumf %10, %11 : vector<16x16x4xf32>
    %cst_7 = arith.constant 0.000000e+00 : bf16
    %13 = vector.broadcast %cst_7 : bf16 to vector<18x18x4xbf16>
    %c0_8 = arith.constant 0 : index
    %c0_9 = arith.constant 0 : index
    %c0_10 = arith.constant 0 : index
    %14 = vector.load %arg14[%c0_8, %c0_9, %c0_10] : memref<18x18x4xbf16, #tpu.memory_space<vmem>>, vector<18x18x4xbf16>
    tpu.vector_store %arg14[%c0_8, %c0_9, %c0_10], %13 {strides = array<i32>} : memref<18x18x4xbf16, #tpu.memory_space<vmem>>, vector<18x18x4xbf16>,
    %cst_11 = arith.constant 0.000000e+00 : bf16
    %15 = vector.broadcast %cst_11 : bf16 to vector<18x18x4xbf16>
    %c0_12 = arith.constant 0 : index
    %c0_13 = arith.constant 0 : index
    %c0_14 = arith.constant 0 : index
    %16 = vector.load %arg15[%c0_12, %c0_13, %c0_14] : memref<18x18x4xbf16, #tpu.memory_space<vmem>>, vector<18x18x4xbf16>
    tpu.vector_store %arg15[%c0_12, %c0_13, %c0_14], %15 {strides = array<i32>} : memref<18x18x4xbf16, #tpu.memory_space<vmem>>, vector<18x18x4xbf16>,
    %17 = arith.truncf %12 : vector<16x16x4xf32> to vector<16x16x4xbf16>
    %c1 = arith.constant 1 : index
    %c1_15 = arith.constant 1 : index
    %c0_16 = arith.constant 0 : index
    %18 = vector.load %arg14[%c1, %c1_15, %c0_16] : memref<18x18x4xbf16, #tpu.memory_space<vmem>>, vector<16x16x4xbf16>
    tpu.vector_store %arg14[%c1, %c1_15, %c0_16], %17 {strides = array<i32>} : memref<18x18x4xbf16, #tpu.memory_space<vmem>>, vector<16x16x4xbf16>,
    %c1_17 = arith.constant 1 : index
    %c1_18 = arith.constant 1 : index
    %c0_19 = arith.constant 0 : index
    %19 = vector.load %arg15[%c1_17, %c1_18, %c0_19] : memref<18x18x4xbf16, #tpu.memory_space<vmem>>, vector<16x16x4xbf16>
    tpu.vector_store %arg15[%c1_17, %c1_18, %c0_19], %1 {strides = array<i32>} : memref<18x18x4xbf16, #tpu.memory_space<vmem>>, vector<16x16x4xbf16>,
    %c0_20 = arith.constant 0 : index
    %c0_21 = arith.constant 0 : index
    %c0_22 = arith.constant 0 : index
    %20 = vector.load %arg14[%c0_20, %c0_21, %c0_22] : memref<18x18x4xbf16, #tpu.memory_space<vmem>>, vector<18x18x4xbf16>
    %21 = vector.extract_strided_slice %20 {offsets = [0, 0, 0], sizes = [16, 16, 4], strides = [1, 1, 1]} : vector<18x18x4xbf16> to vector<16x16x4xbf16>
    %22 = vector.extract_strided_slice %20 {offsets = [0, 1, 0], sizes = [16, 16, 4], strides = [1, 1, 1]} : vector<18x18x4xbf16> to vector<16x16x4xbf16>
    %23 = vector.extract_strided_slice %20 {offsets = [0, 2, 0], sizes = [16, 16, 4], strides = [1, 1, 1]} : vector<18x18x4xbf16> to vector<16x16x4xbf16>
    %24 = vector.extract_strided_slice %20 {offsets = [1, 0, 0], sizes = [16, 16, 4], strides = [1, 1, 1]} : vector<18x18x4xbf16> to vector<16x16x4xbf16>
    %25 = vector.extract_strided_slice %20 {offsets = [1, 1, 0], sizes = [16, 16, 4], strides = [1, 1, 1]} : vector<18x18x4xbf16> to vector<16x16x4xbf16>
    %26 = vector.extract_strided_slice %20 {offsets = [1, 2, 0], sizes = [16, 16, 4], strides = [1, 1, 1]} : vector<18x18x4xbf16> to vector<16x16x4xbf16>
    %27 = vector.extract_strided_slice %20 {offsets = [2, 0, 0], sizes = [16, 16, 4], strides = [1, 1, 1]} : vector<18x18x4xbf16> to vector<16x16x4xbf16>
    %28 = vector.extract_strided_slice %20 {offsets = [2, 1, 0], sizes = [16, 16, 4], strides = [1, 1, 1]} : vector<18x18x4xbf16> to vector<16x16x4xbf16>
    %29 = vector.extract_strided_slice %20 {offsets = [2, 2, 0], sizes = [16, 16, 4], strides = [1, 1, 1]} : vector<18x18x4xbf16> to vector<16x16x4xbf16>
    %30 = tpu.concatenate %21, %22, %23, %24, %25, %26, %27, %28, %29 in 2 : vector<16x16x4xbf16>, vector<16x16x4xbf16>, vector<16x16x4xbf16>, vector<16x16x4xbf16>, vector<16x16x4xbf16>, vector<16x16x4xbf16>, vector<16x16x4xbf16>, vector<16x16x4xbf16>, vector<16x16x4xbf16> -> vector<16x16x36xbf16>
    %31 = vector.shape_cast %30 : vector<16x16x36xbf16> to vector<256x36xbf16>
    %c0_23 = arith.constant 0 : index
    %c0_24 = arith.constant 0 : index
    %32 = vector.load %arg4[%c0_23, %c0_24] : memref<36x8xbf16, #tpu.memory_space<vmem>>, vector<36x8xbf16>
    %cst_25 = arith.constant dense<0.000000e+00> : vector<256x8xf32>
    %33 = tpu.matmul %31, %32, %cst_25 {dimension_numbers = #tpu.dot_dimension_numbers<[1], [0], [0], [1], [0, 0, 1, 1], [], []>} : vector<256x36xbf16>, vector<36x8xbf16>, vector<256x8xf32> -> vector<256x8xf32>
    %c0_26 = arith.constant 0 : index
    %c0_27 = arith.constant 0 : index
    %34 = vector.load %arg5[%c0_26, %c0_27] : memref<1x8xf32, #tpu.memory_space<vmem>>, vector<1x8xf32>
    %35 = vector.broadcast %34 : vector<1x8xf32> to vector<256x8xf32>
    %36 = arith.addf %33, %35 : vector<256x8xf32>
    %c0_28 = arith.constant 0 : index
    %c0_29 = arith.constant 0 : index
    %c0_30 = arith.constant 0 : index
    %37 = vector.load %arg15[%c0_28, %c0_29, %c0_30] : memref<18x18x4xbf16, #tpu.memory_space<vmem>>, vector<18x18x4xbf16>
    %38 = vector.extract_strided_slice %37 {offsets = [0, 0, 0], sizes = [16, 16, 4], strides = [1, 1, 1]} : vector<18x18x4xbf16> to vector<16x16x4xbf16>
    %39 = vector.extract_strided_slice %37 {offsets = [0, 1, 0], sizes = [16, 16, 4], strides = [1, 1, 1]} : vector<18x18x4xbf16> to vector<16x16x4xbf16>
    %40 = vector.extract_strided_slice %37 {offsets = [0, 2, 0], sizes = [16, 16, 4], strides = [1, 1, 1]} : vector<18x18x4xbf16> to vector<16x16x4xbf16>
    %41 = vector.extract_strided_slice %37 {offsets = [1, 0, 0], sizes = [16, 16, 4], strides = [1, 1, 1]} : vector<18x18x4xbf16> to vector<16x16x4xbf16>
    %42 = vector.extract_strided_slice %37 {offsets = [1, 1, 0], sizes = [16, 16, 4], strides = [1, 1, 1]} : vector<18x18x4xbf16> to vector<16x16x4xbf16>
    %43 = vector.extract_strided_slice %37 {offsets = [1, 2, 0], sizes = [16, 16, 4], strides = [1, 1, 1]} : vector<18x18x4xbf16> to vector<16x16x4xbf16>
    %44 = vector.extract_strided_slice %37 {offsets = [2, 0, 0], sizes = [16, 16, 4], strides = [1, 1, 1]} : vector<18x18x4xbf16> to vector<16x16x4xbf16>
    %45 = vector.extract_strided_slice %37 {offsets = [2, 1, 0], sizes = [16, 16, 4], strides = [1, 1, 1]} : vector<18x18x4xbf16> to vector<16x16x4xbf16>
    %46 = vector.extract_strided_slice %37 {offsets = [2, 2, 0], sizes = [16, 16, 4], strides = [1, 1, 1]} : vector<18x18x4xbf16> to vector<16x16x4xbf16>
    %47 = tpu.concatenate %38, %39, %40, %41, %42, %43, %44, %45, %46 in 2 : vector<16x16x4xbf16>, vector<16x16x4xbf16>, vector<16x16x4xbf16>, vector<16x16x4xbf16>, vector<16x16x4xbf16>, vector<16x16x4xbf16>, vector<16x16x4xbf16>, vector<16x16x4xbf16>, vector<16x16x4xbf16> -> vector<16x16x36xbf16>
    %48 = vector.shape_cast %47 : vector<16x16x36xbf16> to vector<256x36xbf16>
    %c0_31 = arith.constant 0 : index
    %c0_32 = arith.constant 0 : index
    %49 = vector.load %arg6[%c0_31, %c0_32] : memref<36x8xbf16, #tpu.memory_space<vmem>>, vector<36x8xbf16>
    %cst_33 = arith.constant dense<0.000000e+00> : vector<256x8xf32>
    %50 = tpu.matmul %48, %49, %cst_33 {dimension_numbers = #tpu.dot_dimension_numbers<[1], [0], [0], [1], [0, 0, 1, 1], [], []>} : vector<256x36xbf16>, vector<36x8xbf16>, vector<256x8xf32> -> vector<256x8xf32>
    %c0_34 = arith.constant 0 : index
    %c0_35 = arith.constant 0 : index
    %51 = vector.load %arg7[%c0_34, %c0_35] : memref<1x8xf32, #tpu.memory_space<vmem>>, vector<1x8xf32>
    %52 = vector.broadcast %51 : vector<1x8xf32> to vector<256x8xf32>
    %53 = arith.addf %50, %52 : vector<256x8xf32>
    %cst_36 = arith.constant dense<0.000000e+00> : vector<8xf32>
    %54 = vector.multi_reduction <add>, %36, %cst_36 [0] : vector<256x8xf32> to vector<8xf32>
    %55 = vector.shape_cast %54 : vector<8xf32> to vector<1x8xf32>
    %56 = vector.shape_cast %55 : vector<1x8xf32> to vector<1x1x8xf32>
    %c0_37 = arith.constant 0 : index
    %c0_38 = arith.constant 0 : index
    %c0_39 = arith.constant 0 : index
    %57 = vector.load %arg10[%c0_37, %c0_38, %c0_39] : memref<1x1x8xf32, #tpu.memory_space<vmem>>, vector<1x1x8xf32>
    tpu.vector_store %arg10[%c0_37, %c0_38, %c0_39], %56 {strides = array<i32>} : memref<1x1x8xf32, #tpu.memory_space<vmem>>, vector<1x1x8xf32>,
    %58 = arith.mulf %36, %36 : vector<256x8xf32>
    %cst_40 = arith.constant dense<0.000000e+00> : vector<8xf32>
    %59 = vector.multi_reduction <add>, %58, %cst_40 [0] : vector<256x8xf32> to vector<8xf32>
    %60 = vector.shape_cast %59 : vector<8xf32> to vector<1x8xf32>
    %61 = vector.shape_cast %60 : vector<1x8xf32> to vector<1x1x8xf32>
    %c0_41 = arith.constant 0 : index
    %c0_42 = arith.constant 0 : index
    %c0_43 = arith.constant 0 : index
    %62 = vector.load %arg11[%c0_41, %c0_42, %c0_43] : memref<1x1x8xf32, #tpu.memory_space<vmem>>, vector<1x1x8xf32>
    tpu.vector_store %arg11[%c0_41, %c0_42, %c0_43], %61 {strides = array<i32>} : memref<1x1x8xf32, #tpu.memory_space<vmem>>, vector<1x1x8xf32>,
    %cst_44 = arith.constant dense<0.000000e+00> : vector<8xf32>
    %63 = vector.multi_reduction <add>, %53, %cst_44 [0] : vector<256x8xf32> to vector<8xf32>
    %64 = vector.shape_cast %63 : vector<8xf32> to vector<1x8xf32>
    %65 = vector.shape_cast %64 : vector<1x8xf32> to vector<1x1x8xf32>
    %c0_45 = arith.constant 0 : index
    %c0_46 = arith.constant 0 : index
    %c0_47 = arith.constant 0 : index
    %66 = vector.load %arg12[%c0_45, %c0_46, %c0_47] : memref<1x1x8xf32, #tpu.memory_space<vmem>>, vector<1x1x8xf32>
    tpu.vector_store %arg12[%c0_45, %c0_46, %c0_47], %65 {strides = array<i32>} : memref<1x1x8xf32, #tpu.memory_space<vmem>>, vector<1x1x8xf32>,
    %67 = arith.mulf %53, %53 : vector<256x8xf32>
    %cst_48 = arith.constant dense<0.000000e+00> : vector<8xf32>
    %68 = vector.multi_reduction <add>, %67, %cst_48 [0] : vector<256x8xf32> to vector<8xf32>
    %69 = vector.shape_cast %68 : vector<8xf32> to vector<1x8xf32>
    %70 = vector.shape_cast %69 : vector<1x8xf32> to vector<1x1x8xf32>
    %c0_49 = arith.constant 0 : index
    %c0_50 = arith.constant 0 : index
    %c0_51 = arith.constant 0 : index
    %71 = vector.load %arg13[%c0_49, %c0_50, %c0_51] : memref<1x1x8xf32, #tpu.memory_space<vmem>>, vector<1x1x8xf32>
    tpu.vector_store %arg13[%c0_49, %c0_50, %c0_51], %70 {strides = array<i32>} : memref<1x1x8xf32, #tpu.memory_space<vmem>>, vector<1x1x8xf32>,
    %72 = vector.shape_cast %36 : vector<256x8xf32> to vector<1x16x16x8xf32>
    %73 = arith.truncf %72 : vector<1x16x16x8xf32> to vector<1x16x16x8xbf16>
    %c0_52 = arith.constant 0 : index
    %c0_53 = arith.constant 0 : index
    %c0_54 = arith.constant 0 : index
    %c0_55 = arith.constant 0 : index
    %74 = vector.load %arg8[%c0_52, %c0_53, %c0_54, %c0_55] : memref<1x16x16x8xbf16, #tpu.memory_space<vmem>>, vector<1x16x16x8xbf16>
    tpu.vector_store %arg8[%c0_52, %c0_53, %c0_54, %c0_55], %73 {strides = array<i32>} : memref<1x16x16x8xbf16, #tpu.memory_space<vmem>>, vector<1x16x16x8xbf16>,
    %75 = vector.shape_cast %53 : vector<256x8xf32> to vector<1x16x16x8xf32>
    %76 = arith.truncf %75 : vector<1x16x16x8xf32> to vector<1x16x16x8xbf16>
    %c0_56 = arith.constant 0 : index
    %c0_57 = arith.constant 0 : index
    %c0_58 = arith.constant 0 : index
    %c0_59 = arith.constant 0 : index
    %77 = vector.load %arg9[%c0_56, %c0_57, %c0_58, %c0_59] : memref<1x16x16x8xbf16, #tpu.memory_space<vmem>>, vector<1x16x16x8xbf16>
    tpu.vector_store %arg9[%c0_56, %c0_57, %c0_58, %c0_59], %76 {strides = array<i32>} : memref<1x16x16x8xbf16, #tpu.memory_space<vmem>>, vector<1x16x16x8xbf16>,
    return
  }
  func.func @transform_0(%arg0: i32) -> (i32, i32, i32, i32) {
    %c0_i32 = arith.constant 0 : i32
    %c0_i32_0 = arith.constant 0 : i32
    %c0_i32_1 = arith.constant 0 : i32
    %c0_i32_2 = arith.constant 0 : i32
    return %arg0, %c0_i32, %c0_i32_0, %c0_i32_1 : i32, i32, i32, i32
  }
  func.func @transform_1(%arg0: i32) -> (i32, i32) {
    %c0_i32 = arith.constant 0 : i32
    %c0_i32_0 = arith.constant 0 : i32
    %c0_i32_1 = arith.constant 0 : i32
    return %c0_i32, %c0_i32_0 : i32, i32
  }
  func.func @transform_2(%arg0: i32) -> (i32, i32) {
    %c0_i32 = arith.constant 0 : i32
    %c0_i32_0 = arith.constant 0 : i32
    %c0_i32_1 = arith.constant 0 : i32
    return %c0_i32, %c0_i32_0 : i32, i32
  }
  func.func @transform_3(%arg0: i32) -> (i32, i32) {
    %c0_i32 = arith.constant 0 : i32
    %c0_i32_0 = arith.constant 0 : i32
    %c0_i32_1 = arith.constant 0 : i32
    return %c0_i32, %c0_i32_0 : i32, i32
  }
  func.func @transform_4(%arg0: i32) -> (i32, i32) {
    %c0_i32 = arith.constant 0 : i32
    %c0_i32_0 = arith.constant 0 : i32
    %c0_i32_1 = arith.constant 0 : i32
    return %c0_i32, %c0_i32_0 : i32, i32
  }
  func.func @transform_5(%arg0: i32) -> (i32, i32) {
    %c0_i32 = arith.constant 0 : i32
    %c0_i32_0 = arith.constant 0 : i32
    %c0_i32_1 = arith.constant 0 : i32
    return %c0_i32, %c0_i32_0 : i32, i32
  }
  func.func @transform_6(%arg0: i32) -> (i32, i32) {
    %c0_i32 = arith.constant 0 : i32
    %c0_i32_0 = arith.constant 0 : i32
    %c0_i32_1 = arith.constant 0 : i32
    return %c0_i32, %c0_i32_0 : i32, i32
  }
  func.func @transform_7(%arg0: i32) -> (i32, i32, i32, i32) {
    %c0_i32 = arith.constant 0 : i32
    %c0_i32_0 = arith.constant 0 : i32
    %c0_i32_1 = arith.constant 0 : i32
    %c0_i32_2 = arith.constant 0 : i32
    return %arg0, %c0_i32, %c0_i32_0, %c0_i32_1 : i32, i32, i32, i32
  }
  func.func @transform_8(%arg0: i32) -> (i32, i32, i32, i32) {
    %c0_i32 = arith.constant 0 : i32
    %c0_i32_0 = arith.constant 0 : i32
    %c0_i32_1 = arith.constant 0 : i32
    %c0_i32_2 = arith.constant 0 : i32
    return %arg0, %c0_i32, %c0_i32_0, %c0_i32_1 : i32, i32, i32, i32
  }
  func.func @transform_9(%arg0: i32) -> (i32, i32, i32) {
    %c0_i32 = arith.constant 0 : i32
    %c0_i32_0 = arith.constant 0 : i32
    %c0_i32_1 = arith.constant 0 : i32
    return %arg0, %c0_i32, %c0_i32_0 : i32, i32, i32
  }
  func.func @transform_10(%arg0: i32) -> (i32, i32, i32) {
    %c0_i32 = arith.constant 0 : i32
    %c0_i32_0 = arith.constant 0 : i32
    %c0_i32_1 = arith.constant 0 : i32
    return %arg0, %c0_i32, %c0_i32_0 : i32, i32, i32
  }
  func.func @transform_11(%arg0: i32) -> (i32, i32, i32) {
    %c0_i32 = arith.constant 0 : i32
    %c0_i32_0 = arith.constant 0 : i32
    %c0_i32_1 = arith.constant 0 : i32
    return %arg0, %c0_i32, %c0_i32_0 : i32, i32, i32
  }
  func.func @transform_12(%arg0: i32) -> (i32, i32, i32) {
    %c0_i32 = arith.constant 0 : i32
    %c0_i32_0 = arith.constant 0 : i32
    %c0_i32_1 = arith.constant 0 : i32
    return %arg0, %c0_i32, %c0_i32_0 : i32, i32, i32
  }
}

module attributes {stable_mosaic.version = 11 : i64} {
  func.func @_stage2_kernel(%arg0: i32, %arg1: memref<1x16x16x8xbf16, #tpu.memory_space<vmem>>, %arg2: memref<1x16x16x8xbf16, #tpu.memory_space<vmem>>, %arg3: memref<1x8xf32, #tpu.memory_space<vmem>>, %arg4: memref<1x8xf32, #tpu.memory_space<vmem>>, %arg5: memref<1x8xf32, #tpu.memory_space<vmem>>, %arg6: memref<1x8xf32, #tpu.memory_space<vmem>>, %arg7: memref<72x8xbf16, #tpu.memory_space<vmem>>, %arg8: memref<1x8xf32, #tpu.memory_space<vmem>>, %arg9: memref<1x16x16x8xf32, #tpu.memory_space<vmem>>, %arg10: memref<18x18x8xbf16, #tpu.memory_space<vmem>>) attributes {dimension_semantics = [#tpu.dimension_semantics<parallel>], iteration_bounds = array<i64: 2>, scalar_prefetch = 0 : i64, scratch_operands = 1 : i64, tpu.core_type = #tpu.core_type<tc>, window_params = [{transform_indices = @transform_0, window_bounds = array<i64: 1, 16, 16, 8>}, {transform_indices = @transform_1, window_bounds = array<i64: 1, 16, 16, 8>}, {pipeline_mode = #tpu.pipeline_mode<synchronous>, transform_indices = @transform_2, window_bounds = array<i64: 1, 8>}, {pipeline_mode = #tpu.pipeline_mode<synchronous>, transform_indices = @transform_3, window_bounds = array<i64: 1, 8>}, {pipeline_mode = #tpu.pipeline_mode<synchronous>, transform_indices = @transform_4, window_bounds = array<i64: 1, 8>}, {pipeline_mode = #tpu.pipeline_mode<synchronous>, transform_indices = @transform_5, window_bounds = array<i64: 1, 8>}, {pipeline_mode = #tpu.pipeline_mode<synchronous>, transform_indices = @transform_6, window_bounds = array<i64: 72, 8>}, {pipeline_mode = #tpu.pipeline_mode<synchronous>, transform_indices = @transform_7, window_bounds = array<i64: 1, 8>}, {transform_indices = @transform_8, window_bounds = array<i64: 1, 16, 16, 8>}]} {
    %c0 = arith.constant 0 : index
    %c0_0 = arith.constant 0 : index
    %c0_1 = arith.constant 0 : index
    %c0_2 = arith.constant 0 : index
    %0 = vector.load %arg1[%c0, %c0_0, %c0_1, %c0_2] : memref<1x16x16x8xbf16, #tpu.memory_space<vmem>>, vector<1x16x16x8xbf16>
    %1 = vector.shape_cast %0 : vector<1x16x16x8xbf16> to vector<16x16x8xbf16>
    %2 = arith.extf %1 : vector<16x16x8xbf16> to vector<16x16x8xf32>
    %c0_3 = arith.constant 0 : index
    %c0_4 = arith.constant 0 : index
    %3 = vector.load %arg3[%c0_3, %c0_4] : memref<1x8xf32, #tpu.memory_space<vmem>>, vector<1x8xf32>
    %4 = vector.shape_cast %3 : vector<1x8xf32> to vector<1x1x8xf32>
    %5 = vector.broadcast %4 : vector<1x1x8xf32> to vector<16x16x8xf32>
    %6 = arith.mulf %2, %5 : vector<16x16x8xf32>
    %c0_5 = arith.constant 0 : index
    %c0_6 = arith.constant 0 : index
    %7 = vector.load %arg4[%c0_5, %c0_6] : memref<1x8xf32, #tpu.memory_space<vmem>>, vector<1x8xf32>
    %8 = vector.shape_cast %7 : vector<1x8xf32> to vector<1x1x8xf32>
    %9 = vector.broadcast %8 : vector<1x1x8xf32> to vector<16x16x8xf32>
    %10 = arith.addf %6, %9 : vector<16x16x8xf32>
    %cst = arith.constant 0.000000e+00 : f32
    %11 = vector.broadcast %cst : f32 to vector<16x16x8xf32>
    %12 = arith.maximumf %10, %11 : vector<16x16x8xf32>
    %cst_7 = arith.constant 0.000000e+00 : bf16
    %13 = vector.broadcast %cst_7 : bf16 to vector<18x18x8xbf16>
    %c0_8 = arith.constant 0 : index
    %c0_9 = arith.constant 0 : index
    %c0_10 = arith.constant 0 : index
    %14 = vector.load %arg10[%c0_8, %c0_9, %c0_10] : memref<18x18x8xbf16, #tpu.memory_space<vmem>>, vector<18x18x8xbf16>
    tpu.vector_store %arg10[%c0_8, %c0_9, %c0_10], %13 {strides = array<i32>} : memref<18x18x8xbf16, #tpu.memory_space<vmem>>, vector<18x18x8xbf16>,
    %15 = arith.truncf %12 : vector<16x16x8xf32> to vector<16x16x8xbf16>
    %c1 = arith.constant 1 : index
    %c1_11 = arith.constant 1 : index
    %c0_12 = arith.constant 0 : index
    %16 = vector.load %arg10[%c1, %c1_11, %c0_12] : memref<18x18x8xbf16, #tpu.memory_space<vmem>>, vector<16x16x8xbf16>
    tpu.vector_store %arg10[%c1, %c1_11, %c0_12], %15 {strides = array<i32>} : memref<18x18x8xbf16, #tpu.memory_space<vmem>>, vector<16x16x8xbf16>,
    %c0_13 = arith.constant 0 : index
    %c0_14 = arith.constant 0 : index
    %c0_15 = arith.constant 0 : index
    %17 = vector.load %arg10[%c0_13, %c0_14, %c0_15] : memref<18x18x8xbf16, #tpu.memory_space<vmem>>, vector<18x18x8xbf16>
    %18 = vector.extract_strided_slice %17 {offsets = [0, 0, 0], sizes = [16, 16, 8], strides = [1, 1, 1]} : vector<18x18x8xbf16> to vector<16x16x8xbf16>
    %19 = vector.extract_strided_slice %17 {offsets = [0, 1, 0], sizes = [16, 16, 8], strides = [1, 1, 1]} : vector<18x18x8xbf16> to vector<16x16x8xbf16>
    %20 = vector.extract_strided_slice %17 {offsets = [0, 2, 0], sizes = [16, 16, 8], strides = [1, 1, 1]} : vector<18x18x8xbf16> to vector<16x16x8xbf16>
    %21 = vector.extract_strided_slice %17 {offsets = [1, 0, 0], sizes = [16, 16, 8], strides = [1, 1, 1]} : vector<18x18x8xbf16> to vector<16x16x8xbf16>
    %22 = vector.extract_strided_slice %17 {offsets = [1, 1, 0], sizes = [16, 16, 8], strides = [1, 1, 1]} : vector<18x18x8xbf16> to vector<16x16x8xbf16>
    %23 = vector.extract_strided_slice %17 {offsets = [1, 2, 0], sizes = [16, 16, 8], strides = [1, 1, 1]} : vector<18x18x8xbf16> to vector<16x16x8xbf16>
    %24 = vector.extract_strided_slice %17 {offsets = [2, 0, 0], sizes = [16, 16, 8], strides = [1, 1, 1]} : vector<18x18x8xbf16> to vector<16x16x8xbf16>
    %25 = vector.extract_strided_slice %17 {offsets = [2, 1, 0], sizes = [16, 16, 8], strides = [1, 1, 1]} : vector<18x18x8xbf16> to vector<16x16x8xbf16>
    %26 = vector.extract_strided_slice %17 {offsets = [2, 2, 0], sizes = [16, 16, 8], strides = [1, 1, 1]} : vector<18x18x8xbf16> to vector<16x16x8xbf16>
    %27 = tpu.concatenate %18, %19, %20, %21, %22, %23, %24, %25, %26 in 2 : vector<16x16x8xbf16>, vector<16x16x8xbf16>, vector<16x16x8xbf16>, vector<16x16x8xbf16>, vector<16x16x8xbf16>, vector<16x16x8xbf16>, vector<16x16x8xbf16>, vector<16x16x8xbf16>, vector<16x16x8xbf16> -> vector<16x16x72xbf16>
    %28 = vector.shape_cast %27 : vector<16x16x72xbf16> to vector<256x72xbf16>
    %c0_16 = arith.constant 0 : index
    %c0_17 = arith.constant 0 : index
    %29 = vector.load %arg7[%c0_16, %c0_17] : memref<72x8xbf16, #tpu.memory_space<vmem>>, vector<72x8xbf16>
    %cst_18 = arith.constant dense<0.000000e+00> : vector<256x8xf32>
    %30 = tpu.matmul %28, %29, %cst_18 {dimension_numbers = #tpu.dot_dimension_numbers<[1], [0], [0], [1], [0, 0, 1, 1], [], []>} : vector<256x72xbf16>, vector<72x8xbf16>, vector<256x8xf32> -> vector<256x8xf32>
    %c0_19 = arith.constant 0 : index
    %c0_20 = arith.constant 0 : index
    %31 = vector.load %arg8[%c0_19, %c0_20] : memref<1x8xf32, #tpu.memory_space<vmem>>, vector<1x8xf32>
    %32 = vector.broadcast %31 : vector<1x8xf32> to vector<256x8xf32>
    %33 = arith.addf %30, %32 : vector<256x8xf32>
    %c0_21 = arith.constant 0 : index
    %c0_22 = arith.constant 0 : index
    %c0_23 = arith.constant 0 : index
    %c0_24 = arith.constant 0 : index
    %34 = vector.load %arg2[%c0_21, %c0_22, %c0_23, %c0_24] : memref<1x16x16x8xbf16, #tpu.memory_space<vmem>>, vector<1x16x16x8xbf16>
    %35 = vector.shape_cast %34 : vector<1x16x16x8xbf16> to vector<16x16x8xbf16>
    %36 = arith.extf %35 : vector<16x16x8xbf16> to vector<16x16x8xf32>
    %37 = vector.shape_cast %36 : vector<16x16x8xf32> to vector<256x8xf32>
    %c0_25 = arith.constant 0 : index
    %c0_26 = arith.constant 0 : index
    %38 = vector.load %arg5[%c0_25, %c0_26] : memref<1x8xf32, #tpu.memory_space<vmem>>, vector<1x8xf32>
    %39 = vector.broadcast %38 : vector<1x8xf32> to vector<256x8xf32>
    %40 = arith.mulf %37, %39 : vector<256x8xf32>
    %41 = arith.addf %33, %40 : vector<256x8xf32>
    %c0_27 = arith.constant 0 : index
    %c0_28 = arith.constant 0 : index
    %42 = vector.load %arg6[%c0_27, %c0_28] : memref<1x8xf32, #tpu.memory_space<vmem>>, vector<1x8xf32>
    %43 = vector.broadcast %42 : vector<1x8xf32> to vector<256x8xf32>
    %44 = arith.addf %41, %43 : vector<256x8xf32>
    %45 = vector.shape_cast %44 : vector<256x8xf32> to vector<1x16x16x8xf32>
    %c0_29 = arith.constant 0 : index
    %c0_30 = arith.constant 0 : index
    %c0_31 = arith.constant 0 : index
    %c0_32 = arith.constant 0 : index
    %46 = vector.load %arg9[%c0_29, %c0_30, %c0_31, %c0_32] : memref<1x16x16x8xf32, #tpu.memory_space<vmem>>, vector<1x16x16x8xf32>
    tpu.vector_store %arg9[%c0_29, %c0_30, %c0_31, %c0_32], %45 {strides = array<i32>} : memref<1x16x16x8xf32, #tpu.memory_space<vmem>>, vector<1x16x16x8xf32>,
    return
  }
  func.func @transform_0(%arg0: i32) -> (i32, i32, i32, i32) {
    %c0_i32 = arith.constant 0 : i32
    %c0_i32_0 = arith.constant 0 : i32
    %c0_i32_1 = arith.constant 0 : i32
    %c0_i32_2 = arith.constant 0 : i32
    return %arg0, %c0_i32, %c0_i32_0, %c0_i32_1 : i32, i32, i32, i32
  }
  func.func @transform_1(%arg0: i32) -> (i32, i32, i32, i32) {
    %c0_i32 = arith.constant 0 : i32
    %c0_i32_0 = arith.constant 0 : i32
    %c0_i32_1 = arith.constant 0 : i32
    %c0_i32_2 = arith.constant 0 : i32
    return %arg0, %c0_i32, %c0_i32_0, %c0_i32_1 : i32, i32, i32, i32
  }
  func.func @transform_2(%arg0: i32) -> (i32, i32) {
    %c0_i32 = arith.constant 0 : i32
    %c0_i32_0 = arith.constant 0 : i32
    %c0_i32_1 = arith.constant 0 : i32
    return %c0_i32, %c0_i32_0 : i32, i32
  }
  func.func @transform_3(%arg0: i32) -> (i32, i32) {
    %c0_i32 = arith.constant 0 : i32
    %c0_i32_0 = arith.constant 0 : i32
    %c0_i32_1 = arith.constant 0 : i32
    return %c0_i32, %c0_i32_0 : i32, i32
  }
  func.func @transform_4(%arg0: i32) -> (i32, i32) {
    %c0_i32 = arith.constant 0 : i32
    %c0_i32_0 = arith.constant 0 : i32
    %c0_i32_1 = arith.constant 0 : i32
    return %c0_i32, %c0_i32_0 : i32, i32
  }
  func.func @transform_5(%arg0: i32) -> (i32, i32) {
    %c0_i32 = arith.constant 0 : i32
    %c0_i32_0 = arith.constant 0 : i32
    %c0_i32_1 = arith.constant 0 : i32
    return %c0_i32, %c0_i32_0 : i32, i32
  }
  func.func @transform_6(%arg0: i32) -> (i32, i32) {
    %c0_i32 = arith.constant 0 : i32
    %c0_i32_0 = arith.constant 0 : i32
    %c0_i32_1 = arith.constant 0 : i32
    return %c0_i32, %c0_i32_0 : i32, i32
  }
  func.func @transform_7(%arg0: i32) -> (i32, i32) {
    %c0_i32 = arith.constant 0 : i32
    %c0_i32_0 = arith.constant 0 : i32
    %c0_i32_1 = arith.constant 0 : i32
    return %c0_i32, %c0_i32_0 : i32, i32
  }
  func.func @transform_8(%arg0: i32) -> (i32, i32, i32, i32) {
    %c0_i32 = arith.constant 0 : i32
    %c0_i32_0 = arith.constant 0 : i32
    %c0_i32_1 = arith.constant 0 : i32
    %c0_i32_2 = arith.constant 0 : i32
    return %arg0, %c0_i32, %c0_i32_0, %c0_i32_1 : i32, i32, i32, i32
  }
}

</mosaic_0001>

<llo_original>
// kernel: residual_conv_forward.3
$region0: #{residual_conv_forward.3}
  #allocation0 [shape = 'u32[]', space=smem, size = 0x4, offset = 0x4, fixed_abs, tag = 'smem constant byte address 0x4 - core index']
  #allocation1 [shape = 'u32[144,128]{1,0:T(1,128)}', space=vmem, size = 0x12000, scoped, tag = 'internal scratch']
  #allocation2 [shape = 'bf16[18,18,8]{2,1,0:T(8,128)(2,1)}', space=vmem, size = 0x1b000, scoped, tag = 'scratch operand']
  %s0 = inlined_call_operand.vmem [shape: bf16[2,16,16,8], index: 0, kind: input, shape index: {}]
  %s1 = inlined_call_operand.vmem [shape: bf16[2,16,16,8], index: 1, kind: input, shape index: {}]
  %s2 = inlined_call_operand.vmem [shape: f32[1,8], index: 2, kind: input, shape index: {}]
  %s3 = inlined_call_operand.vmem [shape: f32[1,8], index: 3, kind: input, shape index: {}]
  %s4 = inlined_call_operand.vmem [shape: f32[1,8], index: 4, kind: input, shape index: {}]
  %s5 = inlined_call_operand.vmem [shape: f32[1,8], index: 5, kind: input, shape index: {}]
  %s6 = inlined_call_operand.vmem [shape: bf16[72,8], index: 6, kind: input, shape index: {}]
  %s7 = inlined_call_operand.vmem [shape: f32[1,8], index: 7, kind: input, shape index: {}]
  %s8 = inlined_call_operand.vmem [shape: f32[2,16,16,8], index: 8, kind: output, shape index: {}]
  %s9 = sld [smem:[#allocation0]]
  $region65: #{residual_conv_forward.3} parent=0
    _
  %s11 = ssub.s32 1, %s9
  %s12 = scalar_select 0, %s11, %s9
  loop: start=0, step=1, limit=4
  $region2: #{residual_conv_forward.3} parent=0 // loop_pre_header
    _
  $region3: #{residual_conv_forward.3} parent=0 // loop_header
    %s14 = sphi 0, %s18
    %p15 = scmp.ge.s32.totalorder %s14, 4
    %s24 = sphi 0, %s26
    %s27 = sphi 0, %s24
    %s28 = sphi 0, %s27
    %s44 = sphi 0, %s28
    %s50 = sphi 0, %s52
    %s53 = sphi 0, %s50
    %s54 = sphi 0, %s53
    %s70 = sphi 0, %s54
    %s74 = sphi 0, %s74
    %s76 = sphi 0, %s74
    %s77 = sphi 0, %s76
    %s91 = sphi 0, %s77
    %s95 = sphi 0, %s95
    %s97 = sphi 0, %s95
    %s98 = sphi 0, %s97
    %s112 = sphi 0, %s98
    %s116 = sphi 0, %s116
    %s118 = sphi 0, %s116
    %s119 = sphi 0, %s118
    %s133 = sphi 0, %s119
    %s137 = sphi 0, %s137
    %s139 = sphi 0, %s137
    %s140 = sphi 0, %s139
    %s154 = sphi 0, %s140
    %s158 = sphi 0, %s158
    %s160 = sphi 0, %s158
    %s161 = sphi 0, %s160
    %s175 = sphi 0, %s161
    %s179 = sphi 0, %s179
    %s181 = sphi 0, %s179
    %s182 = sphi 0, %s181
    %s196 = sphi 0, %s182
    %s202 = sphi 0, %s204
    %s205 = sphi 0, %s202
    %s206 = sphi 0, %s205
    %s222 = sphi 0, %s206
  $region4: #{residual_conv_forward.3} parent=0 // loop_header_branch
    %17 = sbr.rel (%p15) target = $region8
  $region5: #{residual_conv_forward.3} parent=0 // loop_body
    %s19 = ssub.s32 %s14, 1
    %s20 = ssub.s32 %s14, 2
    %s21 = sadd.s32 %s14, 1
    %s22 = ssub.s32 %s14, %s21
    %p23 = scmp.eq.s32.totalorder %s22, 0
    %s25 = sadd.s32 %s24, 1
    %s26 = scalar_select %p23, %s24, %s25
    %p29 = pneg %p23
    %p30 = scmp.eq.s32.totalorder %s14, 1
    %p31 = por %p29, %p30
    %p32 = scmp.ne.s32.totalorder %s24, %s27
    %p33 = scmp.eq.s32.totalorder %s14, 0
    %p34 = por %p32, %p33
    %p35 = scmp.ne.s32.totalorder %s24, %s27
    %p36 = scmp.eq.s32.totalorder %s19, 1
    %p37 = por %p35, %p36
    %p38 = scmp.ne.s32.totalorder %s27, %s28
    %p39 = scmp.eq.s32.totalorder %s19, 0
    %p40 = por %p38, %p39
    %p41 = scmp.ne.s32.totalorder %s27, %s28
    %p42 = scmp.eq.s32.totalorder %s20, 1
    %p43 = por %p41, %p42
    %p45 = scmp.ne.s32.totalorder %s28, %s44
    %p46 = scmp.eq.s32.totalorder %s20, 0
    %p47 = por %p45, %p46
    %s48 = ssub.s32 %s14, %s21
    %p49 = scmp.eq.s32.totalorder %s48, 0
    %s51 = sadd.s32 %s50, 1
    %s52 = scalar_select %p49, %s50, %s51
    %p55 = pneg %p49
    %p56 = scmp.eq.s32.totalorder %s14, 1
    %p57 = por %p55, %p56
    %p58 = scmp.ne.s32.totalorder %s50, %s53
    %p59 = scmp.eq.s32.totalorder %s14, 0
    %p60 = por %p58, %p59
    %p61 = scmp.ne.s32.totalorder %s50, %s53
    %p62 = scmp.eq.s32.totalorder %s19, 1
    %p63 = por %p61, %p62
    %p64 = scmp.ne.s32.totalorder %s53, %s54
    %p65 = scmp.eq.s32.totalorder %s19, 0
    %p66 = por %p64, %p65
    %p67 = scmp.ne.s32.totalorder %s53, %s54
    %p68 = scmp.eq.s32.totalorder %s20, 1
    %p69 = por %p67, %p68
    %p71 = scmp.ne.s32.totalorder %s54, %s70
    %p72 = scmp.eq.s32.totalorder %s20, 0
    %p73 = por %p71, %p72
    %s75 = sadd.s32 %s74, 1
    %p78 = scmp.eq.s32.totalorder %s14, 1
    %p79 = scmp.ne.s32.totalorder %s74, %s76
    %p80 = scmp.eq.s32.totalorder %s14, 0
    %p81 = por %p79, %p80
    %p82 = scmp.ne.s32.totalorder %s74, %s76
    %p83 = scmp.eq.s32.totalorder %s19, 1
    %p84 = por %p82, %p83
    %p85 = scmp.ne.s32.totalorder %s76, %s77
    %p86 = scmp.eq.s32.totalorder %s19, 0
    %p87 = por %p85, %p86
    %p88 = scmp.ne.s32.totalorder %s76, %s77
    %p89 = scmp.eq.s32.totalorder %s20, 1
    %p90 = por %p88, %p89
    %p92 = scmp.ne.s32.totalorder %s77, %s91
    %p93 = scmp.eq.s32.totalorder %s20, 0
    %p94 = por %p92, %p93
    %s96 = sadd.s32 %s95, 1
    %p99 = scmp.eq.s32.totalorder %s14, 1
    %p100 = scmp.ne.s32.totalorder %s95, %s97
    %p101 = scmp.eq.s32.totalorder %s14, 0
    %p102 = por %p100, %p101
    %p103 = scmp.ne.s32.totalorder %s95, %s97
    %p104 = scmp.eq.s32.totalorder %s19, 1
    %p105 = por %p103, %p104
    %p106 = scmp.ne.s32.totalorder %s97, %s98
    %p107 = scmp.eq.s32.totalorder %s19, 0
    %p108 = por %p106, %p107
    %p109 = scmp.ne.s32.totalorder %s97, %s98
    %p110 = scmp.eq.s32.totalorder %s20, 1
    %p111 = por %p109, %p110
    %p113 = scmp.ne.s32.totalorder %s98, %s112
    %p114 = scmp.eq.s32.totalorder %s20, 0
    %p115 = por %p113, %p114
    %s117 = sadd.s32 %s116, 1
    %p120 = scmp.eq.s32.totalorder %s14, 1
    %p121 = scmp.ne.s32.totalorder %s116, %s118
    %p122 = scmp.eq.s32.totalorder %s14, 0
    %p123 = por %p121, %p122
    %p124 = scmp.ne.s32.totalorder %s116, %s118
    %p125 = scmp.eq.s32.totalorder %s19, 1
    %p126 = por %p124, %p125
    %p127 = scmp.ne.s32.totalorder %s118, %s119
    %p128 = scmp.eq.s32.totalorder %s19, 0
    %p129 = por %p127, %p128
    %p130 = scmp.ne.s32.totalorder %s118, %s119
    %p131 = scmp.eq.s32.totalorder %s20, 1
    %p132 = por %p130, %p131
    %p134 = scmp.ne.s32.totalorder %s119, %s133
    %p135 = scmp.eq.s32.totalorder %s20, 0
    %p136 = por %p134, %p135
    %s138 = sadd.s32 %s137, 1
    %p141 = scmp.eq.s32.totalorder %s14, 1
    %p142 = scmp.ne.s32.totalorder %s137, %s139
    %p143 = scmp.eq.s32.totalorder %s14, 0
    %p144 = por %p142, %p143
    %p145 = scmp.ne.s32.totalorder %s137, %s139
    %p146 = scmp.eq.s32.totalorder %s19, 1
    %p147 = por %p145, %p146
    %p148 = scmp.ne.s32.totalorder %s139, %s140
    %p149 = scmp.eq.s32.totalorder %s19, 0
    %p150 = por %p148, %p149
    %p151 = scmp.ne.s32.totalorder %s139, %s140
    %p152 = scmp.eq.s32.totalorder %s20, 1
    %p153 = por %p151, %p152
    %p155 = scmp.ne.s32.totalorder %s140, %s154
    %p156 = scmp.eq.s32.totalorder %s20, 0
    %p157 = por %p155, %p156
    %s159 = sadd.s32 %s158, 1
    %p162 = scmp.eq.s32.totalorder %s14, 1
    %p163 = scmp.ne.s32.totalorder %s158, %s160
    %p164 = scmp.eq.s32.totalorder %s14, 0
    %p165 = por %p163, %p164
    %p166 = scmp.ne.s32.totalorder %s158, %s160
    %p167 = scmp.eq.s32.totalorder %s19, 1
    %p168 = por %p166, %p167
    %p169 = scmp.ne.s32.totalorder %s160, %s161
    %p170 = scmp.eq.s32.totalorder %s19, 0
    %p171 = por %p169, %p170
    %p172 = scmp.ne.s32.totalorder %s160, %s161
    %p173 = scmp.eq.s32.totalorder %s20, 1
    %p174 = por %p172, %p173
    %p176 = scmp.ne.s32.totalorder %s161, %s175
    %p177 = scmp.eq.s32.totalorder %s20, 0
    %p178 = por %p176, %p177
    %s180 = sadd.s32 %s179, 1
    %p183 = scmp.eq.s32.totalorder %s14, 1
    %p184 = scmp.ne.s32.totalorder %s179, %s181
    %p185 = scmp.eq.s32.totalorder %s14, 0
    %p186 = por %p184, %p185
    %p187 = scmp.ne.s32.totalorder %s179, %s181
    %p188 = scmp.eq.s32.totalorder %s19, 1
    %p189 = por %p187, %p188
    %p190 = scmp.ne.s32.totalorder %s181, %s182
    %p191 = scmp.eq.s32.totalorder %s19, 0
    %p192 = por %p190, %p191
    %p193 = scmp.ne.s32.totalorder %s181, %s182
    %p194 = scmp.eq.s32.totalorder %s20, 1
    %p195 = por %p193, %p194
    %p197 = scmp.ne.s32.totalorder %s182, %s196
    %p198 = scmp.eq.s32.totalorder %s20, 0
    %p199 = por %p197, %p198
    %s200 = ssub.s32 %s14, %s21
    %p201 = scmp.eq.s32.totalorder %s200, 0
    %s203 = sadd.s32 %s202, 1
    %s204 = scalar_select %p201, %s202, %s203
    %p207 = pneg %p201
    %p208 = scmp.eq.s32.totalorder %s14, 1
    %p209 = por %p207, %p208
    %p210 = scmp.ne.s32.totalorder %s202, %s205
    %p211 = scmp.eq.s32.totalorder %s14, 0
    %p212 = por %p210, %p211
    %p213 = scmp.ne.s32.totalorder %s202, %s205
    %p214 = scmp.eq.s32.totalorder %s19, 1
    %p215 = por %p213, %p214
    %p216 = scmp.ne.s32.totalorder %s205, %s206
    %p217 = scmp.eq.s32.totalorder %s19, 0
    %p218 = por %p216, %p217
    %p219 = scmp.ne.s32.totalorder %s205, %s206
    %p220 = scmp.eq.s32.totalorder %s20, 1
    %p221 = por %p219, %p220
    %p223 = scmp.ne.s32.totalorder %s206, %s222
    %p224 = scmp.eq.s32.totalorder %s20, 0
    %p225 = por %p223, %p224
    %p226 = scmp.le.s32.totalorder 1, %s14
    %p227 = scmp.lt.s32.totalorder %s14, 3
    %p228 = pnand %p226, %p227
    %p229 = pneg %p228
    // Predicated region
    $region9: #{residual_conv_forward.3} parent=5 // pred_check
      _
    $region10: #{residual_conv_forward.3} parent=5 // pred_check_branch
      %231 = sbr.rel (%p228) target = $region12
    $region11: #{residual_conv_forward.3} parent=5 // pred_region
      %s232 = ssub.s32 %s14, 1
      // Predicated region
      $region13: #{residual_conv_forward.3} parent=11 // pred_check
        %p233 = pneg %p87
      $region14: #{residual_conv_forward.3} parent=11 // pred_check_branch
        %235 = sbr.rel (%p233) target = $region16
      $region15: #{residual_conv_forward.3} parent=11 // pred_region
        _
      $region16: #{residual_conv_forward.3} parent=11 // pred_fallthru
        _
      // Predicated region
      $region17: #{residual_conv_forward.3} parent=11 // pred_check
        %p236 = pneg %p108
      $region18: #{residual_conv_forward.3} parent=11 // pred_check_branch
        %238 = sbr.rel (%p236) target = $region20
      $region19: #{residual_conv_forward.3} parent=11 // pred_region
        _
      $region20: #{residual_conv_forward.3} parent=11 // pred_fallthru
        _
      // Predicated region
      $region21: #{residual_conv_forward.3} parent=11 // pred_check
        %p239 = pneg %p129
      $region22: #{residual_conv_forward.3} parent=11 // pred_check_branch
        %241 = sbr.rel (%p239) target = $region24
      $region23: #{residual_conv_forward.3} parent=11 // pred_region
        _
      $region24: #{residual_conv_forward.3} parent=11 // pred_fallthru
        _
      // Predicated region
      $region25: #{residual_conv_forward.3} parent=11 // pred_check
        %p242 = pneg %p150
      $region26: #{residual_conv_forward.3} parent=11 // pred_check_branch
        %244 = sbr.rel (%p242) target = $region28
      $region27: #{residual_conv_forward.3} parent=11 // pred_region
        _
      $region28: #{residual_conv_forward.3} parent=11 // pred_fallthru
        _
      // Predicated region
      $region29: #{residual_conv_forward.3} parent=11 // pred_check
        %p245 = pneg %p171
      $region30: #{residual_conv_forward.3} parent=11 // pred_check_branch
        %247 = sbr.rel (%p245) target = $region32
      $region31: #{residual_conv_forward.3} parent=11 // pred_region
        _
      $region32: #{residual_conv_forward.3} parent=11 // pred_fallthru
        _
      // Predicated region
      $region33: #{residual_conv_forward.3} parent=11 // pred_check
        %p248 = pneg %p192
      $region34: #{residual_conv_forward.3} parent=11 // pred_check_branch
        %250 = sbr.rel (%p248) target = $region36
      $region35: #{residual_conv_forward.3} parent=11 // pred_region
        _
      $region36: #{residual_conv_forward.3} parent=11 // pred_fallthru
        _
    $region12: #{residual_conv_forward.3} parent=5 // pred_fallthru
      _
    %p251 = scmp.lt.s32.totalorder %s14, 2
    // Predicated region
    $region37: #{residual_conv_forward.3} parent=5 // pred_check
      %p252 = pneg %p251
    $region38: #{residual_conv_forward.3} parent=5 // pred_check_branch
      %254 = sbr.rel (%p252) target = $region40
    $region39: #{residual_conv_forward.3} parent=5 // pred_region
      // Predicated region
      $region41: #{residual_conv_forward.3} parent=39 // pred_check
        %p255 = pneg %p34
      $region42: #{residual_conv_forward.3} parent=39 // pred_check_branch
        %257 = sbr.rel (%p255) target = $region44
      $region43: #{residual_conv_forward.3} parent=39 // pred_region
        %p258 = scmp.lt.s32.totalorder %s14, 1
        %s259 = scalar_select %p258, %s14, 1
        %s260 = smul.addr %s259, 32
        %s261 = smul.addr %s260, 4
        %s262 = scalar_lea.vmem %s0, %s261
      $region44: #{residual_conv_forward.3} parent=39 // pred_fallthru
        _
      // Predicated region
      $region45: #{residual_conv_forward.3} parent=39 // pred_check
        %p263 = pneg %p60
      $region46: #{residual_conv_forward.3} parent=39 // pred_check_branch
        %265 = sbr.rel (%p263) target = $region48
      $region47: #{residual_conv_forward.3} parent=39 // pred_region
        %p266 = scmp.lt.s32.totalorder %s14, 1
        %s267 = scalar_select %p266, %s14, 1
        %s268 = smul.addr %s267, 32
        %s269 = smul.addr %s268, 4
        %s270 = scalar_lea.vmem %s1, %s269
      $region48: #{residual_conv_forward.3} parent=39 // pred_fallthru
        _
    $region40: #{residual_conv_forward.3} parent=5 // pred_fallthru
      _
    %p271 = scmp.le.s32.totalorder 1, %s14
    %p272 = scmp.lt.s32.totalorder %s14, 3
    %p273 = pnand %p271, %p272
    %p274 = pneg %p273
    // Predicated region
    $region49: #{residual_conv_forward.3} parent=5 // pred_check
      _
    $region50: #{residual_conv_forward.3} parent=5 // pred_check_branch
      %276 = sbr.rel (%p273) target = $region52
    $region51: #{residual_conv_forward.3} parent=5 // pred_region
      %s277 = ssub.s32 %s14, 1
      %p278 = scmp.lt.s32.totalorder %s19, 1
      %s279 = scalar_select %p278, %s19, 1
      %s280 = smul.addr %s279, 32
      %s281 = smul.addr %s280, 4
      %s282 = scalar_lea.vmem %s0, %s281
      %p283 = pneg %p40
      %p284 = pneg %p37
      %p285 = scmp.lt.s32.totalorder %s19, 1
      %s286 = scalar_select %p285, %s19, 1
      %s287 = smul.addr %s286, 32
      %s288 = smul.addr %s287, 4
      %s289 = scalar_lea.vmem %s1, %s288
      %p290 = pneg %p66
      %p291 = pneg %p63
      %p292 = pneg %p87
      %p293 = pneg %p84
      %p294 = pneg %p108
      %p295 = pneg %p105
      %p296 = pneg %p129
      %p297 = pneg %p126
      %p298 = pneg %p150
      %p299 = pneg %p147
      %p300 = pneg %p171
      %p301 = pneg %p168
      %p302 = pneg %p192
      %p303 = pneg %p189
      %p304 = pneg %p218
      %p305 = pneg %p215
      %p306 = scmp.lt.s32.totalorder %s19, 1
      %s307 = scalar_select %p306, %s19, 1
      %s308 = smul.addr %s307, 32
      %s309 = smul.addr %s308, 8
      %s310 = scalar_lea.vmem %s8, %s309
      %p311 = scmp.lt.s32.totalorder %s19, 1
      %s312 = scalar_select %p311, %s19, 1
      %s313 = smul.addr %s312, 32
      %s314 = smul.addr %s313, 4
      %s315 = scalar_lea.vmem %s0, %s314
      %p316 = scmp.lt.s32.totalorder %s19, 1
      %s317 = scalar_select %p316, %s19, 1
      %s318 = smul.addr %s317, 32
      %s319 = smul.addr %s318, 4
      %s320 = scalar_lea.vmem %s1, %s319
      %p321 = scmp.lt.s32.totalorder %s19, 1
      %s322 = scalar_select %p321, %s19, 1
      %s323 = smul.addr %s322, 32
      %s324 = smul.addr %s323, 8
      %s325 = scalar_lea.vmem %s8, %s324
      %v327 = vld [vmem:[%s315] sm:$0xf]
      %v328 = vld [vmem:[%s315 + $0x4] sm:$0xf]
      %v329 = vld [vmem:[%s315 + $0x8] sm:$0xf]
      %v330 = vld [vmem:[%s315 + $0xc] sm:$0xf]
      %v331 = vld [vmem:[%s315 + $0x10] sm:$0xf]
      %v332 = vld [vmem:[%s315 + $0x14] sm:$0xf]
      %v333 = vld [vmem:[%s315 + $0x18] sm:$0xf]
      %v334 = vld [vmem:[%s315 + $0x1c] sm:$0xf]
      %v335 = vld [vmem:[%s315 + $0x20] sm:$0xf]
      %v336 = vld [vmem:[%s315 + $0x24] sm:$0xf]
      %v337 = vld [vmem:[%s315 + $0x28] sm:$0xf]
      %v338 = vld [vmem:[%s315 + $0x2c] sm:$0xf]
      %v339 = vld [vmem:[%s315 + $0x30] sm:$0xf]
      %v340 = vld [vmem:[%s315 + $0x34] sm:$0xf]
      %v341 = vld [vmem:[%s315 + $0x38] sm:$0xf]
      %v342 = vld [vmem:[%s315 + $0x3c] sm:$0xf]
      %v343 = vld [vmem:[%s315 + $0x40] sm:$0xf]
      %v344 = vld [vmem:[%s315 + $0x44] sm:$0xf]
      %v345 = vld [vmem:[%s315 + $0x48] sm:$0xf]
      %v346 = vld [vmem:[%s315 + $0x4c] sm:$0xf]
      %v347 = vld [vmem:[%s315 + $0x50] sm:$0xf]
      %v348 = vld [vmem:[%s315 + $0x54] sm:$0xf]
      %v349 = vld [vmem:[%s315 + $0x58] sm:$0xf]
      %v350 = vld [vmem:[%s315 + $0x5c] sm:$0xf]
      %v351 = vld [vmem:[%s315 + $0x60] sm:$0xf]
      %v352 = vld [vmem:[%s315 + $0x64] sm:$0xf]
      %v353 = vld [vmem:[%s315 + $0x68] sm:$0xf]
      %v354 = vld [vmem:[%s315 + $0x6c] sm:$0xf]
      %v355 = vld [vmem:[%s315 + $0x70] sm:$0xf]
      %v356 = vld [vmem:[%s315 + $0x74] sm:$0xf]
      %v357 = vld [vmem:[%s315 + $0x78] sm:$0xf]
      %v358 = vld [vmem:[%s315 + $0x7c] sm:$0xf]
      %v359 = vunpack.c.l.bf16 %v327
      %v360 = vunpack.c.l.bf16 %v328
      %v361 = vunpack.c.l.bf16 %v329
      %v362 = vunpack.c.l.bf16 %v330
      %v363 = vunpack.c.l.bf16 %v331
      %v364 = vunpack.c.l.bf16 %v332
      %v365 = vunpack.c.l.bf16 %v333
      %v366 = vunpack.c.l.bf16 %v334
      %v367 = vunpack.c.l.bf16 %v335
      %v368 = vunpack.c.l.bf16 %v336
      %v369 = vunpack.c.l.bf16 %v337
      %v370 = vunpack.c.l.bf16 %v338
      %v371 = vunpack.c.l.bf16 %v339
      %v372 = vunpack.c.l.bf16 %v340
      %v373 = vunpack.c.l.bf16 %v341
      %v374 = vunpack.c.l.bf16 %v342
      %v375 = vunpack.c.l.bf16 %v343
      %v376 = vunpack.c.l.bf16 %v344
      %v377 = vunpack.c.l.bf16 %v345
      %v378 = vunpack.c.l.bf16 %v346
      %v379 = vunpack.c.l.bf16 %v347
      %v380 = vunpack.c.l.bf16 %v348
      %v381 = vunpack.c.l.bf16 %v349
      %v382 = vunpack.c.l.bf16 %v350
      %v383 = vunpack.c.l.bf16 %v351
      %v384 = vunpack.c.l.bf16 %v352
      %v385 = vunpack.c.l.bf16 %v353
      %v386 = vunpack.c.l.bf16 %v354
      %v387 = vunpack.c.l.bf16 %v355
      %v388 = vunpack.c.l.bf16 %v356
      %v389 = vunpack.c.l.bf16 %v357
      %v390 = vunpack.c.l.bf16 %v358
      %v391 = vld [vmem:[%s2] sm:$0x1]
      %v393 = vlaneseq
      %v394 = vshrl.u32 %v393, 7
      %v395 = vsub.s32 0, %v394
      %v396 = vrot.slane %v391, %v395
      %v398 = vmul.f32 %v359, %v396
      %v399 = vmul.f32 %v360, %v396
      %v400 = vmul.f32 %v361, %v396
      %v401 = vmul.f32 %v362, %v396
      %v402 = vmul.f32 %v363, %v396
      %v403 = vmul.f32 %v364, %v396
      %v404 = vmul.f32 %v365, %v396
      %v405 = vmul.f32 %v366, %v396
      %v406 = vmul.f32 %v367, %v396
      %v407 = vmul.f32 %v368, %v396
      %v408 = vmul.f32 %v369, %v396
      %v409 = vmul.f32 %v370, %v396
      %v410 = vmul.f32 %v371, %v396
      %v411 = vmul.f32 %v372, %v396
      %v412 = vmul.f32 %v373, %v396
      %v413 = vmul.f32 %v374, %v396
      %v414 = vmul.f32 %v375, %v396
      %v415 = vmul.f32 %v376, %v396
      %v416 = vmul.f32 %v377, %v396
      %v417 = vmul.f32 %v378, %v396
      %v418 = vmul.f32 %v379, %v396
      %v419 = vmul.f32 %v380, %v396
      %v420 = vmul.f32 %v381, %v396
      %v421 = vmul.f32 %v382, %v396
      %v422 = vmul.f32 %v383, %v396
      %v423 = vmul.f32 %v384, %v396
      %v424 = vmul.f32 %v385, %v396
      %v425 = vmul.f32 %v386, %v396
      %v426 = vmul.f32 %v387, %v396
      %v427 = vmul.f32 %v388, %v396
      %v428 = vmul.f32 %v389, %v396
      %v429 = vmul.f32 %v390, %v396
      %v430 = vld [vmem:[%s3] sm:$0x1]
      %v432 = vlaneseq
      %v433 = vshrl.u32 %v432, 7
      %v434 = vsub.s32 0, %v433
      %v435 = vrot.slane %v430, %v434
      %v437 = vadd.f32 %v398, %v435
      %v438 = vadd.f32 %v399, %v435
      %v439 = vadd.f32 %v400, %v435
      %v440 = vadd.f32 %v401, %v435
      %v441 = vadd.f32 %v402, %v435
      %v442 = vadd.f32 %v403, %v435
      %v443 = vadd.f32 %v404, %v435
      %v444 = vadd.f32 %v405, %v435
      %v445 = vadd.f32 %v406, %v435
      %v446 = vadd.f32 %v407, %v435
      %v447 = vadd.f32 %v408, %v435
      %v448 = vadd.f32 %v409, %v435
      %v449 = vadd.f32 %v410, %v435
      %v450 = vadd.f32 %v411, %v435
      %v451 = vadd.f32 %v412, %v435
      %v452 = vadd.f32 %v413, %v435
      %v453 = vadd.f32 %v414, %v435
      %v454 = vadd.f32 %v415, %v435
      %v455 = vadd.f32 %v416, %v435
      %v456 = vadd.f32 %v417, %v435
      %v457 = vadd.f32 %v418, %v435
      %v458 = vadd.f32 %v419, %v435
      %v459 = vadd.f32 %v420, %v435
      %v460 = vadd.f32 %v421, %v435
      %v461 = vadd.f32 %v422, %v435
      %v462 = vadd.f32 %v423, %v435
      %v463 = vadd.f32 %v424, %v435
      %v464 = vadd.f32 %v425, %v435
      %v465 = vadd.f32 %v426, %v435
      %v466 = vadd.f32 %v427, %v435
      %v467 = vadd.f32 %v428, %v435
      %v468 = vadd.f32 %v429, %v435
      %v469 = vmax.f32 %v437, 0.0
      %v470 = vmax.f32 %v438, 0.0
      %v471 = vmax.f32 %v439, 0.0
      %v472 = vmax.f32 %v440, 0.0
      %v473 = vmax.f32 %v441, 0.0
      %v474 = vmax.f32 %v442, 0.0
      %v475 = vmax.f32 %v443, 0.0
      %v476 = vmax.f32 %v444, 0.0
      %v477 = vmax.f32 %v445, 0.0
      %v478 = vmax.f32 %v446, 0.0
      %v479 = vmax.f32 %v447, 0.0
      %v480 = vmax.f32 %v448, 0.0
      %v481 = vmax.f32 %v449, 0.0
      %v482 = vmax.f32 %v450, 0.0
      %v483 = vmax.f32 %v451, 0.0
      %v484 = vmax.f32 %v452, 0.0
      %v485 = vmax.f32 %v453, 0.0
      %v486 = vmax.f32 %v454, 0.0
      %v487 = vmax.f32 %v455, 0.0
      %v488 = vmax.f32 %v456, 0.0
      %v489 = vmax.f32 %v457, 0.0
      %v490 = vmax.f32 %v458, 0.0
      %v491 = vmax.f32 %v459, 0.0
      %v492 = vmax.f32 %v460, 0.0
      %v493 = vmax.f32 %v461, 0.0
      %v494 = vmax.f32 %v462, 0.0
      %v495 = vmax.f32 %v463, 0.0
      %v496 = vmax.f32 %v464, 0.0
      %v497 = vmax.f32 %v465, 0.0
      %v498 = vmax.f32 %v466, 0.0
      %v499 = vmax.f32 %v467, 0.0
      %v500 = vmax.f32 %v468, 0.0
      %vm501 = vcmask 60416
      %502 = vst.msk [vmem:[#allocation2] sm:$0xf] %vm501, 0
      %503 = vst.msk [vmem:[#allocation2 + $0x4] sm:$0xf] %vm501, 0
      %vm504 = vcmask 57344
      %505 = vst.msk [vmem:[#allocation2 + $0x8] sm:$0x1] %vm504, 0
      %506 = vst.msk [vmem:[#allocation2 + $0xc] sm:$0xf] %vm501, 0
      %507 = vst.msk [vmem:[#allocation2 + $0x10] sm:$0xf] %vm501, 0
      %508 = vst.msk [vmem:[#allocation2 + $0x14] sm:$0x1] %vm504, 0
      %509 = vst.msk [vmem:[#allocation2 + $0x18] sm:$0xf] %vm501, 0
      %510 = vst.msk [vmem:[#allocation2 + $0x1c] sm:$0xf] %vm501, 0
      %511 = vst.msk [vmem:[#allocation2 + $0x20] sm:$0x1] %vm504, 0
      %512 = vst.msk [vmem:[#allocation2 + $0x24] sm:$0xf] %vm501, 0
      %513 = vst.msk [vmem:[#allocation2 + $0x28] sm:$0xf] %vm501, 0
      %514 = vst.msk [vmem:[#allocation2 + $0x2c] sm:$0x1] %vm504, 0
      %515 = vst.msk [vmem:[#allocation2 + $0x30] sm:$0xf] %vm501, 0
      %516 = vst.msk [vmem:[#allocation2 + $0x34] sm:$0xf] %vm501, 0
      %517 = vst.msk [vmem:[#allocation2 + $0x38] sm:$0x1] %vm504, 0
      %518 = vst.msk [vmem:[#allocation2 + $0x3c] sm:$0xf] %vm501, 0
      %519 = vst.msk [vmem:[#allocation2 + $0x40] sm:$0xf] %vm501, 0
      %520 = vst.msk [vmem:[#allocation2 + $0x44] sm:$0x1] %vm504, 0
      %521 = vst.msk [vmem:[#allocation2 + $0x48] sm:$0xf] %vm501, 0
      %522 = vst.msk [vmem:[#allocation2 + $0x4c] sm:$0xf] %vm501, 0
      %523 = vst.msk [vmem:[#allocation2 + $0x50] sm:$0x1] %vm504, 0
      %524 = vst.msk [vmem:[#allocation2 + $0x54] sm:$0xf] %vm501, 0
      %525 = vst.msk [vmem:[#allocation2 + $0x58] sm:$0xf] %vm501, 0
      %526 = vst.msk [vmem:[#allocation2 + $0x5c] sm:$0x1] %vm504, 0
      %527 = vst.msk [vmem:[#allocation2 + $0x60] sm:$0xf] %vm501, 0
      %528 = vst.msk [vmem:[#allocation2 + $0x64] sm:$0xf] %vm501, 0
      %529 = vst.msk [vmem:[#allocation2 + $0x68] sm:$0x1] %vm504, 0
      %530 = vst.msk [vmem:[#allocation2 + $0x6c] sm:$0xf] %vm501, 0
      %531 = vst.msk [vmem:[#allocation2 + $0x70] sm:$0xf] %vm501, 0
      %532 = vst.msk [vmem:[#allocation2 + $0x74] sm:$0x1] %vm504, 0
      %533 = vst.msk [vmem:[#allocation2 + $0x78] sm:$0xf] %vm501, 0
      %534 = vst.msk [vmem:[#allocation2 + $0x7c] sm:$0xf] %vm501, 0
      %535 = vst.msk [vmem:[#allocation2 + $0x80] sm:$0x1] %vm504, 0
      %536 = vst.msk [vmem:[#allocation2 + $0x84] sm:$0xf] %vm501, 0
      %537 = vst.msk [vmem:[#allocation2 + $0x88] sm:$0xf] %vm501, 0
      %538 = vst.msk [vmem:[#allocation2 + $0x8c] sm:$0x1] %vm504, 0
      %539 = vst.msk [vmem:[#allocation2 + $0x90] sm:$0xf] %vm501, 0
      %540 = vst.msk [vmem:[#allocation2 + $0x94] sm:$0xf] %vm501, 0
      %541 = vst.msk [vmem:[#allocation2 + $0x98] sm:$0x1] %vm504, 0
      %542 = vst.msk [vmem:[#allocation2 + $0x9c] sm:$0xf] %vm501, 0
      %543 = vst.msk [vmem:[#allocation2 + $0xa0] sm:$0xf] %vm501, 0
      %544 = vst.msk [vmem:[#allocation2 + $0xa4] sm:$0x1] %vm504, 0
      %545 = vst.msk [vmem:[#allocation2 + $0xa8] sm:$0xf] %vm501, 0
      %546 = vst.msk [vmem:[#allocation2 + $0xac] sm:$0xf] %vm501, 0
      %547 = vst.msk [vmem:[#allocation2 + $0xb0] sm:$0x1] %vm504, 0
      %548 = vst.msk [vmem:[#allocation2 + $0xb4] sm:$0xf] %vm501, 0
      %549 = vst.msk [vmem:[#allocation2 + $0xb8] sm:$0xf] %vm501, 0
      %550 = vst.msk [vmem:[#allocation2 + $0xbc] sm:$0x1] %vm504, 0
      %551 = vst.msk [vmem:[#allocation2 + $0xc0] sm:$0xf] %vm501, 0
      %552 = vst.msk [vmem:[#allocation2 + $0xc4] sm:$0xf] %vm501, 0
      %553 = vst.msk [vmem:[#allocation2 + $0xc8] sm:$0x1] %vm504, 0
      %554 = vst.msk [vmem:[#allocation2 + $0xcc] sm:$0xf] %vm501, 0
      %555 = vst.msk [vmem:[#allocation2 + $0xd0] sm:$0xf] %vm501, 0
      %556 = vst.msk [vmem:[#allocation2 + $0xd4] sm:$0x1] %vm504, 0
      %v557 = vpack.c.bf16 %v470, %v469
      %v558 = vpack.c.bf16 %v472, %v471
      %v559 = vpack.c.bf16 %v474, %v473
      %v560 = vpack.c.bf16 %v476, %v475
      %v561 = vpack.c.bf16 %v478, %v477
      %v562 = vpack.c.bf16 %v480, %v479
      %v563 = vpack.c.bf16 %v482, %v481
      %v564 = vpack.c.bf16 %v484, %v483
      %v565 = vpack.c.bf16 %v486, %v485
      %v566 = vpack.c.bf16 %v488, %v487
      %v567 = vpack.c.bf16 %v490, %v489
      %v568 = vpack.c.bf16 %v492, %v491
      %v569 = vpack.c.bf16 %v494, %v493
      %v570 = vpack.c.bf16 %v496, %v495
      %v571 = vpack.c.bf16 %v498, %v497
      %v572 = vpack.c.bf16 %v500, %v499
      %v589 = vunpack.c.l.b16 %v557
      %v590 = vunpack.c.h.b16 %v557
      %v591 = vunpack.c.l.b16 %v558
      %v592 = vunpack.c.h.b16 %v558
      %v593 = vunpack.c.l.b16 %v559
      %v594 = vunpack.c.h.b16 %v559
      %v595 = vunpack.c.l.b16 %v560
      %v596 = vunpack.c.h.b16 %v560
      %v597 = vunpack.c.l.b16 %v561
      %v598 = vunpack.c.h.b16 %v561
      %v599 = vunpack.c.l.b16 %v562
      %v600 = vunpack.c.h.b16 %v562
      %v601 = vunpack.c.l.b16 %v563
      %v602 = vunpack.c.h.b16 %v563
      %v603 = vunpack.c.l.b16 %v564
      %v604 = vunpack.c.h.b16 %v564
      %v605 = vunpack.c.l.b16 %v565
      %v606 = vunpack.c.h.b16 %v565
      %v607 = vunpack.c.l.b16 %v566
      %v608 = vunpack.c.h.b16 %v566
      %v609 = vunpack.c.l.b16 %v567
      %v610 = vunpack.c.h.b16 %v567
      %v611 = vunpack.c.l.b16 %v568
      %v612 = vunpack.c.h.b16 %v568
      %v613 = vunpack.c.l.b16 %v569
      %v614 = vunpack.c.h.b16 %v569
      %v615 = vunpack.c.l.b16 %v570
      %v616 = vunpack.c.h.b16 %v570
      %v617 = vunpack.c.l.b16 %v571
      %v618 = vunpack.c.h.b16 %v571
      %v619 = vunpack.c.l.b16 %v572
      %v620 = vunpack.c.h.b16 %v572
      %v621 = vpack.c.b16 %v589, %v589
      %v622 = vpack.c.b16 %v590, %v590
      %v623 = vpack.c.b16 %v591, %v591
      %v624 = vpack.c.b16 %v592, %v592
      %v625 = vpack.c.b16 %v593, %v593
      %v626 = vpack.c.b16 %v594, %v594
      %v627 = vpack.c.b16 %v595, %v595
      %v628 = vpack.c.b16 %v596, %v596
      %v629 = vpack.c.b16 %v597, %v597
      %v630 = vpack.c.b16 %v598, %v598
      %v631 = vpack.c.b16 %v599, %v599
      %v632 = vpack.c.b16 %v600, %v600
      %v633 = vpack.c.b16 %v601, %v601
      %v634 = vpack.c.b16 %v602, %v602
      %v635 = vpack.c.b16 %v603, %v603
      %v636 = vpack.c.b16 %v604, %v604
      %v637 = vpack.c.b16 %v605, %v605
      %v638 = vpack.c.b16 %v606, %v606
      %v639 = vpack.c.b16 %v607, %v607
      %v640 = vpack.c.b16 %v608, %v608
      %v641 = vpack.c.b16 %v609, %v609
      %v642 = vpack.c.b16 %v610, %v610
      %v643 = vpack.c.b16 %v611, %v611
      %v644 = vpack.c.b16 %v612, %v612
      %v645 = vpack.c.b16 %v613, %v613
      %v646 = vpack.c.b16 %v614, %v614
      %v647 = vpack.c.b16 %v615, %v615
      %v648 = vpack.c.b16 %v616, %v616
      %v649 = vpack.c.b16 %v617, %v617
      %v650 = vpack.c.b16 %v618, %v618
      %v651 = vpack.c.b16 %v619, %v619
      %v652 = vpack.c.b16 %v620, %v620
      %vm653 = vsmask.f32 256
      %vm654 = vsmask.f32 4368
      %vm655 = vmor %vm653, %vm654
      %v657 = vshrl.u32 %v621, 16
      %v659 = vrot.slane %v657, 7
      %v660 = vshll.u32 %v621, 16
      %v662 = vor.u32 %v659, %v660
      %v663 = vrot.slane %v659, 4
      %v665 = vshrl.u32 %v622, 16
      %v667 = vrot.slane %v665, 7
      %v668 = vshll.u32 %v622, 16
      %v670 = vor.u32 %v667, %v668
      %v671 = vsel %vm655, %v663, %v670
      %v672 = vrot.slane %v667, 4
      %v674 = vshrl.u32 %v623, 16
      %v676 = vrot.slane %v674, 7
      %v677 = vshll.u32 %v623, 16
      %v679 = vor.u32 %v676, %v677
      %v680 = vrot.slane %v676, 4
      %v682 = vshrl.u32 %v624, 16
      %v684 = vrot.slane %v682, 7
      %v685 = vshll.u32 %v624, 16
      %v687 = vor.u32 %v684, %v685
      %v688 = vsel %vm655, %v680, %v687
      %v689 = vrot.slane %v684, 4
      %v691 = vshrl.u32 %v625, 16
      %v693 = vrot.slane %v691, 7
      %v694 = vshll.u32 %v625, 16
      %v696 = vor.u32 %v693, %v694
      %v697 = vrot.slane %v693, 4
      %v699 = vshrl.u32 %v626, 16
      %v701 = vrot.slane %v699, 7
      %v702 = vshll.u32 %v626, 16
      %v704 = vor.u32 %v701, %v702
      %v705 = vsel %vm655, %v697, %v704
      %v706 = vrot.slane %v701, 4
      %v708 = vshrl.u32 %v627, 16
      %v710 = vrot.slane %v708, 7
      %v711 = vshll.u32 %v627, 16
      %v713 = vor.u32 %v710, %v711
      %v714 = vrot.slane %v710, 4
      %v716 = vshrl.u32 %v628, 16
      %v718 = vrot.slane %v716, 7
      %v719 = vshll.u32 %v628, 16
      %v721 = vor.u32 %v718, %v719
      %v722 = vsel %vm655, %v714, %v721
      %v723 = vrot.slane %v718, 4
      %v725 = vshrl.u32 %v629, 16
      %v727 = vrot.slane %v725, 7
      %v728 = vshll.u32 %v629, 16
      %v730 = vor.u32 %v727, %v728
      %v731 = vrot.slane %v727, 4
      %v733 = vshrl.u32 %v630, 16
      %v735 = vrot.slane %v733, 7
      %v736 = vshll.u32 %v630, 16
      %v738 = vor.u32 %v735, %v736
      %v739 = vsel %vm655, %v731, %v738
      %v740 = vrot.slane %v735, 4
      %v742 = vshrl.u32 %v631, 16
      %v744 = vrot.slane %v742, 7
      %v745 = vshll.u32 %v631, 16
      %v747 = vor.u32 %v744, %v745
      %v748 = vrot.slane %v744, 4
      %v750 = vshrl.u32 %v632, 16
      %v752 = vrot.slane %v750, 7
      %v753 = vshll.u32 %v632, 16
      %v755 = vor.u32 %v752, %v753
      %v756 = vsel %vm655, %v748, %v755
      %v757 = vrot.slane %v752, 4
      %v759 = vshrl.u32 %v633, 16
      %v761 = vrot.slane %v759, 7
      %v762 = vshll.u32 %v633, 16
      %v764 = vor.u32 %v761, %v762
      %v765 = vrot.slane %v761, 4
      %v767 = vshrl.u32 %v634, 16
      %v769 = vrot.slane %v767, 7
      %v770 = vshll.u32 %v634, 16
      %v772 = vor.u32 %v769, %v770
      %v773 = vsel %vm655, %v765, %v772
      %v774 = vrot.slane %v769, 4
      %v776 = vshrl.u32 %v635, 16
      %v778 = vrot.slane %v776, 7
      %v779 = vshll.u32 %v635, 16
      %v781 = vor.u32 %v778, %v779
      %v782 = vrot.slane %v778, 4
      %v784 = vshrl.u32 %v636, 16
      %v786 = vrot.slane %v784, 7
      %v787 = vshll.u32 %v636, 16
      %v789 = vor.u32 %v786, %v787
      %v790 = vsel %vm655, %v782, %v789
      %v791 = vrot.slane %v786, 4
      %v793 = vshrl.u32 %v637, 16
      %v795 = vrot.slane %v793, 7
      %v796 = vshll.u32 %v637, 16
      %v798 = vor.u32 %v795, %v796
      %v799 = vrot.slane %v795, 4
      %v801 = vshrl.u32 %v638, 16
      %v803 = vrot.slane %v801, 7
      %v804 = vshll.u32 %v638, 16
      %v806 = vor.u32 %v803, %v804
      %v807 = vsel %vm655, %v799, %v806
      %v808 = vrot.slane %v803, 4
      %v810 = vshrl.u32 %v639, 16
      %v812 = vrot.slane %v810, 7
      %v813 = vshll.u32 %v639, 16
      %v815 = vor.u32 %v812, %v813
      %v816 = vrot.slane %v812, 4
      %v818 = vshrl.u32 %v640, 16
      %v820 = vrot.slane %v818, 7
      %v821 = vshll.u32 %v640, 16
      %v823 = vor.u32 %v820, %v821
      %v824 = vsel %vm655, %v816, %v823
      %v825 = vrot.slane %v820, 4
      %v827 = vshrl.u32 %v641, 16
      %v829 = vrot.slane %v827, 7
      %v830 = vshll.u32 %v641, 16
      %v832 = vor.u32 %v829, %v830
      %v833 = vrot.slane %v829, 4
      %v835 = vshrl.u32 %v642, 16
      %v837 = vrot.slane %v835, 7
      %v838 = vshll.u32 %v642, 16
      %v840 = vor.u32 %v837, %v838
      %v841 = vsel %vm655, %v833, %v840
      %v842 = vrot.slane %v837, 4
      %v844 = vshrl.u32 %v643, 16
      %v846 = vrot.slane %v844, 7
      %v847 = vshll.u32 %v643, 16
      %v849 = vor.u32 %v846, %v847
      %v850 = vrot.slane %v846, 4
      %v852 = vshrl.u32 %v644, 16
      %v854 = vrot.slane %v852, 7
      %v855 = vshll.u32 %v644, 16
      %v857 = vor.u32 %v854, %v855
      %v858 = vsel %vm655, %v850, %v857
      %v859 = vrot.slane %v854, 4
      %v861 = vshrl.u32 %v645, 16
      %v863 = vrot.slane %v861, 7
      %v864 = vshll.u32 %v645, 16
      %v866 = vor.u32 %v863, %v864
      %v867 = vrot.slane %v863, 4
      %v869 = vshrl.u32 %v646, 16
      %v871 = vrot.slane %v869, 7
      %v872 = vshll.u32 %v646, 16
      %v874 = vor.u32 %v871, %v872
      %v875 = vsel %vm655, %v867, %v874
      %v876 = vrot.slane %v871, 4
      %v878 = vshrl.u32 %v647, 16
      %v880 = vrot.slane %v878, 7
      %v881 = vshll.u32 %v647, 16
      %v883 = vor.u32 %v880, %v881
      %v884 = vrot.slane %v880, 4
      %v886 = vshrl.u32 %v648, 16
      %v888 = vrot.slane %v886, 7
      %v889 = vshll.u32 %v648, 16
      %v891 = vor.u32 %v888, %v889
      %v892 = vsel %vm655, %v884, %v891
      %v893 = vrot.slane %v888, 4
      %v895 = vshrl.u32 %v649, 16
      %v897 = vrot.slane %v895, 7
      %v898 = vshll.u32 %v649, 16
      %v900 = vor.u32 %v897, %v898
      %v901 = vrot.slane %v897, 4
      %v903 = vshrl.u32 %v650, 16
      %v905 = vrot.slane %v903, 7
      %v906 = vshll.u32 %v650, 16
      %v908 = vor.u32 %v905, %v906
      %v909 = vsel %vm655, %v901, %v908
      %v910 = vrot.slane %v905, 4
      %v912 = vshrl.u32 %v651, 16
      %v914 = vrot.slane %v912, 7
      %v915 = vshll.u32 %v651, 16
      %v917 = vor.u32 %v914, %v915
      %v918 = vrot.slane %v914, 4
      %v920 = vshrl.u32 %v652, 16
      %v922 = vrot.slane %v920, 7
      %v923 = vshll.u32 %v652, 16
      %v925 = vor.u32 %v922, %v923
      %v926 = vsel %vm655, %v918, %v925
      %v927 = vrot.slane %v922, 4
      %s976 = scalar_lea.vmem [#allocation2], 12
      %vm977 = vcmask 60416
      %vm978 = vsmask.f32 7938
      %vm979 = vmand %vm977, %vm978
      %v980 = vld [vmem:[%s976] sm:$0xf]
      %v981 = vsel %vm979, %v662, %v980
      %982 = vst [vmem:[%s976] sm:$0xf] %v981
      %983 = vst.msk [vmem:[%s976 + $0x4] sm:$0xf] %vm501, %v671
      %vm984 = vcmask 57344
      %vm985 = vmand %vm984, %vm653
      %v986 = vld [vmem:[%s976 + $0x8] sm:$0x1]
      %v987 = vsel %vm985, %v672, %v986
      %988 = vst [vmem:[%s976 + $0x8] sm:$0x1] %v987
      %v989 = vld [vmem:[%s976 + $0xc] sm:$0xf]
      %v990 = vsel %vm979, %v679, %v989
      %991 = vst [vmem:[%s976 + $0xc] sm:$0xf] %v990
      %992 = vst.msk [vmem:[%s976 + $0x10] sm:$0xf] %vm501, %v688
      %v993 = vld [vmem:[%s976 + $0x14] sm:$0x1]
      %v994 = vsel %vm985, %v689, %v993
      %995 = vst [vmem:[%s976 + $0x14] sm:$0x1] %v994
      %v996 = vld [vmem:[%s976 + $0x18] sm:$0xf]
      %v997 = vsel %vm979, %v696, %v996
      %998 = vst [vmem:[%s976 + $0x18] sm:$0xf] %v997
      %999 = vst.msk [vmem:[%s976 + $0x1c] sm:$0xf] %vm501, %v705
      %v1000 = vld [vmem:[%s976 + $0x20] sm:$0x1]
      %v1001 = vsel %vm985, %v706, %v1000
      %1002 = vst [vmem:[%s976 + $0x20] sm:$0x1] %v1001
      %v1003 = vld [vmem:[%s976 + $0x24] sm:$0xf]
      %v1004 = vsel %vm979, %v713, %v1003
      %1005 = vst [vmem:[%s976 + $0x24] sm:$0xf] %v1004
      %1006 = vst.msk [vmem:[%s976 + $0x28] sm:$0xf] %vm501, %v722
      %v1007 = vld [vmem:[%s976 + $0x2c] sm:$0x1]
      %v1008 = vsel %vm985, %v723, %v1007
      %1009 = vst [vmem:[%s976 + $0x2c] sm:$0x1] %v1008
      %v1010 = vld [vmem:[%s976 + $0x30] sm:$0xf]
      %v1011 = vsel %vm979, %v730, %v1010
      %1012 = vst [vmem:[%s976 + $0x30] sm:$0xf] %v1011
      %1013 = vst.msk [vmem:[%s976 + $0x34] sm:$0xf] %vm501, %v739
      %v1014 = vld [vmem:[%s976 + $0x38] sm:$0x1]
      %v1015 = vsel %vm985, %v740, %v1014
      %1016 = vst [vmem:[%s976 + $0x38] sm:$0x1] %v1015
      %v1017 = vld [vmem:[%s976 + $0x3c] sm:$0xf]
      %v1018 = vsel %vm979, %v747, %v1017
      %1019 = vst [vmem:[%s976 + $0x3c] sm:$0xf] %v1018
      %1020 = vst.msk [vmem:[%s976 + $0x40] sm:$0xf] %vm501, %v756
      %v1021 = vld [vmem:[%s976 + $0x44] sm:$0x1]
      %v1022 = vsel %vm985, %v757, %v1021
      %1023 = vst [vmem:[%s976 + $0x44] sm:$0x1] %v1022
      %v1024 = vld [vmem:[%s976 + $0x48] sm:$0xf]
      %v1025 = vsel %vm979, %v764, %v1024
      %1026 = vst [vmem:[%s976 + $0x48] sm:$0xf] %v1025
      %1027 = vst.msk [vmem:[%s976 + $0x4c] sm:$0xf] %vm501, %v773
      %v1028 = vld [vmem:[%s976 + $0x50] sm:$0x1]
      %v1029 = vsel %vm985, %v774, %v1028
      %1030 = vst [vmem:[%s976 + $0x50] sm:$0x1] %v1029
      %v1031 = vld [vmem:[%s976 + $0x54] sm:$0xf]
      %v1032 = vsel %vm979, %v781, %v1031
      %1033 = vst [vmem:[%s976 + $0x54] sm:$0xf] %v1032
      %1034 = vst.msk [vmem:[%s976 + $0x58] sm:$0xf] %vm501, %v790
      %v1035 = vld [vmem:[%s976 + $0x5c] sm:$0x1]
      %v1036 = vsel %vm985, %v791, %v1035
      %1037 = vst [vmem:[%s976 + $0x5c] sm:$0x1] %v1036
      %v1038 = vld [vmem:[%s976 + $0x60] sm:$0xf]
      %v1039 = vsel %vm979, %v798, %v1038
      %1040 = vst [vmem:[%s976 + $0x60] sm:$0xf] %v1039
      %1041 = vst.msk [vmem:[%s976 + $0x64] sm:$0xf] %vm501, %v807
      %v1042 = vld [vmem:[%s976 + $0x68] sm:$0x1]
      %v1043 = vsel %vm985, %v808, %v1042
      %1044 = vst [vmem:[%s976 + $0x68] sm:$0x1] %v1043
      %v1045 = vld [vmem:[%s976 + $0x6c] sm:$0xf]
      %v1046 = vsel %vm979, %v815, %v1045
      %1047 = vst [vmem:[%s976 + $0x6c] sm:$0xf] %v1046
      %1048 = vst.msk [vmem:[%s976 + $0x70] sm:$0xf] %vm501, %v824
      %v1049 = vld [vmem:[%s976 + $0x74] sm:$0x1]
      %v1050 = vsel %vm985, %v825, %v1049
      %1051 = vst [vmem:[%s976 + $0x74] sm:$0x1] %v1050
      %v1052 = vld [vmem:[%s976 + $0x78] sm:$0xf]
      %v1053 = vsel %vm979, %v832, %v1052
      %1054 = vst [vmem:[%s976 + $0x78] sm:$0xf] %v1053
      %1055 = vst.msk [vmem:[%s976 + $0x7c] sm:$0xf] %vm501, %v841
      %v1056 = vld [vmem:[%s976 + $0x80] sm:$0x1]
      %v1057 = vsel %vm985, %v842, %v1056
      %1058 = vst [vmem:[%s976 + $0x80] sm:$0x1] %v1057
      %v1059 = vld [vmem:[%s976 + $0x84] sm:$0xf]
      %v1060 = vsel %vm979, %v849, %v1059
      %1061 = vst [vmem:[%s976 + $0x84] sm:$0xf] %v1060
      %1062 = vst.msk [vmem:[%s976 + $0x88] sm:$0xf] %vm501, %v858
      %v1063 = vld [vmem:[%s976 + $0x8c] sm:$0x1]
      %v1064 = vsel %vm985, %v859, %v1063
      %1065 = vst [vmem:[%s976 + $0x8c] sm:$0x1] %v1064
      %v1066 = vld [vmem:[%s976 + $0x90] sm:$0xf]
      %v1067 = vsel %vm979, %v866, %v1066
      %1068 = vst [vmem:[%s976 + $0x90] sm:$0xf] %v1067
      %1069 = vst.msk [vmem:[%s976 + $0x94] sm:$0xf] %vm501, %v875
      %v1070 = vld [vmem:[%s976 + $0x98] sm:$0x1]
      %v1071 = vsel %vm985, %v876, %v1070
      %1072 = vst [vmem:[%s976 + $0x98] sm:$0x1] %v1071
      %v1073 = vld [vmem:[%s976 + $0x9c] sm:$0xf]
      %v1074 = vsel %vm979, %v883, %v1073
      %1075 = vst [vmem:[%s976 + $0x9c] sm:$0xf] %v1074
      %1076 = vst.msk [vmem:[%s976 + $0xa0] sm:$0xf] %vm501, %v892
      %v1077 = vld [vmem:[%s976 + $0xa4] sm:$0x1]
      %v1078 = vsel %vm985, %v893, %v1077
      %1079 = vst [vmem:[%s976 + $0xa4] sm:$0x1] %v1078
      %v1080 = vld [vmem:[%s976 + $0xa8] sm:$0xf]
      %v1081 = vsel %vm979, %v900, %v1080
      %1082 = vst [vmem:[%s976 + $0xa8] sm:$0xf] %v1081
      %1083 = vst.msk [vmem:[%s976 + $0xac] sm:$0xf] %vm501, %v909
      %v1084 = vld [vmem:[%s976 + $0xb0] sm:$0x1]
      %v1085 = vsel %vm985, %v910, %v1084
      %1086 = vst [vmem:[%s976 + $0xb0] sm:$0x1] %v1085
      %v1087 = vld [vmem:[%s976 + $0xb4] sm:$0xf]
      %v1088 = vsel %vm979, %v917, %v1087
      %1089 = vst [vmem:[%s976 + $0xb4] sm:$0xf] %v1088
      %1090 = vst.msk [vmem:[%s976 + $0xb8] sm:$0xf] %vm501, %v926
      %v1091 = vld [vmem:[%s976 + $0xbc] sm:$0x1]
      %v1092 = vsel %vm985, %v927, %v1091
      %1093 = vst [vmem:[%s976 + $0xbc] sm:$0x1] %v1092
      %v1094 = vld [vmem:[#allocation2] sm:$0xf]
      %v1095 = vld [vmem:[#allocation2 + $0x4] sm:$0xf]
      %v1096 = vld [vmem:[#allocation2 + $0x8] sm:$0x1]
      %v1097 = vld [vmem:[#allocation2 + $0xc] sm:$0xf]
      %v1098 = vld [vmem:[#allocation2 + $0x10] sm:$0xf]
      %v1099 = vld [vmem:[#allocation2 + $0x14] sm:$0x1]
      %v1100 = vld [vmem:[#allocation2 + $0x18] sm:$0xf]
      %v1101 = vld [vmem:[#allocation2 + $0x1c] sm:$0xf]
      %v1102 = vld [vmem:[#allocation2 + $0x20] sm:$0x1]
      %v1103 = vld [vmem:[#allocation2 + $0x24] sm:$0xf]
      %v1104 = vld [vmem:[#allocation2 + $0x28] sm:$0xf]
      %v1105 = vld [vmem:[#allocation2 + $0x2c] sm:$0x1]
      %v1106 = vld [vmem:[#allocation2 + $0x30] sm:$0xf]
      %v1107 = vld [vmem:[#allocation2 + $0x34] sm:$0xf]
      %v1108 = vld [vmem:[#allocation2 + $0x38] sm:$0x1]
      %v1109 = vld [vmem:[#allocation2 + $0x3c] sm:$0xf]
      %v1110 = vld [vmem:[#allocation2 + $0x40] sm:$0xf]
      %v1111 = vld [vmem:[#allocation2 + $0x44] sm:$0x1]
      %v1112 = vld [vmem:[#allocation2 + $0x48] sm:$0xf]
      %v1113 = vld [vmem:[#allocation2 + $0x4c] sm:$0xf]
      %v1114 = vld [vmem:[#allocation2 + $0x50] sm:$0x1]
      %v1115 = vld [vmem:[#allocation2 + $0x54] sm:$0xf]
      %v1116 = vld [vmem:[#allocation2 + $0x58] sm:$0xf]
      %v1117 = vld [vmem:[#allocation2 + $0x5c] sm:$0x1]
      %v1118 = vld [vmem:[#allocation2 + $0x60] sm:$0xf]
      %v1119 = vld [vmem:[#allocation2 + $0x64] sm:$0xf]
      %v1120 = vld [vmem:[#allocation2 + $0x68] sm:$0x1]
      %v1121 = vld [vmem:[#allocation2 + $0x6c] sm:$0xf]
      %v1122 = vld [vmem:[#allocation2 + $0x70] sm:$0xf]
      %v1123 = vld [vmem:[#allocation2 + $0x74] sm:$0x1]
      %v1124 = vld [vmem:[#allocation2 + $0x78] sm:$0xf]
      %v1125 = vld [vmem:[#allocation2 + $0x7c] sm:$0xf]
      %v1126 = vld [vmem:[#allocation2 + $0x80] sm:$0x1]
      %v1127 = vld [vmem:[#allocation2 + $0x84] sm:$0xf]
      %v1128 = vld [vmem:[#allocation2 + $0x88] sm:$0xf]
      %v1129 = vld [vmem:[#allocation2 + $0x8c] sm:$0x1]
      %v1130 = vld [vmem:[#allocation2 + $0x90] sm:$0xf]
      %v1131 = vld [vmem:[#allocation2 + $0x94] sm:$0xf]
      %v1132 = vld [vmem:[#allocation2 + $0x98] sm:$0x1]
      %v1133 = vld [vmem:[#allocation2 + $0x9c] sm:$0xf]
      %v1134 = vld [vmem:[#allocation2 + $0xa0] sm:$0xf]
      %v1135 = vld [vmem:[#allocation2 + $0xa4] sm:$0x1]
      %v1136 = vld [vmem:[#allocation2 + $0xa8] sm:$0xf]
      %v1137 = vld [vmem:[#allocation2 + $0xac] sm:$0xf]
      %v1138 = vld [vmem:[#allocation2 + $0xb0] sm:$0x1]
      %v1139 = vld [vmem:[#allocation2 + $0xb4] sm:$0xf]
      %v1140 = vld [vmem:[#allocation2 + $0xb8] sm:$0xf]
      %v1141 = vld [vmem:[#allocation2 + $0xbc] sm:$0x1]
      %v1142 = vld [vmem:[#allocation2 + $0xc0] sm:$0xf]
      %v1143 = vld [vmem:[#allocation2 + $0xc4] sm:$0xf]
      %v1144 = vld [vmem:[#allocation2 + $0xc8] sm:$0x1]
      %v1145 = vld [vmem:[#allocation2 + $0xcc] sm:$0xf]
      %v1146 = vld [vmem:[#allocation2 + $0xd0] sm:$0xf]
      %v1147 = vld [vmem:[#allocation2 + $0xd4] sm:$0x1]
      %v1180 = vunpack.c.l.b16 %v1094
      %v1181 = vunpack.c.l.b16 %v1095
      %v1182 = vunpack.c.l.b16 %v1097
      %v1183 = vunpack.c.l.b16 %v1098
      %v1184 = vunpack.c.l.b16 %v1100
      %v1185 = vunpack.c.l.b16 %v1101
      %v1186 = vunpack.c.l.b16 %v1103
      %v1187 = vunpack.c.l.b16 %v1104
      %v1188 = vunpack.c.l.b16 %v1106
      %v1189 = vunpack.c.l.b16 %v1107
      %v1190 = vunpack.c.l.b16 %v1109
      %v1191 = vunpack.c.l.b16 %v1110
      %v1192 = vunpack.c.l.b16 %v1112
      %v1193 = vunpack.c.l.b16 %v1113
      %v1194 = vunpack.c.l.b16 %v1115
      %v1195 = vunpack.c.l.b16 %v1116
      %v1196 = vunpack.c.l.b16 %v1118
      %v1197 = vunpack.c.l.b16 %v1119
      %v1198 = vunpack.c.l.b16 %v1121
      %v1199 = vunpack.c.l.b16 %v1122
      %v1200 = vunpack.c.l.b16 %v1124
      %v1201 = vunpack.c.l.b16 %v1125
      %v1202 = vunpack.c.l.b16 %v1127
      %v1203 = vunpack.c.l.b16 %v1128
      %v1204 = vunpack.c.l.b16 %v1130
      %v1205 = vunpack.c.l.b16 %v1131
      %v1206 = vunpack.c.l.b16 %v1133
      %v1207 = vunpack.c.l.b16 %v1134
      %v1208 = vunpack.c.l.b16 %v1136
      %v1209 = vunpack.c.l.b16 %v1137
      %v1210 = vunpack.c.l.b16 %v1139
      %v1211 = vunpack.c.l.b16 %v1140
      %v1212 = vpack.c.b16 %v1181, %v1180
      %v1213 = vpack.c.b16 %v1183, %v1182
      %v1214 = vpack.c.b16 %v1185, %v1184
      %v1215 = vpack.c.b16 %v1187, %v1186
      %v1216 = vpack.c.b16 %v1189, %v1188
      %v1217 = vpack.c.b16 %v1191, %v1190
      %v1218 = vpack.c.b16 %v1193, %v1192
      %v1219 = vpack.c.b16 %v1195, %v1194
      %v1220 = vpack.c.b16 %v1197, %v1196
      %v1221 = vpack.c.b16 %v1199, %v1198
      %v1222 = vpack.c.b16 %v1201, %v1200
      %v1223 = vpack.c.b16 %v1203, %v1202
      %v1224 = vpack.c.b16 %v1205, %v1204
      %v1225 = vpack.c.b16 %v1207, %v1206
      %v1226 = vpack.c.b16 %v1209, %v1208
      %v1227 = vpack.c.b16 %v1211, %v1210
      %v1244 = vunpack.c.l.b16 %v1096
      %v1245 = vunpack.c.l.b16 %v1099
      %v1246 = vunpack.c.l.b16 %v1102
      %v1247 = vunpack.c.l.b16 %v1105
      %v1248 = vunpack.c.l.b16 %v1108
      %v1249 = vunpack.c.l.b16 %v1111
      %v1250 = vunpack.c.l.b16 %v1114
      %v1251 = vunpack.c.l.b16 %v1117
      %v1252 = vunpack.c.l.b16 %v1120
      %v1253 = vunpack.c.l.b16 %v1123
      %v1254 = vunpack.c.l.b16 %v1126
      %v1255 = vunpack.c.l.b16 %v1129
      %v1256 = vunpack.c.l.b16 %v1132
      %v1257 = vunpack.c.l.b16 %v1135
      %v1258 = vunpack.c.l.b16 %v1138
      %v1259 = vunpack.c.l.b16 %v1141
      %v1260 = vpack.c.b16 %v1244, %v1244
      %v1261 = vpack.c.b16 %v1245, %v1245
      %v1262 = vpack.c.b16 %v1246, %v1246
      %v1263 = vpack.c.b16 %v1247, %v1247
      %v1264 = vpack.c.b16 %v1248, %v1248
      %v1265 = vpack.c.b16 %v1249, %v1249
      %v1266 = vpack.c.b16 %v1250, %v1250
      %v1267 = vpack.c.b16 %v1251, %v1251
      %v1268 = vpack.c.b16 %v1252, %v1252
      %v1269 = vpack.c.b16 %v1253, %v1253
      %v1270 = vpack.c.b16 %v1254, %v1254
      %v1271 = vpack.c.b16 %v1255, %v1255
      %v1272 = vpack.c.b16 %v1256, %v1256
      %v1273 = vpack.c.b16 %v1257, %v1257
      %v1274 = vpack.c.b16 %v1258, %v1258
      %v1275 = vpack.c.b16 %v1259, %v1259
      %vm1276 = vsmask.f32 7424
      %v1278 = vshrl.u32 %v1212, 16
      %v1280 = vshll.u32 %v1212, 16
      %v1282 = vrot.slane %v1280, 1
      %v1283 = vor.u32 %v1278, %v1282
      %v1285 = vshll.u32 %v1260, 16
      %v1287 = vrot.slane %v1285, 1
      %v1288 = vsel %vm1276, %v1283, %v1287
      %v1290 = vshrl.u32 %v1213, 16
      %v1292 = vshll.u32 %v1213, 16
      %v1294 = vrot.slane %v1292, 1
      %v1295 = vor.u32 %v1290, %v1294
      %v1297 = vshll.u32 %v1261, 16
      %v1299 = vrot.slane %v1297, 1
      %v1300 = vsel %vm1276, %v1295, %v1299
      %v1302 = vshrl.u32 %v1214, 16
      %v1304 = vshll.u32 %v1214, 16
      %v1306 = vrot.slane %v1304, 1
      %v1307 = vor.u32 %v1302, %v1306
      %v1309 = vshll.u32 %v1262, 16
      %v1311 = vrot.slane %v1309, 1
      %v1312 = vsel %vm1276, %v1307, %v1311
      %v1314 = vshrl.u32 %v1215, 16
      %v1316 = vshll.u32 %v1215, 16
      %v1318 = vrot.slane %v1316, 1
      %v1319 = vor.u32 %v1314, %v1318
      %v1321 = vshll.u32 %v1263, 16
      %v1323 = vrot.slane %v1321, 1
      %v1324 = vsel %vm1276, %v1319, %v1323
      %v1326 = vshrl.u32 %v1216, 16
      %v1328 = vshll.u32 %v1216, 16
      %v1330 = vrot.slane %v1328, 1
      %v1331 = vor.u32 %v1326, %v1330
      %v1333 = vshll.u32 %v1264, 16
      %v1335 = vrot.slane %v1333, 1
      %v1336 = vsel %vm1276, %v1331, %v1335
      %v1338 = vshrl.u32 %v1217, 16
      %v1340 = vshll.u32 %v1217, 16
      %v1342 = vrot.slane %v1340, 1
      %v1343 = vor.u32 %v1338, %v1342
      %v1345 = vshll.u32 %v1265, 16
      %v1347 = vrot.slane %v1345, 1
      %v1348 = vsel %vm1276, %v1343, %v1347
      %v1350 = vshrl.u32 %v1218, 16
      %v1352 = vshll.u32 %v1218, 16
      %v1354 = vrot.slane %v1352, 1
      %v1355 = vor.u32 %v1350, %v1354
      %v1357 = vshll.u32 %v1266, 16
      %v1359 = vrot.slane %v1357, 1
      %v1360 = vsel %vm1276, %v1355, %v1359
      %v1362 = vshrl.u32 %v1219, 16
      %v1364 = vshll.u32 %v1219, 16
      %v1366 = vrot.slane %v1364, 1
      %v1367 = vor.u32 %v1362, %v1366
      %v1369 = vshll.u32 %v1267, 16
      %v1371 = vrot.slane %v1369, 1
      %v1372 = vsel %vm1276, %v1367, %v1371
      %v1374 = vshrl.u32 %v1220, 16
      %v1376 = vshll.u32 %v1220, 16
      %v1378 = vrot.slane %v1376, 1
      %v1379 = vor.u32 %v1374, %v1378
      %v1381 = vshll.u32 %v1268, 16
      %v1383 = vrot.slane %v1381, 1
      %v1384 = vsel %vm1276, %v1379, %v1383
      %v1386 = vshrl.u32 %v1221, 16
      %v1388 = vshll.u32 %v1221, 16
      %v1390 = vrot.slane %v1388, 1
      %v1391 = vor.u32 %v1386, %v1390
      %v1393 = vshll.u32 %v1269, 16
      %v1395 = vrot.slane %v1393, 1
      %v1396 = vsel %vm1276, %v1391, %v1395
      %v1398 = vshrl.u32 %v1222, 16
      %v1400 = vshll.u32 %v1222, 16
      %v1402 = vrot.slane %v1400, 1
      %v1403 = vor.u32 %v1398, %v1402
      %v1405 = vshll.u32 %v1270, 16
      %v1407 = vrot.slane %v1405, 1
      %v1408 = vsel %vm1276, %v1403, %v1407
      %v1410 = vshrl.u32 %v1223, 16
      %v1412 = vshll.u32 %v1223, 16
      %v1414 = vrot.slane %v1412, 1
      %v1415 = vor.u32 %v1410, %v1414
      %v1417 = vshll.u32 %v1271, 16
      %v1419 = vrot.slane %v1417, 1
      %v1420 = vsel %vm1276, %v1415, %v1419
      %v1422 = vshrl.u32 %v1224, 16
      %v1424 = vshll.u32 %v1224, 16
      %v1426 = vrot.slane %v1424, 1
      %v1427 = vor.u32 %v1422, %v1426
      %v1429 = vshll.u32 %v1272, 16
      %v1431 = vrot.slane %v1429, 1
      %v1432 = vsel %vm1276, %v1427, %v1431
      %v1434 = vshrl.u32 %v1225, 16
      %v1436 = vshll.u32 %v1225, 16
      %v1438 = vrot.slane %v1436, 1
      %v1439 = vor.u32 %v1434, %v1438
      %v1441 = vshll.u32 %v1273, 16
      %v1443 = vrot.slane %v1441, 1
      %v1444 = vsel %vm1276, %v1439, %v1443
      %v1446 = vshrl.u32 %v1226, 16
      %v1448 = vshll.u32 %v1226, 16
      %v1450 = vrot.slane %v1448, 1
      %v1451 = vor.u32 %v1446, %v1450
      %v1453 = vshll.u32 %v1274, 16
      %v1455 = vrot.slane %v1453, 1
      %v1456 = vsel %vm1276, %v1451, %v1455
      %v1458 = vshrl.u32 %v1227, 16
      %v1460 = vshll.u32 %v1227, 16
      %v1462 = vrot.slane %v1460, 1
      %v1463 = vor.u32 %v1458, %v1462
      %v1465 = vshll.u32 %v1275, 16
      %v1467 = vrot.slane %v1465, 1
      %v1468 = vsel %vm1276, %v1463, %v1467
      %1469 = vrot.lane.b32.xlu0 %v1288, 8
      %v1470 = vpop.permute.xlu0 %1469
      %1471 = vrot.lane.b32.xlu0 %v1300, 8
      %v1472 = vpop.permute.xlu0 %1471
      %1473 = vrot.lane.b32.xlu0 %v1312, 8
      %v1474 = vpop.permute.xlu0 %1473
      %1475 = vrot.lane.b32.xlu0 %v1324, 8
      %v1476 = vpop.permute.xlu0 %1475
      %1477 = vrot.lane.b32.xlu0 %v1336, 8
      %v1478 = vpop.permute.xlu0 %1477
      %1479 = vrot.lane.b32.xlu0 %v1348, 8
      %v1480 = vpop.permute.xlu0 %1479
      %1481 = vrot.lane.b32.xlu0 %v1360, 8
      %v1482 = vpop.permute.xlu0 %1481
      %1483 = vrot.lane.b32.xlu0 %v1372, 8
      %v1484 = vpop.permute.xlu0 %1483
      %1485 = vrot.lane.b32.xlu0 %v1384, 8
      %v1486 = vpop.permute.xlu0 %1485
      %1487 = vrot.lane.b32.xlu0 %v1396, 8
      %v1488 = vpop.permute.xlu0 %1487
      %1489 = vrot.lane.b32.xlu0 %v1408, 8
      %v1490 = vpop.permute.xlu0 %1489
      %1491 = vrot.lane.b32.xlu0 %v1420, 8
      %v1492 = vpop.permute.xlu0 %1491
      %1493 = vrot.lane.b32.xlu0 %v1432, 8
      %v1494 = vpop.permute.xlu0 %1493
      %1495 = vrot.lane.b32.xlu0 %v1444, 8
      %v1496 = vpop.permute.xlu0 %1495
      %1497 = vrot.lane.b32.xlu0 %v1456, 8
      %v1498 = vpop.permute.xlu0 %1497
      %1499 = vrot.lane.b32.xlu0 %v1468, 8
      %v1500 = vpop.permute.xlu0 %1499
      %vm1501 = vcmask 1046528
      %v1502 = vrot.slane %v1212, 1
      %v1503 = vrot.slane %v1260, 1
      %v1504 = vsel %vm1501, %v1502, %v1503
      %v1505 = vrot.slane %v1213, 1
      %v1506 = vrot.slane %v1261, 1
      %v1507 = vsel %vm1501, %v1505, %v1506
      %v1508 = vrot.slane %v1214, 1
      %v1509 = vrot.slane %v1262, 1
      %v1510 = vsel %vm1501, %v1508, %v1509
      %v1511 = vrot.slane %v1215, 1
      %v1512 = vrot.slane %v1263, 1
      %v1513 = vsel %vm1501, %v1511, %v1512
      %v1514 = vrot.slane %v1216, 1
      %v1515 = vrot.slane %v1264, 1
      %v1516 = vsel %vm1501, %v1514, %v1515
      %v1517 = vrot.slane %v1217, 1
      %v1518 = vrot.slane %v1265, 1
      %v1519 = vsel %vm1501, %v1517, %v1518
      %v1520 = vrot.slane %v1218, 1
      %v1521 = vrot.slane %v1266, 1
      %v1522 = vsel %vm1501, %v1520, %v1521
      %v1523 = vrot.slane %v1219, 1
      %v1524 = vrot.slane %v1267, 1
      %v1525 = vsel %vm1501, %v1523, %v1524
      %v1526 = vrot.slane %v1220, 1
      %v1527 = vrot.slane %v1268, 1
      %v1528 = vsel %vm1501, %v1526, %v1527
      %v1529 = vrot.slane %v1221, 1
      %v1530 = vrot.slane %v1269, 1
      %v1531 = vsel %vm1501, %v1529, %v1530
      %v1532 = vrot.slane %v1222, 1
      %v1533 = vrot.slane %v1270, 1
      %v1534 = vsel %vm1501, %v1532, %v1533
      %v1535 = vrot.slane %v1223, 1
      %v1536 = vrot.slane %v1271, 1
      %v1537 = vsel %vm1501, %v1535, %v1536
      %v1538 = vrot.slane %v1224, 1
      %v1539 = vrot.slane %v1272, 1
      %v1540 = vsel %vm1501, %v1538, %v1539
      %v1541 = vrot.slane %v1225, 1
      %v1542 = vrot.slane %v1273, 1
      %v1543 = vsel %vm1501, %v1541, %v1542
      %v1544 = vrot.slane %v1226, 1
      %v1545 = vrot.slane %v1274, 1
      %v1546 = vsel %vm1501, %v1544, %v1545
      %v1547 = vrot.slane %v1227, 1
      %v1548 = vrot.slane %v1275, 1
      %v1549 = vsel %vm1501, %v1547, %v1548
      %1550 = vrot.lane.b32.xlu0 %v1504, 16
      %v1551 = vpop.permute.xlu0 %1550
      %1552 = vrot.lane.b32.xlu0 %v1507, 16
      %v1553 = vpop.permute.xlu0 %1552
      %1554 = vrot.lane.b32.xlu0 %v1510, 16
      %v1555 = vpop.permute.xlu0 %1554
      %1556 = vrot.lane.b32.xlu0 %v1513, 16
      %v1557 = vpop.permute.xlu0 %1556
      %1558 = vrot.lane.b32.xlu0 %v1516, 16
      %v1559 = vpop.permute.xlu0 %1558
      %1560 = vrot.lane.b32.xlu0 %v1519, 16
      %v1561 = vpop.permute.xlu0 %1560
      %1562 = vrot.lane.b32.xlu0 %v1522, 16
      %v1563 = vpop.permute.xlu0 %1562
      %1564 = vrot.lane.b32.xlu0 %v1525, 16
      %v1565 = vpop.permute.xlu0 %1564
      %1566 = vrot.lane.b32.xlu0 %v1528, 16
      %v1567 = vpop.permute.xlu0 %1566
      %1568 = vrot.lane.b32.xlu0 %v1531, 16
      %v1569 = vpop.permute.xlu0 %1568
      %1570 = vrot.lane.b32.xlu0 %v1534, 16
      %v1571 = vpop.permute.xlu0 %1570
      %1572 = vrot.lane.b32.xlu0 %v1537, 16
      %v1573 = vpop.permute.xlu0 %1572
      %1574 = vrot.lane.b32.xlu0 %v1540, 16
      %v1575 = vpop.permute.xlu0 %1574
      %1576 = vrot.lane.b32.xlu0 %v1543, 16
      %v1577 = vpop.permute.xlu0 %1576
      %1578 = vrot.lane.b32.xlu0 %v1546, 16
      %v1579 = vpop.permute.xlu0 %1578
      %1580 = vrot.lane.b32.xlu0 %v1549, 16
      %v1581 = vpop.permute.xlu0 %1580
      %v1584 = vunpack.c.l.b16 %v1142
      %v1585 = vunpack.c.l.b16 %v1143
      %v1586 = vpack.c.b16 %v1585, %v1584
      %1587 = vrot.lane.b32.xlu0 %v1213, 24
      %v1588 = vpop.permute.xlu0 %1587
      %1589 = vrot.lane.b32.xlu0 %v1214, 24
      %v1590 = vpop.permute.xlu0 %1589
      %1591 = vrot.lane.b32.xlu0 %v1215, 24
      %v1592 = vpop.permute.xlu0 %1591
      %1593 = vrot.lane.b32.xlu0 %v1216, 24
      %v1594 = vpop.permute.xlu0 %1593
      %1595 = vrot.lane.b32.xlu0 %v1217, 24
      %v1596 = vpop.permute.xlu0 %1595
      %1597 = vrot.lane.b32.xlu0 %v1218, 24
      %v1598 = vpop.permute.xlu0 %1597
      %1599 = vrot.lane.b32.xlu0 %v1219, 24
      %v1600 = vpop.permute.xlu0 %1599
      %1601 = vrot.lane.b32.xlu0 %v1220, 24
      %v1602 = vpop.permute.xlu0 %1601
      %1603 = vrot.lane.b32.xlu0 %v1221, 24
      %v1604 = vpop.permute.xlu0 %1603
      %1605 = vrot.lane.b32.xlu0 %v1222, 24
      %v1606 = vpop.permute.xlu0 %1605
      %1607 = vrot.lane.b32.xlu0 %v1223, 24
      %v1608 = vpop.permute.xlu0 %1607
      %1609 = vrot.lane.b32.xlu0 %v1224, 24
      %v1610 = vpop.permute.xlu0 %1609
      %1611 = vrot.lane.b32.xlu0 %v1225, 24
      %v1612 = vpop.permute.xlu0 %1611
      %1613 = vrot.lane.b32.xlu0 %v1226, 24
      %v1614 = vpop.permute.xlu0 %1613
      %1615 = vrot.lane.b32.xlu0 %v1227, 24
      %v1616 = vpop.permute.xlu0 %1615
      %1617 = vrot.lane.b32.xlu0 %v1586, 24
      %v1618 = vpop.permute.xlu0 %1617
      %v1620 = vunpack.c.l.b16 %v1144
      %v1621 = vpack.c.b16 %v1620, %v1620
      %v1623 = vshrl.u32 %v1586, 16
      %v1625 = vshll.u32 %v1586, 16
      %v1627 = vrot.slane %v1625, 1
      %v1628 = vor.u32 %v1623, %v1627
      %v1630 = vshll.u32 %v1621, 16
      %v1632 = vrot.slane %v1630, 1
      %v1633 = vsel %vm1276, %v1628, %v1632
      %1634 = vrot.lane.b32.xlu0 %v1300, 32
      %v1635 = vpop.permute.xlu0 %1634
      %1636 = vrot.lane.b32.xlu0 %v1312, 32
      %v1637 = vpop.permute.xlu0 %1636
      %1638 = vrot.lane.b32.xlu0 %v1324, 32
      %v1639 = vpop.permute.xlu0 %1638
      %1640 = vrot.lane.b32.xlu0 %v1336, 32
      %v1641 = vpop.permute.xlu0 %1640
      %1642 = vrot.lane.b32.xlu0 %v1348, 32
      %v1643 = vpop.permute.xlu0 %1642
      %1644 = vrot.lane.b32.xlu0 %v1360, 32
      %v1645 = vpop.permute.xlu0 %1644
      %1646 = vrot.lane.b32.xlu0 %v1372, 32
      %v1647 = vpop.permute.xlu0 %1646
      %1648 = vrot.lane.b32.xlu0 %v1384, 32
      %v1649 = vpop.permute.xlu0 %1648
      %1650 = vrot.lane.b32.xlu0 %v1396, 32
      %v1651 = vpop.permute.xlu0 %1650
      %1652 = vrot.lane.b32.xlu0 %v1408, 32
      %v1653 = vpop.permute.xlu0 %1652
      %1654 = vrot.lane.b32.xlu0 %v1420, 32
      %v1655 = vpop.permute.xlu0 %1654
      %1656 = vrot.lane.b32.xlu0 %v1432, 32
      %v1657 = vpop.permute.xlu0 %1656
      %1658 = vrot.lane.b32.xlu0 %v1444, 32
      %v1659 = vpop.permute.xlu0 %1658
      %1660 = vrot.lane.b32.xlu0 %v1456, 32
      %v1661 = vpop.permute.xlu0 %1660
      %1662 = vrot.lane.b32.xlu0 %v1468, 32
      %v1663 = vpop.permute.xlu0 %1662
      %1664 = vrot.lane.b32.xlu0 %v1633, 32
      %v1665 = vpop.permute.xlu0 %1664
      %v1666 = vrot.slane %v1586, 1
      %v1667 = vrot.slane %v1621, 1
      %v1668 = vsel %vm1501, %v1666, %v1667
      %1669 = vrot.lane.b32.xlu0 %v1507, 40
      %v1670 = vpop.permute.xlu0 %1669
      %1671 = vrot.lane.b32.xlu0 %v1510, 40
      %v1672 = vpop.permute.xlu0 %1671
      %1673 = vrot.lane.b32.xlu0 %v1513, 40
      %v1674 = vpop.permute.xlu0 %1673
      %1675 = vrot.lane.b32.xlu0 %v1516, 40
      %v1676 = vpop.permute.xlu0 %1675
      %1677 = vrot.lane.b32.xlu0 %v1519, 40
      %v1678 = vpop.permute.xlu0 %1677
      %1679 = vrot.lane.b32.xlu0 %v1522, 40
      %v1680 = vpop.permute.xlu0 %1679
      %1681 = vrot.lane.b32.xlu0 %v1525, 40
      %v1682 = vpop.permute.xlu0 %1681
      %1683 = vrot.lane.b32.xlu0 %v1528, 40
      %v1684 = vpop.permute.xlu0 %1683
      %1685 = vrot.lane.b32.xlu0 %v1531, 40
      %v1686 = vpop.permute.xlu0 %1685
      %1687 = vrot.lane.b32.xlu0 %v1534, 40
      %v1688 = vpop.permute.xlu0 %1687
      %1689 = vrot.lane.b32.xlu0 %v1537, 40
      %v1690 = vpop.permute.xlu0 %1689
      %1691 = vrot.lane.b32.xlu0 %v1540, 40
      %v1692 = vpop.permute.xlu0 %1691
      %1693 = vrot.lane.b32.xlu0 %v1543, 40
      %v1694 = vpop.permute.xlu0 %1693
      %1695 = vrot.lane.b32.xlu0 %v1546, 40
      %v1696 = vpop.permute.xlu0 %1695
      %1697 = vrot.lane.b32.xlu0 %v1549, 40
      %v1698 = vpop.permute.xlu0 %1697
      %1699 = vrot.lane.b32.xlu0 %v1668, 40
      %v1700 = vpop.permute.xlu0 %1699
      %v1703 = vunpack.c.l.b16 %v1145
      %v1704 = vunpack.c.l.b16 %v1146
      %v1705 = vpack.c.b16 %v1704, %v1703
      %1706 = vrot.lane.b32.xlu0 %v1214, 48
      %v1707 = vpop.permute.xlu0 %1706
      %1708 = vrot.lane.b32.xlu0 %v1215, 48
      %v1709 = vpop.permute.xlu0 %1708
      %1710 = vrot.lane.b32.xlu0 %v1216, 48
      %v1711 = vpop.permute.xlu0 %1710
      %1712 = vrot.lane.b32.xlu0 %v1217, 48
      %v1713 = vpop.permute.xlu0 %1712
      %1714 = vrot.lane.b32.xlu0 %v1218, 48
      %v1715 = vpop.permute.xlu0 %1714
      %1716 = vrot.lane.b32.xlu0 %v1219, 48
      %v1717 = vpop.permute.xlu0 %1716
      %1718 = vrot.lane.b32.xlu0 %v1220, 48
      %v1719 = vpop.permute.xlu0 %1718
      %1720 = vrot.lane.b32.xlu0 %v1221, 48
      %v1721 = vpop.permute.xlu0 %1720
      %1722 = vrot.lane.b32.xlu0 %v1222, 48
      %v1723 = vpop.permute.xlu0 %1722
      %1724 = vrot.lane.b32.xlu0 %v1223, 48
      %v1725 = vpop.permute.xlu0 %1724
      %1726 = vrot.lane.b32.xlu0 %v1224, 48
      %v1727 = vpop.permute.xlu0 %1726
      %1728 = vrot.lane.b32.xlu0 %v1225, 48
      %v1729 = vpop.permute.xlu0 %1728
      %1730 = vrot.lane.b32.xlu0 %v1226, 48
      %v1731 = vpop.permute.xlu0 %1730
      %1732 = vrot.lane.b32.xlu0 %v1227, 48
      %v1733 = vpop.permute.xlu0 %1732
      %1734 = vrot.lane.b32.xlu0 %v1586, 48
      %v1735 = vpop.permute.xlu0 %1734
      %1736 = vrot.lane.b32.xlu0 %v1705, 48
      %v1737 = vpop.permute.xlu0 %1736
      %v1739 = vunpack.c.l.b16 %v1147
      %v1740 = vpack.c.b16 %v1739, %v1739
      %v1742 = vshrl.u32 %v1705, 16
      %v1744 = vshll.u32 %v1705, 16
      %v1746 = vrot.slane %v1744, 1
      %v1747 = vor.u32 %v1742, %v1746
      %v1749 = vshll.u32 %v1740, 16
      %v1751 = vrot.slane %v1749, 1
      %v1752 = vsel %vm1276, %v1747, %v1751
      %1753 = vrot.lane.b32.xlu0 %v1312, 56
      %v1754 = vpop.permute.xlu0 %1753
      %1755 = vrot.lane.b32.xlu0 %v1324, 56
      %v1756 = vpop.permute.xlu0 %1755
      %1757 = vrot.lane.b32.xlu0 %v1336, 56
      %v1758 = vpop.permute.xlu0 %1757
      %1759 = vrot.lane.b32.xlu0 %v1348, 56
      %v1760 = vpop.permute.xlu0 %1759
      %1761 = vrot.lane.b32.xlu0 %v1360, 56
      %v1762 = vpop.permute.xlu0 %1761
      %1763 = vrot.lane.b32.xlu0 %v1372, 56
      %v1764 = vpop.permute.xlu0 %1763
      %1765 = vrot.lane.b32.xlu0 %v1384, 56
      %v1766 = vpop.permute.xlu0 %1765
      %1767 = vrot.lane.b32.xlu0 %v1396, 56
      %v1768 = vpop.permute.xlu0 %1767
      %1769 = vrot.lane.b32.xlu0 %v1408, 56
      %v1770 = vpop.permute.xlu0 %1769
      %1771 = vrot.lane.b32.xlu0 %v1420, 56
      %v1772 = vpop.permute.xlu0 %1771
      %1773 = vrot.lane.b32.xlu0 %v1432, 56
      %v1774 = vpop.permute.xlu0 %1773
      %1775 = vrot.lane.b32.xlu0 %v1444, 56
      %v1776 = vpop.permute.xlu0 %1775
      %1777 = vrot.lane.b32.xlu0 %v1456, 56
      %v1778 = vpop.permute.xlu0 %1777
      %1779 = vrot.lane.b32.xlu0 %v1468, 56
      %v1780 = vpop.permute.xlu0 %1779
      %1781 = vrot.lane.b32.xlu0 %v1633, 56
      %v1782 = vpop.permute.xlu0 %1781
      %1783 = vrot.lane.b32.xlu0 %v1752, 56
      %v1784 = vpop.permute.xlu0 %1783
      %v1785 = vrot.slane %v1705, 1
      %v1786 = vrot.slane %v1740, 1
      %v1787 = vsel %vm1501, %v1785, %v1786
      %1788 = vrot.lane.b32.xlu0 %v1510, 64
      %v1789 = vpop.permute.xlu0 %1788
      %1790 = vrot.lane.b32.xlu0 %v1513, 64
      %v1791 = vpop.permute.xlu0 %1790
      %1792 = vrot.lane.b32.xlu0 %v1516, 64
      %v1793 = vpop.permute.xlu0 %1792
      %1794 = vrot.lane.b32.xlu0 %v1519, 64
      %v1795 = vpop.permute.xlu0 %1794
      %1796 = vrot.lane.b32.xlu0 %v1522, 64
      %v1797 = vpop.permute.xlu0 %1796
      %1798 = vrot.lane.b32.xlu0 %v1525, 64
      %v1799 = vpop.permute.xlu0 %1798
      %1800 = vrot.lane.b32.xlu0 %v1528, 64
      %v1801 = vpop.permute.xlu0 %1800
      %1802 = vrot.lane.b32.xlu0 %v1531, 64
      %v1803 = vpop.permute.xlu0 %1802
      %1804 = vrot.lane.b32.xlu0 %v1534, 64
      %v1805 = vpop.permute.xlu0 %1804
      %1806 = vrot.lane.b32.xlu0 %v1537, 64
      %v1807 = vpop.permute.xlu0 %1806
      %1808 = vrot.lane.b32.xlu0 %v1540, 64
      %v1809 = vpop.permute.xlu0 %1808
      %1810 = vrot.lane.b32.xlu0 %v1543, 64
      %v1811 = vpop.permute.xlu0 %1810
      %1812 = vrot.lane.b32.xlu0 %v1546, 64
      %v1813 = vpop.permute.xlu0 %1812
      %1814 = vrot.lane.b32.xlu0 %v1549, 64
      %v1815 = vpop.permute.xlu0 %1814
      %1816 = vrot.lane.b32.xlu0 %v1668, 64
      %v1817 = vpop.permute.xlu0 %1816
      %1818 = vrot.lane.b32.xlu0 %v1787, 64
      %v1819 = vpop.permute.xlu0 %1818
      %vm1820 = vcmask 64512
      %v1822 = vsel %vm1820, %v1212, %v1470
      %v1824 = vsel %vm1820, %v1213, %v1472
      %v1826 = vsel %vm1820, %v1214, %v1474
      %v1828 = vsel %vm1820, %v1215, %v1476
      %v1830 = vsel %vm1820, %v1216, %v1478
      %v1832 = vsel %vm1820, %v1217, %v1480
      %v1834 = vsel %vm1820, %v1218, %v1482
      %v1836 = vsel %vm1820, %v1219, %v1484
      %v1838 = vsel %vm1820, %v1220, %v1486
      %v1840 = vsel %vm1820, %v1221, %v1488
      %v1842 = vsel %vm1820, %v1222, %v1490
      %v1844 = vsel %vm1820, %v1223, %v1492
      %v1846 = vsel %vm1820, %v1224, %v1494
      %v1848 = vsel %vm1820, %v1225, %v1496
      %v1850 = vsel %vm1820, %v1226, %v1498
      %v1852 = vsel %vm1820, %v1227, %v1500
      %vm1853 = vcmask 130048
      %v1855 = vsel %vm1853, %v1822, %v1551
      %v1857 = vsel %vm1853, %v1824, %v1553
      %v1859 = vsel %vm1853, %v1826, %v1555
      %v1861 = vsel %vm1853, %v1828, %v1557
      %v1863 = vsel %vm1853, %v1830, %v1559
      %v1865 = vsel %vm1853, %v1832, %v1561
      %v1867 = vsel %vm1853, %v1834, %v1563
      %v1869 = vsel %vm1853, %v1836, %v1565
      %v1871 = vsel %vm1853, %v1838, %v1567
      %v1873 = vsel %vm1853, %v1840, %v1569
      %v1875 = vsel %vm1853, %v1842, %v1571
      %v1877 = vsel %vm1853, %v1844, %v1573
      %v1879 = vsel %vm1853, %v1846, %v1575
      %v1881 = vsel %vm1853, %v1848, %v1577
      %v1883 = vsel %vm1853, %v1850, %v1579
      %v1885 = vsel %vm1853, %v1852, %v1581
      %vm1886 = vcmask 195584
      %v1888 = vsel %vm1886, %v1855, %v1588
      %v1890 = vsel %vm1886, %v1857, %v1590
      %v1892 = vsel %vm1886, %v1859, %v1592
      %v1894 = vsel %vm1886, %v1861, %v1594
      %v1896 = vsel %vm1886, %v1863, %v1596
      %v1898 = vsel %vm1886, %v1865, %v1598
      %v1900 = vsel %vm1886, %v1867, %v1600
      %v1902 = vsel %vm1886, %v1869, %v1602
      %v1904 = vsel %vm1886, %v1871, %v1604
      %v1906 = vsel %vm1886, %v1873, %v1606
      %v1908 = vsel %vm1886, %v1875, %v1608
      %v1910 = vsel %vm1886, %v1877, %v1610
      %v1912 = vsel %vm1886, %v1879, %v1612
      %v1914 = vsel %vm1886, %v1881, %v1614
      %v1916 = vsel %vm1886, %v1883, %v1616
      %v1918 = vsel %vm1886, %v1885, %v1618
      %vm1919 = vcmask 261120
      %v1921 = vsel %vm1919, %v1888, %v1635
      %v1923 = vsel %vm1919, %v1890, %v1637
      %v1925 = vsel %vm1919, %v1892, %v1639
      %v1927 = vsel %vm1919, %v1894, %v1641
      %v1929 = vsel %vm1919, %v1896, %v1643
      %v1931 = vsel %vm1919, %v1898, %v1645
      %v1933 = vsel %vm1919, %v1900, %v1647
      %v1935 = vsel %vm1919, %v1902, %v1649
      %v1937 = vsel %vm1919, %v1904, %v1651
      %v1939 = vsel %vm1919, %v1906, %v1653
      %v1941 = vsel %vm1919, %v1908, %v1655
      %v1943 = vsel %vm1919, %v1910, %v1657
      %v1945 = vsel %vm1919, %v1912, %v1659
      %v1947 = vsel %vm1919, %v1914, %v1661
      %v1949 = vsel %vm1919, %v1916, %v1663
      %v1951 = vsel %vm1919, %v1918, %v1665
      %vm1952 = vcmask 326656
      %v1954 = vsel %vm1952, %v1921, %v1670
      %v1956 = vsel %vm1952, %v1923, %v1672
      %v1958 = vsel %vm1952, %v1925, %v1674
      %v1960 = vsel %vm1952, %v1927, %v1676
      %v1962 = vsel %vm1952, %v1929, %v1678
      %v1964 = vsel %vm1952, %v1931, %v1680
      %v1966 = vsel %vm1952, %v1933, %v1682
      %v1968 = vsel %vm1952, %v1935, %v1684
      %v1970 = vsel %vm1952, %v1937, %v1686
      %v1972 = vsel %vm1952, %v1939, %v1688
      %v1974 = vsel %vm1952, %v1941, %v1690
      %v1976 = vsel %vm1952, %v1943, %v1692
      %v1978 = vsel %vm1952, %v1945, %v1694
      %v1980 = vsel %vm1952, %v1947, %v1696
      %v1982 = vsel %vm1952, %v1949, %v1698
      %v1984 = vsel %vm1952, %v1951, %v1700
      %vm1985 = vcmask 392192
      %v1987 = vsel %vm1985, %v1954, %v1707
      %v1989 = vsel %vm1985, %v1956, %v1709
      %v1991 = vsel %vm1985, %v1958, %v1711
      %v1993 = vsel %vm1985, %v1960, %v1713
      %v1995 = vsel %vm1985, %v1962, %v1715
      %v1997 = vsel %vm1985, %v1964, %v1717
      %v1999 = vsel %vm1985, %v1966, %v1719
      %v2001 = vsel %vm1985, %v1968, %v1721
      %v2003 = vsel %vm1985, %v1970, %v1723
      %v2005 = vsel %vm1985, %v1972, %v1725
      %v2007 = vsel %vm1985, %v1974, %v1727
      %v2009 = vsel %vm1985, %v1976, %v1729
      %v2011 = vsel %vm1985, %v1978, %v1731
      %v2013 = vsel %vm1985, %v1980, %v1733
      %v2015 = vsel %vm1985, %v1982, %v1735
      %v2017 = vsel %vm1985, %v1984, %v1737
      %vm2018 = vcmask 457728
      %v2020 = vsel %vm2018, %v1987, %v1754
      %v2022 = vsel %vm2018, %v1989, %v1756
      %v2024 = vsel %vm2018, %v1991, %v1758
      %v2026 = vsel %vm2018, %v1993, %v1760
      %v2028 = vsel %vm2018, %v1995, %v1762
      %v2030 = vsel %vm2018, %v1997, %v1764
      %v2032 = vsel %vm2018, %v1999, %v1766
      %v2034 = vsel %vm2018, %v2001, %v1768
      %v2036 = vsel %vm2018, %v2003, %v1770
      %v2038 = vsel %vm2018, %v2005, %v1772
      %v2040 = vsel %vm2018, %v2007, %v1774
      %v2042 = vsel %vm2018, %v2009, %v1776
      %v2044 = vsel %vm2018, %v2011, %v1778
      %v2046 = vsel %vm2018, %v2013, %v1780
      %v2048 = vsel %vm2018, %v2015, %v1782
      %v2050 = vsel %vm2018, %v2017, %v1784
      %vm2051 = vcmask 523264
      %v2053 = vsel %vm2051, %v2020, %v1789
      %v2055 = vsel %vm2051, %v2022, %v1791
      %v2057 = vsel %vm2051, %v2024, %v1793
      %v2059 = vsel %vm2051, %v2026, %v1795
      %v2061 = vsel %vm2051, %v2028, %v1797
      %v2063 = vsel %vm2051, %v2030, %v1799
      %v2065 = vsel %vm2051, %v2032, %v1801
      %v2067 = vsel %vm2051, %v2034, %v1803
      %v2069 = vsel %vm2051, %v2036, %v1805
      %v2071 = vsel %vm2051, %v2038, %v1807
      %v2073 = vsel %vm2051, %v2040, %v1809
      %v2075 = vsel %vm2051, %v2042, %v1811
      %v2077 = vsel %vm2051, %v2044, %v1813
      %v2079 = vsel %vm2051, %v2046, %v1815
      %v2081 = vsel %vm2051, %v2048, %v1817
      %v2083 = vsel %vm2051, %v2050, %v1819
      %v2084 = vld [vmem:[%s6] sm:$0xf]
      %v2085 = vld [vmem:[%s6 + $0x4] sm:$0xf]
      %v2086 = vld [vmem:[%s6 + $0x8] sm:$0xf]
      %v2087 = vld [vmem:[%s6 + $0xc] sm:$0xf]
      %v2088 = vld [vmem:[%s6 + $0x10] sm:$0xf]
      %v2089 = vld [vmem:[%s6 + $0x14] sm:$0xf]
      %v2090 = vld [vmem:[%s6 + $0x18] sm:$0xf]
      %v2091 = vld [vmem:[%s6 + $0x1c] sm:$0xf]
      %v2092 = vld [vmem:[%s6 + $0x20] sm:$0xf]
      %v2093 = vld [vmem:[%s7] sm:$0x1]
      %v2095 = vlaneseq
      %v2096 = vshrl.u32 %v2095, 7
      %v2097 = vsub.s32 0, %v2096
      %v2098 = vrot.slane %v2093, %v2097
      %v2109 = vunpack.c.l.b16 %v2084
      %v2110 = vunpack.c.l.b16 %v2085
      %v2111 = vunpack.c.l.b16 %v2086
      %v2112 = vunpack.c.l.b16 %v2087
      %v2113 = vunpack.c.l.b16 %v2088
      %v2114 = vunpack.c.l.b16 %v2089
      %v2115 = vunpack.c.l.b16 %v2090
      %v2116 = vunpack.c.l.b16 %v2091
      %v2117 = vunpack.c.l.b16 %v2092
      %v2118 = vpack.c.b16 %v2110, %v2109
      %v2119 = vpack.c.b16 %v2112, %v2111
      %v2120 = vpack.c.b16 %v2114, %v2113
      %v2121 = vpack.c.b16 %v2116, %v2115
      %v2122 = vpack.c.b16 %v2117, %v2117
      %vm2127 = vcmask 588800
      %v2128 = vsel %vm2127, %v2053, 0
      %v2130 = vsel %vm2127, %v2055, 0
      %v2132 = vsel %vm2127, %v2057, 0
      %v2134 = vsel %vm2127, %v2059, 0
      %v2136 = vsel %vm2127, %v2061, 0
      %v2138 = vsel %vm2127, %v2063, 0
      %v2140 = vsel %vm2127, %v2065, 0
      %v2142 = vsel %vm2127, %v2067, 0
      %v2144 = vsel %vm2127, %v2069, 0
      %v2146 = vsel %vm2127, %v2071, 0
      %v2148 = vsel %vm2127, %v2073, 0
      %v2150 = vsel %vm2127, %v2075, 0
      %v2152 = vsel %vm2127, %v2077, 0
      %v2154 = vsel %vm2127, %v2079, 0
      %v2156 = vsel %vm2127, %v2081, 0
      %v2158 = vsel %vm2127, %v2083, 0
      %vm2160 = vcmask 1043456
      %v2162 = vsel %vm2160, %v2122, 0
      %2164 = vmatprep.subr.bf16.mxu0 0
      %2165 = vmatpush1.bf16.msra.mxu0 %v2118
      %2166 = vmatprep.subr.bf16.mxu0 0
      %2167 = vmatpush1.bf16.msra.mxu0 %v2119
      %2168 = vmatprep.subr.bf16.mxu0 0
      %2169 = vmatpush1.bf16.msra.mxu0 %v2120
      %2170 = vmatprep.subr.bf16.mxu0 0
      %2171 = vmatpush1.bf16.msra.mxu0 %v2121
      %2172 = vmatprep.subr.bf16.mxu0 0
      %2173 = vmatpush1.bf16.msra.mxu0 %v2162
      %2174 = vmatprep.subr.bf16.mxu0 0
      %2175 = vmatpush1.bf16.msra.mxu0 0
      %2176 = vmatprep.subr.bf16.mxu0 0
      %2177 = vmatpush1.bf16.msra.mxu0 0
      %2178 = vmatprep.subr.bf16.mxu0 0
      %2179 = vmatpush1.bf16.msra.mxu0 0
      %2180 = vmatprep.subr.bf16.mxu0 0
      %2181 = vmatpush1.bf16.msra.mxu0 0
      %2182 = vmatprep.subr.bf16.mxu0 0
      %2183 = vmatpush1.bf16.msra.mxu0 0
      %2184 = vmatprep.subr.bf16.mxu0 0
      %2185 = vmatpush1.bf16.msra.mxu0 0
      %2186 = vmatprep.subr.bf16.mxu0 0
      %2187 = vmatpush1.bf16.msra.mxu0 0
      %2188 = vmatprep.subr.bf16.mxu0 0
      %2189 = vmatpush1.bf16.msra.mxu0 0
      %2190 = vmatprep.subr.bf16.mxu0 0
      %2191 = vmatpush1.bf16.msra.mxu0 0
      %2192 = vmatprep.subr.bf16.mxu0 0
      %2193 = vmatpush1.bf16.msra.mxu0 0
      %2194 = vmatprep.subr.bf16.mxu0 0
      %2195 = vmatpush1.bf16.msra.mxu0 0
      %2196 = vmatprep.mubr.bf16.mxu0 0
      %2197 = vmatmul.mubr.bf16.gmra.mrb[0].mxu0 %v2128
      %v2198 = vpop.f32.mrb[0].mxu0
      %v2199 = vadd.f32 %v2098, %v2198
      %v2200 = vpop.f32.mrb[0].mxu0
      %v2201 = vpop.f32.mrb[0].mxu0
      %v2202 = vadd.f32 %v2098, %v2201
      %v2203 = vpop.f32.mrb[0].mxu0
      %2204 = vmatprep.mubr.bf16.mxu0 0
      %2205 = vmatmul.mubr.bf16.gmra.mrb[0].mxu0 %v2130
      %v2206 = vpop.f32.mrb[0].mxu0
      %v2207 = vadd.f32 %v2098, %v2206
      %v2208 = vpop.f32.mrb[0].mxu0
      %v2209 = vpop.f32.mrb[0].mxu0
      %v2210 = vadd.f32 %v2098, %v2209
      %v2211 = vpop.f32.mrb[0].mxu0
      %2212 = vmatprep.mubr.bf16.mxu0 0
      %2213 = vmatmul.mubr.bf16.gmra.mrb[0].mxu0 %v2132
      %v2214 = vpop.f32.mrb[0].mxu0
      %v2215 = vadd.f32 %v2098, %v2214
      %v2216 = vpop.f32.mrb[0].mxu0
      %v2217 = vpop.f32.mrb[0].mxu0
      %v2218 = vadd.f32 %v2098, %v2217
      %v2219 = vpop.f32.mrb[0].mxu0
      %2220 = vmatprep.mubr.bf16.mxu0 0
      %2221 = vmatmul.mubr.bf16.gmra.mrb[0].mxu0 %v2134
      %v2222 = vpop.f32.mrb[0].mxu0
      %v2223 = vadd.f32 %v2098, %v2222
      %v2224 = vpop.f32.mrb[0].mxu0
      %v2225 = vpop.f32.mrb[0].mxu0
      %v2226 = vadd.f32 %v2098, %v2225
      %v2227 = vpop.f32.mrb[0].mxu0
      %2228 = vmatprep.mubr.bf16.mxu0 0
      %2229 = vmatmul.mubr.bf16.gmra.mrb[0].mxu0 %v2136
      %v2230 = vpop.f32.mrb[0].mxu0
      %v2231 = vadd.f32 %v2098, %v2230
      %v2232 = vpop.f32.mrb[0].mxu0
      %v2233 = vpop.f32.mrb[0].mxu0
      %v2234 = vadd.f32 %v2098, %v2233
      %v2235 = vpop.f32.mrb[0].mxu0
      %2236 = vmatprep.mubr.bf16.mxu0 0
      %2237 = vmatmul.mubr.bf16.gmra.mrb[0].mxu0 %v2138
      %v2238 = vpop.f32.mrb[0].mxu0
      %v2239 = vadd.f32 %v2098, %v2238
      %v2240 = vpop.f32.mrb[0].mxu0
      %v2241 = vpop.f32.mrb[0].mxu0
      %v2242 = vadd.f32 %v2098, %v2241
      %v2243 = vpop.f32.mrb[0].mxu0
      %2244 = vmatprep.mubr.bf16.mxu0 0
      %2245 = vmatmul.mubr.bf16.gmra.mrb[0].mxu0 %v2140
      %v2246 = vpop.f32.mrb[0].mxu0
      %v2247 = vadd.f32 %v2098, %v2246
      %v2248 = vpop.f32.mrb[0].mxu0
      %v2249 = vpop.f32.mrb[0].mxu0
      %v2250 = vadd.f32 %v2098, %v2249
      %v2251 = vpop.f32.mrb[0].mxu0
      %2252 = vmatprep.mubr.bf16.mxu0 0
      %2253 = vmatmul.mubr.bf16.gmra.mrb[0].mxu0 %v2142
      %v2254 = vpop.f32.mrb[0].mxu0
      %v2255 = vadd.f32 %v2098, %v2254
      %v2256 = vpop.f32.mrb[0].mxu0
      %v2257 = vpop.f32.mrb[0].mxu0
      %v2258 = vadd.f32 %v2098, %v2257
      %v2259 = vpop.f32.mrb[0].mxu0
      %2260 = vmatprep.mubr.bf16.mxu0 0
      %2261 = vmatmul.mubr.bf16.gmra.mrb[0].mxu0 %v2144
      %v2262 = vpop.f32.mrb[0].mxu0
      %v2263 = vadd.f32 %v2098, %v2262
      %v2264 = vpop.f32.mrb[0].mxu0
      %v2265 = vpop.f32.mrb[0].mxu0
      %v2266 = vadd.f32 %v2098, %v2265
      %v2267 = vpop.f32.mrb[0].mxu0
      %2268 = vmatprep.mubr.bf16.mxu0 0
      %2269 = vmatmul.mubr.bf16.gmra.mrb[0].mxu0 %v2146
      %v2270 = vpop.f32.mrb[0].mxu0
      %v2271 = vadd.f32 %v2098, %v2270
      %v2272 = vpop.f32.mrb[0].mxu0
      %v2273 = vpop.f32.mrb[0].mxu0
      %v2274 = vadd.f32 %v2098, %v2273
      %v2275 = vpop.f32.mrb[0].mxu0
      %2276 = vmatprep.mubr.bf16.mxu0 0
      %2277 = vmatmul.mubr.bf16.gmra.mrb[0].mxu0 %v2148
      %v2278 = vpop.f32.mrb[0].mxu0
      %v2279 = vadd.f32 %v2098, %v2278
      %v2280 = vpop.f32.mrb[0].mxu0
      %v2281 = vpop.f32.mrb[0].mxu0
      %v2282 = vadd.f32 %v2098, %v2281
      %v2283 = vpop.f32.mrb[0].mxu0
      %2284 = vmatprep.mubr.bf16.mxu0 0
      %2285 = vmatmul.mubr.bf16.gmra.mrb[0].mxu0 %v2150
      %v2286 = vpop.f32.mrb[0].mxu0
      %v2287 = vadd.f32 %v2098, %v2286
      %v2288 = vpop.f32.mrb[0].mxu0
      %v2289 = vpop.f32.mrb[0].mxu0
      %v2290 = vadd.f32 %v2098, %v2289
      %v2291 = vpop.f32.mrb[0].mxu0
      %2292 = vmatprep.mubr.bf16.mxu0 0
      %2293 = vmatmul.mubr.bf16.gmra.mrb[0].mxu0 %v2152
      %v2294 = vpop.f32.mrb[0].mxu0
      %v2295 = vadd.f32 %v2098, %v2294
      %v2296 = vpop.f32.mrb[0].mxu0
      %v2297 = vpop.f32.mrb[0].mxu0
      %v2298 = vadd.f32 %v2098, %v2297
      %v2299 = vpop.f32.mrb[0].mxu0
      %2300 = vmatprep.mubr.bf16.mxu0 0
      %2301 = vmatmul.mubr.bf16.gmra.mrb[0].mxu0 %v2154
      %v2302 = vpop.f32.mrb[0].mxu0
      %v2303 = vadd.f32 %v2098, %v2302
      %v2304 = vpop.f32.mrb[0].mxu0
      %v2305 = vpop.f32.mrb[0].mxu0
      %v2306 = vadd.f32 %v2098, %v2305
      %v2307 = vpop.f32.mrb[0].mxu0
      %2308 = vmatprep.mubr.bf16.mxu0 0
      %2309 = vmatmul.mubr.bf16.gmra.mrb[0].mxu0 %v2156
      %v2310 = vpop.f32.mrb[0].mxu0
      %v2311 = vadd.f32 %v2098, %v2310
      %v2312 = vpop.f32.mrb[0].mxu0
      %v2313 = vpop.f32.mrb[0].mxu0
      %v2314 = vadd.f32 %v2098, %v2313
      %v2315 = vpop.f32.mrb[0].mxu0
      %2316 = vmatprep.mubr.bf16.mxu0 0
      %2317 = vmatmul.mubr.bf16.gmra.mrb[0].mxu0 %v2158
      %v2318 = vpop.f32.mrb[0].mxu0
      %v2319 = vadd.f32 %v2098, %v2318
      %v2320 = vpop.f32.mrb[0].mxu0
      %v2321 = vpop.f32.mrb[0].mxu0
      %v2322 = vadd.f32 %v2098, %v2321
      %v2323 = vpop.f32.mrb[0].mxu0
      %2324 = vdwg.mxu0
      %v2325 = vld [vmem:[%s320] sm:$0xf]
      %v2326 = vld [vmem:[%s320 + $0x4] sm:$0xf]
      %v2327 = vld [vmem:[%s320 + $0x8] sm:$0xf]
      %v2328 = vld [vmem:[%s320 + $0xc] sm:$0xf]
      %v2329 = vld [vmem:[%s320 + $0x10] sm:$0xf]
      %v2330 = vld [vmem:[%s320 + $0x14] sm:$0xf]
      %v2331 = vld [vmem:[%s320 + $0x18] sm:$0xf]
      %v2332 = vld [vmem:[%s320 + $0x1c] sm:$0xf]
      %v2333 = vld [vmem:[%s320 + $0x20] sm:$0xf]
      %v2334 = vld [vmem:[%s320 + $0x24] sm:$0xf]
      %v2335 = vld [vmem:[%s320 + $0x28] sm:$0xf]
      %v2336 = vld [vmem:[%s320 + $0x2c] sm:$0xf]
      %v2337 = vld [vmem:[%s320 + $0x30] sm:$0xf]
      %v2338 = vld [vmem:[%s320 + $0x34] sm:$0xf]
      %v2339 = vld [vmem:[%s320 + $0x38] sm:$0xf]
      %v2340 = vld [vmem:[%s320 + $0x3c] sm:$0xf]
      %v2341 = vld [vmem:[%s320 + $0x40] sm:$0xf]
      %v2342 = vld [vmem:[%s320 + $0x44] sm:$0xf]
      %v2343 = vld [vmem:[%s320 + $0x48] sm:$0xf]
      %v2344 = vld [vmem:[%s320 + $0x4c] sm:$0xf]
      %v2345 = vld [vmem:[%s320 + $0x50] sm:$0xf]
      %v2346 = vld [vmem:[%s320 + $0x54] sm:$0xf]
      %v2347 = vld [vmem:[%s320 + $0x58] sm:$0xf]
      %v2348 = vld [vmem:[%s320 + $0x5c] sm:$0xf]
      %v2349 = vld [vmem:[%s320 + $0x60] sm:$0xf]
      %v2350 = vld [vmem:[%s320 + $0x64] sm:$0xf]
      %v2351 = vld [vmem:[%s320 + $0x68] sm:$0xf]
      %v2352 = vld [vmem:[%s320 + $0x6c] sm:$0xf]
      %v2353 = vld [vmem:[%s320 + $0x70] sm:$0xf]
      %v2354 = vld [vmem:[%s320 + $0x74] sm:$0xf]
      %v2355 = vld [vmem:[%s320 + $0x78] sm:$0xf]
      %v2356 = vld [vmem:[%s320 + $0x7c] sm:$0xf]
      %v2357 = vunpack.c.l.bf16 %v2325
      %v2358 = vunpack.c.l.bf16 %v2326
      %v2359 = vunpack.c.l.bf16 %v2327
      %v2360 = vunpack.c.l.bf16 %v2328
      %v2361 = vunpack.c.l.bf16 %v2329
      %v2362 = vunpack.c.l.bf16 %v2330
      %v2363 = vunpack.c.l.bf16 %v2331
      %v2364 = vunpack.c.l.bf16 %v2332
      %v2365 = vunpack.c.l.bf16 %v2333
      %v2366 = vunpack.c.l.bf16 %v2334
      %v2367 = vunpack.c.l.bf16 %v2335
      %v2368 = vunpack.c.l.bf16 %v2336
      %v2369 = vunpack.c.l.bf16 %v2337
      %v2370 = vunpack.c.l.bf16 %v2338
      %v2371 = vunpack.c.l.bf16 %v2339
      %v2372 = vunpack.c.l.bf16 %v2340
      %v2373 = vunpack.c.l.bf16 %v2341
      %v2374 = vunpack.c.l.bf16 %v2342
      %v2375 = vunpack.c.l.bf16 %v2343
      %v2376 = vunpack.c.l.bf16 %v2344
      %v2377 = vunpack.c.l.bf16 %v2345
      %v2378 = vunpack.c.l.bf16 %v2346
      %v2379 = vunpack.c.l.bf16 %v2347
      %v2380 = vunpack.c.l.bf16 %v2348
      %v2381 = vunpack.c.l.bf16 %v2349
      %v2382 = vunpack.c.l.bf16 %v2350
      %v2383 = vunpack.c.l.bf16 %v2351
      %v2384 = vunpack.c.l.bf16 %v2352
      %v2385 = vunpack.c.l.bf16 %v2353
      %v2386 = vunpack.c.l.bf16 %v2354
      %v2387 = vunpack.c.l.bf16 %v2355
      %v2388 = vunpack.c.l.bf16 %v2356
      %v2389 = vld [vmem:[%s4] sm:$0x1]
      %v2391 = vlaneseq
      %v2392 = vshrl.u32 %v2391, 7
      %v2393 = vsub.s32 0, %v2392
      %v2394 = vrot.slane %v2389, %v2393
      %v2396 = vmul.f32 %v2357, %v2394
      %v2397 = vmul.f32 %v2358, %v2394
      %v2398 = vmul.f32 %v2359, %v2394
      %v2399 = vmul.f32 %v2360, %v2394
      %v2400 = vmul.f32 %v2361, %v2394
      %v2401 = vmul.f32 %v2362, %v2394
      %v2402 = vmul.f32 %v2363, %v2394
      %v2403 = vmul.f32 %v2364, %v2394
      %v2404 = vmul.f32 %v2365, %v2394
      %v2405 = vmul.f32 %v2366, %v2394
      %v2406 = vmul.f32 %v2367, %v2394
      %v2407 = vmul.f32 %v2368, %v2394
      %v2408 = vmul.f32 %v2369, %v2394
      %v2409 = vmul.f32 %v2370, %v2394
      %v2410 = vmul.f32 %v2371, %v2394
      %v2411 = vmul.f32 %v2372, %v2394
      %v2412 = vmul.f32 %v2373, %v2394
      %v2413 = vmul.f32 %v2374, %v2394
      %v2414 = vmul.f32 %v2375, %v2394
      %v2415 = vmul.f32 %v2376, %v2394
      %v2416 = vmul.f32 %v2377, %v2394
      %v2417 = vmul.f32 %v2378, %v2394
      %v2418 = vmul.f32 %v2379, %v2394
      %v2419 = vmul.f32 %v2380, %v2394
      %v2420 = vmul.f32 %v2381, %v2394
      %v2421 = vmul.f32 %v2382, %v2394
      %v2422 = vmul.f32 %v2383, %v2394
      %v2423 = vmul.f32 %v2384, %v2394
      %v2424 = vmul.f32 %v2385, %v2394
      %v2425 = vmul.f32 %v2386, %v2394
      %v2426 = vmul.f32 %v2387, %v2394
      %v2427 = vmul.f32 %v2388, %v2394
      %v2428 = vadd.f32 %v2199, %v2396
      %v2429 = vadd.f32 %v2202, %v2397
      %v2430 = vadd.f32 %v2207, %v2398
      %v2431 = vadd.f32 %v2210, %v2399
      %v2432 = vadd.f32 %v2215, %v2400
      %v2433 = vadd.f32 %v2218, %v2401
      %v2434 = vadd.f32 %v2223, %v2402
      %v2435 = vadd.f32 %v2226, %v2403
      %v2436 = vadd.f32 %v2231, %v2404
      %v2437 = vadd.f32 %v2234, %v2405
      %v2438 = vadd.f32 %v2239, %v2406
      %v2439 = vadd.f32 %v2242, %v2407
      %v2440 = vadd.f32 %v2247, %v2408
      %v2441 = vadd.f32 %v2250, %v2409
      %v2442 = vadd.f32 %v2255, %v2410
      %v2443 = vadd.f32 %v2258, %v2411
      %v2444 = vadd.f32 %v2263, %v2412
      %v2445 = vadd.f32 %v2266, %v2413
      %v2446 = vadd.f32 %v2271, %v2414
      %v2447 = vadd.f32 %v2274, %v2415
      %v2448 = vadd.f32 %v2279, %v2416
      %v2449 = vadd.f32 %v2282, %v2417
      %v2450 = vadd.f32 %v2287, %v2418
      %v2451 = vadd.f32 %v2290, %v2419
      %v2452 = vadd.f32 %v2295, %v2420
      %v2453 = vadd.f32 %v2298, %v2421
      %v2454 = vadd.f32 %v2303, %v2422
      %v2455 = vadd.f32 %v2306, %v2423
      %v2456 = vadd.f32 %v2311, %v2424
      %v2457 = vadd.f32 %v2314, %v2425
      %v2458 = vadd.f32 %v2319, %v2426
      %v2459 = vadd.f32 %v2322, %v2427
      %v2460 = vld [vmem:[%s5] sm:$0x1]
      %v2462 = vlaneseq
      %v2463 = vshrl.u32 %v2462, 7
      %v2464 = vsub.s32 0, %v2463
      %v2465 = vrot.slane %v2460, %v2464
      %v2467 = vadd.f32 %v2428, %v2465
      %v2468 = vadd.f32 %v2429, %v2465
      %v2469 = vadd.f32 %v2430, %v2465
      %v2470 = vadd.f32 %v2431, %v2465
      %v2471 = vadd.f32 %v2432, %v2465
      %v2472 = vadd.f32 %v2433, %v2465
      %v2473 = vadd.f32 %v2434, %v2465
      %v2474 = vadd.f32 %v2435, %v2465
      %v2475 = vadd.f32 %v2436, %v2465
      %v2476 = vadd.f32 %v2437, %v2465
      %v2477 = vadd.f32 %v2438, %v2465
      %v2478 = vadd.f32 %v2439, %v2465
      %v2479 = vadd.f32 %v2440, %v2465
      %v2480 = vadd.f32 %v2441, %v2465
      %v2481 = vadd.f32 %v2442, %v2465
      %v2482 = vadd.f32 %v2443, %v2465
      %v2483 = vadd.f32 %v2444, %v2465
      %v2484 = vadd.f32 %v2445, %v2465
      %v2485 = vadd.f32 %v2446, %v2465
      %v2486 = vadd.f32 %v2447, %v2465
      %v2487 = vadd.f32 %v2448, %v2465
      %v2488 = vadd.f32 %v2449, %v2465
      %v2489 = vadd.f32 %v2450, %v2465
      %v2490 = vadd.f32 %v2451, %v2465
      %v2491 = vadd.f32 %v2452, %v2465
      %v2492 = vadd.f32 %v2453, %v2465
      %v2493 = vadd.f32 %v2454, %v2465
      %v2494 = vadd.f32 %v2455, %v2465
      %v2495 = vadd.f32 %v2456, %v2465
      %v2496 = vadd.f32 %v2457, %v2465
      %v2497 = vadd.f32 %v2458, %v2465
      %v2498 = vadd.f32 %v2459, %v2465
      %2499 = vst.msk [vmem:[%s325] sm:$0xff] %vm1820, %v2467
      %2500 = vst.msk [vmem:[%s325 + $0x8] sm:$0xff] %vm1820, %v2468
      %2501 = vst.msk [vmem:[%s325 + $0x10] sm:$0xff] %vm1820, %v2469
      %2502 = vst.msk [vmem:[%s325 + $0x18] sm:$0xff] %vm1820, %v2470
      %2503 = vst.msk [vmem:[%s325 + $0x20] sm:$0xff] %vm1820, %v2471
      %2504 = vst.msk [vmem:[%s325 + $0x28] sm:$0xff] %vm1820, %v2472
      %2505 = vst.msk [vmem:[%s325 + $0x30] sm:$0xff] %vm1820, %v2473
      %2506 = vst.msk [vmem:[%s325 + $0x38] sm:$0xff] %vm1820, %v2474
      %2507 = vst.msk [vmem:[%s325 + $0x40] sm:$0xff] %vm1820, %v2475
      %2508 = vst.msk [vmem:[%s325 + $0x48] sm:$0xff] %vm1820, %v2476
      %2509 = vst.msk [vmem:[%s325 + $0x50] sm:$0xff] %vm1820, %v2477
      %2510 = vst.msk [vmem:[%s325 + $0x58] sm:$0xff] %vm1820, %v2478
      %2511 = vst.msk [vmem:[%s325 + $0x60] sm:$0xff] %vm1820, %v2479
      %2512 = vst.msk [vmem:[%s325 + $0x68] sm:$0xff] %vm1820, %v2480
      %2513 = vst.msk [vmem:[%s325 + $0x70] sm:$0xff] %vm1820, %v2481
      %2514 = vst.msk [vmem:[%s325 + $0x78] sm:$0xff] %vm1820, %v2482
      %2515 = vst.msk [vmem:[%s325 + $0x80] sm:$0xff] %vm1820, %v2483
      %2516 = vst.msk [vmem:[%s325 + $0x88] sm:$0xff] %vm1820, %v2484
      %2517 = vst.msk [vmem:[%s325 + $0x90] sm:$0xff] %vm1820, %v2485
      %2518 = vst.msk [vmem:[%s325 + $0x98] sm:$0xff] %vm1820, %v2486
      %2519 = vst.msk [vmem:[%s325 + $0xa0] sm:$0xff] %vm1820, %v2487
      %2520 = vst.msk [vmem:[%s325 + $0xa8] sm:$0xff] %vm1820, %v2488
      %2521 = vst.msk [vmem:[%s325 + $0xb0] sm:$0xff] %vm1820, %v2489
      %2522 = vst.msk [vmem:[%s325 + $0xb8] sm:$0xff] %vm1820, %v2490
      %2523 = vst.msk [vmem:[%s325 + $0xc0] sm:$0xff] %vm1820, %v2491
      %2524 = vst.msk [vmem:[%s325 + $0xc8] sm:$0xff] %vm1820, %v2492
      %2525 = vst.msk [vmem:[%s325 + $0xd0] sm:$0xff] %vm1820, %v2493
      %2526 = vst.msk [vmem:[%s325 + $0xd8] sm:$0xff] %vm1820, %v2494
      %2527 = vst.msk [vmem:[%s325 + $0xe0] sm:$0xff] %vm1820, %v2495
      %2528 = vst.msk [vmem:[%s325 + $0xe8] sm:$0xff] %vm1820, %v2496
      %2529 = vst.msk [vmem:[%s325 + $0xf0] sm:$0xff] %vm1820, %v2497
      %2530 = vst.msk [vmem:[%s325 + $0xf8] sm:$0xff] %vm1820, %v2498
      %p2531 = scmp.lt.s32.totalorder %s19, 1
      %s2532 = scalar_select %p2531, %s19, 1
      %s2533 = smul.addr %s2532, 32
      %s2534 = smul.addr %s2533, 8
      %s2535 = scalar_lea.vmem %s8, %s2534
      // Predicated region
      $region53: #{residual_conv_forward.3} parent=51 // pred_check
        %p2536 = pneg %p215
      $region54: #{residual_conv_forward.3} parent=51 // pred_check_branch
        %2538 = sbr.rel (%p2536) target = $region56
      $region55: #{residual_conv_forward.3} parent=51 // pred_region
        _
      $region56: #{residual_conv_forward.3} parent=51 // pred_fallthru
        _
    $region52: #{residual_conv_forward.3} parent=5 // pred_fallthru
      _
    %p2539 = scmp.le.s32.totalorder 2, %s14
    // Predicated region
    $region57: #{residual_conv_forward.3} parent=5 // pred_check
      %p2540 = pneg %p2539
    $region58: #{residual_conv_forward.3} parent=5 // pred_check_branch
      %2542 = sbr.rel (%p2540) target = $region60
    $region59: #{residual_conv_forward.3} parent=5 // pred_region
      %s2543 = ssub.s32 %s14, 2
      // Predicated region
      $region61: #{residual_conv_forward.3} parent=59 // pred_check
        %p2544 = pneg %p221
      $region62: #{residual_conv_forward.3} parent=59 // pred_check_branch
        %2546 = sbr.rel (%p2544) target = $region64
      $region63: #{residual_conv_forward.3} parent=59 // pred_region
        %p2547 = scmp.lt.s32.totalorder %s20, 1
        %s2548 = scalar_select %p2547, %s20, 1
        %s2549 = smul.addr %s2548, 32
        %s2550 = smul.addr %s2549, 8
        %s2551 = scalar_lea.vmem %s8, %s2550
      $region64: #{residual_conv_forward.3} parent=59 // pred_fallthru
        _
    $region60: #{residual_conv_forward.3} parent=5 // pred_fallthru
      _
  $region6: #{residual_conv_forward.3} parent=0 // loop_footer
    %s18 = sadd.s32 1, %s14
  $region7: #{residual_conv_forward.3} parent=0 // loop_footer_branch
    %13 = sbr.rel target = $region3
  $region8: #{residual_conv_forward.3} parent=0 // loop_exit
    _

// kernel: residual_conv_forward.2
$region0: #{residual_conv_forward.2}
  #allocation0 [shape = 'u32[]', space=smem, size = 0x4, offset = 0x4, fixed_abs, tag = 'smem constant byte address 0x4 - core index']
  #allocation1 [shape = 'u32[144,128]{1,0:T(1,128)}', space=vmem, size = 0x12000, scoped, tag = 'internal scratch']
  #allocation2 [shape = 'bf16[18,18,4]{2,1,0:T(8,128)(2,1)}', space=vmem, size = 0x1b000, scoped, tag = 'scratch operand']
  #allocation3 [shape = 'bf16[18,18,4]{2,1,0:T(8,128)(2,1)}', space=vmem, size = 0x1b000, scoped, tag = 'scratch operand']
  %s0 = inlined_call_operand.vmem [shape: bf16[2,16,16,4], index: 0, kind: input, shape index: {}]
  %s1 = inlined_call_operand.vmem [shape: f32[1,4], index: 1, kind: input, shape index: {}]
  %s2 = inlined_call_operand.vmem [shape: f32[1,4], index: 2, kind: input, shape index: {}]
  %s3 = inlined_call_operand.vmem [shape: bf16[36,8], index: 3, kind: input, shape index: {}]
  %s4 = inlined_call_operand.vmem [shape: f32[1,8], index: 4, kind: input, shape index: {}]
  %s5 = inlined_call_operand.vmem [shape: bf16[36,8], index: 5, kind: input, shape index: {}]
  %s6 = inlined_call_operand.vmem [shape: f32[1,8], index: 6, kind: input, shape index: {}]
  %s7 = inlined_call_operand.vmem [shape: bf16[2,16,16,8], index: 7, kind: output, shape index: {0}]
  %s8 = inlined_call_operand.vmem [shape: bf16[2,16,16,8], index: 8, kind: output, shape index: {1}]
  %s9 = inlined_call_operand.vmem [shape: f32[2,1,8], index: 9, kind: output, shape index: {2}]
  %s10 = inlined_call_operand.vmem [shape: f32[2,1,8], index: 10, kind: output, shape index: {3}]
  %s11 = inlined_call_operand.vmem [shape: f32[2,1,8], index: 11, kind: output, shape index: {4}]
  %s12 = inlined_call_operand.vmem [shape: f32[2,1,8], index: 12, kind: output, shape index: {5}]
  %13 = xla_tuple %s7, %s8, %s9, %s10, %s11, %s12
  %s14 = sld [smem:[#allocation0]]
  $region101: #{residual_conv_forward.2} parent=0
    _
  %s16 = ssub.s32 1, %s14
  %s17 = scalar_select 0, %s16, %s14
  loop: start=0, step=1, limit=4
  $region2: #{residual_conv_forward.2} parent=0 // loop_pre_header
    _
  $region3: #{residual_conv_forward.2} parent=0 // loop_header
    %s19 = sphi 0, %s23
    %p20 = scmp.ge.s32.totalorder %s19, 4
    %s29 = sphi 0, %s31
    %s32 = sphi 0, %s29
    %s33 = sphi 0, %s32
    %s49 = sphi 0, %s33
    %s53 = sphi 0, %s53
    %s55 = sphi 0, %s53
    %s56 = sphi 0, %s55
    %s70 = sphi 0, %s56
    %s74 = sphi 0, %s74
    %s76 = sphi 0, %s74
    %s77 = sphi 0, %s76
    %s91 = sphi 0, %s77
    %s95 = sphi 0, %s95
    %s97 = sphi 0, %s95
    %s98 = sphi 0, %s97
    %s112 = sphi 0, %s98
    %s116 = sphi 0, %s116
    %s118 = sphi 0, %s116
    %s119 = sphi 0, %s118
    %s133 = sphi 0, %s119
    %s137 = sphi 0, %s137
    %s139 = sphi 0, %s137
    %s140 = sphi 0, %s139
    %s154 = sphi 0, %s140
    %s158 = sphi 0, %s158
    %s160 = sphi 0, %s158
    %s161 = sphi 0, %s160
    %s175 = sphi 0, %s161
    %s181 = sphi 0, %s183
    %s184 = sphi 0, %s181
    %s185 = sphi 0, %s184
    %s201 = sphi 0, %s185
    %s207 = sphi 0, %s209
    %s210 = sphi 0, %s207
    %s211 = sphi 0, %s210
    %s227 = sphi 0, %s211
    %s233 = sphi 0, %s235
    %s236 = sphi 0, %s233
    %s237 = sphi 0, %s236
    %s253 = sphi 0, %s237
    %s259 = sphi 0, %s261
    %s262 = sphi 0, %s259
    %s263 = sphi 0, %s262
    %s279 = sphi 0, %s263
    %s285 = sphi 0, %s287
    %s288 = sphi 0, %s285
    %s289 = sphi 0, %s288
    %s305 = sphi 0, %s289
    %s311 = sphi 0, %s313
    %s314 = sphi 0, %s311
    %s315 = sphi 0, %s314
    %s331 = sphi 0, %s315
  $region4: #{residual_conv_forward.2} parent=0 // loop_header_branch
    %22 = sbr.rel (%p20) target = $region8
  $region5: #{residual_conv_forward.2} parent=0 // loop_body
    %s24 = ssub.s32 %s19, 1
    %s25 = ssub.s32 %s19, 2
    %s26 = sadd.s32 %s19, 1
    %s27 = ssub.s32 %s19, %s26
    %p28 = scmp.eq.s32.totalorder %s27, 0
    %s30 = sadd.s32 %s29, 1
    %s31 = scalar_select %p28, %s29, %s30
    %p34 = pneg %p28
    %p35 = scmp.eq.s32.totalorder %s19, 1
    %p36 = por %p34, %p35
    %p37 = scmp.ne.s32.totalorder %s29, %s32
    %p38 = scmp.eq.s32.totalorder %s19, 0
    %p39 = por %p37, %p38
    %p40 = scmp.ne.s32.totalorder %s29, %s32
    %p41 = scmp.eq.s32.totalorder %s24, 1
    %p42 = por %p40, %p41
    %p43 = scmp.ne.s32.totalorder %s32, %s33
    %p44 = scmp.eq.s32.totalorder %s24, 0
    %p45 = por %p43, %p44
    %p46 = scmp.ne.s32.totalorder %s32, %s33
    %p47 = scmp.eq.s32.totalorder %s25, 1
    %p48 = por %p46, %p47
    %p50 = scmp.ne.s32.totalorder %s33, %s49
    %p51 = scmp.eq.s32.totalorder %s25, 0
    %p52 = por %p50, %p51
    %s54 = sadd.s32 %s53, 1
    %p57 = scmp.eq.s32.totalorder %s19, 1
    %p58 = scmp.ne.s32.totalorder %s53, %s55
    %p59 = scmp.eq.s32.totalorder %s19, 0
    %p60 = por %p58, %p59
    %p61 = scmp.ne.s32.totalorder %s53, %s55
    %p62 = scmp.eq.s32.totalorder %s24, 1
    %p63 = por %p61, %p62
    %p64 = scmp.ne.s32.totalorder %s55, %s56
    %p65 = scmp.eq.s32.totalorder %s24, 0
    %p66 = por %p64, %p65
    %p67 = scmp.ne.s32.totalorder %s55, %s56
    %p68 = scmp.eq.s32.totalorder %s25, 1
    %p69 = por %p67, %p68
    %p71 = scmp.ne.s32.totalorder %s56, %s70
    %p72 = scmp.eq.s32.totalorder %s25, 0
    %p73 = por %p71, %p72
    %s75 = sadd.s32 %s74, 1
    %p78 = scmp.eq.s32.totalorder %s19, 1
    %p79 = scmp.ne.s32.totalorder %s74, %s76
    %p80 = scmp.eq.s32.totalorder %s19, 0
    %p81 = por %p79, %p80
    %p82 = scmp.ne.s32.totalorder %s74, %s76
    %p83 = scmp.eq.s32.totalorder %s24, 1
    %p84 = por %p82, %p83
    %p85 = scmp.ne.s32.totalorder %s76, %s77
    %p86 = scmp.eq.s32.totalorder %s24, 0
    %p87 = por %p85, %p86
    %p88 = scmp.ne.s32.totalorder %s76, %s77
    %p89 = scmp.eq.s32.totalorder %s25, 1
    %p90 = por %p88, %p89
    %p92 = scmp.ne.s32.totalorder %s77, %s91
    %p93 = scmp.eq.s32.totalorder %s25, 0
    %p94 = por %p92, %p93
    %s96 = sadd.s32 %s95, 1
    %p99 = scmp.eq.s32.totalorder %s19, 1
    %p100 = scmp.ne.s32.totalorder %s95, %s97
    %p101 = scmp.eq.s32.totalorder %s19, 0
    %p102 = por %p100, %p101
    %p103 = scmp.ne.s32.totalorder %s95, %s97
    %p104 = scmp.eq.s32.totalorder %s24, 1
    %p105 = por %p103, %p104
    %p106 = scmp.ne.s32.totalorder %s97, %s98
    %p107 = scmp.eq.s32.totalorder %s24, 0
    %p108 = por %p106, %p107
    %p109 = scmp.ne.s32.totalorder %s97, %s98
    %p110 = scmp.eq.s32.totalorder %s25, 1
    %p111 = por %p109, %p110
    %p113 = scmp.ne.s32.totalorder %s98, %s112
    %p114 = scmp.eq.s32.totalorder %s25, 0
    %p115 = por %p113, %p114
    %s117 = sadd.s32 %s116, 1
    %p120 = scmp.eq.s32.totalorder %s19, 1
    %p121 = scmp.ne.s32.totalorder %s116, %s118
    %p122 = scmp.eq.s32.totalorder %s19, 0
    %p123 = por %p121, %p122
    %p124 = scmp.ne.s32.totalorder %s116, %s118
    %p125 = scmp.eq.s32.totalorder %s24, 1
    %p126 = por %p124, %p125
    %p127 = scmp.ne.s32.totalorder %s118, %s119
    %p128 = scmp.eq.s32.totalorder %s24, 0
    %p129 = por %p127, %p128
    %p130 = scmp.ne.s32.totalorder %s118, %s119
    %p131 = scmp.eq.s32.totalorder %s25, 1
    %p132 = por %p130, %p131
    %p134 = scmp.ne.s32.totalorder %s119, %s133
    %p135 = scmp.eq.s32.totalorder %s25, 0
    %p136 = por %p134, %p135
    %s138 = sadd.s32 %s137, 1
    %p141 = scmp.eq.s32.totalorder %s19, 1
    %p142 = scmp.ne.s32.totalorder %s137, %s139
    %p143 = scmp.eq.s32.totalorder %s19, 0
    %p144 = por %p142, %p143
    %p145 = scmp.ne.s32.totalorder %s137, %s139
    %p146 = scmp.eq.s32.totalorder %s24, 1
    %p147 = por %p145, %p146
    %p148 = scmp.ne.s32.totalorder %s139, %s140
    %p149 = scmp.eq.s32.totalorder %s24, 0
    %p150 = por %p148, %p149
    %p151 = scmp.ne.s32.totalorder %s139, %s140
    %p152 = scmp.eq.s32.totalorder %s25, 1
    %p153 = por %p151, %p152
    %p155 = scmp.ne.s32.totalorder %s140, %s154
    %p156 = scmp.eq.s32.totalorder %s25, 0
    %p157 = por %p155, %p156
    %s159 = sadd.s32 %s158, 1
    %p162 = scmp.eq.s32.totalorder %s19, 1
    %p163 = scmp.ne.s32.totalorder %s158, %s160
    %p164 = scmp.eq.s32.totalorder %s19, 0
    %p165 = por %p163, %p164
    %p166 = scmp.ne.s32.totalorder %s158, %s160
    %p167 = scmp.eq.s32.totalorder %s24, 1
    %p168 = por %p166, %p167
    %p169 = scmp.ne.s32.totalorder %s160, %s161
    %p170 = scmp.eq.s32.totalorder %s24, 0
    %p171 = por %p169, %p170
    %p172 = scmp.ne.s32.totalorder %s160, %s161
    %p173 = scmp.eq.s32.totalorder %s25, 1
    %p174 = por %p172, %p173
    %p176 = scmp.ne.s32.totalorder %s161, %s175
    %p177 = scmp.eq.s32.totalorder %s25, 0
    %p178 = por %p176, %p177
    %s179 = ssub.s32 %s19, %s26
    %p180 = scmp.eq.s32.totalorder %s179, 0
    %s182 = sadd.s32 %s181, 1
    %s183 = scalar_select %p180, %s181, %s182
    %p186 = pneg %p180
    %p187 = scmp.eq.s32.totalorder %s19, 1
    %p188 = por %p186, %p187
    %p189 = scmp.ne.s32.totalorder %s181, %s184
    %p190 = scmp.eq.s32.totalorder %s19, 0
    %p191 = por %p189, %p190
    %p192 = scmp.ne.s32.totalorder %s181, %s184
    %p193 = scmp.eq.s32.totalorder %s24, 1
    %p194 = por %p192, %p193
    %p195 = scmp.ne.s32.totalorder %s184, %s185
    %p196 = scmp.eq.s32.totalorder %s24, 0
    %p197 = por %p195, %p196
    %p198 = scmp.ne.s32.totalorder %s184, %s185
    %p199 = scmp.eq.s32.totalorder %s25, 1
    %p200 = por %p198, %p199
    %p202 = scmp.ne.s32.totalorder %s185, %s201
    %p203 = scmp.eq.s32.totalorder %s25, 0
    %p204 = por %p202, %p203
    %s205 = ssub.s32 %s19, %s26
    %p206 = scmp.eq.s32.totalorder %s205, 0
    %s208 = sadd.s32 %s207, 1
    %s209 = scalar_select %p206, %s207, %s208
    %p212 = pneg %p206
    %p213 = scmp.eq.s32.totalorder %s19, 1
    %p214 = por %p212, %p213
    %p215 = scmp.ne.s32.totalorder %s207, %s210
    %p216 = scmp.eq.s32.totalorder %s19, 0
    %p217 = por %p215, %p216
    %p218 = scmp.ne.s32.totalorder %s207, %s210
    %p219 = scmp.eq.s32.totalorder %s24, 1
    %p220 = por %p218, %p219
    %p221 = scmp.ne.s32.totalorder %s210, %s211
    %p222 = scmp.eq.s32.totalorder %s24, 0
    %p223 = por %p221, %p222
    %p224 = scmp.ne.s32.totalorder %s210, %s211
    %p225 = scmp.eq.s32.totalorder %s25, 1
    %p226 = por %p224, %p225
    %p228 = scmp.ne.s32.totalorder %s211, %s227
    %p229 = scmp.eq.s32.totalorder %s25, 0
    %p230 = por %p228, %p229
    %s231 = ssub.s32 %s19, %s26
    %p232 = scmp.eq.s32.totalorder %s231, 0
    %s234 = sadd.s32 %s233, 1
    %s235 = scalar_select %p232, %s233, %s234
    %p238 = pneg %p232
    %p239 = scmp.eq.s32.totalorder %s19, 1
    %p240 = por %p238, %p239
    %p241 = scmp.ne.s32.totalorder %s233, %s236
    %p242 = scmp.eq.s32.totalorder %s19, 0
    %p243 = por %p241, %p242
    %p244 = scmp.ne.s32.totalorder %s233, %s236
    %p245 = scmp.eq.s32.totalorder %s24, 1
    %p246 = por %p244, %p245
    %p247 = scmp.ne.s32.totalorder %s236, %s237
    %p248 = scmp.eq.s32.totalorder %s24, 0
    %p249 = por %p247, %p248
    %p250 = scmp.ne.s32.totalorder %s236, %s237
    %p251 = scmp.eq.s32.totalorder %s25, 1
    %p252 = por %p250, %p251
    %p254 = scmp.ne.s32.totalorder %s237, %s253
    %p255 = scmp.eq.s32.totalorder %s25, 0
    %p256 = por %p254, %p255
    %s257 = ssub.s32 %s19, %s26
    %p258 = scmp.eq.s32.totalorder %s257, 0
    %s260 = sadd.s32 %s259, 1
    %s261 = scalar_select %p258, %s259, %s260
    %p264 = pneg %p258
    %p265 = scmp.eq.s32.totalorder %s19, 1
    %p266 = por %p264, %p265
    %p267 = scmp.ne.s32.totalorder %s259, %s262
    %p268 = scmp.eq.s32.totalorder %s19, 0
    %p269 = por %p267, %p268
    %p270 = scmp.ne.s32.totalorder %s259, %s262
    %p271 = scmp.eq.s32.totalorder %s24, 1
    %p272 = por %p270, %p271
    %p273 = scmp.ne.s32.totalorder %s262, %s263
    %p274 = scmp.eq.s32.totalorder %s24, 0
    %p275 = por %p273, %p274
    %p276 = scmp.ne.s32.totalorder %s262, %s263
    %p277 = scmp.eq.s32.totalorder %s25, 1
    %p278 = por %p276, %p277
    %p280 = scmp.ne.s32.totalorder %s263, %s279
    %p281 = scmp.eq.s32.totalorder %s25, 0
    %p282 = por %p280, %p281
    %s283 = ssub.s32 %s19, %s26
    %p284 = scmp.eq.s32.totalorder %s283, 0
    %s286 = sadd.s32 %s285, 1
    %s287 = scalar_select %p284, %s285, %s286
    %p290 = pneg %p284
    %p291 = scmp.eq.s32.totalorder %s19, 1
    %p292 = por %p290, %p291
    %p293 = scmp.ne.s32.totalorder %s285, %s288
    %p294 = scmp.eq.s32.totalorder %s19, 0
    %p295 = por %p293, %p294
    %p296 = scmp.ne.s32.totalorder %s285, %s288
    %p297 = scmp.eq.s32.totalorder %s24, 1
    %p298 = por %p296, %p297
    %p299 = scmp.ne.s32.totalorder %s288, %s289
    %p300 = scmp.eq.s32.totalorder %s24, 0
    %p301 = por %p299, %p300
    %p302 = scmp.ne.s32.totalorder %s288, %s289
    %p303 = scmp.eq.s32.totalorder %s25, 1
    %p304 = por %p302, %p303
    %p306 = scmp.ne.s32.totalorder %s289, %s305
    %p307 = scmp.eq.s32.totalorder %s25, 0
    %p308 = por %p306, %p307
    %s309 = ssub.s32 %s19, %s26
    %p310 = scmp.eq.s32.totalorder %s309, 0
    %s312 = sadd.s32 %s311, 1
    %s313 = scalar_select %p310, %s311, %s312
    %p316 = pneg %p310
    %p317 = scmp.eq.s32.totalorder %s19, 1
    %p318 = por %p316, %p317
    %p319 = scmp.ne.s32.totalorder %s311, %s314
    %p320 = scmp.eq.s32.totalorder %s19, 0
    %p321 = por %p319, %p320
    %p322 = scmp.ne.s32.totalorder %s311, %s314
    %p323 = scmp.eq.s32.totalorder %s24, 1
    %p324 = por %p322, %p323
    %p325 = scmp.ne.s32.totalorder %s314, %s315
    %p326 = scmp.eq.s32.totalorder %s24, 0
    %p327 = por %p325, %p326
    %p328 = scmp.ne.s32.totalorder %s314, %s315
    %p329 = scmp.eq.s32.totalorder %s25, 1
    %p330 = por %p328, %p329
    %p332 = scmp.ne.s32.totalorder %s315, %s331
    %p333 = scmp.eq.s32.totalorder %s25, 0
    %p334 = por %p332, %p333
    %p335 = scmp.le.s32.totalorder 1, %s19
    %p336 = scmp.lt.s32.totalorder %s19, 3
    %p337 = pnand %p335, %p336
    %p338 = pneg %p337
    // Predicated region
    $region9: #{residual_conv_forward.2} parent=5 // pred_check
      _
    $region10: #{residual_conv_forward.2} parent=5 // pred_check_branch
      %340 = sbr.rel (%p337) target = $region12
    $region11: #{residual_conv_forward.2} parent=5 // pred_region
      %s341 = ssub.s32 %s19, 1
      // Predicated region
      $region13: #{residual_conv_forward.2} parent=11 // pred_check
        %p342 = pneg %p66
      $region14: #{residual_conv_forward.2} parent=11 // pred_check_branch
        %344 = sbr.rel (%p342) target = $region16
      $region15: #{residual_conv_forward.2} parent=11 // pred_region
        _
      $region16: #{residual_conv_forward.2} parent=11 // pred_fallthru
        _
      // Predicated region
      $region17: #{residual_conv_forward.2} parent=11 // pred_check
        %p345 = pneg %p87
      $region18: #{residual_conv_forward.2} parent=11 // pred_check_branch
        %347 = sbr.rel (%p345) target = $region20
      $region19: #{residual_conv_forward.2} parent=11 // pred_region
        _
      $region20: #{residual_conv_forward.2} parent=11 // pred_fallthru
        _
      // Predicated region
      $region21: #{residual_conv_forward.2} parent=11 // pred_check
        %p348 = pneg %p108
      $region22: #{residual_conv_forward.2} parent=11 // pred_check_branch
        %350 = sbr.rel (%p348) target = $region24
      $region23: #{residual_conv_forward.2} parent=11 // pred_region
        _
      $region24: #{residual_conv_forward.2} parent=11 // pred_fallthru
        _
      // Predicated region
      $region25: #{residual_conv_forward.2} parent=11 // pred_check
        %p351 = pneg %p129
      $region26: #{residual_conv_forward.2} parent=11 // pred_check_branch
        %353 = sbr.rel (%p351) target = $region28
      $region27: #{residual_conv_forward.2} parent=11 // pred_region
        _
      $region28: #{residual_conv_forward.2} parent=11 // pred_fallthru
        _
      // Predicated region
      $region29: #{residual_conv_forward.2} parent=11 // pred_check
        %p354 = pneg %p150
      $region30: #{residual_conv_forward.2} parent=11 // pred_check_branch
        %356 = sbr.rel (%p354) target = $region32
      $region31: #{residual_conv_forward.2} parent=11 // pred_region
        _
      $region32: #{residual_conv_forward.2} parent=11 // pred_fallthru
        _
      // Predicated region
      $region33: #{residual_conv_forward.2} parent=11 // pred_check
        %p357 = pneg %p171
      $region34: #{residual_conv_forward.2} parent=11 // pred_check_branch
        %359 = sbr.rel (%p357) target = $region36
      $region35: #{residual_conv_forward.2} parent=11 // pred_region
        _
      $region36: #{residual_conv_forward.2} parent=11 // pred_fallthru
        _
    $region12: #{residual_conv_forward.2} parent=5 // pred_fallthru
      _
    %p360 = scmp.lt.s32.totalorder %s19, 2
    // Predicated region
    $region37: #{residual_conv_forward.2} parent=5 // pred_check
      %p361 = pneg %p360
    $region38: #{residual_conv_forward.2} parent=5 // pred_check_branch
      %363 = sbr.rel (%p361) target = $region40
    $region39: #{residual_conv_forward.2} parent=5 // pred_region
      // Predicated region
      $region41: #{residual_conv_forward.2} parent=39 // pred_check
        %p364 = pneg %p39
      $region42: #{residual_conv_forward.2} parent=39 // pred_check_branch
        %366 = sbr.rel (%p364) target = $region44
      $region43: #{residual_conv_forward.2} parent=39 // pred_region
        %p367 = scmp.lt.s32.totalorder %s19, 1
        %s368 = scalar_select %p367, %s19, 1
        %s369 = smul.addr %s368, 32
        %s370 = smul.addr %s369, 4
        %s371 = scalar_lea.vmem %s0, %s370
      $region44: #{residual_conv_forward.2} parent=39 // pred_fallthru
        _
    $region40: #{residual_conv_forward.2} parent=5 // pred_fallthru
      _
    %p372 = scmp.le.s32.totalorder 1, %s19
    %p373 = scmp.lt.s32.totalorder %s19, 3
    %p374 = pnand %p372, %p373
    %p375 = pneg %p374
    // Predicated region
    $region45: #{residual_conv_forward.2} parent=5 // pred_check
      _
    $region46: #{residual_conv_forward.2} parent=5 // pred_check_branch
      %377 = sbr.rel (%p374) target = $region48
    $region47: #{residual_conv_forward.2} parent=5 // pred_region
      %s378 = ssub.s32 %s19, 1
      %p379 = scmp.lt.s32.totalorder %s24, 1
      %s380 = scalar_select %p379, %s24, 1
      %s381 = smul.addr %s380, 32
      %s382 = smul.addr %s381, 4
      %s383 = scalar_lea.vmem %s0, %s382
      %p384 = pneg %p45
      %p385 = pneg %p42
      %p386 = pneg %p66
      %p387 = pneg %p63
      %p388 = pneg %p87
      %p389 = pneg %p84
      %p390 = pneg %p108
      %p391 = pneg %p105
      %p392 = pneg %p129
      %p393 = pneg %p126
      %p394 = pneg %p150
      %p395 = pneg %p147
      %p396 = pneg %p171
      %p397 = pneg %p168
      %p398 = pneg %p197
      %p399 = pneg %p194
      %p400 = scmp.lt.s32.totalorder %s24, 1
      %s401 = scalar_select %p400, %s24, 1
      %s402 = smul.addr %s401, 32
      %s403 = smul.addr %s402, 4
      %s404 = scalar_lea.vmem %s7, %s403
      %p405 = pneg %p223
      %p406 = pneg %p220
      %p407 = scmp.lt.s32.totalorder %s24, 1
      %s408 = scalar_select %p407, %s24, 1
      %s409 = smul.addr %s408, 32
      %s410 = smul.addr %s409, 4
      %s411 = scalar_lea.vmem %s8, %s410
      %p412 = pneg %p249
      %p413 = pneg %p246
      %p414 = scmp.lt.s32.totalorder %s24, 1
      %s415 = scalar_select %p414, %s24, 1
      %s416 = scalar_lea.vmem %s9, %s415
      %p417 = pneg %p275
      %p418 = pneg %p272
      %p419 = scmp.lt.s32.totalorder %s24, 1
      %s420 = scalar_select %p419, %s24, 1
      %s421 = scalar_lea.vmem %s10, %s420
      %p422 = pneg %p301
      %p423 = pneg %p298
      %p424 = scmp.lt.s32.totalorder %s24, 1
      %s425 = scalar_select %p424, %s24, 1
      %s426 = scalar_lea.vmem %s11, %s425
      %p427 = pneg %p327
      %p428 = pneg %p324
      %p429 = scmp.lt.s32.totalorder %s24, 1
      %s430 = scalar_select %p429, %s24, 1
      %s431 = scalar_lea.vmem %s12, %s430
      %p432 = scmp.lt.s32.totalorder %s24, 1
      %s433 = scalar_select %p432, %s24, 1
      %s434 = smul.addr %s433, 32
      %s435 = smul.addr %s434, 4
      %s436 = scalar_lea.vmem %s0, %s435
      %p437 = scmp.lt.s32.totalorder %s24, 1
      %s438 = scalar_select %p437, %s24, 1
      %s439 = smul.addr %s438, 32
      %s440 = smul.addr %s439, 4
      %s441 = scalar_lea.vmem %s7, %s440
      %p442 = scmp.lt.s32.totalorder %s24, 1
      %s443 = scalar_select %p442, %s24, 1
      %s444 = smul.addr %s443, 32
      %s445 = smul.addr %s444, 4
      %s446 = scalar_lea.vmem %s8, %s445
      %p447 = scmp.lt.s32.totalorder %s24, 1
      %s448 = scalar_select %p447, %s24, 1
      %s449 = scalar_lea.vmem %s9, %s448
      %p450 = scmp.lt.s32.totalorder %s24, 1
      %s451 = scalar_select %p450, %s24, 1
      %s452 = scalar_lea.vmem %s10, %s451
      %p453 = scmp.lt.s32.totalorder %s24, 1
      %s454 = scalar_select %p453, %s24, 1
      %s455 = scalar_lea.vmem %s11, %s454
      %p456 = scmp.lt.s32.totalorder %s24, 1
      %s457 = scalar_select %p456, %s24, 1
      %s458 = scalar_lea.vmem %s12, %s457
      %v460 = vld [vmem:[%s436] sm:$0xf]
      %v461 = vld [vmem:[%s436 + $0x4] sm:$0xf]
      %v462 = vld [vmem:[%s436 + $0x8] sm:$0xf]
      %v463 = vld [vmem:[%s436 + $0xc] sm:$0xf]
      %v464 = vld [vmem:[%s436 + $0x10] sm:$0xf]
      %v465 = vld [vmem:[%s436 + $0x14] sm:$0xf]
      %v466 = vld [vmem:[%s436 + $0x18] sm:$0xf]
      %v467 = vld [vmem:[%s436 + $0x1c] sm:$0xf]
      %v468 = vld [vmem:[%s436 + $0x20] sm:$0xf]
      %v469 = vld [vmem:[%s436 + $0x24] sm:$0xf]
      %v470 = vld [vmem:[%s436 + $0x28] sm:$0xf]
      %v471 = vld [vmem:[%s436 + $0x2c] sm:$0xf]
      %v472 = vld [vmem:[%s436 + $0x30] sm:$0xf]
      %v473 = vld [vmem:[%s436 + $0x34] sm:$0xf]
      %v474 = vld [vmem:[%s436 + $0x38] sm:$0xf]
      %v475 = vld [vmem:[%s436 + $0x3c] sm:$0xf]
      %v476 = vld [vmem:[%s436 + $0x40] sm:$0xf]
      %v477 = vld [vmem:[%s436 + $0x44] sm:$0xf]
      %v478 = vld [vmem:[%s436 + $0x48] sm:$0xf]
      %v479 = vld [vmem:[%s436 + $0x4c] sm:$0xf]
      %v480 = vld [vmem:[%s436 + $0x50] sm:$0xf]
      %v481 = vld [vmem:[%s436 + $0x54] sm:$0xf]
      %v482 = vld [vmem:[%s436 + $0x58] sm:$0xf]
      %v483 = vld [vmem:[%s436 + $0x5c] sm:$0xf]
      %v484 = vld [vmem:[%s436 + $0x60] sm:$0xf]
      %v485 = vld [vmem:[%s436 + $0x64] sm:$0xf]
      %v486 = vld [vmem:[%s436 + $0x68] sm:$0xf]
      %v487 = vld [vmem:[%s436 + $0x6c] sm:$0xf]
      %v488 = vld [vmem:[%s436 + $0x70] sm:$0xf]
      %v489 = vld [vmem:[%s436 + $0x74] sm:$0xf]
      %v490 = vld [vmem:[%s436 + $0x78] sm:$0xf]
      %v491 = vld [vmem:[%s436 + $0x7c] sm:$0xf]
      %v492 = vunpack.c.l.bf16 %v460
      %v493 = vunpack.c.l.bf16 %v461
      %v494 = vunpack.c.l.bf16 %v462
      %v495 = vunpack.c.l.bf16 %v463
      %v496 = vunpack.c.l.bf16 %v464
      %v497 = vunpack.c.l.bf16 %v465
      %v498 = vunpack.c.l.bf16 %v466
      %v499 = vunpack.c.l.bf16 %v467
      %v500 = vunpack.c.l.bf16 %v468
      %v501 = vunpack.c.l.bf16 %v469
      %v502 = vunpack.c.l.bf16 %v470
      %v503 = vunpack.c.l.bf16 %v471
      %v504 = vunpack.c.l.bf16 %v472
      %v505 = vunpack.c.l.bf16 %v473
      %v506 = vunpack.c.l.bf16 %v474
      %v507 = vunpack.c.l.bf16 %v475
      %v508 = vunpack.c.l.bf16 %v476
      %v509 = vunpack.c.l.bf16 %v477
      %v510 = vunpack.c.l.bf16 %v478
      %v511 = vunpack.c.l.bf16 %v479
      %v512 = vunpack.c.l.bf16 %v480
      %v513 = vunpack.c.l.bf16 %v481
      %v514 = vunpack.c.l.bf16 %v482
      %v515 = vunpack.c.l.bf16 %v483
      %v516 = vunpack.c.l.bf16 %v484
      %v517 = vunpack.c.l.bf16 %v485
      %v518 = vunpack.c.l.bf16 %v486
      %v519 = vunpack.c.l.bf16 %v487
      %v520 = vunpack.c.l.bf16 %v488
      %v521 = vunpack.c.l.bf16 %v489
      %v522 = vunpack.c.l.bf16 %v490
      %v523 = vunpack.c.l.bf16 %v491
      %v524 = vld [vmem:[%s1] sm:$0x1]
      %v526 = vlaneseq
      %v527 = vshrl.u32 %v526, 7
      %v528 = vsub.s32 0, %v527
      %v529 = vrot.slane %v524, %v528
      %v531 = vmul.f32 %v492, %v529
      %v532 = vmul.f32 %v493, %v529
      %v533 = vmul.f32 %v494, %v529
      %v534 = vmul.f32 %v495, %v529
      %v535 = vmul.f32 %v496, %v529
      %v536 = vmul.f32 %v497, %v529
      %v537 = vmul.f32 %v498, %v529
      %v538 = vmul.f32 %v499, %v529
      %v539 = vmul.f32 %v500, %v529
      %v540 = vmul.f32 %v501, %v529
      %v541 = vmul.f32 %v502, %v529
      %v542 = vmul.f32 %v503, %v529
      %v543 = vmul.f32 %v504, %v529
      %v544 = vmul.f32 %v505, %v529
      %v545 = vmul.f32 %v506, %v529
      %v546 = vmul.f32 %v507, %v529
      %v547 = vmul.f32 %v508, %v529
      %v548 = vmul.f32 %v509, %v529
      %v549 = vmul.f32 %v510, %v529
      %v550 = vmul.f32 %v511, %v529
      %v551 = vmul.f32 %v512, %v529
      %v552 = vmul.f32 %v513, %v529
      %v553 = vmul.f32 %v514, %v529
      %v554 = vmul.f32 %v515, %v529
      %v555 = vmul.f32 %v516, %v529
      %v556 = vmul.f32 %v517, %v529
      %v557 = vmul.f32 %v518, %v529
      %v558 = vmul.f32 %v519, %v529
      %v559 = vmul.f32 %v520, %v529
      %v560 = vmul.f32 %v521, %v529
      %v561 = vmul.f32 %v522, %v529
      %v562 = vmul.f32 %v523, %v529
      %v563 = vld [vmem:[%s2] sm:$0x1]
      %v565 = vlaneseq
      %v566 = vshrl.u32 %v565, 7
      %v567 = vsub.s32 0, %v566
      %v568 = vrot.slane %v563, %v567
      %v570 = vadd.f32 %v531, %v568
      %v571 = vadd.f32 %v532, %v568
      %v572 = vadd.f32 %v533, %v568
      %v573 = vadd.f32 %v534, %v568
      %v574 = vadd.f32 %v535, %v568
      %v575 = vadd.f32 %v536, %v568
      %v576 = vadd.f32 %v537, %v568
      %v577 = vadd.f32 %v538, %v568
      %v578 = vadd.f32 %v539, %v568
      %v579 = vadd.f32 %v540, %v568
      %v580 = vadd.f32 %v541, %v568
      %v581 = vadd.f32 %v542, %v568
      %v582 = vadd.f32 %v543, %v568
      %v583 = vadd.f32 %v544, %v568
      %v584 = vadd.f32 %v545, %v568
      %v585 = vadd.f32 %v546, %v568
      %v586 = vadd.f32 %v547, %v568
      %v587 = vadd.f32 %v548, %v568
      %v588 = vadd.f32 %v549, %v568
      %v589 = vadd.f32 %v550, %v568
      %v590 = vadd.f32 %v551, %v568
      %v591 = vadd.f32 %v552, %v568
      %v592 = vadd.f32 %v553, %v568
      %v593 = vadd.f32 %v554, %v568
      %v594 = vadd.f32 %v555, %v568
      %v595 = vadd.f32 %v556, %v568
      %v596 = vadd.f32 %v557, %v568
      %v597 = vadd.f32 %v558, %v568
      %v598 = vadd.f32 %v559, %v568
      %v599 = vadd.f32 %v560, %v568
      %v600 = vadd.f32 %v561, %v568
      %v601 = vadd.f32 %v562, %v568
      %v602 = vmax.f32 %v570, 0.0
      %v603 = vmax.f32 %v571, 0.0
      %v604 = vmax.f32 %v572, 0.0
      %v605 = vmax.f32 %v573, 0.0
      %v606 = vmax.f32 %v574, 0.0
      %v607 = vmax.f32 %v575, 0.0
      %v608 = vmax.f32 %v576, 0.0
      %v609 = vmax.f32 %v577, 0.0
      %v610 = vmax.f32 %v578, 0.0
      %v611 = vmax.f32 %v579, 0.0
      %v612 = vmax.f32 %v580, 0.0
      %v613 = vmax.f32 %v581, 0.0
      %v614 = vmax.f32 %v582, 0.0
      %v615 = vmax.f32 %v583, 0.0
      %v616 = vmax.f32 %v584, 0.0
      %v617 = vmax.f32 %v585, 0.0
      %v618 = vmax.f32 %v586, 0.0
      %v619 = vmax.f32 %v587, 0.0
      %v620 = vmax.f32 %v588, 0.0
      %v621 = vmax.f32 %v589, 0.0
      %v622 = vmax.f32 %v590, 0.0
      %v623 = vmax.f32 %v591, 0.0
      %v624 = vmax.f32 %v592, 0.0
      %v625 = vmax.f32 %v593, 0.0
      %v626 = vmax.f32 %v594, 0.0
      %v627 = vmax.f32 %v595, 0.0
      %v628 = vmax.f32 %v596, 0.0
      %v629 = vmax.f32 %v597, 0.0
      %v630 = vmax.f32 %v598, 0.0
      %v631 = vmax.f32 %v599, 0.0
      %v632 = vmax.f32 %v600, 0.0
      %v633 = vmax.f32 %v601, 0.0
      %vm634 = vcmask 27648
      %635 = vst.msk [vmem:[#allocation2] sm:$0xf] %vm634, 0
      %636 = vst.msk [vmem:[#allocation2 + $0x4] sm:$0xf] %vm634, 0
      %vm637 = vcmask 24576
      %638 = vst.msk [vmem:[#allocation2 + $0x8] sm:$0x1] %vm637, 0
      %639 = vst.msk [vmem:[#allocation2 + $0xc] sm:$0xf] %vm634, 0
      %640 = vst.msk [vmem:[#allocation2 + $0x10] sm:$0xf] %vm634, 0
      %641 = vst.msk [vmem:[#allocation2 + $0x14] sm:$0x1] %vm637, 0
      %642 = vst.msk [vmem:[#allocation2 + $0x18] sm:$0xf] %vm634, 0
      %643 = vst.msk [vmem:[#allocation2 + $0x1c] sm:$0xf] %vm634, 0
      %644 = vst.msk [vmem:[#allocation2 + $0x20] sm:$0x1] %vm637, 0
      %645 = vst.msk [vmem:[#allocation2 + $0x24] sm:$0xf] %vm634, 0
      %646 = vst.msk [vmem:[#allocation2 + $0x28] sm:$0xf] %vm634, 0
      %647 = vst.msk [vmem:[#allocation2 + $0x2c] sm:$0x1] %vm637, 0
      %648 = vst.msk [vmem:[#allocation2 + $0x30] sm:$0xf] %vm634, 0
      %649 = vst.msk [vmem:[#allocation2 + $0x34] sm:$0xf] %vm634, 0
      %650 = vst.msk [vmem:[#allocation2 + $0x38] sm:$0x1] %vm637, 0
      %651 = vst.msk [vmem:[#allocation2 + $0x3c] sm:$0xf] %vm634, 0
      %652 = vst.msk [vmem:[#allocation2 + $0x40] sm:$0xf] %vm634, 0
      %653 = vst.msk [vmem:[#allocation2 + $0x44] sm:$0x1] %vm637, 0
      %654 = vst.msk [vmem:[#allocation2 + $0x48] sm:$0xf] %vm634, 0
      %655 = vst.msk [vmem:[#allocation2 + $0x4c] sm:$0xf] %vm634, 0
      %656 = vst.msk [vmem:[#allocation2 + $0x50] sm:$0x1] %vm637, 0
      %657 = vst.msk [vmem:[#allocation2 + $0x54] sm:$0xf] %vm634, 0
      %658 = vst.msk [vmem:[#allocation2 + $0x58] sm:$0xf] %vm634, 0
      %659 = vst.msk [vmem:[#allocation2 + $0x5c] sm:$0x1] %vm637, 0
      %660 = vst.msk [vmem:[#allocation2 + $0x60] sm:$0xf] %vm634, 0
      %661 = vst.msk [vmem:[#allocation2 + $0x64] sm:$0xf] %vm634, 0
      %662 = vst.msk [vmem:[#allocation2 + $0x68] sm:$0x1] %vm637, 0
      %663 = vst.msk [vmem:[#allocation2 + $0x6c] sm:$0xf] %vm634, 0
      %664 = vst.msk [vmem:[#allocation2 + $0x70] sm:$0xf] %vm634, 0
      %665 = vst.msk [vmem:[#allocation2 + $0x74] sm:$0x1] %vm637, 0
      %666 = vst.msk [vmem:[#allocation2 + $0x78] sm:$0xf] %vm634, 0
      %667 = vst.msk [vmem:[#allocation2 + $0x7c] sm:$0xf] %vm634, 0
      %668 = vst.msk [vmem:[#allocation2 + $0x80] sm:$0x1] %vm637, 0
      %669 = vst.msk [vmem:[#allocation2 + $0x84] sm:$0xf] %vm634, 0
      %670 = vst.msk [vmem:[#allocation2 + $0x88] sm:$0xf] %vm634, 0
      %671 = vst.msk [vmem:[#allocation2 + $0x8c] sm:$0x1] %vm637, 0
      %672 = vst.msk [vmem:[#allocation2 + $0x90] sm:$0xf] %vm634, 0
      %673 = vst.msk [vmem:[#allocation2 + $0x94] sm:$0xf] %vm634, 0
      %674 = vst.msk [vmem:[#allocation2 + $0x98] sm:$0x1] %vm637, 0
      %675 = vst.msk [vmem:[#allocation2 + $0x9c] sm:$0xf] %vm634, 0
      %676 = vst.msk [vmem:[#allocation2 + $0xa0] sm:$0xf] %vm634, 0
      %677 = vst.msk [vmem:[#allocation2 + $0xa4] sm:$0x1] %vm637, 0
      %678 = vst.msk [vmem:[#allocation2 + $0xa8] sm:$0xf] %vm634, 0
      %679 = vst.msk [vmem:[#allocation2 + $0xac] sm:$0xf] %vm634, 0
      %680 = vst.msk [vmem:[#allocation2 + $0xb0] sm:$0x1] %vm637, 0
      %681 = vst.msk [vmem:[#allocation2 + $0xb4] sm:$0xf] %vm634, 0
      %682 = vst.msk [vmem:[#allocation2 + $0xb8] sm:$0xf] %vm634, 0
      %683 = vst.msk [vmem:[#allocation2 + $0xbc] sm:$0x1] %vm637, 0
      %684 = vst.msk [vmem:[#allocation2 + $0xc0] sm:$0xf] %vm634, 0
      %685 = vst.msk [vmem:[#allocation2 + $0xc4] sm:$0xf] %vm634, 0
      %686 = vst.msk [vmem:[#allocation2 + $0xc8] sm:$0x1] %vm637, 0
      %687 = vst.msk [vmem:[#allocation2 + $0xcc] sm:$0xf] %vm634, 0
      %688 = vst.msk [vmem:[#allocation2 + $0xd0] sm:$0xf] %vm634, 0
      %689 = vst.msk [vmem:[#allocation2 + $0xd4] sm:$0x1] %vm637, 0
      %690 = vst.msk [vmem:[#allocation3] sm:$0xf] %vm634, 0
      %691 = vst.msk [vmem:[#allocation3 + $0x4] sm:$0xf] %vm634, 0
      %692 = vst.msk [vmem:[#allocation3 + $0x8] sm:$0x1] %vm637, 0
      %693 = vst.msk [vmem:[#allocation3 + $0xc] sm:$0xf] %vm634, 0
      %694 = vst.msk [vmem:[#allocation3 + $0x10] sm:$0xf] %vm634, 0
      %695 = vst.msk [vmem:[#allocation3 + $0x14] sm:$0x1] %vm637, 0
      %696 = vst.msk [vmem:[#allocation3 + $0x18] sm:$0xf] %vm634, 0
      %697 = vst.msk [vmem:[#allocation3 + $0x1c] sm:$0xf] %vm634, 0
      %698 = vst.msk [vmem:[#allocation3 + $0x20] sm:$0x1] %vm637, 0
      %699 = vst.msk [vmem:[#allocation3 + $0x24] sm:$0xf] %vm634, 0
      %700 = vst.msk [vmem:[#allocation3 + $0x28] sm:$0xf] %vm634, 0
      %701 = vst.msk [vmem:[#allocation3 + $0x2c] sm:$0x1] %vm637, 0
      %702 = vst.msk [vmem:[#allocation3 + $0x30] sm:$0xf] %vm634, 0
      %703 = vst.msk [vmem:[#allocation3 + $0x34] sm:$0xf] %vm634, 0
      %704 = vst.msk [vmem:[#allocation3 + $0x38] sm:$0x1] %vm637, 0
      %705 = vst.msk [vmem:[#allocation3 + $0x3c] sm:$0xf] %vm634, 0
      %706 = vst.msk [vmem:[#allocation3 + $0x40] sm:$0xf] %vm634, 0
      %707 = vst.msk [vmem:[#allocation3 + $0x44] sm:$0x1] %vm637, 0
      %708 = vst.msk [vmem:[#allocation3 + $0x48] sm:$0xf] %vm634, 0
      %709 = vst.msk [vmem:[#allocation3 + $0x4c] sm:$0xf] %vm634, 0
      %710 = vst.msk [vmem:[#allocation3 + $0x50] sm:$0x1] %vm637, 0
      %711 = vst.msk [vmem:[#allocation3 + $0x54] sm:$0xf] %vm634, 0
      %712 = vst.msk [vmem:[#allocation3 + $0x58] sm:$0xf] %vm634, 0
      %713 = vst.msk [vmem:[#allocation3 + $0x5c] sm:$0x1] %vm637, 0
      %714 = vst.msk [vmem:[#allocation3 + $0x60] sm:$0xf] %vm634, 0
      %715 = vst.msk [vmem:[#allocation3 + $0x64] sm:$0xf] %vm634, 0
      %716 = vst.msk [vmem:[#allocation3 + $0x68] sm:$0x1] %vm637, 0
      %717 = vst.msk [vmem:[#allocation3 + $0x6c] sm:$0xf] %vm634, 0
      %718 = vst.msk [vmem:[#allocation3 + $0x70] sm:$0xf] %vm634, 0
      %719 = vst.msk [vmem:[#allocation3 + $0x74] sm:$0x1] %vm637, 0
      %720 = vst.msk [vmem:[#allocation3 + $0x78] sm:$0xf] %vm634, 0
      %721 = vst.msk [vmem:[#allocation3 + $0x7c] sm:$0xf] %vm634, 0
      %722 = vst.msk [vmem:[#allocation3 + $0x80] sm:$0x1] %vm637, 0
      %723 = vst.msk [vmem:[#allocation3 + $0x84] sm:$0xf] %vm634, 0
      %724 = vst.msk [vmem:[#allocation3 + $0x88] sm:$0xf] %vm634, 0
      %725 = vst.msk [vmem:[#allocation3 + $0x8c] sm:$0x1] %vm637, 0
      %726 = vst.msk [vmem:[#allocation3 + $0x90] sm:$0xf] %vm634, 0
      %727 = vst.msk [vmem:[#allocation3 + $0x94] sm:$0xf] %vm634, 0
      %728 = vst.msk [vmem:[#allocation3 + $0x98] sm:$0x1] %vm637, 0
      %729 = vst.msk [vmem:[#allocation3 + $0x9c] sm:$0xf] %vm634, 0
      %730 = vst.msk [vmem:[#allocation3 + $0xa0] sm:$0xf] %vm634, 0
      %731 = vst.msk [vmem:[#allocation3 + $0xa4] sm:$0x1] %vm637, 0
      %732 = vst.msk [vmem:[#allocation3 + $0xa8] sm:$0xf] %vm634, 0
      %733 = vst.msk [vmem:[#allocation3 + $0xac] sm:$0xf] %vm634, 0
      %734 = vst.msk [vmem:[#allocation3 + $0xb0] sm:$0x1] %vm637, 0
      %735 = vst.msk [vmem:[#allocation3 + $0xb4] sm:$0xf] %vm634, 0
      %736 = vst.msk [vmem:[#allocation3 + $0xb8] sm:$0xf] %vm634, 0
      %737 = vst.msk [vmem:[#allocation3 + $0xbc] sm:$0x1] %vm637, 0
      %738 = vst.msk [vmem:[#allocation3 + $0xc0] sm:$0xf] %vm634, 0
      %739 = vst.msk [vmem:[#allocation3 + $0xc4] sm:$0xf] %vm634, 0
      %740 = vst.msk [vmem:[#allocation3 + $0xc8] sm:$0x1] %vm637, 0
      %741 = vst.msk [vmem:[#allocation3 + $0xcc] sm:$0xf] %vm634, 0
      %742 = vst.msk [vmem:[#allocation3 + $0xd0] sm:$0xf] %vm634, 0
      %743 = vst.msk [vmem:[#allocation3 + $0xd4] sm:$0x1] %vm637, 0
      %v744 = vpack.c.bf16 %v603, %v602
      %v745 = vpack.c.bf16 %v605, %v604
      %v746 = vpack.c.bf16 %v607, %v606
      %v747 = vpack.c.bf16 %v609, %v608
      %v748 = vpack.c.bf16 %v611, %v610
      %v749 = vpack.c.bf16 %v613, %v612
      %v750 = vpack.c.bf16 %v615, %v614
      %v751 = vpack.c.bf16 %v617, %v616
      %v752 = vpack.c.bf16 %v619, %v618
      %v753 = vpack.c.bf16 %v621, %v620
      %v754 = vpack.c.bf16 %v623, %v622
      %v755 = vpack.c.bf16 %v625, %v624
      %v756 = vpack.c.bf16 %v627, %v626
      %v757 = vpack.c.bf16 %v629, %v628
      %v758 = vpack.c.bf16 %v631, %v630
      %v759 = vpack.c.bf16 %v633, %v632
      %v776 = vunpack.c.l.b16 %v744
      %v777 = vunpack.c.h.b16 %v744
      %v778 = vunpack.c.l.b16 %v745
      %v779 = vunpack.c.h.b16 %v745
      %v780 = vunpack.c.l.b16 %v746
      %v781 = vunpack.c.h.b16 %v746
      %v782 = vunpack.c.l.b16 %v747
      %v783 = vunpack.c.h.b16 %v747
      %v784 = vunpack.c.l.b16 %v748
      %v785 = vunpack.c.h.b16 %v748
      %v786 = vunpack.c.l.b16 %v749
      %v787 = vunpack.c.h.b16 %v749
      %v788 = vunpack.c.l.b16 %v750
      %v789 = vunpack.c.h.b16 %v750
      %v790 = vunpack.c.l.b16 %v751
      %v791 = vunpack.c.h.b16 %v751
      %v792 = vunpack.c.l.b16 %v752
      %v793 = vunpack.c.h.b16 %v752
      %v794 = vunpack.c.l.b16 %v753
      %v795 = vunpack.c.h.b16 %v753
      %v796 = vunpack.c.l.b16 %v754
      %v797 = vunpack.c.h.b16 %v754
      %v798 = vunpack.c.l.b16 %v755
      %v799 = vunpack.c.h.b16 %v755
      %v800 = vunpack.c.l.b16 %v756
      %v801 = vunpack.c.h.b16 %v756
      %v802 = vunpack.c.l.b16 %v757
      %v803 = vunpack.c.h.b16 %v757
      %v804 = vunpack.c.l.b16 %v758
      %v805 = vunpack.c.h.b16 %v758
      %v806 = vunpack.c.l.b16 %v759
      %v807 = vunpack.c.h.b16 %v759
      %v808 = vpack.c.b16 %v776, %v776
      %v809 = vpack.c.b16 %v777, %v777
      %v810 = vpack.c.b16 %v778, %v778
      %v811 = vpack.c.b16 %v779, %v779
      %v812 = vpack.c.b16 %v780, %v780
      %v813 = vpack.c.b16 %v781, %v781
      %v814 = vpack.c.b16 %v782, %v782
      %v815 = vpack.c.b16 %v783, %v783
      %v816 = vpack.c.b16 %v784, %v784
      %v817 = vpack.c.b16 %v785, %v785
      %v818 = vpack.c.b16 %v786, %v786
      %v819 = vpack.c.b16 %v787, %v787
      %v820 = vpack.c.b16 %v788, %v788
      %v821 = vpack.c.b16 %v789, %v789
      %v822 = vpack.c.b16 %v790, %v790
      %v823 = vpack.c.b16 %v791, %v791
      %v824 = vpack.c.b16 %v792, %v792
      %v825 = vpack.c.b16 %v793, %v793
      %v826 = vpack.c.b16 %v794, %v794
      %v827 = vpack.c.b16 %v795, %v795
      %v828 = vpack.c.b16 %v796, %v796
      %v829 = vpack.c.b16 %v797, %v797
      %v830 = vpack.c.b16 %v798, %v798
      %v831 = vpack.c.b16 %v799, %v799
      %v832 = vpack.c.b16 %v800, %v800
      %v833 = vpack.c.b16 %v801, %v801
      %v834 = vpack.c.b16 %v802, %v802
      %v835 = vpack.c.b16 %v803, %v803
      %v836 = vpack.c.b16 %v804, %v804
      %v837 = vpack.c.b16 %v805, %v805
      %v838 = vpack.c.b16 %v806, %v806
      %v839 = vpack.c.b16 %v807, %v807
      %vm840 = vsmask.f32 256
      %vm841 = vsmask.f32 4368
      %vm842 = vmor %vm840, %vm841
      %v844 = vshrl.u32 %v808, 16
      %v846 = vrot.slane %v844, 7
      %v847 = vshll.u32 %v808, 16
      %v849 = vor.u32 %v846, %v847
      %v850 = vrot.slane %v846, 4
      %v852 = vshrl.u32 %v809, 16
      %v854 = vrot.slane %v852, 7
      %v855 = vshll.u32 %v809, 16
      %v857 = vor.u32 %v854, %v855
      %v858 = vsel %vm842, %v850, %v857
      %v859 = vrot.slane %v854, 4
      %v861 = vshrl.u32 %v810, 16
      %v863 = vrot.slane %v861, 7
      %v864 = vshll.u32 %v810, 16
      %v866 = vor.u32 %v863, %v864
      %v867 = vrot.slane %v863, 4
      %v869 = vshrl.u32 %v811, 16
      %v871 = vrot.slane %v869, 7
      %v872 = vshll.u32 %v811, 16
      %v874 = vor.u32 %v871, %v872
      %v875 = vsel %vm842, %v867, %v874
      %v876 = vrot.slane %v871, 4
      %v878 = vshrl.u32 %v812, 16
      %v880 = vrot.slane %v878, 7
      %v881 = vshll.u32 %v812, 16
      %v883 = vor.u32 %v880, %v881
      %v884 = vrot.slane %v880, 4
      %v886 = vshrl.u32 %v813, 16
      %v888 = vrot.slane %v886, 7
      %v889 = vshll.u32 %v813, 16
      %v891 = vor.u32 %v888, %v889
      %v892 = vsel %vm842, %v884, %v891
      %v893 = vrot.slane %v888, 4
      %v895 = vshrl.u32 %v814, 16
      %v897 = vrot.slane %v895, 7
      %v898 = vshll.u32 %v814, 16
      %v900 = vor.u32 %v897, %v898
      %v901 = vrot.slane %v897, 4
      %v903 = vshrl.u32 %v815, 16
      %v905 = vrot.slane %v903, 7
      %v906 = vshll.u32 %v815, 16
      %v908 = vor.u32 %v905, %v906
      %v909 = vsel %vm842, %v901, %v908
      %v910 = vrot.slane %v905, 4
      %v912 = vshrl.u32 %v816, 16
      %v914 = vrot.slane %v912, 7
      %v915 = vshll.u32 %v816, 16
      %v917 = vor.u32 %v914, %v915
      %v918 = vrot.slane %v914, 4
      %v920 = vshrl.u32 %v817, 16
      %v922 = vrot.slane %v920, 7
      %v923 = vshll.u32 %v817, 16
      %v925 = vor.u32 %v922, %v923
      %v926 = vsel %vm842, %v918, %v925
      %v927 = vrot.slane %v922, 4
      %v929 = vshrl.u32 %v818, 16
      %v931 = vrot.slane %v929, 7
      %v932 = vshll.u32 %v818, 16
      %v934 = vor.u32 %v931, %v932
      %v935 = vrot.slane %v931, 4
      %v937 = vshrl.u32 %v819, 16
      %v939 = vrot.slane %v937, 7
      %v940 = vshll.u32 %v819, 16
      %v942 = vor.u32 %v939, %v940
      %v943 = vsel %vm842, %v935, %v942
      %v944 = vrot.slane %v939, 4
      %v946 = vshrl.u32 %v820, 16
      %v948 = vrot.slane %v946, 7
      %v949 = vshll.u32 %v820, 16
      %v951 = vor.u32 %v948, %v949
      %v952 = vrot.slane %v948, 4
      %v954 = vshrl.u32 %v821, 16
      %v956 = vrot.slane %v954, 7
      %v957 = vshll.u32 %v821, 16
      %v959 = vor.u32 %v956, %v957
      %v960 = vsel %vm842, %v952, %v959
      %v961 = vrot.slane %v956, 4
      %v963 = vshrl.u32 %v822, 16
      %v965 = vrot.slane %v963, 7
      %v966 = vshll.u32 %v822, 16
      %v968 = vor.u32 %v965, %v966
      %v969 = vrot.slane %v965, 4
      %v971 = vshrl.u32 %v823, 16
      %v973 = vrot.slane %v971, 7
      %v974 = vshll.u32 %v823, 16
      %v976 = vor.u32 %v973, %v974
      %v977 = vsel %vm842, %v969, %v976
      %v978 = vrot.slane %v973, 4
      %v980 = vshrl.u32 %v824, 16
      %v982 = vrot.slane %v980, 7
      %v983 = vshll.u32 %v824, 16
      %v985 = vor.u32 %v982, %v983
      %v986 = vrot.slane %v982, 4
      %v988 = vshrl.u32 %v825, 16
      %v990 = vrot.slane %v988, 7
      %v991 = vshll.u32 %v825, 16
      %v993 = vor.u32 %v990, %v991
      %v994 = vsel %vm842, %v986, %v993
      %v995 = vrot.slane %v990, 4
      %v997 = vshrl.u32 %v826, 16
      %v999 = vrot.slane %v997, 7
      %v1000 = vshll.u32 %v826, 16
      %v1002 = vor.u32 %v999, %v1000
      %v1003 = vrot.slane %v999, 4
      %v1005 = vshrl.u32 %v827, 16
      %v1007 = vrot.slane %v1005, 7
      %v1008 = vshll.u32 %v827, 16
      %v1010 = vor.u32 %v1007, %v1008
      %v1011 = vsel %vm842, %v1003, %v1010
      %v1012 = vrot.slane %v1007, 4
      %v1014 = vshrl.u32 %v828, 16
      %v1016 = vrot.slane %v1014, 7
      %v1017 = vshll.u32 %v828, 16
      %v1019 = vor.u32 %v1016, %v1017
      %v1020 = vrot.slane %v1016, 4
      %v1022 = vshrl.u32 %v829, 16
      %v1024 = vrot.slane %v1022, 7
      %v1025 = vshll.u32 %v829, 16
      %v1027 = vor.u32 %v1024, %v1025
      %v1028 = vsel %vm842, %v1020, %v1027
      %v1029 = vrot.slane %v1024, 4
      %v1031 = vshrl.u32 %v830, 16
      %v1033 = vrot.slane %v1031, 7
      %v1034 = vshll.u32 %v830, 16
      %v1036 = vor.u32 %v1033, %v1034
      %v1037 = vrot.slane %v1033, 4
      %v1039 = vshrl.u32 %v831, 16
      %v1041 = vrot.slane %v1039, 7
      %v1042 = vshll.u32 %v831, 16
      %v1044 = vor.u32 %v1041, %v1042
      %v1045 = vsel %vm842, %v1037, %v1044
      %v1046 = vrot.slane %v1041, 4
      %v1048 = vshrl.u32 %v832, 16
      %v1050 = vrot.slane %v1048, 7
      %v1051 = vshll.u32 %v832, 16
      %v1053 = vor.u32 %v1050, %v1051
      %v1054 = vrot.slane %v1050, 4
      %v1056 = vshrl.u32 %v833, 16
      %v1058 = vrot.slane %v1056, 7
      %v1059 = vshll.u32 %v833, 16
      %v1061 = vor.u32 %v1058, %v1059
      %v1062 = vsel %vm842, %v1054, %v1061
      %v1063 = vrot.slane %v1058, 4
      %v1065 = vshrl.u32 %v834, 16
      %v1067 = vrot.slane %v1065, 7
      %v1068 = vshll.u32 %v834, 16
      %v1070 = vor.u32 %v1067, %v1068
      %v1071 = vrot.slane %v1067, 4
      %v1073 = vshrl.u32 %v835, 16
      %v1075 = vrot.slane %v1073, 7
      %v1076 = vshll.u32 %v835, 16
      %v1078 = vor.u32 %v1075, %v1076
      %v1079 = vsel %vm842, %v1071, %v1078
      %v1080 = vrot.slane %v1075, 4
      %v1082 = vshrl.u32 %v836, 16
      %v1084 = vrot.slane %v1082, 7
      %v1085 = vshll.u32 %v836, 16
      %v1087 = vor.u32 %v1084, %v1085
      %v1088 = vrot.slane %v1084, 4
      %v1090 = vshrl.u32 %v837, 16
      %v1092 = vrot.slane %v1090, 7
      %v1093 = vshll.u32 %v837, 16
      %v1095 = vor.u32 %v1092, %v1093
      %v1096 = vsel %vm842, %v1088, %v1095
      %v1097 = vrot.slane %v1092, 4
      %v1099 = vshrl.u32 %v838, 16
      %v1101 = vrot.slane %v1099, 7
      %v1102 = vshll.u32 %v838, 16
      %v1104 = vor.u32 %v1101, %v1102
      %v1105 = vrot.slane %v1101, 4
      %v1107 = vshrl.u32 %v839, 16
      %v1109 = vrot.slane %v1107, 7
      %v1110 = vshll.u32 %v839, 16
      %v1112 = vor.u32 %v1109, %v1110
      %v1113 = vsel %vm842, %v1105, %v1112
      %v1114 = vrot.slane %v1109, 4
      %s1163 = scalar_lea.vmem [#allocation2], 12
      %vm1164 = vcmask 27648
      %vm1165 = vsmask.f32 7938
      %vm1166 = vmand %vm1164, %vm1165
      %v1167 = vld [vmem:[%s1163] sm:$0xf]
      %v1168 = vsel %vm1166, %v849, %v1167
      %1169 = vst [vmem:[%s1163] sm:$0xf] %v1168
      %1170 = vst.msk [vmem:[%s1163 + $0x4] sm:$0xf] %vm634, %v858
      %vm1171 = vcmask 24576
      %vm1172 = vmand %vm1171, %vm840
      %v1173 = vld [vmem:[%s1163 + $0x8] sm:$0x1]
      %v1174 = vsel %vm1172, %v859, %v1173
      %1175 = vst [vmem:[%s1163 + $0x8] sm:$0x1] %v1174
      %v1176 = vld [vmem:[%s1163 + $0xc] sm:$0xf]
      %v1177 = vsel %vm1166, %v866, %v1176
      %1178 = vst [vmem:[%s1163 + $0xc] sm:$0xf] %v1177
      %1179 = vst.msk [vmem:[%s1163 + $0x10] sm:$0xf] %vm634, %v875
      %v1180 = vld [vmem:[%s1163 + $0x14] sm:$0x1]
      %v1181 = vsel %vm1172, %v876, %v1180
      %1182 = vst [vmem:[%s1163 + $0x14] sm:$0x1] %v1181
      %v1183 = vld [vmem:[%s1163 + $0x18] sm:$0xf]
      %v1184 = vsel %vm1166, %v883, %v1183
      %1185 = vst [vmem:[%s1163 + $0x18] sm:$0xf] %v1184
      %1186 = vst.msk [vmem:[%s1163 + $0x1c] sm:$0xf] %vm634, %v892
      %v1187 = vld [vmem:[%s1163 + $0x20] sm:$0x1]
      %v1188 = vsel %vm1172, %v893, %v1187
      %1189 = vst [vmem:[%s1163 + $0x20] sm:$0x1] %v1188
      %v1190 = vld [vmem:[%s1163 + $0x24] sm:$0xf]
      %v1191 = vsel %vm1166, %v900, %v1190
      %1192 = vst [vmem:[%s1163 + $0x24] sm:$0xf] %v1191
      %1193 = vst.msk [vmem:[%s1163 + $0x28] sm:$0xf] %vm634, %v909
      %v1194 = vld [vmem:[%s1163 + $0x2c] sm:$0x1]
      %v1195 = vsel %vm1172, %v910, %v1194
      %1196 = vst [vmem:[%s1163 + $0x2c] sm:$0x1] %v1195
      %v1197 = vld [vmem:[%s1163 + $0x30] sm:$0xf]
      %v1198 = vsel %vm1166, %v917, %v1197
      %1199 = vst [vmem:[%s1163 + $0x30] sm:$0xf] %v1198
      %1200 = vst.msk [vmem:[%s1163 + $0x34] sm:$0xf] %vm634, %v926
      %v1201 = vld [vmem:[%s1163 + $0x38] sm:$0x1]
      %v1202 = vsel %vm1172, %v927, %v1201
      %1203 = vst [vmem:[%s1163 + $0x38] sm:$0x1] %v1202
      %v1204 = vld [vmem:[%s1163 + $0x3c] sm:$0xf]
      %v1205 = vsel %vm1166, %v934, %v1204
      %1206 = vst [vmem:[%s1163 + $0x3c] sm:$0xf] %v1205
      %1207 = vst.msk [vmem:[%s1163 + $0x40] sm:$0xf] %vm634, %v943
      %v1208 = vld [vmem:[%s1163 + $0x44] sm:$0x1]
      %v1209 = vsel %vm1172, %v944, %v1208
      %1210 = vst [vmem:[%s1163 + $0x44] sm:$0x1] %v1209
      %v1211 = vld [vmem:[%s1163 + $0x48] sm:$0xf]
      %v1212 = vsel %vm1166, %v951, %v1211
      %1213 = vst [vmem:[%s1163 + $0x48] sm:$0xf] %v1212
      %1214 = vst.msk [vmem:[%s1163 + $0x4c] sm:$0xf] %vm634, %v960
      %v1215 = vld [vmem:[%s1163 + $0x50] sm:$0x1]
      %v1216 = vsel %vm1172, %v961, %v1215
      %1217 = vst [vmem:[%s1163 + $0x50] sm:$0x1] %v1216
      %v1218 = vld [vmem:[%s1163 + $0x54] sm:$0xf]
      %v1219 = vsel %vm1166, %v968, %v1218
      %1220 = vst [vmem:[%s1163 + $0x54] sm:$0xf] %v1219
      %1221 = vst.msk [vmem:[%s1163 + $0x58] sm:$0xf] %vm634, %v977
      %v1222 = vld [vmem:[%s1163 + $0x5c] sm:$0x1]
      %v1223 = vsel %vm1172, %v978, %v1222
      %1224 = vst [vmem:[%s1163 + $0x5c] sm:$0x1] %v1223
      %v1225 = vld [vmem:[%s1163 + $0x60] sm:$0xf]
      %v1226 = vsel %vm1166, %v985, %v1225
      %1227 = vst [vmem:[%s1163 + $0x60] sm:$0xf] %v1226
      %1228 = vst.msk [vmem:[%s1163 + $0x64] sm:$0xf] %vm634, %v994
      %v1229 = vld [vmem:[%s1163 + $0x68] sm:$0x1]
      %v1230 = vsel %vm1172, %v995, %v1229
      %1231 = vst [vmem:[%s1163 + $0x68] sm:$0x1] %v1230
      %v1232 = vld [vmem:[%s1163 + $0x6c] sm:$0xf]
      %v1233 = vsel %vm1166, %v1002, %v1232
      %1234 = vst [vmem:[%s1163 + $0x6c] sm:$0xf] %v1233
      %1235 = vst.msk [vmem:[%s1163 + $0x70] sm:$0xf] %vm634, %v1011
      %v1236 = vld [vmem:[%s1163 + $0x74] sm:$0x1]
      %v1237 = vsel %vm1172, %v1012, %v1236
      %1238 = vst [vmem:[%s1163 + $0x74] sm:$0x1] %v1237
      %v1239 = vld [vmem:[%s1163 + $0x78] sm:$0xf]
      %v1240 = vsel %vm1166, %v1019, %v1239
      %1241 = vst [vmem:[%s1163 + $0x78] sm:$0xf] %v1240
      %1242 = vst.msk [vmem:[%s1163 + $0x7c] sm:$0xf] %vm634, %v1028
      %v1243 = vld [vmem:[%s1163 + $0x80] sm:$0x1]
      %v1244 = vsel %vm1172, %v1029, %v1243
      %1245 = vst [vmem:[%s1163 + $0x80] sm:$0x1] %v1244
      %v1246 = vld [vmem:[%s1163 + $0x84] sm:$0xf]
      %v1247 = vsel %vm1166, %v1036, %v1246
      %1248 = vst [vmem:[%s1163 + $0x84] sm:$0xf] %v1247
      %1249 = vst.msk [vmem:[%s1163 + $0x88] sm:$0xf] %vm634, %v1045
      %v1250 = vld [vmem:[%s1163 + $0x8c] sm:$0x1]
      %v1251 = vsel %vm1172, %v1046, %v1250
      %1252 = vst [vmem:[%s1163 + $0x8c] sm:$0x1] %v1251
      %v1253 = vld [vmem:[%s1163 + $0x90] sm:$0xf]
      %v1254 = vsel %vm1166, %v1053, %v1253
      %1255 = vst [vmem:[%s1163 + $0x90] sm:$0xf] %v1254
      %1256 = vst.msk [vmem:[%s1163 + $0x94] sm:$0xf] %vm634, %v1062
      %v1257 = vld [vmem:[%s1163 + $0x98] sm:$0x1]
      %v1258 = vsel %vm1172, %v1063, %v1257
      %1259 = vst [vmem:[%s1163 + $0x98] sm:$0x1] %v1258
      %v1260 = vld [vmem:[%s1163 + $0x9c] sm:$0xf]
      %v1261 = vsel %vm1166, %v1070, %v1260
      %1262 = vst [vmem:[%s1163 + $0x9c] sm:$0xf] %v1261
      %1263 = vst.msk [vmem:[%s1163 + $0xa0] sm:$0xf] %vm634, %v1079
      %v1264 = vld [vmem:[%s1163 + $0xa4] sm:$0x1]
      %v1265 = vsel %vm1172, %v1080, %v1264
      %1266 = vst [vmem:[%s1163 + $0xa4] sm:$0x1] %v1265
      %v1267 = vld [vmem:[%s1163 + $0xa8] sm:$0xf]
      %v1268 = vsel %vm1166, %v1087, %v1267
      %1269 = vst [vmem:[%s1163 + $0xa8] sm:$0xf] %v1268
      %1270 = vst.msk [vmem:[%s1163 + $0xac] sm:$0xf] %vm634, %v1096
      %v1271 = vld [vmem:[%s1163 + $0xb0] sm:$0x1]
      %v1272 = vsel %vm1172, %v1097, %v1271
      %1273 = vst [vmem:[%s1163 + $0xb0] sm:$0x1] %v1272
      %v1274 = vld [vmem:[%s1163 + $0xb4] sm:$0xf]
      %v1275 = vsel %vm1166, %v1104, %v1274
      %1276 = vst [vmem:[%s1163 + $0xb4] sm:$0xf] %v1275
      %1277 = vst.msk [vmem:[%s1163 + $0xb8] sm:$0xf] %vm634, %v1113
      %v1278 = vld [vmem:[%s1163 + $0xbc] sm:$0x1]
      %v1279 = vsel %vm1172, %v1114, %v1278
      %1280 = vst [vmem:[%s1163 + $0xbc] sm:$0x1] %v1279
      %v1282 = vshrl.u32 %v460, 16
      %v1284 = vrot.slane %v1282, 7
      %v1285 = vshll.u32 %v460, 16
      %v1287 = vor.u32 %v1284, %v1285
      %v1288 = vrot.slane %v1284, 4
      %v1290 = vshrl.u32 %v461, 16
      %v1292 = vrot.slane %v1290, 7
      %v1293 = vshll.u32 %v461, 16
      %v1295 = vor.u32 %v1292, %v1293
      %v1296 = vsel %vm842, %v1288, %v1295
      %v1297 = vrot.slane %v1292, 4
      %v1299 = vshrl.u32 %v462, 16
      %v1301 = vrot.slane %v1299, 7
      %v1302 = vshll.u32 %v462, 16
      %v1304 = vor.u32 %v1301, %v1302
      %v1305 = vrot.slane %v1301, 4
      %v1307 = vshrl.u32 %v463, 16
      %v1309 = vrot.slane %v1307, 7
      %v1310 = vshll.u32 %v463, 16
      %v1312 = vor.u32 %v1309, %v1310
      %v1313 = vsel %vm842, %v1305, %v1312
      %v1314 = vrot.slane %v1309, 4
      %v1316 = vshrl.u32 %v464, 16
      %v1318 = vrot.slane %v1316, 7
      %v1319 = vshll.u32 %v464, 16
      %v1321 = vor.u32 %v1318, %v1319
      %v1322 = vrot.slane %v1318, 4
      %v1324 = vshrl.u32 %v465, 16
      %v1326 = vrot.slane %v1324, 7
      %v1327 = vshll.u32 %v465, 16
      %v1329 = vor.u32 %v1326, %v1327
      %v1330 = vsel %vm842, %v1322, %v1329
      %v1331 = vrot.slane %v1326, 4
      %v1333 = vshrl.u32 %v466, 16
      %v1335 = vrot.slane %v1333, 7
      %v1336 = vshll.u32 %v466, 16
      %v1338 = vor.u32 %v1335, %v1336
      %v1339 = vrot.slane %v1335, 4
      %v1341 = vshrl.u32 %v467, 16
      %v1343 = vrot.slane %v1341, 7
      %v1344 = vshll.u32 %v467, 16
      %v1346 = vor.u32 %v1343, %v1344
      %v1347 = vsel %vm842, %v1339, %v1346
      %v1348 = vrot.slane %v1343, 4
      %v1350 = vshrl.u32 %v468, 16
      %v1352 = vrot.slane %v1350, 7
      %v1353 = vshll.u32 %v468, 16
      %v1355 = vor.u32 %v1352, %v1353
      %v1356 = vrot.slane %v1352, 4
      %v1358 = vshrl.u32 %v469, 16
      %v1360 = vrot.slane %v1358, 7
      %v1361 = vshll.u32 %v469, 16
      %v1363 = vor.u32 %v1360, %v1361
      %v1364 = vsel %vm842, %v1356, %v1363
      %v1365 = vrot.slane %v1360, 4
      %v1367 = vshrl.u32 %v470, 16
      %v1369 = vrot.slane %v1367, 7
      %v1370 = vshll.u32 %v470, 16
      %v1372 = vor.u32 %v1369, %v1370
      %v1373 = vrot.slane %v1369, 4
      %v1375 = vshrl.u32 %v471, 16
      %v1377 = vrot.slane %v1375, 7
      %v1378 = vshll.u32 %v471, 16
      %v1380 = vor.u32 %v1377, %v1378
      %v1381 = vsel %vm842, %v1373, %v1380
      %v1382 = vrot.slane %v1377, 4
      %v1384 = vshrl.u32 %v472, 16
      %v1386 = vrot.slane %v1384, 7
      %v1387 = vshll.u32 %v472, 16
      %v1389 = vor.u32 %v1386, %v1387
      %v1390 = vrot.slane %v1386, 4
      %v1392 = vshrl.u32 %v473, 16
      %v1394 = vrot.slane %v1392, 7
      %v1395 = vshll.u32 %v473, 16
      %v1397 = vor.u32 %v1394, %v1395
      %v1398 = vsel %vm842, %v1390, %v1397
      %v1399 = vrot.slane %v1394, 4
      %v1401 = vshrl.u32 %v474, 16
      %v1403 = vrot.slane %v1401, 7
      %v1404 = vshll.u32 %v474, 16
      %v1406 = vor.u32 %v1403, %v1404
      %v1407 = vrot.slane %v1403, 4
      %v1409 = vshrl.u32 %v475, 16
      %v1411 = vrot.slane %v1409, 7
      %v1412 = vshll.u32 %v475, 16
      %v1414 = vor.u32 %v1411, %v1412
      %v1415 = vsel %vm842, %v1407, %v1414
      %v1416 = vrot.slane %v1411, 4
      %v1418 = vshrl.u32 %v476, 16
      %v1420 = vrot.slane %v1418, 7
      %v1421 = vshll.u32 %v476, 16
      %v1423 = vor.u32 %v1420, %v1421
      %v1424 = vrot.slane %v1420, 4
      %v1426 = vshrl.u32 %v477, 16
      %v1428 = vrot.slane %v1426, 7
      %v1429 = vshll.u32 %v477, 16
      %v1431 = vor.u32 %v1428, %v1429
      %v1432 = vsel %vm842, %v1424, %v1431
      %v1433 = vrot.slane %v1428, 4
      %v1435 = vshrl.u32 %v478, 16
      %v1437 = vrot.slane %v1435, 7
      %v1438 = vshll.u32 %v478, 16
      %v1440 = vor.u32 %v1437, %v1438
      %v1441 = vrot.slane %v1437, 4
      %v1443 = vshrl.u32 %v479, 16
      %v1445 = vrot.slane %v1443, 7
      %v1446 = vshll.u32 %v479, 16
      %v1448 = vor.u32 %v1445, %v1446
      %v1449 = vsel %vm842, %v1441, %v1448
      %v1450 = vrot.slane %v1445, 4
      %v1452 = vshrl.u32 %v480, 16
      %v1454 = vrot.slane %v1452, 7
      %v1455 = vshll.u32 %v480, 16
      %v1457 = vor.u32 %v1454, %v1455
      %v1458 = vrot.slane %v1454, 4
      %v1460 = vshrl.u32 %v481, 16
      %v1462 = vrot.slane %v1460, 7
      %v1463 = vshll.u32 %v481, 16
      %v1465 = vor.u32 %v1462, %v1463
      %v1466 = vsel %vm842, %v1458, %v1465
      %v1467 = vrot.slane %v1462, 4
      %v1469 = vshrl.u32 %v482, 16
      %v1471 = vrot.slane %v1469, 7
      %v1472 = vshll.u32 %v482, 16
      %v1474 = vor.u32 %v1471, %v1472
      %v1475 = vrot.slane %v1471, 4
      %v1477 = vshrl.u32 %v483, 16
      %v1479 = vrot.slane %v1477, 7
      %v1480 = vshll.u32 %v483, 16
      %v1482 = vor.u32 %v1479, %v1480
      %v1483 = vsel %vm842, %v1475, %v1482
      %v1484 = vrot.slane %v1479, 4
      %v1486 = vshrl.u32 %v484, 16
      %v1488 = vrot.slane %v1486, 7
      %v1489 = vshll.u32 %v484, 16
      %v1491 = vor.u32 %v1488, %v1489
      %v1492 = vrot.slane %v1488, 4
      %v1494 = vshrl.u32 %v485, 16
      %v1496 = vrot.slane %v1494, 7
      %v1497 = vshll.u32 %v485, 16
      %v1499 = vor.u32 %v1496, %v1497
      %v1500 = vsel %vm842, %v1492, %v1499
      %v1501 = vrot.slane %v1496, 4
      %v1503 = vshrl.u32 %v486, 16
      %v1505 = vrot.slane %v1503, 7
      %v1506 = vshll.u32 %v486, 16
      %v1508 = vor.u32 %v1505, %v1506
      %v1509 = vrot.slane %v1505, 4
      %v1511 = vshrl.u32 %v487, 16
      %v1513 = vrot.slane %v1511, 7
      %v1514 = vshll.u32 %v487, 16
      %v1516 = vor.u32 %v1513, %v1514
      %v1517 = vsel %vm842, %v1509, %v1516
      %v1518 = vrot.slane %v1513, 4
      %v1520 = vshrl.u32 %v488, 16
      %v1522 = vrot.slane %v1520, 7
      %v1523 = vshll.u32 %v488, 16
      %v1525 = vor.u32 %v1522, %v1523
      %v1526 = vrot.slane %v1522, 4
      %v1528 = vshrl.u32 %v489, 16
      %v1530 = vrot.slane %v1528, 7
      %v1531 = vshll.u32 %v489, 16
      %v1533 = vor.u32 %v1530, %v1531
      %v1534 = vsel %vm842, %v1526, %v1533
      %v1535 = vrot.slane %v1530, 4
      %v1537 = vshrl.u32 %v490, 16
      %v1539 = vrot.slane %v1537, 7
      %v1540 = vshll.u32 %v490, 16
      %v1542 = vor.u32 %v1539, %v1540
      %v1543 = vrot.slane %v1539, 4
      %v1545 = vshrl.u32 %v491, 16
      %v1547 = vrot.slane %v1545, 7
      %v1548 = vshll.u32 %v491, 16
      %v1550 = vor.u32 %v1547, %v1548
      %v1551 = vsel %vm842, %v1543, %v1550
      %v1552 = vrot.slane %v1547, 4
      %s1601 = scalar_lea.vmem [#allocation3], 12
      %v1602 = vld [vmem:[%s1601] sm:$0xf]
      %v1603 = vsel %vm1166, %v1287, %v1602
      %1604 = vst [vmem:[%s1601] sm:$0xf] %v1603
      %1605 = vst.msk [vmem:[%s1601 + $0x4] sm:$0xf] %vm634, %v1296
      %v1606 = vld [vmem:[%s1601 + $0x8] sm:$0x1]
      %v1607 = vsel %vm1172, %v1297, %v1606
      %1608 = vst [vmem:[%s1601 + $0x8] sm:$0x1] %v1607
      %v1609 = vld [vmem:[%s1601 + $0xc] sm:$0xf]
      %v1610 = vsel %vm1166, %v1304, %v1609
      %1611 = vst [vmem:[%s1601 + $0xc] sm:$0xf] %v1610
      %1612 = vst.msk [vmem:[%s1601 + $0x10] sm:$0xf] %vm634, %v1313
      %v1613 = vld [vmem:[%s1601 + $0x14] sm:$0x1]
      %v1614 = vsel %vm1172, %v1314, %v1613
      %1615 = vst [vmem:[%s1601 + $0x14] sm:$0x1] %v1614
      %v1616 = vld [vmem:[%s1601 + $0x18] sm:$0xf]
      %v1617 = vsel %vm1166, %v1321, %v1616
      %1618 = vst [vmem:[%s1601 + $0x18] sm:$0xf] %v1617
      %1619 = vst.msk [vmem:[%s1601 + $0x1c] sm:$0xf] %vm634, %v1330
      %v1620 = vld [vmem:[%s1601 + $0x20] sm:$0x1]
      %v1621 = vsel %vm1172, %v1331, %v1620
      %1622 = vst [vmem:[%s1601 + $0x20] sm:$0x1] %v1621
      %v1623 = vld [vmem:[%s1601 + $0x24] sm:$0xf]
      %v1624 = vsel %vm1166, %v1338, %v1623
      %1625 = vst [vmem:[%s1601 + $0x24] sm:$0xf] %v1624
      %1626 = vst.msk [vmem:[%s1601 + $0x28] sm:$0xf] %vm634, %v1347
      %v1627 = vld [vmem:[%s1601 + $0x2c] sm:$0x1]
      %v1628 = vsel %vm1172, %v1348, %v1627
      %1629 = vst [vmem:[%s1601 + $0x2c] sm:$0x1] %v1628
      %v1630 = vld [vmem:[%s1601 + $0x30] sm:$0xf]
      %v1631 = vsel %vm1166, %v1355, %v1630
      %1632 = vst [vmem:[%s1601 + $0x30] sm:$0xf] %v1631
      %1633 = vst.msk [vmem:[%s1601 + $0x34] sm:$0xf] %vm634, %v1364
      %v1634 = vld [vmem:[%s1601 + $0x38] sm:$0x1]
      %v1635 = vsel %vm1172, %v1365, %v1634
      %1636 = vst [vmem:[%s1601 + $0x38] sm:$0x1] %v1635
      %v1637 = vld [vmem:[%s1601 + $0x3c] sm:$0xf]
      %v1638 = vsel %vm1166, %v1372, %v1637
      %1639 = vst [vmem:[%s1601 + $0x3c] sm:$0xf] %v1638
      %1640 = vst.msk [vmem:[%s1601 + $0x40] sm:$0xf] %vm634, %v1381
      %v1641 = vld [vmem:[%s1601 + $0x44] sm:$0x1]
      %v1642 = vsel %vm1172, %v1382, %v1641
      %1643 = vst [vmem:[%s1601 + $0x44] sm:$0x1] %v1642
      %v1644 = vld [vmem:[%s1601 + $0x48] sm:$0xf]
      %v1645 = vsel %vm1166, %v1389, %v1644
      %1646 = vst [vmem:[%s1601 + $0x48] sm:$0xf] %v1645
      %1647 = vst.msk [vmem:[%s1601 + $0x4c] sm:$0xf] %vm634, %v1398
      %v1648 = vld [vmem:[%s1601 + $0x50] sm:$0x1]
      %v1649 = vsel %vm1172, %v1399, %v1648
      %1650 = vst [vmem:[%s1601 + $0x50] sm:$0x1] %v1649
      %v1651 = vld [vmem:[%s1601 + $0x54] sm:$0xf]
      %v1652 = vsel %vm1166, %v1406, %v1651
      %1653 = vst [vmem:[%s1601 + $0x54] sm:$0xf] %v1652
      %1654 = vst.msk [vmem:[%s1601 + $0x58] sm:$0xf] %vm634, %v1415
      %v1655 = vld [vmem:[%s1601 + $0x5c] sm:$0x1]
      %v1656 = vsel %vm1172, %v1416, %v1655
      %1657 = vst [vmem:[%s1601 + $0x5c] sm:$0x1] %v1656
      %v1658 = vld [vmem:[%s1601 + $0x60] sm:$0xf]
      %v1659 = vsel %vm1166, %v1423, %v1658
      %1660 = vst [vmem:[%s1601 + $0x60] sm:$0xf] %v1659
      %1661 = vst.msk [vmem:[%s1601 + $0x64] sm:$0xf] %vm634, %v1432
      %v1662 = vld [vmem:[%s1601 + $0x68] sm:$0x1]
      %v1663 = vsel %vm1172, %v1433, %v1662
      %1664 = vst [vmem:[%s1601 + $0x68] sm:$0x1] %v1663
      %v1665 = vld [vmem:[%s1601 + $0x6c] sm:$0xf]
      %v1666 = vsel %vm1166, %v1440, %v1665
      %1667 = vst [vmem:[%s1601 + $0x6c] sm:$0xf] %v1666
      %1668 = vst.msk [vmem:[%s1601 + $0x70] sm:$0xf] %vm634, %v1449
      %v1669 = vld [vmem:[%s1601 + $0x74] sm:$0x1]
      %v1670 = vsel %vm1172, %v1450, %v1669
      %1671 = vst [vmem:[%s1601 + $0x74] sm:$0x1] %v1670
      %v1672 = vld [vmem:[%s1601 + $0x78] sm:$0xf]
      %v1673 = vsel %vm1166, %v1457, %v1672
      %1674 = vst [vmem:[%s1601 + $0x78] sm:$0xf] %v1673
      %1675 = vst.msk [vmem:[%s1601 + $0x7c] sm:$0xf] %vm634, %v1466
      %v1676 = vld [vmem:[%s1601 + $0x80] sm:$0x1]
      %v1677 = vsel %vm1172, %v1467, %v1676
      %1678 = vst [vmem:[%s1601 + $0x80] sm:$0x1] %v1677
      %v1679 = vld [vmem:[%s1601 + $0x84] sm:$0xf]
      %v1680 = vsel %vm1166, %v1474, %v1679
      %1681 = vst [vmem:[%s1601 + $0x84] sm:$0xf] %v1680
      %1682 = vst.msk [vmem:[%s1601 + $0x88] sm:$0xf] %vm634, %v1483
      %v1683 = vld [vmem:[%s1601 + $0x8c] sm:$0x1]
      %v1684 = vsel %vm1172, %v1484, %v1683
      %1685 = vst [vmem:[%s1601 + $0x8c] sm:$0x1] %v1684
      %v1686 = vld [vmem:[%s1601 + $0x90] sm:$0xf]
      %v1687 = vsel %vm1166, %v1491, %v1686
      %1688 = vst [vmem:[%s1601 + $0x90] sm:$0xf] %v1687
      %1689 = vst.msk [vmem:[%s1601 + $0x94] sm:$0xf] %vm634, %v1500
      %v1690 = vld [vmem:[%s1601 + $0x98] sm:$0x1]
      %v1691 = vsel %vm1172, %v1501, %v1690
      %1692 = vst [vmem:[%s1601 + $0x98] sm:$0x1] %v1691
      %v1693 = vld [vmem:[%s1601 + $0x9c] sm:$0xf]
      %v1694 = vsel %vm1166, %v1508, %v1693
      %1695 = vst [vmem:[%s1601 + $0x9c] sm:$0xf] %v1694
      %1696 = vst.msk [vmem:[%s1601 + $0xa0] sm:$0xf] %vm634, %v1517
      %v1697 = vld [vmem:[%s1601 + $0xa4] sm:$0x1]
      %v1698 = vsel %vm1172, %v1518, %v1697
      %1699 = vst [vmem:[%s1601 + $0xa4] sm:$0x1] %v1698
      %v1700 = vld [vmem:[%s1601 + $0xa8] sm:$0xf]
      %v1701 = vsel %vm1166, %v1525, %v1700
      %1702 = vst [vmem:[%s1601 + $0xa8] sm:$0xf] %v1701
      %1703 = vst.msk [vmem:[%s1601 + $0xac] sm:$0xf] %vm634, %v1534
      %v1704 = vld [vmem:[%s1601 + $0xb0] sm:$0x1]
      %v1705 = vsel %vm1172, %v1535, %v1704
      %1706 = vst [vmem:[%s1601 + $0xb0] sm:$0x1] %v1705
      %v1707 = vld [vmem:[%s1601 + $0xb4] sm:$0xf]
      %v1708 = vsel %vm1166, %v1542, %v1707
      %1709 = vst [vmem:[%s1601 + $0xb4] sm:$0xf] %v1708
      %1710 = vst.msk [vmem:[%s1601 + $0xb8] sm:$0xf] %vm634, %v1551
      %v1711 = vld [vmem:[%s1601 + $0xbc] sm:$0x1]
      %v1712 = vsel %vm1172, %v1552, %v1711
      %1713 = vst [vmem:[%s1601 + $0xbc] sm:$0x1] %v1712
      %v1714 = vld [vmem:[#allocation2] sm:$0xf]
      %v1715 = vld [vmem:[#allocation2 + $0x4] sm:$0xf]
      %v1716 = vld [vmem:[#allocation2 + $0x8] sm:$0x1]
      %v1717 = vld [vmem:[#allocation2 + $0xc] sm:$0xf]
      %v1718 = vld [vmem:[#allocation2 + $0x10] sm:$0xf]
      %v1719 = vld [vmem:[#allocation2 + $0x14] sm:$0x1]
      %v1720 = vld [vmem:[#allocation2 + $0x18] sm:$0xf]
      %v1721 = vld [vmem:[#allocation2 + $0x1c] sm:$0xf]
      %v1722 = vld [vmem:[#allocation2 + $0x20] sm:$0x1]
      %v1723 = vld [vmem:[#allocation2 + $0x24] sm:$0xf]
      %v1724 = vld [vmem:[#allocation2 + $0x28] sm:$0xf]
      %v1725 = vld [vmem:[#allocation2 + $0x2c] sm:$0x1]
      %v1726 = vld [vmem:[#allocation2 + $0x30] sm:$0xf]
      %v1727 = vld [vmem:[#allocation2 + $0x34] sm:$0xf]
      %v1728 = vld [vmem:[#allocation2 + $0x38] sm:$0x1]
      %v1729 = vld [vmem:[#allocation2 + $0x3c] sm:$0xf]
      %v1730 = vld [vmem:[#allocation2 + $0x40] sm:$0xf]
      %v1731 = vld [vmem:[#allocation2 + $0x44] sm:$0x1]
      %v1732 = vld [vmem:[#allocation2 + $0x48] sm:$0xf]
      %v1733 = vld [vmem:[#allocation2 + $0x4c] sm:$0xf]
      %v1734 = vld [vmem:[#allocation2 + $0x50] sm:$0x1]
      %v1735 = vld [vmem:[#allocation2 + $0x54] sm:$0xf]
      %v1736 = vld [vmem:[#allocation2 + $0x58] sm:$0xf]
      %v1737 = vld [vmem:[#allocation2 + $0x5c] sm:$0x1]
      %v1738 = vld [vmem:[#allocation2 + $0x60] sm:$0xf]
      %v1739 = vld [vmem:[#allocation2 + $0x64] sm:$0xf]
      %v1740 = vld [vmem:[#allocation2 + $0x68] sm:$0x1]
      %v1741 = vld [vmem:[#allocation2 + $0x6c] sm:$0xf]
      %v1742 = vld [vmem:[#allocation2 + $0x70] sm:$0xf]
      %v1743 = vld [vmem:[#allocation2 + $0x74] sm:$0x1]
      %v1744 = vld [vmem:[#allocation2 + $0x78] sm:$0xf]
      %v1745 = vld [vmem:[#allocation2 + $0x7c] sm:$0xf]
      %v1746 = vld [vmem:[#allocation2 + $0x80] sm:$0x1]
      %v1747 = vld [vmem:[#allocation2 + $0x84] sm:$0xf]
      %v1748 = vld [vmem:[#allocation2 + $0x88] sm:$0xf]
      %v1749 = vld [vmem:[#allocation2 + $0x8c] sm:$0x1]
      %v1750 = vld [vmem:[#allocation2 + $0x90] sm:$0xf]
      %v1751 = vld [vmem:[#allocation2 + $0x94] sm:$0xf]
      %v1752 = vld [vmem:[#allocation2 + $0x98] sm:$0x1]
      %v1753 = vld [vmem:[#allocation2 + $0x9c] sm:$0xf]
      %v1754 = vld [vmem:[#allocation2 + $0xa0] sm:$0xf]
      %v1755 = vld [vmem:[#allocation2 + $0xa4] sm:$0x1]
      %v1756 = vld [vmem:[#allocation2 + $0xa8] sm:$0xf]
      %v1757 = vld [vmem:[#allocation2 + $0xac] sm:$0xf]
      %v1758 = vld [vmem:[#allocation2 + $0xb0] sm:$0x1]
      %v1759 = vld [vmem:[#allocation2 + $0xb4] sm:$0xf]
      %v1760 = vld [vmem:[#allocation2 + $0xb8] sm:$0xf]
      %v1761 = vld [vmem:[#allocation2 + $0xbc] sm:$0x1]
      %v1762 = vld [vmem:[#allocation2 + $0xc0] sm:$0xf]
      %v1763 = vld [vmem:[#allocation2 + $0xc4] sm:$0xf]
      %v1764 = vld [vmem:[#allocation2 + $0xc8] sm:$0x1]
      %v1765 = vld [vmem:[#allocation2 + $0xcc] sm:$0xf]
      %v1766 = vld [vmem:[#allocation2 + $0xd0] sm:$0xf]
      %v1767 = vld [vmem:[#allocation2 + $0xd4] sm:$0x1]
      %v1800 = vunpack.c.l.b16 %v1714
      %v1801 = vunpack.c.l.b16 %v1715
      %v1802 = vunpack.c.l.b16 %v1717
      %v1803 = vunpack.c.l.b16 %v1718
      %v1804 = vunpack.c.l.b16 %v1720
      %v1805 = vunpack.c.l.b16 %v1721
      %v1806 = vunpack.c.l.b16 %v1723
      %v1807 = vunpack.c.l.b16 %v1724
      %v1808 = vunpack.c.l.b16 %v1726
      %v1809 = vunpack.c.l.b16 %v1727
      %v1810 = vunpack.c.l.b16 %v1729
      %v1811 = vunpack.c.l.b16 %v1730
      %v1812 = vunpack.c.l.b16 %v1732
      %v1813 = vunpack.c.l.b16 %v1733
      %v1814 = vunpack.c.l.b16 %v1735
      %v1815 = vunpack.c.l.b16 %v1736
      %v1816 = vunpack.c.l.b16 %v1738
      %v1817 = vunpack.c.l.b16 %v1739
      %v1818 = vunpack.c.l.b16 %v1741
      %v1819 = vunpack.c.l.b16 %v1742
      %v1820 = vunpack.c.l.b16 %v1744
      %v1821 = vunpack.c.l.b16 %v1745
      %v1822 = vunpack.c.l.b16 %v1747
      %v1823 = vunpack.c.l.b16 %v1748
      %v1824 = vunpack.c.l.b16 %v1750
      %v1825 = vunpack.c.l.b16 %v1751
      %v1826 = vunpack.c.l.b16 %v1753
      %v1827 = vunpack.c.l.b16 %v1754
      %v1828 = vunpack.c.l.b16 %v1756
      %v1829 = vunpack.c.l.b16 %v1757
      %v1830 = vunpack.c.l.b16 %v1759
      %v1831 = vunpack.c.l.b16 %v1760
      %v1832 = vpack.c.b16 %v1801, %v1800
      %v1833 = vpack.c.b16 %v1803, %v1802
      %v1834 = vpack.c.b16 %v1805, %v1804
      %v1835 = vpack.c.b16 %v1807, %v1806
      %v1836 = vpack.c.b16 %v1809, %v1808
      %v1837 = vpack.c.b16 %v1811, %v1810
      %v1838 = vpack.c.b16 %v1813, %v1812
      %v1839 = vpack.c.b16 %v1815, %v1814
      %v1840 = vpack.c.b16 %v1817, %v1816
      %v1841 = vpack.c.b16 %v1819, %v1818
      %v1842 = vpack.c.b16 %v1821, %v1820
      %v1843 = vpack.c.b16 %v1823, %v1822
      %v1844 = vpack.c.b16 %v1825, %v1824
      %v1845 = vpack.c.b16 %v1827, %v1826
      %v1846 = vpack.c.b16 %v1829, %v1828
      %v1847 = vpack.c.b16 %v1831, %v1830
      %v1864 = vunpack.c.l.b16 %v1716
      %v1865 = vunpack.c.l.b16 %v1719
      %v1866 = vunpack.c.l.b16 %v1722
      %v1867 = vunpack.c.l.b16 %v1725
      %v1868 = vunpack.c.l.b16 %v1728
      %v1869 = vunpack.c.l.b16 %v1731
      %v1870 = vunpack.c.l.b16 %v1734
      %v1871 = vunpack.c.l.b16 %v1737
      %v1872 = vunpack.c.l.b16 %v1740
      %v1873 = vunpack.c.l.b16 %v1743
      %v1874 = vunpack.c.l.b16 %v1746
      %v1875 = vunpack.c.l.b16 %v1749
      %v1876 = vunpack.c.l.b16 %v1752
      %v1877 = vunpack.c.l.b16 %v1755
      %v1878 = vunpack.c.l.b16 %v1758
      %v1879 = vunpack.c.l.b16 %v1761
      %v1880 = vpack.c.b16 %v1864, %v1864
      %v1881 = vpack.c.b16 %v1865, %v1865
      %v1882 = vpack.c.b16 %v1866, %v1866
      %v1883 = vpack.c.b16 %v1867, %v1867
      %v1884 = vpack.c.b16 %v1868, %v1868
      %v1885 = vpack.c.b16 %v1869, %v1869
      %v1886 = vpack.c.b16 %v1870, %v1870
      %v1887 = vpack.c.b16 %v1871, %v1871
      %v1888 = vpack.c.b16 %v1872, %v1872
      %v1889 = vpack.c.b16 %v1873, %v1873
      %v1890 = vpack.c.b16 %v1874, %v1874
      %v1891 = vpack.c.b16 %v1875, %v1875
      %v1892 = vpack.c.b16 %v1876, %v1876
      %v1893 = vpack.c.b16 %v1877, %v1877
      %v1894 = vpack.c.b16 %v1878, %v1878
      %v1895 = vpack.c.b16 %v1879, %v1879
      %vm1896 = vsmask.f32 7424
      %v1898 = vshrl.u32 %v1832, 16
      %v1900 = vshll.u32 %v1832, 16
      %v1902 = vrot.slane %v1900, 1
      %v1903 = vor.u32 %v1898, %v1902
      %v1905 = vshll.u32 %v1880, 16
      %v1907 = vrot.slane %v1905, 1
      %v1908 = vsel %vm1896, %v1903, %v1907
      %v1910 = vshrl.u32 %v1833, 16
      %v1912 = vshll.u32 %v1833, 16
      %v1914 = vrot.slane %v1912, 1
      %v1915 = vor.u32 %v1910, %v1914
      %v1917 = vshll.u32 %v1881, 16
      %v1919 = vrot.slane %v1917, 1
      %v1920 = vsel %vm1896, %v1915, %v1919
      %v1922 = vshrl.u32 %v1834, 16
      %v1924 = vshll.u32 %v1834, 16
      %v1926 = vrot.slane %v1924, 1
      %v1927 = vor.u32 %v1922, %v1926
      %v1929 = vshll.u32 %v1882, 16
      %v1931 = vrot.slane %v1929, 1
      %v1932 = vsel %vm1896, %v1927, %v1931
      %v1934 = vshrl.u32 %v1835, 16
      %v1936 = vshll.u32 %v1835, 16
      %v1938 = vrot.slane %v1936, 1
      %v1939 = vor.u32 %v1934, %v1938
      %v1941 = vshll.u32 %v1883, 16
      %v1943 = vrot.slane %v1941, 1
      %v1944 = vsel %vm1896, %v1939, %v1943
      %v1946 = vshrl.u32 %v1836, 16
      %v1948 = vshll.u32 %v1836, 16
      %v1950 = vrot.slane %v1948, 1
      %v1951 = vor.u32 %v1946, %v1950
      %v1953 = vshll.u32 %v1884, 16
      %v1955 = vrot.slane %v1953, 1
      %v1956 = vsel %vm1896, %v1951, %v1955
      %v1958 = vshrl.u32 %v1837, 16
      %v1960 = vshll.u32 %v1837, 16
      %v1962 = vrot.slane %v1960, 1
      %v1963 = vor.u32 %v1958, %v1962
      %v1965 = vshll.u32 %v1885, 16
      %v1967 = vrot.slane %v1965, 1
      %v1968 = vsel %vm1896, %v1963, %v1967
      %v1970 = vshrl.u32 %v1838, 16
      %v1972 = vshll.u32 %v1838, 16
      %v1974 = vrot.slane %v1972, 1
      %v1975 = vor.u32 %v1970, %v1974
      %v1977 = vshll.u32 %v1886, 16
      %v1979 = vrot.slane %v1977, 1
      %v1980 = vsel %vm1896, %v1975, %v1979
      %v1982 = vshrl.u32 %v1839, 16
      %v1984 = vshll.u32 %v1839, 16
      %v1986 = vrot.slane %v1984, 1
      %v1987 = vor.u32 %v1982, %v1986
      %v1989 = vshll.u32 %v1887, 16
      %v1991 = vrot.slane %v1989, 1
      %v1992 = vsel %vm1896, %v1987, %v1991
      %v1994 = vshrl.u32 %v1840, 16
      %v1996 = vshll.u32 %v1840, 16
      %v1998 = vrot.slane %v1996, 1
      %v1999 = vor.u32 %v1994, %v1998
      %v2001 = vshll.u32 %v1888, 16
      %v2003 = vrot.slane %v2001, 1
      %v2004 = vsel %vm1896, %v1999, %v2003
      %v2006 = vshrl.u32 %v1841, 16
      %v2008 = vshll.u32 %v1841, 16
      %v2010 = vrot.slane %v2008, 1
      %v2011 = vor.u32 %v2006, %v2010
      %v2013 = vshll.u32 %v1889, 16
      %v2015 = vrot.slane %v2013, 1
      %v2016 = vsel %vm1896, %v2011, %v2015
      %v2018 = vshrl.u32 %v1842, 16
      %v2020 = vshll.u32 %v1842, 16
      %v2022 = vrot.slane %v2020, 1
      %v2023 = vor.u32 %v2018, %v2022
      %v2025 = vshll.u32 %v1890, 16
      %v2027 = vrot.slane %v2025, 1
      %v2028 = vsel %vm1896, %v2023, %v2027
      %v2030 = vshrl.u32 %v1843, 16
      %v2032 = vshll.u32 %v1843, 16
      %v2034 = vrot.slane %v2032, 1
      %v2035 = vor.u32 %v2030, %v2034
      %v2037 = vshll.u32 %v1891, 16
      %v2039 = vrot.slane %v2037, 1
      %v2040 = vsel %vm1896, %v2035, %v2039
      %v2042 = vshrl.u32 %v1844, 16
      %v2044 = vshll.u32 %v1844, 16
      %v2046 = vrot.slane %v2044, 1
      %v2047 = vor.u32 %v2042, %v2046
      %v2049 = vshll.u32 %v1892, 16
      %v2051 = vrot.slane %v2049, 1
      %v2052 = vsel %vm1896, %v2047, %v2051
      %v2054 = vshrl.u32 %v1845, 16
      %v2056 = vshll.u32 %v1845, 16
      %v2058 = vrot.slane %v2056, 1
      %v2059 = vor.u32 %v2054, %v2058
      %v2061 = vshll.u32 %v1893, 16
      %v2063 = vrot.slane %v2061, 1
      %v2064 = vsel %vm1896, %v2059, %v2063
      %v2066 = vshrl.u32 %v1846, 16
      %v2068 = vshll.u32 %v1846, 16
      %v2070 = vrot.slane %v2068, 1
      %v2071 = vor.u32 %v2066, %v2070
      %v2073 = vshll.u32 %v1894, 16
      %v2075 = vrot.slane %v2073, 1
      %v2076 = vsel %vm1896, %v2071, %v2075
      %v2078 = vshrl.u32 %v1847, 16
      %v2080 = vshll.u32 %v1847, 16
      %v2082 = vrot.slane %v2080, 1
      %v2083 = vor.u32 %v2078, %v2082
      %v2085 = vshll.u32 %v1895, 16
      %v2087 = vrot.slane %v2085, 1
      %v2088 = vsel %vm1896, %v2083, %v2087
      %2089 = vrot.lane.b32.xlu0 %v1908, 4
      %v2090 = vpop.permute.xlu0 %2089
      %2091 = vrot.lane.b32.xlu0 %v1920, 4
      %v2092 = vpop.permute.xlu0 %2091
      %2093 = vrot.lane.b32.xlu0 %v1932, 4
      %v2094 = vpop.permute.xlu0 %2093
      %2095 = vrot.lane.b32.xlu0 %v1944, 4
      %v2096 = vpop.permute.xlu0 %2095
      %2097 = vrot.lane.b32.xlu0 %v1956, 4
      %v2098 = vpop.permute.xlu0 %2097
      %2099 = vrot.lane.b32.xlu0 %v1968, 4
      %v2100 = vpop.permute.xlu0 %2099
      %2101 = vrot.lane.b32.xlu0 %v1980, 4
      %v2102 = vpop.permute.xlu0 %2101
      %2103 = vrot.lane.b32.xlu0 %v1992, 4
      %v2104 = vpop.permute.xlu0 %2103
      %2105 = vrot.lane.b32.xlu0 %v2004, 4
      %v2106 = vpop.permute.xlu0 %2105
      %2107 = vrot.lane.b32.xlu0 %v2016, 4
      %v2108 = vpop.permute.xlu0 %2107
      %2109 = vrot.lane.b32.xlu0 %v2028, 4
      %v2110 = vpop.permute.xlu0 %2109
      %2111 = vrot.lane.b32.xlu0 %v2040, 4
      %v2112 = vpop.permute.xlu0 %2111
      %2113 = vrot.lane.b32.xlu0 %v2052, 4
      %v2114 = vpop.permute.xlu0 %2113
      %2115 = vrot.lane.b32.xlu0 %v2064, 4
      %v2116 = vpop.permute.xlu0 %2115
      %2117 = vrot.lane.b32.xlu0 %v2076, 4
      %v2118 = vpop.permute.xlu0 %2117
      %2119 = vrot.lane.b32.xlu0 %v2088, 4
      %v2120 = vpop.permute.xlu0 %2119
      %vm2121 = vcmask 1046528
      %v2122 = vrot.slane %v1832, 1
      %v2123 = vrot.slane %v1880, 1
      %v2124 = vsel %vm2121, %v2122, %v2123
      %v2125 = vrot.slane %v1833, 1
      %v2126 = vrot.slane %v1881, 1
      %v2127 = vsel %vm2121, %v2125, %v2126
      %v2128 = vrot.slane %v1834, 1
      %v2129 = vrot.slane %v1882, 1
      %v2130 = vsel %vm2121, %v2128, %v2129
      %v2131 = vrot.slane %v1835, 1
      %v2132 = vrot.slane %v1883, 1
      %v2133 = vsel %vm2121, %v2131, %v2132
      %v2134 = vrot.slane %v1836, 1
      %v2135 = vrot.slane %v1884, 1
      %v2136 = vsel %vm2121, %v2134, %v2135
      %v2137 = vrot.slane %v1837, 1
      %v2138 = vrot.slane %v1885, 1
      %v2139 = vsel %vm2121, %v2137, %v2138
      %v2140 = vrot.slane %v1838, 1
      %v2141 = vrot.slane %v1886, 1
      %v2142 = vsel %vm2121, %v2140, %v2141
      %v2143 = vrot.slane %v1839, 1
      %v2144 = vrot.slane %v1887, 1
      %v2145 = vsel %vm2121, %v2143, %v2144
      %v2146 = vrot.slane %v1840, 1
      %v2147 = vrot.slane %v1888, 1
      %v2148 = vsel %vm2121, %v2146, %v2147
      %v2149 = vrot.slane %v1841, 1
      %v2150 = vrot.slane %v1889, 1
      %v2151 = vsel %vm2121, %v2149, %v2150
      %v2152 = vrot.slane %v1842, 1
      %v2153 = vrot.slane %v1890, 1
      %v2154 = vsel %vm2121, %v2152, %v2153
      %v2155 = vrot.slane %v1843, 1
      %v2156 = vrot.slane %v1891, 1
      %v2157 = vsel %vm2121, %v2155, %v2156
      %v2158 = vrot.slane %v1844, 1
      %v2159 = vrot.slane %v1892, 1
      %v2160 = vsel %vm2121, %v2158, %v2159
      %v2161 = vrot.slane %v1845, 1
      %v2162 = vrot.slane %v1893, 1
      %v2163 = vsel %vm2121, %v2161, %v2162
      %v2164 = vrot.slane %v1846, 1
      %v2165 = vrot.slane %v1894, 1
      %v2166 = vsel %vm2121, %v2164, %v2165
      %v2167 = vrot.slane %v1847, 1
      %v2168 = vrot.slane %v1895, 1
      %v2169 = vsel %vm2121, %v2167, %v2168
      %2170 = vrot.lane.b32.xlu0 %v2124, 8
      %v2171 = vpop.permute.xlu0 %2170
      %2172 = vrot.lane.b32.xlu0 %v2127, 8
      %v2173 = vpop.permute.xlu0 %2172
      %2174 = vrot.lane.b32.xlu0 %v2130, 8
      %v2175 = vpop.permute.xlu0 %2174
      %2176 = vrot.lane.b32.xlu0 %v2133, 8
      %v2177 = vpop.permute.xlu0 %2176
      %2178 = vrot.lane.b32.xlu0 %v2136, 8
      %v2179 = vpop.permute.xlu0 %2178
      %2180 = vrot.lane.b32.xlu0 %v2139, 8
      %v2181 = vpop.permute.xlu0 %2180
      %2182 = vrot.lane.b32.xlu0 %v2142, 8
      %v2183 = vpop.permute.xlu0 %2182
      %2184 = vrot.lane.b32.xlu0 %v2145, 8
      %v2185 = vpop.permute.xlu0 %2184
      %2186 = vrot.lane.b32.xlu0 %v2148, 8
      %v2187 = vpop.permute.xlu0 %2186
      %2188 = vrot.lane.b32.xlu0 %v2151, 8
      %v2189 = vpop.permute.xlu0 %2188
      %2190 = vrot.lane.b32.xlu0 %v2154, 8
      %v2191 = vpop.permute.xlu0 %2190
      %2192 = vrot.lane.b32.xlu0 %v2157, 8
      %v2193 = vpop.permute.xlu0 %2192
      %2194 = vrot.lane.b32.xlu0 %v2160, 8
      %v2195 = vpop.permute.xlu0 %2194
      %2196 = vrot.lane.b32.xlu0 %v2163, 8
      %v2197 = vpop.permute.xlu0 %2196
      %2198 = vrot.lane.b32.xlu0 %v2166, 8
      %v2199 = vpop.permute.xlu0 %2198
      %2200 = vrot.lane.b32.xlu0 %v2169, 8
      %v2201 = vpop.permute.xlu0 %2200
      %v2204 = vunpack.c.l.b16 %v1762
      %v2205 = vunpack.c.l.b16 %v1763
      %v2206 = vpack.c.b16 %v2205, %v2204
      %2207 = vrot.lane.b32.xlu0 %v1833, 12
      %v2208 = vpop.permute.xlu0 %2207
      %2209 = vrot.lane.b32.xlu0 %v1834, 12
      %v2210 = vpop.permute.xlu0 %2209
      %2211 = vrot.lane.b32.xlu0 %v1835, 12
      %v2212 = vpop.permute.xlu0 %2211
      %2213 = vrot.lane.b32.xlu0 %v1836, 12
      %v2214 = vpop.permute.xlu0 %2213
      %2215 = vrot.lane.b32.xlu0 %v1837, 12
      %v2216 = vpop.permute.xlu0 %2215
      %2217 = vrot.lane.b32.xlu0 %v1838, 12
      %v2218 = vpop.permute.xlu0 %2217
      %2219 = vrot.lane.b32.xlu0 %v1839, 12
      %v2220 = vpop.permute.xlu0 %2219
      %2221 = vrot.lane.b32.xlu0 %v1840, 12
      %v2222 = vpop.permute.xlu0 %2221
      %2223 = vrot.lane.b32.xlu0 %v1841, 12
      %v2224 = vpop.permute.xlu0 %2223
      %2225 = vrot.lane.b32.xlu0 %v1842, 12
      %v2226 = vpop.permute.xlu0 %2225
      %2227 = vrot.lane.b32.xlu0 %v1843, 12
      %v2228 = vpop.permute.xlu0 %2227
      %2229 = vrot.lane.b32.xlu0 %v1844, 12
      %v2230 = vpop.permute.xlu0 %2229
      %2231 = vrot.lane.b32.xlu0 %v1845, 12
      %v2232 = vpop.permute.xlu0 %2231
      %2233 = vrot.lane.b32.xlu0 %v1846, 12
      %v2234 = vpop.permute.xlu0 %2233
      %2235 = vrot.lane.b32.xlu0 %v1847, 12
      %v2236 = vpop.permute.xlu0 %2235
      %2237 = vrot.lane.b32.xlu0 %v2206, 12
      %v2238 = vpop.permute.xlu0 %2237
      %v2240 = vunpack.c.l.b16 %v1764
      %v2241 = vpack.c.b16 %v2240, %v2240
      %v2243 = vshrl.u32 %v2206, 16
      %v2245 = vshll.u32 %v2206, 16
      %v2247 = vrot.slane %v2245, 1
      %v2248 = vor.u32 %v2243, %v2247
      %v2250 = vshll.u32 %v2241, 16
      %v2252 = vrot.slane %v2250, 1
      %v2253 = vsel %vm1896, %v2248, %v2252
      %2254 = vrot.lane.b32.xlu0 %v1920, 16
      %v2255 = vpop.permute.xlu0 %2254
      %2256 = vrot.lane.b32.xlu0 %v1932, 16
      %v2257 = vpop.permute.xlu0 %2256
      %2258 = vrot.lane.b32.xlu0 %v1944, 16
      %v2259 = vpop.permute.xlu0 %2258
      %2260 = vrot.lane.b32.xlu0 %v1956, 16
      %v2261 = vpop.permute.xlu0 %2260
      %2262 = vrot.lane.b32.xlu0 %v1968, 16
      %v2263 = vpop.permute.xlu0 %2262
      %2264 = vrot.lane.b32.xlu0 %v1980, 16
      %v2265 = vpop.permute.xlu0 %2264
      %2266 = vrot.lane.b32.xlu0 %v1992, 16
      %v2267 = vpop.permute.xlu0 %2266
      %2268 = vrot.lane.b32.xlu0 %v2004, 16
      %v2269 = vpop.permute.xlu0 %2268
      %2270 = vrot.lane.b32.xlu0 %v2016, 16
      %v2271 = vpop.permute.xlu0 %2270
      %2272 = vrot.lane.b32.xlu0 %v2028, 16
      %v2273 = vpop.permute.xlu0 %2272
      %2274 = vrot.lane.b32.xlu0 %v2040, 16
      %v2275 = vpop.permute.xlu0 %2274
      %2276 = vrot.lane.b32.xlu0 %v2052, 16
      %v2277 = vpop.permute.xlu0 %2276
      %2278 = vrot.lane.b32.xlu0 %v2064, 16
      %v2279 = vpop.permute.xlu0 %2278
      %2280 = vrot.lane.b32.xlu0 %v2076, 16
      %v2281 = vpop.permute.xlu0 %2280
      %2282 = vrot.lane.b32.xlu0 %v2088, 16
      %v2283 = vpop.permute.xlu0 %2282
      %2284 = vrot.lane.b32.xlu0 %v2253, 16
      %v2285 = vpop.permute.xlu0 %2284
      %v2286 = vrot.slane %v2206, 1
      %v2287 = vrot.slane %v2241, 1
      %v2288 = vsel %vm2121, %v2286, %v2287
      %2289 = vrot.lane.b32.xlu0 %v2127, 20
      %v2290 = vpop.permute.xlu0 %2289
      %2291 = vrot.lane.b32.xlu0 %v2130, 20
      %v2292 = vpop.permute.xlu0 %2291
      %2293 = vrot.lane.b32.xlu0 %v2133, 20
      %v2294 = vpop.permute.xlu0 %2293
      %2295 = vrot.lane.b32.xlu0 %v2136, 20
      %v2296 = vpop.permute.xlu0 %2295
      %2297 = vrot.lane.b32.xlu0 %v2139, 20
      %v2298 = vpop.permute.xlu0 %2297
      %2299 = vrot.lane.b32.xlu0 %v2142, 20
      %v2300 = vpop.permute.xlu0 %2299
      %2301 = vrot.lane.b32.xlu0 %v2145, 20
      %v2302 = vpop.permute.xlu0 %2301
      %2303 = vrot.lane.b32.xlu0 %v2148, 20
      %v2304 = vpop.permute.xlu0 %2303
      %2305 = vrot.lane.b32.xlu0 %v2151, 20
      %v2306 = vpop.permute.xlu0 %2305
      %2307 = vrot.lane.b32.xlu0 %v2154, 20
      %v2308 = vpop.permute.xlu0 %2307
      %2309 = vrot.lane.b32.xlu0 %v2157, 20
      %v2310 = vpop.permute.xlu0 %2309
      %2311 = vrot.lane.b32.xlu0 %v2160, 20
      %v2312 = vpop.permute.xlu0 %2311
      %2313 = vrot.lane.b32.xlu0 %v2163, 20
      %v2314 = vpop.permute.xlu0 %2313
      %2315 = vrot.lane.b32.xlu0 %v2166, 20
      %v2316 = vpop.permute.xlu0 %2315
      %2317 = vrot.lane.b32.xlu0 %v2169, 20
      %v2318 = vpop.permute.xlu0 %2317
      %2319 = vrot.lane.b32.xlu0 %v2288, 20
      %v2320 = vpop.permute.xlu0 %2319
      %v2323 = vunpack.c.l.b16 %v1765
      %v2324 = vunpack.c.l.b16 %v1766
      %v2325 = vpack.c.b16 %v2324, %v2323
      %2326 = vrot.lane.b32.xlu0 %v1834, 24
      %v2327 = vpop.permute.xlu0 %2326
      %2328 = vrot.lane.b32.xlu0 %v1835, 24
      %v2329 = vpop.permute.xlu0 %2328
      %2330 = vrot.lane.b32.xlu0 %v1836, 24
      %v2331 = vpop.permute.xlu0 %2330
      %2332 = vrot.lane.b32.xlu0 %v1837, 24
      %v2333 = vpop.permute.xlu0 %2332
      %2334 = vrot.lane.b32.xlu0 %v1838, 24
      %v2335 = vpop.permute.xlu0 %2334
      %2336 = vrot.lane.b32.xlu0 %v1839, 24
      %v2337 = vpop.permute.xlu0 %2336
      %2338 = vrot.lane.b32.xlu0 %v1840, 24
      %v2339 = vpop.permute.xlu0 %2338
      %2340 = vrot.lane.b32.xlu0 %v1841, 24
      %v2341 = vpop.permute.xlu0 %2340
      %2342 = vrot.lane.b32.xlu0 %v1842, 24
      %v2343 = vpop.permute.xlu0 %2342
      %2344 = vrot.lane.b32.xlu0 %v1843, 24
      %v2345 = vpop.permute.xlu0 %2344
      %2346 = vrot.lane.b32.xlu0 %v1844, 24
      %v2347 = vpop.permute.xlu0 %2346
      %2348 = vrot.lane.b32.xlu0 %v1845, 24
      %v2349 = vpop.permute.xlu0 %2348
      %2350 = vrot.lane.b32.xlu0 %v1846, 24
      %v2351 = vpop.permute.xlu0 %2350
      %2352 = vrot.lane.b32.xlu0 %v1847, 24
      %v2353 = vpop.permute.xlu0 %2352
      %2354 = vrot.lane.b32.xlu0 %v2206, 24
      %v2355 = vpop.permute.xlu0 %2354
      %2356 = vrot.lane.b32.xlu0 %v2325, 24
      %v2357 = vpop.permute.xlu0 %2356
      %v2359 = vunpack.c.l.b16 %v1767
      %v2360 = vpack.c.b16 %v2359, %v2359
      %v2362 = vshrl.u32 %v2325, 16
      %v2364 = vshll.u32 %v2325, 16
      %v2366 = vrot.slane %v2364, 1
      %v2367 = vor.u32 %v2362, %v2366
      %v2369 = vshll.u32 %v2360, 16
      %v2371 = vrot.slane %v2369, 1
      %v2372 = vsel %vm1896, %v2367, %v2371
      %2373 = vrot.lane.b32.xlu0 %v1932, 28
      %v2374 = vpop.permute.xlu0 %2373
      %2375 = vrot.lane.b32.xlu0 %v1944, 28
      %v2376 = vpop.permute.xlu0 %2375
      %2377 = vrot.lane.b32.xlu0 %v1956, 28
      %v2378 = vpop.permute.xlu0 %2377
      %2379 = vrot.lane.b32.xlu0 %v1968, 28
      %v2380 = vpop.permute.xlu0 %2379
      %2381 = vrot.lane.b32.xlu0 %v1980, 28
      %v2382 = vpop.permute.xlu0 %2381
      %2383 = vrot.lane.b32.xlu0 %v1992, 28
      %v2384 = vpop.permute.xlu0 %2383
      %2385 = vrot.lane.b32.xlu0 %v2004, 28
      %v2386 = vpop.permute.xlu0 %2385
      %2387 = vrot.lane.b32.xlu0 %v2016, 28
      %v2388 = vpop.permute.xlu0 %2387
      %2389 = vrot.lane.b32.xlu0 %v2028, 28
      %v2390 = vpop.permute.xlu0 %2389
      %2391 = vrot.lane.b32.xlu0 %v2040, 28
      %v2392 = vpop.permute.xlu0 %2391
      %2393 = vrot.lane.b32.xlu0 %v2052, 28
      %v2394 = vpop.permute.xlu0 %2393
      %2395 = vrot.lane.b32.xlu0 %v2064, 28
      %v2396 = vpop.permute.xlu0 %2395
      %2397 = vrot.lane.b32.xlu0 %v2076, 28
      %v2398 = vpop.permute.xlu0 %2397
      %2399 = vrot.lane.b32.xlu0 %v2088, 28
      %v2400 = vpop.permute.xlu0 %2399
      %2401 = vrot.lane.b32.xlu0 %v2253, 28
      %v2402 = vpop.permute.xlu0 %2401
      %2403 = vrot.lane.b32.xlu0 %v2372, 28
      %v2404 = vpop.permute.xlu0 %2403
      %v2405 = vrot.slane %v2325, 1
      %v2406 = vrot.slane %v2360, 1
      %v2407 = vsel %vm2121, %v2405, %v2406
      %2408 = vrot.lane.b32.xlu0 %v2130, 32
      %v2409 = vpop.permute.xlu0 %2408
      %2410 = vrot.lane.b32.xlu0 %v2133, 32
      %v2411 = vpop.permute.xlu0 %2410
      %2412 = vrot.lane.b32.xlu0 %v2136, 32
      %v2413 = vpop.permute.xlu0 %2412
      %2414 = vrot.lane.b32.xlu0 %v2139, 32
      %v2415 = vpop.permute.xlu0 %2414
      %2416 = vrot.lane.b32.xlu0 %v2142, 32
      %v2417 = vpop.permute.xlu0 %2416
      %2418 = vrot.lane.b32.xlu0 %v2145, 32
      %v2419 = vpop.permute.xlu0 %2418
      %2420 = vrot.lane.b32.xlu0 %v2148, 32
      %v2421 = vpop.permute.xlu0 %2420
      %2422 = vrot.lane.b32.xlu0 %v2151, 32
      %v2423 = vpop.permute.xlu0 %2422
      %2424 = vrot.lane.b32.xlu0 %v2154, 32
      %v2425 = vpop.permute.xlu0 %2424
      %2426 = vrot.lane.b32.xlu0 %v2157, 32
      %v2427 = vpop.permute.xlu0 %2426
      %2428 = vrot.lane.b32.xlu0 %v2160, 32
      %v2429 = vpop.permute.xlu0 %2428
      %2430 = vrot.lane.b32.xlu0 %v2163, 32
      %v2431 = vpop.permute.xlu0 %2430
      %2432 = vrot.lane.b32.xlu0 %v2166, 32
      %v2433 = vpop.permute.xlu0 %2432
      %2434 = vrot.lane.b32.xlu0 %v2169, 32
      %v2435 = vpop.permute.xlu0 %2434
      %2436 = vrot.lane.b32.xlu0 %v2288, 32
      %v2437 = vpop.permute.xlu0 %2436
      %2438 = vrot.lane.b32.xlu0 %v2407, 32
      %v2439 = vpop.permute.xlu0 %2438
      %vm2440 = vcmask 31744
      %v2442 = vsel %vm2440, %v1832, %v2090
      %v2444 = vsel %vm2440, %v1833, %v2092
      %v2446 = vsel %vm2440, %v1834, %v2094
      %v2448 = vsel %vm2440, %v1835, %v2096
      %v2450 = vsel %vm2440, %v1836, %v2098
      %v2452 = vsel %vm2440, %v1837, %v2100
      %v2454 = vsel %vm2440, %v1838, %v2102
      %v2456 = vsel %vm2440, %v1839, %v2104
      %v2458 = vsel %vm2440, %v1840, %v2106
      %v2460 = vsel %vm2440, %v1841, %v2108
      %v2462 = vsel %vm2440, %v1842, %v2110
      %v2464 = vsel %vm2440, %v1843, %v2112
      %v2466 = vsel %vm2440, %v1844, %v2114
      %v2468 = vsel %vm2440, %v1845, %v2116
      %v2470 = vsel %vm2440, %v1846, %v2118
      %v2472 = vsel %vm2440, %v1847, %v2120
      %vm2473 = vcmask 64512
      %v2475 = vsel %vm2473, %v2442, %v2171
      %v2477 = vsel %vm2473, %v2444, %v2173
      %v2479 = vsel %vm2473, %v2446, %v2175
      %v2481 = vsel %vm2473, %v2448, %v2177
      %v2483 = vsel %vm2473, %v2450, %v2179
      %v2485 = vsel %vm2473, %v2452, %v2181
      %v2487 = vsel %vm2473, %v2454, %v2183
      %v2489 = vsel %vm2473, %v2456, %v2185
      %v2491 = vsel %vm2473, %v2458, %v2187
      %v2493 = vsel %vm2473, %v2460, %v2189
      %v2495 = vsel %vm2473, %v2462, %v2191
      %v2497 = vsel %vm2473, %v2464, %v2193
      %v2499 = vsel %vm2473, %v2466, %v2195
      %v2501 = vsel %vm2473, %v2468, %v2197
      %v2503 = vsel %vm2473, %v2470, %v2199
      %v2505 = vsel %vm2473, %v2472, %v2201
      %vm2506 = vcmask 97280
      %v2508 = vsel %vm2506, %v2475, %v2208
      %v2510 = vsel %vm2506, %v2477, %v2210
      %v2512 = vsel %vm2506, %v2479, %v2212
      %v2514 = vsel %vm2506, %v2481, %v2214
      %v2516 = vsel %vm2506, %v2483, %v2216
      %v2518 = vsel %vm2506, %v2485, %v2218
      %v2520 = vsel %vm2506, %v2487, %v2220
      %v2522 = vsel %vm2506, %v2489, %v2222
      %v2524 = vsel %vm2506, %v2491, %v2224
      %v2526 = vsel %vm2506, %v2493, %v2226
      %v2528 = vsel %vm2506, %v2495, %v2228
      %v2530 = vsel %vm2506, %v2497, %v2230
      %v2532 = vsel %vm2506, %v2499, %v2232
      %v2534 = vsel %vm2506, %v2501, %v2234
      %v2536 = vsel %vm2506, %v2503, %v2236
      %v2538 = vsel %vm2506, %v2505, %v2238
      %vm2539 = vcmask 130048
      %v2541 = vsel %vm2539, %v2508, %v2255
      %v2543 = vsel %vm2539, %v2510, %v2257
      %v2545 = vsel %vm2539, %v2512, %v2259
      %v2547 = vsel %vm2539, %v2514, %v2261
      %v2549 = vsel %vm2539, %v2516, %v2263
      %v2551 = vsel %vm2539, %v2518, %v2265
      %v2553 = vsel %vm2539, %v2520, %v2267
      %v2555 = vsel %vm2539, %v2522, %v2269
      %v2557 = vsel %vm2539, %v2524, %v2271
      %v2559 = vsel %vm2539, %v2526, %v2273
      %v2561 = vsel %vm2539, %v2528, %v2275
      %v2563 = vsel %vm2539, %v2530, %v2277
      %v2565 = vsel %vm2539, %v2532, %v2279
      %v2567 = vsel %vm2539, %v2534, %v2281
      %v2569 = vsel %vm2539, %v2536, %v2283
      %v2571 = vsel %vm2539, %v2538, %v2285
      %vm2572 = vcmask 162816
      %v2574 = vsel %vm2572, %v2541, %v2290
      %v2576 = vsel %vm2572, %v2543, %v2292
      %v2578 = vsel %vm2572, %v2545, %v2294
      %v2580 = vsel %vm2572, %v2547, %v2296
      %v2582 = vsel %vm2572, %v2549, %v2298
      %v2584 = vsel %vm2572, %v2551, %v2300
      %v2586 = vsel %vm2572, %v2553, %v2302
      %v2588 = vsel %vm2572, %v2555, %v2304
      %v2590 = vsel %vm2572, %v2557, %v2306
      %v2592 = vsel %vm2572, %v2559, %v2308
      %v2594 = vsel %vm2572, %v2561, %v2310
      %v2596 = vsel %vm2572, %v2563, %v2312
      %v2598 = vsel %vm2572, %v2565, %v2314
      %v2600 = vsel %vm2572, %v2567, %v2316
      %v2602 = vsel %vm2572, %v2569, %v2318
      %v2604 = vsel %vm2572, %v2571, %v2320
      %vm2605 = vcmask 195584
      %v2607 = vsel %vm2605, %v2574, %v2327
      %v2609 = vsel %vm2605, %v2576, %v2329
      %v2611 = vsel %vm2605, %v2578, %v2331
      %v2613 = vsel %vm2605, %v2580, %v2333
      %v2615 = vsel %vm2605, %v2582, %v2335
      %v2617 = vsel %vm2605, %v2584, %v2337
      %v2619 = vsel %vm2605, %v2586, %v2339
      %v2621 = vsel %vm2605, %v2588, %v2341
      %v2623 = vsel %vm2605, %v2590, %v2343
      %v2625 = vsel %vm2605, %v2592, %v2345
      %v2627 = vsel %vm2605, %v2594, %v2347
      %v2629 = vsel %vm2605, %v2596, %v2349
      %v2631 = vsel %vm2605, %v2598, %v2351
      %v2633 = vsel %vm2605, %v2600, %v2353
      %v2635 = vsel %vm2605, %v2602, %v2355
      %v2637 = vsel %vm2605, %v2604, %v2357
      %vm2638 = vcmask 228352
      %v2640 = vsel %vm2638, %v2607, %v2374
      %v2642 = vsel %vm2638, %v2609, %v2376
      %v2644 = vsel %vm2638, %v2611, %v2378
      %v2646 = vsel %vm2638, %v2613, %v2380
      %v2648 = vsel %vm2638, %v2615, %v2382
      %v2650 = vsel %vm2638, %v2617, %v2384
      %v2652 = vsel %vm2638, %v2619, %v2386
      %v2654 = vsel %vm2638, %v2621, %v2388
      %v2656 = vsel %vm2638, %v2623, %v2390
      %v2658 = vsel %vm2638, %v2625, %v2392
      %v2660 = vsel %vm2638, %v2627, %v2394
      %v2662 = vsel %vm2638, %v2629, %v2396
      %v2664 = vsel %vm2638, %v2631, %v2398
      %v2666 = vsel %vm2638, %v2633, %v2400
      %v2668 = vsel %vm2638, %v2635, %v2402
      %v2670 = vsel %vm2638, %v2637, %v2404
      %vm2671 = vcmask 261120
      %v2673 = vsel %vm2671, %v2640, %v2409
      %v2675 = vsel %vm2671, %v2642, %v2411
      %v2677 = vsel %vm2671, %v2644, %v2413
      %v2679 = vsel %vm2671, %v2646, %v2415
      %v2681 = vsel %vm2671, %v2648, %v2417
      %v2683 = vsel %vm2671, %v2650, %v2419
      %v2685 = vsel %vm2671, %v2652, %v2421
      %v2687 = vsel %vm2671, %v2654, %v2423
      %v2689 = vsel %vm2671, %v2656, %v2425
      %v2691 = vsel %vm2671, %v2658, %v2427
      %v2693 = vsel %vm2671, %v2660, %v2429
      %v2695 = vsel %vm2671, %v2662, %v2431
      %v2697 = vsel %vm2671, %v2664, %v2433
      %v2699 = vsel %vm2671, %v2666, %v2435
      %v2701 = vsel %vm2671, %v2668, %v2437
      %v2703 = vsel %vm2671, %v2670, %v2439
      %v2704 = vld [vmem:[%s3] sm:$0xf]
      %v2705 = vld [vmem:[%s3 + $0x4] sm:$0xf]
      %v2706 = vld [vmem:[%s3 + $0x8] sm:$0xf]
      %v2707 = vld [vmem:[%s3 + $0xc] sm:$0xf]
      %v2708 = vld [vmem:[%s3 + $0x10] sm:$0x3]
      %v2709 = vld [vmem:[%s4] sm:$0x1]
      %v2711 = vlaneseq
      %v2712 = vshrl.u32 %v2711, 7
      %v2713 = vsub.s32 0, %v2712
      %v2714 = vrot.slane %v2709, %v2713
      %v2721 = vunpack.c.l.b16 %v2704
      %v2722 = vunpack.c.l.b16 %v2705
      %v2723 = vunpack.c.l.b16 %v2706
      %v2724 = vunpack.c.l.b16 %v2707
      %v2725 = vunpack.c.l.b16 %v2708
      %v2726 = vpack.c.b16 %v2722, %v2721
      %v2727 = vpack.c.b16 %v2724, %v2723
      %v2728 = vpack.c.b16 %v2725, %v2725
      %vm2731 = vcmask 293888
      %v2732 = vsel %vm2731, %v2673, 0
      %v2734 = vsel %vm2731, %v2675, 0
      %v2736 = vsel %vm2731, %v2677, 0
      %v2738 = vsel %vm2731, %v2679, 0
      %v2740 = vsel %vm2731, %v2681, 0
      %v2742 = vsel %vm2731, %v2683, 0
      %v2744 = vsel %vm2731, %v2685, 0
      %v2746 = vsel %vm2731, %v2687, 0
      %v2748 = vsel %vm2731, %v2689, 0
      %v2750 = vsel %vm2731, %v2691, 0
      %v2752 = vsel %vm2731, %v2693, 0
      %v2754 = vsel %vm2731, %v2695, 0
      %v2756 = vsel %vm2731, %v2697, 0
      %v2758 = vsel %vm2731, %v2699, 0
      %v2760 = vsel %vm2731, %v2701, 0
      %v2762 = vsel %vm2731, %v2703, 0
      %vm2764 = vcmask 1041408
      %v2766 = vsel %vm2764, %v2728, 0
      %2768 = vmatprep.subr.bf16.mxu0 0
      %2769 = vmatpush1.bf16.msra.mxu0 %v2726
      %2770 = vmatprep.subr.bf16.mxu0 0
      %2771 = vmatpush1.bf16.msra.mxu0 %v2727
      %2772 = vmatprep.subr.bf16.mxu0 0
      %2773 = vmatpush1.bf16.msra.mxu0 %v2766
      %2774 = vmatprep.subr.bf16.mxu0 0
      %2775 = vmatpush1.bf16.msra.mxu0 0
      %2776 = vmatprep.subr.bf16.mxu0 0
      %2777 = vmatpush1.bf16.msra.mxu0 0
      %2778 = vmatprep.subr.bf16.mxu0 0
      %2779 = vmatpush1.bf16.msra.mxu0 0
      %2780 = vmatprep.subr.bf16.mxu0 0
      %2781 = vmatpush1.bf16.msra.mxu0 0
      %2782 = vmatprep.subr.bf16.mxu0 0
      %2783 = vmatpush1.bf16.msra.mxu0 0
      %2784 = vmatprep.subr.bf16.mxu0 0
      %2785 = vmatpush1.bf16.msra.mxu0 0
      %2786 = vmatprep.subr.bf16.mxu0 0
      %2787 = vmatpush1.bf16.msra.mxu0 0
      %2788 = vmatprep.subr.bf16.mxu0 0
      %2789 = vmatpush1.bf16.msra.mxu0 0
      %2790 = vmatprep.subr.bf16.mxu0 0
      %2791 = vmatpush1.bf16.msra.mxu0 0
      %2792 = vmatprep.subr.bf16.mxu0 0
      %2793 = vmatpush1.bf16.msra.mxu0 0
      %2794 = vmatprep.subr.bf16.mxu0 0
      %2795 = vmatpush1.bf16.msra.mxu0 0
      %2796 = vmatprep.subr.bf16.mxu0 0
      %2797 = vmatpush1.bf16.msra.mxu0 0
      %2798 = vmatprep.subr.bf16.mxu0 0
      %2799 = vmatpush1.bf16.msra.mxu0 0
      %2800 = vmatprep.mubr.bf16.mxu0 0
      %2801 = vmatmul.mubr.bf16.gmra.mrb[0].mxu0 %v2732
      %v2802 = vpop.f32.mrb[0].mxu0
      %v2803 = vadd.f32 %v2714, %v2802
      %v2804 = vpop.f32.mrb[0].mxu0
      %v2805 = vpop.f32.mrb[0].mxu0
      %v2806 = vadd.f32 %v2714, %v2805
      %v2807 = vpop.f32.mrb[0].mxu0
      %2808 = vmatprep.mubr.bf16.mxu0 0
      %2809 = vmatmul.mubr.bf16.gmra.mrb[0].mxu0 %v2734
      %v2810 = vpop.f32.mrb[0].mxu0
      %v2811 = vadd.f32 %v2714, %v2810
      %v2812 = vpop.f32.mrb[0].mxu0
      %v2813 = vpop.f32.mrb[0].mxu0
      %v2814 = vadd.f32 %v2714, %v2813
      %v2815 = vpop.f32.mrb[0].mxu0
      %2816 = vmatprep.mubr.bf16.mxu0 0
      %2817 = vmatmul.mubr.bf16.gmra.mrb[0].mxu0 %v2736
      %v2818 = vpop.f32.mrb[0].mxu0
      %v2819 = vadd.f32 %v2714, %v2818
      %v2820 = vpop.f32.mrb[0].mxu0
      %v2821 = vpop.f32.mrb[0].mxu0
      %v2822 = vadd.f32 %v2714, %v2821
      %v2823 = vpop.f32.mrb[0].mxu0
      %2824 = vmatprep.mubr.bf16.mxu0 0
      %2825 = vmatmul.mubr.bf16.gmra.mrb[0].mxu0 %v2738
      %v2826 = vpop.f32.mrb[0].mxu0
      %v2827 = vadd.f32 %v2714, %v2826
      %v2828 = vpop.f32.mrb[0].mxu0
      %v2829 = vpop.f32.mrb[0].mxu0
      %v2830 = vadd.f32 %v2714, %v2829
      %v2831 = vpop.f32.mrb[0].mxu0
      %2832 = vmatprep.mubr.bf16.mxu0 0
      %2833 = vmatmul.mubr.bf16.gmra.mrb[0].mxu0 %v2740
      %v2834 = vpop.f32.mrb[0].mxu0
      %v2835 = vadd.f32 %v2714, %v2834
      %v2836 = vpop.f32.mrb[0].mxu0
      %v2837 = vpop.f32.mrb[0].mxu0
      %v2838 = vadd.f32 %v2714, %v2837
      %v2839 = vpop.f32.mrb[0].mxu0
      %2840 = vmatprep.mubr.bf16.mxu0 0
      %2841 = vmatmul.mubr.bf16.gmra.mrb[0].mxu0 %v2742
      %v2842 = vpop.f32.mrb[0].mxu0
      %v2843 = vadd.f32 %v2714, %v2842
      %v2844 = vpop.f32.mrb[0].mxu0
      %v2845 = vpop.f32.mrb[0].mxu0
      %v2846 = vadd.f32 %v2714, %v2845
      %v2847 = vpop.f32.mrb[0].mxu0
      %2848 = vmatprep.mubr.bf16.mxu0 0
      %2849 = vmatmul.mubr.bf16.gmra.mrb[0].mxu0 %v2744
      %v2850 = vpop.f32.mrb[0].mxu0
      %v2851 = vadd.f32 %v2714, %v2850
      %v2852 = vpop.f32.mrb[0].mxu0
      %v2853 = vpop.f32.mrb[0].mxu0
      %v2854 = vadd.f32 %v2714, %v2853
      %v2855 = vpop.f32.mrb[0].mxu0
      %2856 = vmatprep.mubr.bf16.mxu0 0
      %2857 = vmatmul.mubr.bf16.gmra.mrb[0].mxu0 %v2746
      %v2858 = vpop.f32.mrb[0].mxu0
      %v2859 = vadd.f32 %v2714, %v2858
      %v2860 = vpop.f32.mrb[0].mxu0
      %v2861 = vpop.f32.mrb[0].mxu0
      %v2862 = vadd.f32 %v2714, %v2861
      %v2863 = vpop.f32.mrb[0].mxu0
      %2864 = vmatprep.mubr.bf16.mxu0 0
      %2865 = vmatmul.mubr.bf16.gmra.mrb[0].mxu0 %v2748
      %v2866 = vpop.f32.mrb[0].mxu0
      %v2867 = vadd.f32 %v2714, %v2866
      %v2868 = vpop.f32.mrb[0].mxu0
      %v2869 = vpop.f32.mrb[0].mxu0
      %v2870 = vadd.f32 %v2714, %v2869
      %v2871 = vpop.f32.mrb[0].mxu0
      %2872 = vmatprep.mubr.bf16.mxu0 0
      %2873 = vmatmul.mubr.bf16.gmra.mrb[0].mxu0 %v2750
      %v2874 = vpop.f32.mrb[0].mxu0
      %v2875 = vadd.f32 %v2714, %v2874
      %v2876 = vpop.f32.mrb[0].mxu0
      %v2877 = vpop.f32.mrb[0].mxu0
      %v2878 = vadd.f32 %v2714, %v2877
      %v2879 = vpop.f32.mrb[0].mxu0
      %2880 = vmatprep.mubr.bf16.mxu0 0
      %2881 = vmatmul.mubr.bf16.gmra.mrb[0].mxu0 %v2752
      %v2882 = vpop.f32.mrb[0].mxu0
      %v2883 = vadd.f32 %v2714, %v2882
      %v2884 = vpop.f32.mrb[0].mxu0
      %v2885 = vpop.f32.mrb[0].mxu0
      %v2886 = vadd.f32 %v2714, %v2885
      %v2887 = vpop.f32.mrb[0].mxu0
      %2888 = vmatprep.mubr.bf16.mxu0 0
      %2889 = vmatmul.mubr.bf16.gmra.mrb[0].mxu0 %v2754
      %v2890 = vpop.f32.mrb[0].mxu0
      %v2891 = vadd.f32 %v2714, %v2890
      %v2892 = vpop.f32.mrb[0].mxu0
      %v2893 = vpop.f32.mrb[0].mxu0
      %v2894 = vadd.f32 %v2714, %v2893
      %v2895 = vpop.f32.mrb[0].mxu0
      %2896 = vmatprep.mubr.bf16.mxu0 0
      %2897 = vmatmul.mubr.bf16.gmra.mrb[0].mxu0 %v2756
      %v2898 = vpop.f32.mrb[0].mxu0
      %v2899 = vadd.f32 %v2714, %v2898
      %v2900 = vpop.f32.mrb[0].mxu0
      %v2901 = vpop.f32.mrb[0].mxu0
      %v2902 = vadd.f32 %v2714, %v2901
      %v2903 = vpop.f32.mrb[0].mxu0
      %2904 = vmatprep.mubr.bf16.mxu0 0
      %2905 = vmatmul.mubr.bf16.gmra.mrb[0].mxu0 %v2758
      %v2906 = vpop.f32.mrb[0].mxu0
      %v2907 = vadd.f32 %v2714, %v2906
      %v2908 = vpop.f32.mrb[0].mxu0
      %v2909 = vpop.f32.mrb[0].mxu0
      %v2910 = vadd.f32 %v2714, %v2909
      %v2911 = vpop.f32.mrb[0].mxu0
      %2912 = vmatprep.mubr.bf16.mxu0 0
      %2913 = vmatmul.mubr.bf16.gmra.mrb[0].mxu0 %v2760
      %v2914 = vpop.f32.mrb[0].mxu0
      %v2915 = vadd.f32 %v2714, %v2914
      %v2916 = vpop.f32.mrb[0].mxu0
      %v2917 = vpop.f32.mrb[0].mxu0
      %v2918 = vadd.f32 %v2714, %v2917
      %v2919 = vpop.f32.mrb[0].mxu0
      %2920 = vmatprep.mubr.bf16.mxu0 0
      %2921 = vmatmul.mubr.bf16.gmra.mrb[0].mxu0 %v2762
      %v2922 = vpop.f32.mrb[0].mxu0
      %v2923 = vadd.f32 %v2714, %v2922
      %v2924 = vpop.f32.mrb[0].mxu0
      %v2925 = vpop.f32.mrb[0].mxu0
      %v2926 = vadd.f32 %v2714, %v2925
      %v2927 = vpop.f32.mrb[0].mxu0
      %2928 = vdwg.mxu0
      %v2929 = vld [vmem:[#allocation3] sm:$0xf]
      %v2930 = vld [vmem:[#allocation3 + $0x4] sm:$0xf]
      %v2931 = vld [vmem:[#allocation3 + $0x8] sm:$0x1]
      %v2932 = vld [vmem:[#allocation3 + $0xc] sm:$0xf]
      %v2933 = vld [vmem:[#allocation3 + $0x10] sm:$0xf]
      %v2934 = vld [vmem:[#allocation3 + $0x14] sm:$0x1]
      %v2935 = vld [vmem:[#allocation3 + $0x18] sm:$0xf]
      %v2936 = vld [vmem:[#allocation3 + $0x1c] sm:$0xf]
      %v2937 = vld [vmem:[#allocation3 + $0x20] sm:$0x1]
      %v2938 = vld [vmem:[#allocation3 + $0x24] sm:$0xf]
      %v2939 = vld [vmem:[#allocation3 + $0x28] sm:$0xf]
      %v2940 = vld [vmem:[#allocation3 + $0x2c] sm:$0x1]
      %v2941 = vld [vmem:[#allocation3 + $0x30] sm:$0xf]
      %v2942 = vld [vmem:[#allocation3 + $0x34] sm:$0xf]
      %v2943 = vld [vmem:[#allocation3 + $0x38] sm:$0x1]
      %v2944 = vld [vmem:[#allocation3 + $0x3c] sm:$0xf]
      %v2945 = vld [vmem:[#allocation3 + $0x40] sm:$0xf]
      %v2946 = vld [vmem:[#allocation3 + $0x44] sm:$0x1]
      %v2947 = vld [vmem:[#allocation3 + $0x48] sm:$0xf]
      %v2948 = vld [vmem:[#allocation3 + $0x4c] sm:$0xf]
      %v2949 = vld [vmem:[#allocation3 + $0x50] sm:$0x1]
      %v2950 = vld [vmem:[#allocation3 + $0x54] sm:$0xf]
      %v2951 = vld [vmem:[#allocation3 + $0x58] sm:$0xf]
      %v2952 = vld [vmem:[#allocation3 + $0x5c] sm:$0x1]
      %v2953 = vld [vmem:[#allocation3 + $0x60] sm:$0xf]
      %v2954 = vld [vmem:[#allocation3 + $0x64] sm:$0xf]
      %v2955 = vld [vmem:[#allocation3 + $0x68] sm:$0x1]
      %v2956 = vld [vmem:[#allocation3 + $0x6c] sm:$0xf]
      %v2957 = vld [vmem:[#allocation3 + $0x70] sm:$0xf]
      %v2958 = vld [vmem:[#allocation3 + $0x74] sm:$0x1]
      %v2959 = vld [vmem:[#allocation3 + $0x78] sm:$0xf]
      %v2960 = vld [vmem:[#allocation3 + $0x7c] sm:$0xf]
      %v2961 = vld [vmem:[#allocation3 + $0x80] sm:$0x1]
      %v2962 = vld [vmem:[#allocation3 + $0x84] sm:$0xf]
      %v2963 = vld [vmem:[#allocation3 + $0x88] sm:$0xf]
      %v2964 = vld [vmem:[#allocation3 + $0x8c] sm:$0x1]
      %v2965 = vld [vmem:[#allocation3 + $0x90] sm:$0xf]
      %v2966 = vld [vmem:[#allocation3 + $0x94] sm:$0xf]
      %v2967 = vld [vmem:[#allocation3 + $0x98] sm:$0x1]
      %v2968 = vld [vmem:[#allocation3 + $0x9c] sm:$0xf]
      %v2969 = vld [vmem:[#allocation3 + $0xa0] sm:$0xf]
      %v2970 = vld [vmem:[#allocation3 + $0xa4] sm:$0x1]
      %v2971 = vld [vmem:[#allocation3 + $0xa8] sm:$0xf]
      %v2972 = vld [vmem:[#allocation3 + $0xac] sm:$0xf]
      %v2973 = vld [vmem:[#allocation3 + $0xb0] sm:$0x1]
      %v2974 = vld [vmem:[#allocation3 + $0xb4] sm:$0xf]
      %v2975 = vld [vmem:[#allocation3 + $0xb8] sm:$0xf]
      %v2976 = vld [vmem:[#allocation3 + $0xbc] sm:$0x1]
      %v2977 = vld [vmem:[#allocation3 + $0xc0] sm:$0xf]
      %v2978 = vld [vmem:[#allocation3 + $0xc4] sm:$0xf]
      %v2979 = vld [vmem:[#allocation3 + $0xc8] sm:$0x1]
      %v2980 = vld [vmem:[#allocation3 + $0xcc] sm:$0xf]
      %v2981 = vld [vmem:[#allocation3 + $0xd0] sm:$0xf]
      %v2982 = vld [vmem:[#allocation3 + $0xd4] sm:$0x1]
      %v3015 = vunpack.c.l.b16 %v2929
      %v3016 = vunpack.c.l.b16 %v2930
      %v3017 = vunpack.c.l.b16 %v2932
      %v3018 = vunpack.c.l.b16 %v2933
      %v3019 = vunpack.c.l.b16 %v2935
      %v3020 = vunpack.c.l.b16 %v2936
      %v3021 = vunpack.c.l.b16 %v2938
      %v3022 = vunpack.c.l.b16 %v2939
      %v3023 = vunpack.c.l.b16 %v2941
      %v3024 = vunpack.c.l.b16 %v2942
      %v3025 = vunpack.c.l.b16 %v2944
      %v3026 = vunpack.c.l.b16 %v2945
      %v3027 = vunpack.c.l.b16 %v2947
      %v3028 = vunpack.c.l.b16 %v2948
      %v3029 = vunpack.c.l.b16 %v2950
      %v3030 = vunpack.c.l.b16 %v2951
      %v3031 = vunpack.c.l.b16 %v2953
      %v3032 = vunpack.c.l.b16 %v2954
      %v3033 = vunpack.c.l.b16 %v2956
      %v3034 = vunpack.c.l.b16 %v2957
      %v3035 = vunpack.c.l.b16 %v2959
      %v3036 = vunpack.c.l.b16 %v2960
      %v3037 = vunpack.c.l.b16 %v2962
      %v3038 = vunpack.c.l.b16 %v2963
      %v3039 = vunpack.c.l.b16 %v2965
      %v3040 = vunpack.c.l.b16 %v2966
      %v3041 = vunpack.c.l.b16 %v2968
      %v3042 = vunpack.c.l.b16 %v2969
      %v3043 = vunpack.c.l.b16 %v2971
      %v3044 = vunpack.c.l.b16 %v2972
      %v3045 = vunpack.c.l.b16 %v2974
      %v3046 = vunpack.c.l.b16 %v2975
      %v3047 = vpack.c.b16 %v3016, %v3015
      %v3048 = vpack.c.b16 %v3018, %v3017
      %v3049 = vpack.c.b16 %v3020, %v3019
      %v3050 = vpack.c.b16 %v3022, %v3021
      %v3051 = vpack.c.b16 %v3024, %v3023
      %v3052 = vpack.c.b16 %v3026, %v3025
      %v3053 = vpack.c.b16 %v3028, %v3027
      %v3054 = vpack.c.b16 %v3030, %v3029
      %v3055 = vpack.c.b16 %v3032, %v3031
      %v3056 = vpack.c.b16 %v3034, %v3033
      %v3057 = vpack.c.b16 %v3036, %v3035
      %v3058 = vpack.c.b16 %v3038, %v3037
      %v3059 = vpack.c.b16 %v3040, %v3039
      %v3060 = vpack.c.b16 %v3042, %v3041
      %v3061 = vpack.c.b16 %v3044, %v3043
      %v3062 = vpack.c.b16 %v3046, %v3045
      %v3079 = vunpack.c.l.b16 %v2931
      %v3080 = vunpack.c.l.b16 %v2934
      %v3081 = vunpack.c.l.b16 %v2937
      %v3082 = vunpack.c.l.b16 %v2940
      %v3083 = vunpack.c.l.b16 %v2943
      %v3084 = vunpack.c.l.b16 %v2946
      %v3085 = vunpack.c.l.b16 %v2949
      %v3086 = vunpack.c.l.b16 %v2952
      %v3087 = vunpack.c.l.b16 %v2955
      %v3088 = vunpack.c.l.b16 %v2958
      %v3089 = vunpack.c.l.b16 %v2961
      %v3090 = vunpack.c.l.b16 %v2964
      %v3091 = vunpack.c.l.b16 %v2967
      %v3092 = vunpack.c.l.b16 %v2970
      %v3093 = vunpack.c.l.b16 %v2973
      %v3094 = vunpack.c.l.b16 %v2976
      %v3095 = vpack.c.b16 %v3079, %v3079
      %v3096 = vpack.c.b16 %v3080, %v3080
      %v3097 = vpack.c.b16 %v3081, %v3081
      %v3098 = vpack.c.b16 %v3082, %v3082
      %v3099 = vpack.c.b16 %v3083, %v3083
      %v3100 = vpack.c.b16 %v3084, %v3084
      %v3101 = vpack.c.b16 %v3085, %v3085
      %v3102 = vpack.c.b16 %v3086, %v3086
      %v3103 = vpack.c.b16 %v3087, %v3087
      %v3104 = vpack.c.b16 %v3088, %v3088
      %v3105 = vpack.c.b16 %v3089, %v3089
      %v3106 = vpack.c.b16 %v3090, %v3090
      %v3107 = vpack.c.b16 %v3091, %v3091
      %v3108 = vpack.c.b16 %v3092, %v3092
      %v3109 = vpack.c.b16 %v3093, %v3093
      %v3110 = vpack.c.b16 %v3094, %v3094
      %v3112 = vshrl.u32 %v3047, 16
      %v3114 = vshll.u32 %v3047, 16
      %v3116 = vrot.slane %v3114, 1
      %v3117 = vor.u32 %v3112, %v3116
      %v3119 = vshll.u32 %v3095, 16
      %v3121 = vrot.slane %v3119, 1
      %v3122 = vsel %vm1896, %v3117, %v3121
      %v3124 = vshrl.u32 %v3048, 16
      %v3126 = vshll.u32 %v3048, 16
      %v3128 = vrot.slane %v3126, 1
      %v3129 = vor.u32 %v3124, %v3128
      %v3131 = vshll.u32 %v3096, 16
      %v3133 = vrot.slane %v3131, 1
      %v3134 = vsel %vm1896, %v3129, %v3133
      %v3136 = vshrl.u32 %v3049, 16
      %v3138 = vshll.u32 %v3049, 16
      %v3140 = vrot.slane %v3138, 1
      %v3141 = vor.u32 %v3136, %v3140
      %v3143 = vshll.u32 %v3097, 16
      %v3145 = vrot.slane %v3143, 1
      %v3146 = vsel %vm1896, %v3141, %v3145
      %v3148 = vshrl.u32 %v3050, 16
      %v3150 = vshll.u32 %v3050, 16
      %v3152 = vrot.slane %v3150, 1
      %v3153 = vor.u32 %v3148, %v3152
      %v3155 = vshll.u32 %v3098, 16
      %v3157 = vrot.slane %v3155, 1
      %v3158 = vsel %vm1896, %v3153, %v3157
      %v3160 = vshrl.u32 %v3051, 16
      %v3162 = vshll.u32 %v3051, 16
      %v3164 = vrot.slane %v3162, 1
      %v3165 = vor.u32 %v3160, %v3164
      %v3167 = vshll.u32 %v3099, 16
      %v3169 = vrot.slane %v3167, 1
      %v3170 = vsel %vm1896, %v3165, %v3169
      %v3172 = vshrl.u32 %v3052, 16
      %v3174 = vshll.u32 %v3052, 16
      %v3176 = vrot.slane %v3174, 1
      %v3177 = vor.u32 %v3172, %v3176
      %v3179 = vshll.u32 %v3100, 16
      %v3181 = vrot.slane %v3179, 1
      %v3182 = vsel %vm1896, %v3177, %v3181
      %v3184 = vshrl.u32 %v3053, 16
      %v3186 = vshll.u32 %v3053, 16
      %v3188 = vrot.slane %v3186, 1
      %v3189 = vor.u32 %v3184, %v3188
      %v3191 = vshll.u32 %v3101, 16
      %v3193 = vrot.slane %v3191, 1
      %v3194 = vsel %vm1896, %v3189, %v3193
      %v3196 = vshrl.u32 %v3054, 16
      %v3198 = vshll.u32 %v3054, 16
      %v3200 = vrot.slane %v3198, 1
      %v3201 = vor.u32 %v3196, %v3200
      %v3203 = vshll.u32 %v3102, 16
      %v3205 = vrot.slane %v3203, 1
      %v3206 = vsel %vm1896, %v3201, %v3205
      %v3208 = vshrl.u32 %v3055, 16
      %v3210 = vshll.u32 %v3055, 16
      %v3212 = vrot.slane %v3210, 1
      %v3213 = vor.u32 %v3208, %v3212
      %v3215 = vshll.u32 %v3103, 16
      %v3217 = vrot.slane %v3215, 1
      %v3218 = vsel %vm1896, %v3213, %v3217
      %v3220 = vshrl.u32 %v3056, 16
      %v3222 = vshll.u32 %v3056, 16
      %v3224 = vrot.slane %v3222, 1
      %v3225 = vor.u32 %v3220, %v3224
      %v3227 = vshll.u32 %v3104, 16
      %v3229 = vrot.slane %v3227, 1
      %v3230 = vsel %vm1896, %v3225, %v3229
      %v3232 = vshrl.u32 %v3057, 16
      %v3234 = vshll.u32 %v3057, 16
      %v3236 = vrot.slane %v3234, 1
      %v3237 = vor.u32 %v3232, %v3236
      %v3239 = vshll.u32 %v3105, 16
      %v3241 = vrot.slane %v3239, 1
      %v3242 = vsel %vm1896, %v3237, %v3241
      %v3244 = vshrl.u32 %v3058, 16
      %v3246 = vshll.u32 %v3058, 16
      %v3248 = vrot.slane %v3246, 1
      %v3249 = vor.u32 %v3244, %v3248
      %v3251 = vshll.u32 %v3106, 16
      %v3253 = vrot.slane %v3251, 1
      %v3254 = vsel %vm1896, %v3249, %v3253
      %v3256 = vshrl.u32 %v3059, 16
      %v3258 = vshll.u32 %v3059, 16
      %v3260 = vrot.slane %v3258, 1
      %v3261 = vor.u32 %v3256, %v3260
      %v3263 = vshll.u32 %v3107, 16
      %v3265 = vrot.slane %v3263, 1
      %v3266 = vsel %vm1896, %v3261, %v3265
      %v3268 = vshrl.u32 %v3060, 16
      %v3270 = vshll.u32 %v3060, 16
      %v3272 = vrot.slane %v3270, 1
      %v3273 = vor.u32 %v3268, %v3272
      %v3275 = vshll.u32 %v3108, 16
      %v3277 = vrot.slane %v3275, 1
      %v3278 = vsel %vm1896, %v3273, %v3277
      %v3280 = vshrl.u32 %v3061, 16
      %v3282 = vshll.u32 %v3061, 16
      %v3284 = vrot.slane %v3282, 1
      %v3285 = vor.u32 %v3280, %v3284
      %v3287 = vshll.u32 %v3109, 16
      %v3289 = vrot.slane %v3287, 1
      %v3290 = vsel %vm1896, %v3285, %v3289
      %v3292 = vshrl.u32 %v3062, 16
      %v3294 = vshll.u32 %v3062, 16
      %v3296 = vrot.slane %v3294, 1
      %v3297 = vor.u32 %v3292, %v3296
      %v3299 = vshll.u32 %v3110, 16
      %v3301 = vrot.slane %v3299, 1
      %v3302 = vsel %vm1896, %v3297, %v3301
      %3303 = vrot.lane.b32.xlu0 %v3122, 4
      %v3304 = vpop.permute.xlu0 %3303
      %3305 = vrot.lane.b32.xlu0 %v3134, 4
      %v3306 = vpop.permute.xlu0 %3305
      %3307 = vrot.lane.b32.xlu0 %v3146, 4
      %v3308 = vpop.permute.xlu0 %3307
      %3309 = vrot.lane.b32.xlu0 %v3158, 4
      %v3310 = vpop.permute.xlu0 %3309
      %3311 = vrot.lane.b32.xlu0 %v3170, 4
      %v3312 = vpop.permute.xlu0 %3311
      %3313 = vrot.lane.b32.xlu0 %v3182, 4
      %v3314 = vpop.permute.xlu0 %3313
      %3315 = vrot.lane.b32.xlu0 %v3194, 4
      %v3316 = vpop.permute.xlu0 %3315
      %3317 = vrot.lane.b32.xlu0 %v3206, 4
      %v3318 = vpop.permute.xlu0 %3317
      %3319 = vrot.lane.b32.xlu0 %v3218, 4
      %v3320 = vpop.permute.xlu0 %3319
      %3321 = vrot.lane.b32.xlu0 %v3230, 4
      %v3322 = vpop.permute.xlu0 %3321
      %3323 = vrot.lane.b32.xlu0 %v3242, 4
      %v3324 = vpop.permute.xlu0 %3323
      %3325 = vrot.lane.b32.xlu0 %v3254, 4
      %v3326 = vpop.permute.xlu0 %3325
      %3327 = vrot.lane.b32.xlu0 %v3266, 4
      %v3328 = vpop.permute.xlu0 %3327
      %3329 = vrot.lane.b32.xlu0 %v3278, 4
      %v3330 = vpop.permute.xlu0 %3329
      %3331 = vrot.lane.b32.xlu0 %v3290, 4
      %v3332 = vpop.permute.xlu0 %3331
      %3333 = vrot.lane.b32.xlu0 %v3302, 4
      %v3334 = vpop.permute.xlu0 %3333
      %v3335 = vrot.slane %v3047, 1
      %v3336 = vrot.slane %v3095, 1
      %v3337 = vsel %vm2121, %v3335, %v3336
      %v3338 = vrot.slane %v3048, 1
      %v3339 = vrot.slane %v3096, 1
      %v3340 = vsel %vm2121, %v3338, %v3339
      %v3341 = vrot.slane %v3049, 1
      %v3342 = vrot.slane %v3097, 1
      %v3343 = vsel %vm2121, %v3341, %v3342
      %v3344 = vrot.slane %v3050, 1
      %v3345 = vrot.slane %v3098, 1
      %v3346 = vsel %vm2121, %v3344, %v3345
      %v3347 = vrot.slane %v3051, 1
      %v3348 = vrot.slane %v3099, 1
      %v3349 = vsel %vm2121, %v3347, %v3348
      %v3350 = vrot.slane %v3052, 1
      %v3351 = vrot.slane %v3100, 1
      %v3352 = vsel %vm2121, %v3350, %v3351
      %v3353 = vrot.slane %v3053, 1
      %v3354 = vrot.slane %v3101, 1
      %v3355 = vsel %vm2121, %v3353, %v3354
      %v3356 = vrot.slane %v3054, 1
      %v3357 = vrot.slane %v3102, 1
      %v3358 = vsel %vm2121, %v3356, %v3357
      %v3359 = vrot.slane %v3055, 1
      %v3360 = vrot.slane %v3103, 1
      %v3361 = vsel %vm2121, %v3359, %v3360
      %v3362 = vrot.slane %v3056, 1
      %v3363 = vrot.slane %v3104, 1
      %v3364 = vsel %vm2121, %v3362, %v3363
      %v3365 = vrot.slane %v3057, 1
      %v3366 = vrot.slane %v3105, 1
      %v3367 = vsel %vm2121, %v3365, %v3366
      %v3368 = vrot.slane %v3058, 1
      %v3369 = vrot.slane %v3106, 1
      %v3370 = vsel %vm2121, %v3368, %v3369
      %v3371 = vrot.slane %v3059, 1
      %v3372 = vrot.slane %v3107, 1
      %v3373 = vsel %vm2121, %v3371, %v3372
      %v3374 = vrot.slane %v3060, 1
      %v3375 = vrot.slane %v3108, 1
      %v3376 = vsel %vm2121, %v3374, %v3375
      %v3377 = vrot.slane %v3061, 1
      %v3378 = vrot.slane %v3109, 1
      %v3379 = vsel %vm2121, %v3377, %v3378
      %v3380 = vrot.slane %v3062, 1
      %v3381 = vrot.slane %v3110, 1
      %v3382 = vsel %vm2121, %v3380, %v3381
      %3383 = vrot.lane.b32.xlu0 %v3337, 8
      %v3384 = vpop.permute.xlu0 %3383
      %3385 = vrot.lane.b32.xlu0 %v3340, 8
      %v3386 = vpop.permute.xlu0 %3385
      %3387 = vrot.lane.b32.xlu0 %v3343, 8
      %v3388 = vpop.permute.xlu0 %3387
      %3389 = vrot.lane.b32.xlu0 %v3346, 8
      %v3390 = vpop.permute.xlu0 %3389
      %3391 = vrot.lane.b32.xlu0 %v3349, 8
      %v3392 = vpop.permute.xlu0 %3391
      %3393 = vrot.lane.b32.xlu0 %v3352, 8
      %v3394 = vpop.permute.xlu0 %3393
      %3395 = vrot.lane.b32.xlu0 %v3355, 8
      %v3396 = vpop.permute.xlu0 %3395
      %3397 = vrot.lane.b32.xlu0 %v3358, 8
      %v3398 = vpop.permute.xlu0 %3397
      %3399 = vrot.lane.b32.xlu0 %v3361, 8
      %v3400 = vpop.permute.xlu0 %3399
      %3401 = vrot.lane.b32.xlu0 %v3364, 8
      %v3402 = vpop.permute.xlu0 %3401
      %3403 = vrot.lane.b32.xlu0 %v3367, 8
      %v3404 = vpop.permute.xlu0 %3403
      %3405 = vrot.lane.b32.xlu0 %v3370, 8
      %v3406 = vpop.permute.xlu0 %3405
      %3407 = vrot.lane.b32.xlu0 %v3373, 8
      %v3408 = vpop.permute.xlu0 %3407
      %3409 = vrot.lane.b32.xlu0 %v3376, 8
      %v3410 = vpop.permute.xlu0 %3409
      %3411 = vrot.lane.b32.xlu0 %v3379, 8
      %v3412 = vpop.permute.xlu0 %3411
      %3413 = vrot.lane.b32.xlu0 %v3382, 8
      %v3414 = vpop.permute.xlu0 %3413
      %v3417 = vunpack.c.l.b16 %v2977
      %v3418 = vunpack.c.l.b16 %v2978
      %v3419 = vpack.c.b16 %v3418, %v3417
      %3420 = vrot.lane.b32.xlu0 %v3048, 12
      %v3421 = vpop.permute.xlu0 %3420
      %3422 = vrot.lane.b32.xlu0 %v3049, 12
      %v3423 = vpop.permute.xlu0 %3422
      %3424 = vrot.lane.b32.xlu0 %v3050, 12
      %v3425 = vpop.permute.xlu0 %3424
      %3426 = vrot.lane.b32.xlu0 %v3051, 12
      %v3427 = vpop.permute.xlu0 %3426
      %3428 = vrot.lane.b32.xlu0 %v3052, 12
      %v3429 = vpop.permute.xlu0 %3428
      %3430 = vrot.lane.b32.xlu0 %v3053, 12
      %v3431 = vpop.permute.xlu0 %3430
      %3432 = vrot.lane.b32.xlu0 %v3054, 12
      %v3433 = vpop.permute.xlu0 %3432
      %3434 = vrot.lane.b32.xlu0 %v3055, 12
      %v3435 = vpop.permute.xlu0 %3434
      %3436 = vrot.lane.b32.xlu0 %v3056, 12
      %v3437 = vpop.permute.xlu0 %3436
      %3438 = vrot.lane.b32.xlu0 %v3057, 12
      %v3439 = vpop.permute.xlu0 %3438
      %3440 = vrot.lane.b32.xlu0 %v3058, 12
      %v3441 = vpop.permute.xlu0 %3440
      %3442 = vrot.lane.b32.xlu0 %v3059, 12
      %v3443 = vpop.permute.xlu0 %3442
      %3444 = vrot.lane.b32.xlu0 %v3060, 12
      %v3445 = vpop.permute.xlu0 %3444
      %3446 = vrot.lane.b32.xlu0 %v3061, 12
      %v3447 = vpop.permute.xlu0 %3446
      %3448 = vrot.lane.b32.xlu0 %v3062, 12
      %v3449 = vpop.permute.xlu0 %3448
      %3450 = vrot.lane.b32.xlu0 %v3419, 12
      %v3451 = vpop.permute.xlu0 %3450
      %v3453 = vunpack.c.l.b16 %v2979
      %v3454 = vpack.c.b16 %v3453, %v3453
      %v3456 = vshrl.u32 %v3419, 16
      %v3458 = vshll.u32 %v3419, 16
      %v3460 = vrot.slane %v3458, 1
      %v3461 = vor.u32 %v3456, %v3460
      %v3463 = vshll.u32 %v3454, 16
      %v3465 = vrot.slane %v3463, 1
      %v3466 = vsel %vm1896, %v3461, %v3465
      %3467 = vrot.lane.b32.xlu0 %v3134, 16
      %v3468 = vpop.permute.xlu0 %3467
      %3469 = vrot.lane.b32.xlu0 %v3146, 16
      %v3470 = vpop.permute.xlu0 %3469
      %3471 = vrot.lane.b32.xlu0 %v3158, 16
      %v3472 = vpop.permute.xlu0 %3471
      %3473 = vrot.lane.b32.xlu0 %v3170, 16
      %v3474 = vpop.permute.xlu0 %3473
      %3475 = vrot.lane.b32.xlu0 %v3182, 16
      %v3476 = vpop.permute.xlu0 %3475
      %3477 = vrot.lane.b32.xlu0 %v3194, 16
      %v3478 = vpop.permute.xlu0 %3477
      %3479 = vrot.lane.b32.xlu0 %v3206, 16
      %v3480 = vpop.permute.xlu0 %3479
      %3481 = vrot.lane.b32.xlu0 %v3218, 16
      %v3482 = vpop.permute.xlu0 %3481
      %3483 = vrot.lane.b32.xlu0 %v3230, 16
      %v3484 = vpop.permute.xlu0 %3483
      %3485 = vrot.lane.b32.xlu0 %v3242, 16
      %v3486 = vpop.permute.xlu0 %3485
      %3487 = vrot.lane.b32.xlu0 %v3254, 16
      %v3488 = vpop.permute.xlu0 %3487
      %3489 = vrot.lane.b32.xlu0 %v3266, 16
      %v3490 = vpop.permute.xlu0 %3489
      %3491 = vrot.lane.b32.xlu0 %v3278, 16
      %v3492 = vpop.permute.xlu0 %3491
      %3493 = vrot.lane.b32.xlu0 %v3290, 16
      %v3494 = vpop.permute.xlu0 %3493
      %3495 = vrot.lane.b32.xlu0 %v3302, 16
      %v3496 = vpop.permute.xlu0 %3495
      %3497 = vrot.lane.b32.xlu0 %v3466, 16
      %v3498 = vpop.permute.xlu0 %3497
      %v3499 = vrot.slane %v3419, 1
      %v3500 = vrot.slane %v3454, 1
      %v3501 = vsel %vm2121, %v3499, %v3500
      %3502 = vrot.lane.b32.xlu0 %v3340, 20
      %v3503 = vpop.permute.xlu0 %3502
      %3504 = vrot.lane.b32.xlu0 %v3343, 20
      %v3505 = vpop.permute.xlu0 %3504
      %3506 = vrot.lane.b32.xlu0 %v3346, 20
      %v3507 = vpop.permute.xlu0 %3506
      %3508 = vrot.lane.b32.xlu0 %v3349, 20
      %v3509 = vpop.permute.xlu0 %3508
      %3510 = vrot.lane.b32.xlu0 %v3352, 20
      %v3511 = vpop.permute.xlu0 %3510
      %3512 = vrot.lane.b32.xlu0 %v3355, 20
      %v3513 = vpop.permute.xlu0 %3512
      %3514 = vrot.lane.b32.xlu0 %v3358, 20
      %v3515 = vpop.permute.xlu0 %3514
      %3516 = vrot.lane.b32.xlu0 %v3361, 20
      %v3517 = vpop.permute.xlu0 %3516
      %3518 = vrot.lane.b32.xlu0 %v3364, 20
      %v3519 = vpop.permute.xlu0 %3518
      %3520 = vrot.lane.b32.xlu0 %v3367, 20
      %v3521 = vpop.permute.xlu0 %3520
      %3522 = vrot.lane.b32.xlu0 %v3370, 20
      %v3523 = vpop.permute.xlu0 %3522
      %3524 = vrot.lane.b32.xlu0 %v3373, 20
      %v3525 = vpop.permute.xlu0 %3524
      %3526 = vrot.lane.b32.xlu0 %v3376, 20
      %v3527 = vpop.permute.xlu0 %3526
      %3528 = vrot.lane.b32.xlu0 %v3379, 20
      %v3529 = vpop.permute.xlu0 %3528
      %3530 = vrot.lane.b32.xlu0 %v3382, 20
      %v3531 = vpop.permute.xlu0 %3530
      %3532 = vrot.lane.b32.xlu0 %v3501, 20
      %v3533 = vpop.permute.xlu0 %3532
      %v3536 = vunpack.c.l.b16 %v2980
      %v3537 = vunpack.c.l.b16 %v2981
      %v3538 = vpack.c.b16 %v3537, %v3536
      %3539 = vrot.lane.b32.xlu0 %v3049, 24
      %v3540 = vpop.permute.xlu0 %3539
      %3541 = vrot.lane.b32.xlu0 %v3050, 24
      %v3542 = vpop.permute.xlu0 %3541
      %3543 = vrot.lane.b32.xlu0 %v3051, 24
      %v3544 = vpop.permute.xlu0 %3543
      %3545 = vrot.lane.b32.xlu0 %v3052, 24
      %v3546 = vpop.permute.xlu0 %3545
      %3547 = vrot.lane.b32.xlu0 %v3053, 24
      %v3548 = vpop.permute.xlu0 %3547
      %3549 = vrot.lane.b32.xlu0 %v3054, 24
      %v3550 = vpop.permute.xlu0 %3549
      %3551 = vrot.lane.b32.xlu0 %v3055, 24
      %v3552 = vpop.permute.xlu0 %3551
      %3553 = vrot.lane.b32.xlu0 %v3056, 24
      %v3554 = vpop.permute.xlu0 %3553
      %3555 = vrot.lane.b32.xlu0 %v3057, 24
      %v3556 = vpop.permute.xlu0 %3555
      %3557 = vrot.lane.b32.xlu0 %v3058, 24
      %v3558 = vpop.permute.xlu0 %3557
      %3559 = vrot.lane.b32.xlu0 %v3059, 24
      %v3560 = vpop.permute.xlu0 %3559
      %3561 = vrot.lane.b32.xlu0 %v3060, 24
      %v3562 = vpop.permute.xlu0 %3561
      %3563 = vrot.lane.b32.xlu0 %v3061, 24
      %v3564 = vpop.permute.xlu0 %3563
      %3565 = vrot.lane.b32.xlu0 %v3062, 24
      %v3566 = vpop.permute.xlu0 %3565
      %3567 = vrot.lane.b32.xlu0 %v3419, 24
      %v3568 = vpop.permute.xlu0 %3567
      %3569 = vrot.lane.b32.xlu0 %v3538, 24
      %v3570 = vpop.permute.xlu0 %3569
      %v3572 = vunpack.c.l.b16 %v2982
      %v3573 = vpack.c.b16 %v3572, %v3572
      %v3575 = vshrl.u32 %v3538, 16
      %v3577 = vshll.u32 %v3538, 16
      %v3579 = vrot.slane %v3577, 1
      %v3580 = vor.u32 %v3575, %v3579
      %v3582 = vshll.u32 %v3573, 16
      %v3584 = vrot.slane %v3582, 1
      %v3585 = vsel %vm1896, %v3580, %v3584
      %3586 = vrot.lane.b32.xlu0 %v3146, 28
      %v3587 = vpop.permute.xlu0 %3586
      %3588 = vrot.lane.b32.xlu0 %v3158, 28
      %v3589 = vpop.permute.xlu0 %3588
      %3590 = vrot.lane.b32.xlu0 %v3170, 28
      %v3591 = vpop.permute.xlu0 %3590
      %3592 = vrot.lane.b32.xlu0 %v3182, 28
      %v3593 = vpop.permute.xlu0 %3592
      %3594 = vrot.lane.b32.xlu0 %v3194, 28
      %v3595 = vpop.permute.xlu0 %3594
      %3596 = vrot.lane.b32.xlu0 %v3206, 28
      %v3597 = vpop.permute.xlu0 %3596
      %3598 = vrot.lane.b32.xlu0 %v3218, 28
      %v3599 = vpop.permute.xlu0 %3598
      %3600 = vrot.lane.b32.xlu0 %v3230, 28
      %v3601 = vpop.permute.xlu0 %3600
      %3602 = vrot.lane.b32.xlu0 %v3242, 28
      %v3603 = vpop.permute.xlu0 %3602
      %3604 = vrot.lane.b32.xlu0 %v3254, 28
      %v3605 = vpop.permute.xlu0 %3604
      %3606 = vrot.lane.b32.xlu0 %v3266, 28
      %v3607 = vpop.permute.xlu0 %3606
      %3608 = vrot.lane.b32.xlu0 %v3278, 28
      %v3609 = vpop.permute.xlu0 %3608
      %3610 = vrot.lane.b32.xlu0 %v3290, 28
      %v3611 = vpop.permute.xlu0 %3610
      %3612 = vrot.lane.b32.xlu0 %v3302, 28
      %v3613 = vpop.permute.xlu0 %3612
      %3614 = vrot.lane.b32.xlu0 %v3466, 28
      %v3615 = vpop.permute.xlu0 %3614
      %3616 = vrot.lane.b32.xlu0 %v3585, 28
      %v3617 = vpop.permute.xlu0 %3616
      %v3618 = vrot.slane %v3538, 1
      %v3619 = vrot.slane %v3573, 1
      %v3620 = vsel %vm2121, %v3618, %v3619
      %3621 = vrot.lane.b32.xlu0 %v3343, 32
      %v3622 = vpop.permute.xlu0 %3621
      %3623 = vrot.lane.b32.xlu0 %v3346, 32
      %v3624 = vpop.permute.xlu0 %3623
      %3625 = vrot.lane.b32.xlu0 %v3349, 32
      %v3626 = vpop.permute.xlu0 %3625
      %3627 = vrot.lane.b32.xlu0 %v3352, 32
      %v3628 = vpop.permute.xlu0 %3627
      %3629 = vrot.lane.b32.xlu0 %v3355, 32
      %v3630 = vpop.permute.xlu0 %3629
      %3631 = vrot.lane.b32.xlu0 %v3358, 32
      %v3632 = vpop.permute.xlu0 %3631
      %3633 = vrot.lane.b32.xlu0 %v3361, 32
      %v3634 = vpop.permute.xlu0 %3633
      %3635 = vrot.lane.b32.xlu0 %v3364, 32
      %v3636 = vpop.permute.xlu0 %3635
      %3637 = vrot.lane.b32.xlu0 %v3367, 32
      %v3638 = vpop.permute.xlu0 %3637
      %3639 = vrot.lane.b32.xlu0 %v3370, 32
      %v3640 = vpop.permute.xlu0 %3639
      %3641 = vrot.lane.b32.xlu0 %v3373, 32
      %v3642 = vpop.permute.xlu0 %3641
      %3643 = vrot.lane.b32.xlu0 %v3376, 32
      %v3644 = vpop.permute.xlu0 %3643
      %3645 = vrot.lane.b32.xlu0 %v3379, 32
      %v3646 = vpop.permute.xlu0 %3645
      %3647 = vrot.lane.b32.xlu0 %v3382, 32
      %v3648 = vpop.permute.xlu0 %3647
      %3649 = vrot.lane.b32.xlu0 %v3501, 32
      %v3650 = vpop.permute.xlu0 %3649
      %3651 = vrot.lane.b32.xlu0 %v3620, 32
      %v3652 = vpop.permute.xlu0 %3651
      %v3654 = vsel %vm2440, %v3047, %v3304
      %v3656 = vsel %vm2440, %v3048, %v3306
      %v3658 = vsel %vm2440, %v3049, %v3308
      %v3660 = vsel %vm2440, %v3050, %v3310
      %v3662 = vsel %vm2440, %v3051, %v3312
      %v3664 = vsel %vm2440, %v3052, %v3314
      %v3666 = vsel %vm2440, %v3053, %v3316
      %v3668 = vsel %vm2440, %v3054, %v3318
      %v3670 = vsel %vm2440, %v3055, %v3320
      %v3672 = vsel %vm2440, %v3056, %v3322
      %v3674 = vsel %vm2440, %v3057, %v3324
      %v3676 = vsel %vm2440, %v3058, %v3326
      %v3678 = vsel %vm2440, %v3059, %v3328
      %v3680 = vsel %vm2440, %v3060, %v3330
      %v3682 = vsel %vm2440, %v3061, %v3332
      %v3684 = vsel %vm2440, %v3062, %v3334
      %v3686 = vsel %vm2473, %v3654, %v3384
      %v3688 = vsel %vm2473, %v3656, %v3386
      %v3690 = vsel %vm2473, %v3658, %v3388
      %v3692 = vsel %vm2473, %v3660, %v3390
      %v3694 = vsel %vm2473, %v3662, %v3392
      %v3696 = vsel %vm2473, %v3664, %v3394
      %v3698 = vsel %vm2473, %v3666, %v3396
      %v3700 = vsel %vm2473, %v3668, %v3398
      %v3702 = vsel %vm2473, %v3670, %v3400
      %v3704 = vsel %vm2473, %v3672, %v3402
      %v3706 = vsel %vm2473, %v3674, %v3404
      %v3708 = vsel %vm2473, %v3676, %v3406
      %v3710 = vsel %vm2473, %v3678, %v3408
      %v3712 = vsel %vm2473, %v3680, %v3410
      %v3714 = vsel %vm2473, %v3682, %v3412
      %v3716 = vsel %vm2473, %v3684, %v3414
      %v3718 = vsel %vm2506, %v3686, %v3421
      %v3720 = vsel %vm2506, %v3688, %v3423
      %v3722 = vsel %vm2506, %v3690, %v3425
      %v3724 = vsel %vm2506, %v3692, %v3427
      %v3726 = vsel %vm2506, %v3694, %v3429
      %v3728 = vsel %vm2506, %v3696, %v3431
      %v3730 = vsel %vm2506, %v3698, %v3433
      %v3732 = vsel %vm2506, %v3700, %v3435
      %v3734 = vsel %vm2506, %v3702, %v3437
      %v3736 = vsel %vm2506, %v3704, %v3439
      %v3738 = vsel %vm2506, %v3706, %v3441
      %v3740 = vsel %vm2506, %v3708, %v3443
      %v3742 = vsel %vm2506, %v3710, %v3445
      %v3744 = vsel %vm2506, %v3712, %v3447
      %v3746 = vsel %vm2506, %v3714, %v3449
      %v3748 = vsel %vm2506, %v3716, %v3451
      %v3750 = vsel %vm2539, %v3718, %v3468
      %v3752 = vsel %vm2539, %v3720, %v3470
      %v3754 = vsel %vm2539, %v3722, %v3472
      %v3756 = vsel %vm2539, %v3724, %v3474
      %v3758 = vsel %vm2539, %v3726, %v3476
      %v3760 = vsel %vm2539, %v3728, %v3478
      %v3762 = vsel %vm2539, %v3730, %v3480
      %v3764 = vsel %vm2539, %v3732, %v3482
      %v3766 = vsel %vm2539, %v3734, %v3484
      %v3768 = vsel %vm2539, %v3736, %v3486
      %v3770 = vsel %vm2539, %v3738, %v3488
      %v3772 = vsel %vm2539, %v3740, %v3490
      %v3774 = vsel %vm2539, %v3742, %v3492
      %v3776 = vsel %vm2539, %v3744, %v3494
      %v3778 = vsel %vm2539, %v3746, %v3496
      %v3780 = vsel %vm2539, %v3748, %v3498
      %v3782 = vsel %vm2572, %v3750, %v3503
      %v3784 = vsel %vm2572, %v3752, %v3505
      %v3786 = vsel %vm2572, %v3754, %v3507
      %v3788 = vsel %vm2572, %v3756, %v3509
      %v3790 = vsel %vm2572, %v3758, %v3511
      %v3792 = vsel %vm2572, %v3760, %v3513
      %v3794 = vsel %vm2572, %v3762, %v3515
      %v3796 = vsel %vm2572, %v3764, %v3517
      %v3798 = vsel %vm2572, %v3766, %v3519
      %v3800 = vsel %vm2572, %v3768, %v3521
      %v3802 = vsel %vm2572, %v3770, %v3523
      %v3804 = vsel %vm2572, %v3772, %v3525
      %v3806 = vsel %vm2572, %v3774, %v3527
      %v3808 = vsel %vm2572, %v3776, %v3529
      %v3810 = vsel %vm2572, %v3778, %v3531
      %v3812 = vsel %vm2572, %v3780, %v3533
      %v3814 = vsel %vm2605, %v3782, %v3540
      %v3816 = vsel %vm2605, %v3784, %v3542
      %v3818 = vsel %vm2605, %v3786, %v3544
      %v3820 = vsel %vm2605, %v3788, %v3546
      %v3822 = vsel %vm2605, %v3790, %v3548
      %v3824 = vsel %vm2605, %v3792, %v3550
      %v3826 = vsel %vm2605, %v3794, %v3552
      %v3828 = vsel %vm2605, %v3796, %v3554
      %v3830 = vsel %vm2605, %v3798, %v3556
      %v3832 = vsel %vm2605, %v3800, %v3558
      %v3834 = vsel %vm2605, %v3802, %v3560
      %v3836 = vsel %vm2605, %v3804, %v3562
      %v3838 = vsel %vm2605, %v3806, %v3564
      %v3840 = vsel %vm2605, %v3808, %v3566
      %v3842 = vsel %vm2605, %v3810, %v3568
      %v3844 = vsel %vm2605, %v3812, %v3570
      %v3846 = vsel %vm2638, %v3814, %v3587
      %v3848 = vsel %vm2638, %v3816, %v3589
      %v3850 = vsel %vm2638, %v3818, %v3591
      %v3852 = vsel %vm2638, %v3820, %v3593
      %v3854 = vsel %vm2638, %v3822, %v3595
      %v3856 = vsel %vm2638, %v3824, %v3597
      %v3858 = vsel %vm2638, %v3826, %v3599
      %v3860 = vsel %vm2638, %v3828, %v3601
      %v3862 = vsel %vm2638, %v3830, %v3603
      %v3864 = vsel %vm2638, %v3832, %v3605
      %v3866 = vsel %vm2638, %v3834, %v3607
      %v3868 = vsel %vm2638, %v3836, %v3609
      %v3870 = vsel %vm2638, %v3838, %v3611
      %v3872 = vsel %vm2638, %v3840, %v3613
      %v3874 = vsel %vm2638, %v3842, %v3615
      %v3876 = vsel %vm2638, %v3844, %v3617
      %v3878 = vsel %vm2671, %v3846, %v3622
      %v3880 = vsel %vm2671, %v3848, %v3624
      %v3882 = vsel %vm2671, %v3850, %v3626
      %v3884 = vsel %vm2671, %v3852, %v3628
      %v3886 = vsel %vm2671, %v3854, %v3630
      %v3888 = vsel %vm2671, %v3856, %v3632
      %v3890 = vsel %vm2671, %v3858, %v3634
      %v3892 = vsel %vm2671, %v3860, %v3636
      %v3894 = vsel %vm2671, %v3862, %v3638
      %v3896 = vsel %vm2671, %v3864, %v3640
      %v3898 = vsel %vm2671, %v3866, %v3642
      %v3900 = vsel %vm2671, %v3868, %v3644
      %v3902 = vsel %vm2671, %v3870, %v3646
      %v3904 = vsel %vm2671, %v3872, %v3648
      %v3906 = vsel %vm2671, %v3874, %v3650
      %v3908 = vsel %vm2671, %v3876, %v3652
      %v3909 = vld [vmem:[%s5] sm:$0xf]
      %v3910 = vld [vmem:[%s5 + $0x4] sm:$0xf]
      %v3911 = vld [vmem:[%s5 + $0x8] sm:$0xf]
      %v3912 = vld [vmem:[%s5 + $0xc] sm:$0xf]
      %v3913 = vld [vmem:[%s5 + $0x10] sm:$0x3]
      %v3914 = vld [vmem:[%s6] sm:$0x1]
      %v3916 = vlaneseq
      %v3917 = vshrl.u32 %v3916, 7
      %v3918 = vsub.s32 0, %v3917
      %v3919 = vrot.slane %v3914, %v3918
      %v3926 = vunpack.c.l.b16 %v3909
      %v3927 = vunpack.c.l.b16 %v3910
      %v3928 = vunpack.c.l.b16 %v3911
      %v3929 = vunpack.c.l.b16 %v3912
      %v3930 = vunpack.c.l.b16 %v3913
      %v3931 = vpack.c.b16 %v3927, %v3926
      %v3932 = vpack.c.b16 %v3929, %v3928
      %v3933 = vpack.c.b16 %v3930, %v3930
      %v3936 = vsel %vm2731, %v3878, 0
      %v3938 = vsel %vm2731, %v3880, 0
      %v3940 = vsel %vm2731, %v3882, 0
      %v3942 = vsel %vm2731, %v3884, 0
      %v3944 = vsel %vm2731, %v3886, 0
      %v3946 = vsel %vm2731, %v3888, 0
      %v3948 = vsel %vm2731, %v3890, 0
      %v3950 = vsel %vm2731, %v3892, 0
      %v3952 = vsel %vm2731, %v3894, 0
      %v3954 = vsel %vm2731, %v3896, 0
      %v3956 = vsel %vm2731, %v3898, 0
      %v3958 = vsel %vm2731, %v3900, 0
      %v3960 = vsel %vm2731, %v3902, 0
      %v3962 = vsel %vm2731, %v3904, 0
      %v3964 = vsel %vm2731, %v3906, 0
      %v3966 = vsel %vm2731, %v3908, 0
      %v3969 = vsel %vm2764, %v3933, 0
      %3971 = vmatprep.subr.bf16.mxu0 0
      %3972 = vmatpush1.bf16.msra.mxu0 %v3931
      %3973 = vmatprep.subr.bf16.mxu0 0
      %3974 = vmatpush1.bf16.msra.mxu0 %v3932
      %3975 = vmatprep.subr.bf16.mxu0 0
      %3976 = vmatpush1.bf16.msra.mxu0 %v3969
      %3977 = vmatprep.subr.bf16.mxu0 0
      %3978 = vmatpush1.bf16.msra.mxu0 0
      %3979 = vmatprep.subr.bf16.mxu0 0
      %3980 = vmatpush1.bf16.msra.mxu0 0
      %3981 = vmatprep.subr.bf16.mxu0 0
      %3982 = vmatpush1.bf16.msra.mxu0 0
      %3983 = vmatprep.subr.bf16.mxu0 0
      %3984 = vmatpush1.bf16.msra.mxu0 0
      %3985 = vmatprep.subr.bf16.mxu0 0
      %3986 = vmatpush1.bf16.msra.mxu0 0
      %3987 = vmatprep.subr.bf16.mxu0 0
      %3988 = vmatpush1.bf16.msra.mxu0 0
      %3989 = vmatprep.subr.bf16.mxu0 0
      %3990 = vmatpush1.bf16.msra.mxu0 0
      %3991 = vmatprep.subr.bf16.mxu0 0
      %3992 = vmatpush1.bf16.msra.mxu0 0
      %3993 = vmatprep.subr.bf16.mxu0 0
      %3994 = vmatpush1.bf16.msra.mxu0 0
      %3995 = vmatprep.subr.bf16.mxu0 0
      %3996 = vmatpush1.bf16.msra.mxu0 0
      %3997 = vmatprep.subr.bf16.mxu0 0
      %3998 = vmatpush1.bf16.msra.mxu0 0
      %3999 = vmatprep.subr.bf16.mxu0 0
      %4000 = vmatpush1.bf16.msra.mxu0 0
      %4001 = vmatprep.subr.bf16.mxu0 0
      %4002 = vmatpush1.bf16.msra.mxu0 0
      %4003 = vmatprep.mubr.bf16.mxu0 0
      %4004 = vmatmul.mubr.bf16.gmra.mrb[0].mxu0 %v3936
      %v4005 = vpop.f32.mrb[0].mxu0
      %v4006 = vadd.f32 %v3919, %v4005
      %v4007 = vpop.f32.mrb[0].mxu0
      %v4008 = vpop.f32.mrb[0].mxu0
      %v4009 = vadd.f32 %v3919, %v4008
      %v4010 = vpop.f32.mrb[0].mxu0
      %4011 = vmatprep.mubr.bf16.mxu0 0
      %4012 = vmatmul.mubr.bf16.gmra.mrb[0].mxu0 %v3938
      %v4013 = vpop.f32.mrb[0].mxu0
      %v4014 = vadd.f32 %v3919, %v4013
      %v4015 = vpop.f32.mrb[0].mxu0
      %v4016 = vpop.f32.mrb[0].mxu0
      %v4017 = vadd.f32 %v3919, %v4016
      %v4018 = vpop.f32.mrb[0].mxu0
      %4019 = vmatprep.mubr.bf16.mxu0 0
      %4020 = vmatmul.mubr.bf16.gmra.mrb[0].mxu0 %v3940
      %v4021 = vpop.f32.mrb[0].mxu0
      %v4022 = vadd.f32 %v3919, %v4021
      %v4023 = vpop.f32.mrb[0].mxu0
      %v4024 = vpop.f32.mrb[0].mxu0
      %v4025 = vadd.f32 %v3919, %v4024
      %v4026 = vpop.f32.mrb[0].mxu0
      %4027 = vmatprep.mubr.bf16.mxu0 0
      %4028 = vmatmul.mubr.bf16.gmra.mrb[0].mxu0 %v3942
      %v4029 = vpop.f32.mrb[0].mxu0
      %v4030 = vadd.f32 %v3919, %v4029
      %v4031 = vpop.f32.mrb[0].mxu0
      %v4032 = vpop.f32.mrb[0].mxu0
      %v4033 = vadd.f32 %v3919, %v4032
      %v4034 = vpop.f32.mrb[0].mxu0
      %4035 = vmatprep.mubr.bf16.mxu0 0
      %4036 = vmatmul.mubr.bf16.gmra.mrb[0].mxu0 %v3944
      %v4037 = vpop.f32.mrb[0].mxu0
      %v4038 = vadd.f32 %v3919, %v4037
      %v4039 = vpop.f32.mrb[0].mxu0
      %v4040 = vpop.f32.mrb[0].mxu0
      %v4041 = vadd.f32 %v3919, %v4040
      %v4042 = vpop.f32.mrb[0].mxu0
      %4043 = vmatprep.mubr.bf16.mxu0 0
      %4044 = vmatmul.mubr.bf16.gmra.mrb[0].mxu0 %v3946
      %v4045 = vpop.f32.mrb[0].mxu0
      %v4046 = vadd.f32 %v3919, %v4045
      %v4047 = vpop.f32.mrb[0].mxu0
      %v4048 = vpop.f32.mrb[0].mxu0
      %v4049 = vadd.f32 %v3919, %v4048
      %v4050 = vpop.f32.mrb[0].mxu0
      %4051 = vmatprep.mubr.bf16.mxu0 0
      %4052 = vmatmul.mubr.bf16.gmra.mrb[0].mxu0 %v3948
      %v4053 = vpop.f32.mrb[0].mxu0
      %v4054 = vadd.f32 %v3919, %v4053
      %v4055 = vpop.f32.mrb[0].mxu0
      %v4056 = vpop.f32.mrb[0].mxu0
      %v4057 = vadd.f32 %v3919, %v4056
      %v4058 = vpop.f32.mrb[0].mxu0
      %4059 = vmatprep.mubr.bf16.mxu0 0
      %4060 = vmatmul.mubr.bf16.gmra.mrb[0].mxu0 %v3950
      %v4061 = vpop.f32.mrb[0].mxu0
      %v4062 = vadd.f32 %v3919, %v4061
      %v4063 = vpop.f32.mrb[0].mxu0
      %v4064 = vpop.f32.mrb[0].mxu0
      %v4065 = vadd.f32 %v3919, %v4064
      %v4066 = vpop.f32.mrb[0].mxu0
      %4067 = vmatprep.mubr.bf16.mxu0 0
      %4068 = vmatmul.mubr.bf16.gmra.mrb[0].mxu0 %v3952
      %v4069 = vpop.f32.mrb[0].mxu0
      %v4070 = vadd.f32 %v3919, %v4069
      %v4071 = vpop.f32.mrb[0].mxu0
      %v4072 = vpop.f32.mrb[0].mxu0
      %v4073 = vadd.f32 %v3919, %v4072
      %v4074 = vpop.f32.mrb[0].mxu0
      %4075 = vmatprep.mubr.bf16.mxu0 0
      %4076 = vmatmul.mubr.bf16.gmra.mrb[0].mxu0 %v3954
      %v4077 = vpop.f32.mrb[0].mxu0
      %v4078 = vadd.f32 %v3919, %v4077
      %v4079 = vpop.f32.mrb[0].mxu0
      %v4080 = vpop.f32.mrb[0].mxu0
      %v4081 = vadd.f32 %v3919, %v4080
      %v4082 = vpop.f32.mrb[0].mxu0
      %4083 = vmatprep.mubr.bf16.mxu0 0
      %4084 = vmatmul.mubr.bf16.gmra.mrb[0].mxu0 %v3956
      %v4085 = vpop.f32.mrb[0].mxu0
      %v4086 = vadd.f32 %v3919, %v4085
      %v4087 = vpop.f32.mrb[0].mxu0
      %v4088 = vpop.f32.mrb[0].mxu0
      %v4089 = vadd.f32 %v3919, %v4088
      %v4090 = vpop.f32.mrb[0].mxu0
      %4091 = vmatprep.mubr.bf16.mxu0 0
      %4092 = vmatmul.mubr.bf16.gmra.mrb[0].mxu0 %v3958
      %v4093 = vpop.f32.mrb[0].mxu0
      %v4094 = vadd.f32 %v3919, %v4093
      %v4095 = vpop.f32.mrb[0].mxu0
      %v4096 = vpop.f32.mrb[0].mxu0
      %v4097 = vadd.f32 %v3919, %v4096
      %v4098 = vpop.f32.mrb[0].mxu0
      %4099 = vmatprep.mubr.bf16.mxu0 0
      %4100 = vmatmul.mubr.bf16.gmra.mrb[0].mxu0 %v3960
      %v4101 = vpop.f32.mrb[0].mxu0
      %v4102 = vadd.f32 %v3919, %v4101
      %v4103 = vpop.f32.mrb[0].mxu0
      %v4104 = vpop.f32.mrb[0].mxu0
      %v4105 = vadd.f32 %v3919, %v4104
      %v4106 = vpop.f32.mrb[0].mxu0
      %4107 = vmatprep.mubr.bf16.mxu0 0
      %4108 = vmatmul.mubr.bf16.gmra.mrb[0].mxu0 %v3962
      %v4109 = vpop.f32.mrb[0].mxu0
      %v4110 = vadd.f32 %v3919, %v4109
      %v4111 = vpop.f32.mrb[0].mxu0
      %v4112 = vpop.f32.mrb[0].mxu0
      %v4113 = vadd.f32 %v3919, %v4112
      %v4114 = vpop.f32.mrb[0].mxu0
      %4115 = vmatprep.mubr.bf16.mxu0 0
      %4116 = vmatmul.mubr.bf16.gmra.mrb[0].mxu0 %v3964
      %v4117 = vpop.f32.mrb[0].mxu0
      %v4118 = vadd.f32 %v3919, %v4117
      %v4119 = vpop.f32.mrb[0].mxu0
      %v4120 = vpop.f32.mrb[0].mxu0
      %v4121 = vadd.f32 %v3919, %v4120
      %v4122 = vpop.f32.mrb[0].mxu0
      %4123 = vmatprep.mubr.bf16.mxu0 0
      %4124 = vmatmul.mubr.bf16.gmra.mrb[0].mxu0 %v3966
      %v4125 = vpop.f32.mrb[0].mxu0
      %v4126 = vadd.f32 %v3919, %v4125
      %v4127 = vpop.f32.mrb[0].mxu0
      %v4128 = vpop.f32.mrb[0].mxu0
      %v4129 = vadd.f32 %v3919, %v4128
      %v4130 = vpop.f32.mrb[0].mxu0
      %4131 = vdwg.mxu0
      %v4132 = vsel %vm2473, %v2803, 0.0
      %v4133 = vsel %vm2473, %v2806, 0.0
      %v4134 = vadd.f32 %v4132, %v4133
      %v4135 = vsel %vm2473, %v2811, 0.0
      %v4136 = vadd.f32 %v4134, %v4135
      %v4137 = vsel %vm2473, %v2814, 0.0
      %v4138 = vadd.f32 %v4136, %v4137
      %v4139 = vsel %vm2473, %v2819, 0.0
      %v4140 = vadd.f32 %v4138, %v4139
      %v4141 = vsel %vm2473, %v2822, 0.0
      %v4142 = vadd.f32 %v4140, %v4141
      %v4143 = vsel %vm2473, %v2827, 0.0
      %v4144 = vadd.f32 %v4142, %v4143
      %v4145 = vsel %vm2473, %v2830, 0.0
      %v4146 = vadd.f32 %v4144, %v4145
      %v4147 = vsel %vm2473, %v2835, 0.0
      %v4148 = vadd.f32 %v4146, %v4147
      %v4149 = vsel %vm2473, %v2838, 0.0
      %v4150 = vadd.f32 %v4148, %v4149
      %v4151 = vsel %vm2473, %v2843, 0.0
      %v4152 = vadd.f32 %v4150, %v4151
      %v4153 = vsel %vm2473, %v2846, 0.0
      %v4154 = vadd.f32 %v4152, %v4153
      %v4155 = vsel %vm2473, %v2851, 0.0
      %v4156 = vadd.f32 %v4154, %v4155
      %v4157 = vsel %vm2473, %v2854, 0.0
      %v4158 = vadd.f32 %v4156, %v4157
      %v4159 = vsel %vm2473, %v2859, 0.0
      %v4160 = vadd.f32 %v4158, %v4159
      %v4161 = vsel %vm2473, %v2862, 0.0
      %v4162 = vadd.f32 %v4160, %v4161
      %v4163 = vsel %vm2473, %v2867, 0.0
      %v4164 = vadd.f32 %v4162, %v4163
      %v4165 = vsel %vm2473, %v2870, 0.0
      %v4166 = vadd.f32 %v4164, %v4165
      %v4167 = vsel %vm2473, %v2875, 0.0
      %v4168 = vadd.f32 %v4166, %v4167
      %v4169 = vsel %vm2473, %v2878, 0.0
      %v4170 = vadd.f32 %v4168, %v4169
      %v4171 = vsel %vm2473, %v2883, 0.0
      %v4172 = vadd.f32 %v4170, %v4171
      %v4173 = vsel %vm2473, %v2886, 0.0
      %v4174 = vadd.f32 %v4172, %v4173
      %v4175 = vsel %vm2473, %v2891, 0.0
      %v4176 = vadd.f32 %v4174, %v4175
      %v4177 = vsel %vm2473, %v2894, 0.0
      %v4178 = vadd.f32 %v4176, %v4177
      %v4179 = vsel %vm2473, %v2899, 0.0
      %v4180 = vadd.f32 %v4178, %v4179
      %v4181 = vsel %vm2473, %v2902, 0.0
      %v4182 = vadd.f32 %v4180, %v4181
      %v4183 = vsel %vm2473, %v2907, 0.0
      %v4184 = vadd.f32 %v4182, %v4183
      %v4185 = vsel %vm2473, %v2910, 0.0
      %v4186 = vadd.f32 %v4184, %v4185
      %v4187 = vsel %vm2473, %v2915, 0.0
      %v4188 = vadd.f32 %v4186, %v4187
      %v4189 = vsel %vm2473, %v2918, 0.0
      %v4190 = vadd.f32 %v4188, %v4189
      %v4191 = vsel %vm2473, %v2923, 0.0
      %v4192 = vadd.f32 %v4190, %v4191
      %v4193 = vsel %vm2473, %v2926, 0.0
      %v4194 = vadd.f32 %v4192, %v4193
      %v4195 = vrot.slane %v4194, 4
      %v4196 = vadd.f32 %v4194, %v4195
      %v4197 = vrot.slane %v4196, 2
      %v4198 = vadd.f32 %v4196, %v4197
      %v4199 = vrot.slane %v4198, 1
      %v4200 = vadd.f32 %v4198, %v4199
      %vm4201 = vcmask 57344
      %4202 = vst.msk [vmem:[%s449] sm:$0x1] %vm4201, %v4200
      %v4203 = vmul.f32 %v2803, %v2803
      %v4204 = vmul.f32 %v2806, %v2806
      %v4205 = vmul.f32 %v2811, %v2811
      %v4206 = vmul.f32 %v2814, %v2814
      %v4207 = vmul.f32 %v2819, %v2819
      %v4208 = vmul.f32 %v2822, %v2822
      %v4209 = vmul.f32 %v2827, %v2827
      %v4210 = vmul.f32 %v2830, %v2830
      %v4211 = vmul.f32 %v2835, %v2835
      %v4212 = vmul.f32 %v2838, %v2838
      %v4213 = vmul.f32 %v2843, %v2843
      %v4214 = vmul.f32 %v2846, %v2846
      %v4215 = vmul.f32 %v2851, %v2851
      %v4216 = vmul.f32 %v2854, %v2854
      %v4217 = vmul.f32 %v2859, %v2859
      %v4218 = vmul.f32 %v2862, %v2862
      %v4219 = vmul.f32 %v2867, %v2867
      %v4220 = vmul.f32 %v2870, %v2870
      %v4221 = vmul.f32 %v2875, %v2875
      %v4222 = vmul.f32 %v2878, %v2878
      %v4223 = vmul.f32 %v2883, %v2883
      %v4224 = vmul.f32 %v2886, %v2886
      %v4225 = vmul.f32 %v2891, %v2891
      %v4226 = vmul.f32 %v2894, %v2894
      %v4227 = vmul.f32 %v2899, %v2899
      %v4228 = vmul.f32 %v2902, %v2902
      %v4229 = vmul.f32 %v2907, %v2907
      %v4230 = vmul.f32 %v2910, %v2910
      %v4231 = vmul.f32 %v2915, %v2915
      %v4232 = vmul.f32 %v2918, %v2918
      %v4233 = vmul.f32 %v2923, %v2923
      %v4234 = vmul.f32 %v2926, %v2926
      %v4235 = vsel %vm2473, %v4203, 0.0
      %v4236 = vsel %vm2473, %v4204, 0.0
      %v4237 = vadd.f32 %v4235, %v4236
      %v4238 = vsel %vm2473, %v4205, 0.0
      %v4239 = vadd.f32 %v4237, %v4238
      %v4240 = vsel %vm2473, %v4206, 0.0
      %v4241 = vadd.f32 %v4239, %v4240
      %v4242 = vsel %vm2473, %v4207, 0.0
      %v4243 = vadd.f32 %v4241, %v4242
      %v4244 = vsel %vm2473, %v4208, 0.0
      %v4245 = vadd.f32 %v4243, %v4244
      %v4246 = vsel %vm2473, %v4209, 0.0
      %v4247 = vadd.f32 %v4245, %v4246
      %v4248 = vsel %vm2473, %v4210, 0.0
      %v4249 = vadd.f32 %v4247, %v4248
      %v4250 = vsel %vm2473, %v4211, 0.0
      %v4251 = vadd.f32 %v4249, %v4250
      %v4252 = vsel %vm2473, %v4212, 0.0
      %v4253 = vadd.f32 %v4251, %v4252
      %v4254 = vsel %vm2473, %v4213, 0.0
      %v4255 = vadd.f32 %v4253, %v4254
      %v4256 = vsel %vm2473, %v4214, 0.0
      %v4257 = vadd.f32 %v4255, %v4256
      %v4258 = vsel %vm2473, %v4215, 0.0
      %v4259 = vadd.f32 %v4257, %v4258
      %v4260 = vsel %vm2473, %v4216, 0.0
      %v4261 = vadd.f32 %v4259, %v4260
      %v4262 = vsel %vm2473, %v4217, 0.0
      %v4263 = vadd.f32 %v4261, %v4262
      %v4264 = vsel %vm2473, %v4218, 0.0
      %v4265 = vadd.f32 %v4263, %v4264
      %v4266 = vsel %vm2473, %v4219, 0.0
      %v4267 = vadd.f32 %v4265, %v4266
      %v4268 = vsel %vm2473, %v4220, 0.0
      %v4269 = vadd.f32 %v4267, %v4268
      %v4270 = vsel %vm2473, %v4221, 0.0
      %v4271 = vadd.f32 %v4269, %v4270
      %v4272 = vsel %vm2473, %v4222, 0.0
      %v4273 = vadd.f32 %v4271, %v4272
      %v4274 = vsel %vm2473, %v4223, 0.0
      %v4275 = vadd.f32 %v4273, %v4274
      %v4276 = vsel %vm2473, %v4224, 0.0
      %v4277 = vadd.f32 %v4275, %v4276
      %v4278 = vsel %vm2473, %v4225, 0.0
      %v4279 = vadd.f32 %v4277, %v4278
      %v4280 = vsel %vm2473, %v4226, 0.0
      %v4281 = vadd.f32 %v4279, %v4280
      %v4282 = vsel %vm2473, %v4227, 0.0
      %v4283 = vadd.f32 %v4281, %v4282
      %v4284 = vsel %vm2473, %v4228, 0.0
      %v4285 = vadd.f32 %v4283, %v4284
      %v4286 = vsel %vm2473, %v4229, 0.0
      %v4287 = vadd.f32 %v4285, %v4286
      %v4288 = vsel %vm2473, %v4230, 0.0
      %v4289 = vadd.f32 %v4287, %v4288
      %v4290 = vsel %vm2473, %v4231, 0.0
      %v4291 = vadd.f32 %v4289, %v4290
      %v4292 = vsel %vm2473, %v4232, 0.0
      %v4293 = vadd.f32 %v4291, %v4292
      %v4294 = vsel %vm2473, %v4233, 0.0
      %v4295 = vadd.f32 %v4293, %v4294
      %v4296 = vsel %vm2473, %v4234, 0.0
      %v4297 = vadd.f32 %v4295, %v4296
      %v4298 = vrot.slane %v4297, 4
      %v4299 = vadd.f32 %v4297, %v4298
      %v4300 = vrot.slane %v4299, 2
      %v4301 = vadd.f32 %v4299, %v4300
      %v4302 = vrot.slane %v4301, 1
      %v4303 = vadd.f32 %v4301, %v4302
      %4304 = vst.msk [vmem:[%s452] sm:$0x1] %vm4201, %v4303
      %v4305 = vsel %vm2473, %v4006, 0.0
      %v4306 = vsel %vm2473, %v4009, 0.0
      %v4307 = vadd.f32 %v4305, %v4306
      %v4308 = vsel %vm2473, %v4014, 0.0
      %v4309 = vadd.f32 %v4307, %v4308
      %v4310 = vsel %vm2473, %v4017, 0.0
      %v4311 = vadd.f32 %v4309, %v4310
      %v4312 = vsel %vm2473, %v4022, 0.0
      %v4313 = vadd.f32 %v4311, %v4312
      %v4314 = vsel %vm2473, %v4025, 0.0
      %v4315 = vadd.f32 %v4313, %v4314
      %v4316 = vsel %vm2473, %v4030, 0.0
      %v4317 = vadd.f32 %v4315, %v4316
      %v4318 = vsel %vm2473, %v4033, 0.0
      %v4319 = vadd.f32 %v4317, %v4318
      %v4320 = vsel %vm2473, %v4038, 0.0
      %v4321 = vadd.f32 %v4319, %v4320
      %v4322 = vsel %vm2473, %v4041, 0.0
      %v4323 = vadd.f32 %v4321, %v4322
      %v4324 = vsel %vm2473, %v4046, 0.0
      %v4325 = vadd.f32 %v4323, %v4324
      %v4326 = vsel %vm2473, %v4049, 0.0
      %v4327 = vadd.f32 %v4325, %v4326
      %v4328 = vsel %vm2473, %v4054, 0.0
      %v4329 = vadd.f32 %v4327, %v4328
      %v4330 = vsel %vm2473, %v4057, 0.0
      %v4331 = vadd.f32 %v4329, %v4330
      %v4332 = vsel %vm2473, %v4062, 0.0
      %v4333 = vadd.f32 %v4331, %v4332
      %v4334 = vsel %vm2473, %v4065, 0.0
      %v4335 = vadd.f32 %v4333, %v4334
      %v4336 = vsel %vm2473, %v4070, 0.0
      %v4337 = vadd.f32 %v4335, %v4336
      %v4338 = vsel %vm2473, %v4073, 0.0
      %v4339 = vadd.f32 %v4337, %v4338
      %v4340 = vsel %vm2473, %v4078, 0.0
      %v4341 = vadd.f32 %v4339, %v4340
      %v4342 = vsel %vm2473, %v4081, 0.0
      %v4343 = vadd.f32 %v4341, %v4342
      %v4344 = vsel %vm2473, %v4086, 0.0
      %v4345 = vadd.f32 %v4343, %v4344
      %v4346 = vsel %vm2473, %v4089, 0.0
      %v4347 = vadd.f32 %v4345, %v4346
      %v4348 = vsel %vm2473, %v4094, 0.0
      %v4349 = vadd.f32 %v4347, %v4348
      %v4350 = vsel %vm2473, %v4097, 0.0
      %v4351 = vadd.f32 %v4349, %v4350
      %v4352 = vsel %vm2473, %v4102, 0.0
      %v4353 = vadd.f32 %v4351, %v4352
      %v4354 = vsel %vm2473, %v4105, 0.0
      %v4355 = vadd.f32 %v4353, %v4354
      %v4356 = vsel %vm2473, %v4110, 0.0
      %v4357 = vadd.f32 %v4355, %v4356
      %v4358 = vsel %vm2473, %v4113, 0.0
      %v4359 = vadd.f32 %v4357, %v4358
      %v4360 = vsel %vm2473, %v4118, 0.0
      %v4361 = vadd.f32 %v4359, %v4360
      %v4362 = vsel %vm2473, %v4121, 0.0
      %v4363 = vadd.f32 %v4361, %v4362
      %v4364 = vsel %vm2473, %v4126, 0.0
      %v4365 = vadd.f32 %v4363, %v4364
      %v4366 = vsel %vm2473, %v4129, 0.0
      %v4367 = vadd.f32 %v4365, %v4366
      %v4368 = vrot.slane %v4367, 4
      %v4369 = vadd.f32 %v4367, %v4368
      %v4370 = vrot.slane %v4369, 2
      %v4371 = vadd.f32 %v4369, %v4370
      %v4372 = vrot.slane %v4371, 1
      %v4373 = vadd.f32 %v4371, %v4372
      %4374 = vst.msk [vmem:[%s455] sm:$0x1] %vm4201, %v4373
      %v4375 = vmul.f32 %v4006, %v4006
      %v4376 = vmul.f32 %v4009, %v4009
      %v4377 = vmul.f32 %v4014, %v4014
      %v4378 = vmul.f32 %v4017, %v4017
      %v4379 = vmul.f32 %v4022, %v4022
      %v4380 = vmul.f32 %v4025, %v4025
      %v4381 = vmul.f32 %v4030, %v4030
      %v4382 = vmul.f32 %v4033, %v4033
      %v4383 = vmul.f32 %v4038, %v4038
      %v4384 = vmul.f32 %v4041, %v4041
      %v4385 = vmul.f32 %v4046, %v4046
      %v4386 = vmul.f32 %v4049, %v4049
      %v4387 = vmul.f32 %v4054, %v4054
      %v4388 = vmul.f32 %v4057, %v4057
      %v4389 = vmul.f32 %v4062, %v4062
      %v4390 = vmul.f32 %v4065, %v4065
      %v4391 = vmul.f32 %v4070, %v4070
      %v4392 = vmul.f32 %v4073, %v4073
      %v4393 = vmul.f32 %v4078, %v4078
      %v4394 = vmul.f32 %v4081, %v4081
      %v4395 = vmul.f32 %v4086, %v4086
      %v4396 = vmul.f32 %v4089, %v4089
      %v4397 = vmul.f32 %v4094, %v4094
      %v4398 = vmul.f32 %v4097, %v4097
      %v4399 = vmul.f32 %v4102, %v4102
      %v4400 = vmul.f32 %v4105, %v4105
      %v4401 = vmul.f32 %v4110, %v4110
      %v4402 = vmul.f32 %v4113, %v4113
      %v4403 = vmul.f32 %v4118, %v4118
      %v4404 = vmul.f32 %v4121, %v4121
      %v4405 = vmul.f32 %v4126, %v4126
      %v4406 = vmul.f32 %v4129, %v4129
      %v4407 = vsel %vm2473, %v4375, 0.0
      %v4408 = vsel %vm2473, %v4376, 0.0
      %v4409 = vadd.f32 %v4407, %v4408
      %v4410 = vsel %vm2473, %v4377, 0.0
      %v4411 = vadd.f32 %v4409, %v4410
      %v4412 = vsel %vm2473, %v4378, 0.0
      %v4413 = vadd.f32 %v4411, %v4412
      %v4414 = vsel %vm2473, %v4379, 0.0
      %v4415 = vadd.f32 %v4413, %v4414
      %v4416 = vsel %vm2473, %v4380, 0.0
      %v4417 = vadd.f32 %v4415, %v4416
      %v4418 = vsel %vm2473, %v4381, 0.0
      %v4419 = vadd.f32 %v4417, %v4418
      %v4420 = vsel %vm2473, %v4382, 0.0
      %v4421 = vadd.f32 %v4419, %v4420
      %v4422 = vsel %vm2473, %v4383, 0.0
      %v4423 = vadd.f32 %v4421, %v4422
      %v4424 = vsel %vm2473, %v4384, 0.0
      %v4425 = vadd.f32 %v4423, %v4424
      %v4426 = vsel %vm2473, %v4385, 0.0
      %v4427 = vadd.f32 %v4425, %v4426
      %v4428 = vsel %vm2473, %v4386, 0.0
      %v4429 = vadd.f32 %v4427, %v4428
      %v4430 = vsel %vm2473, %v4387, 0.0
      %v4431 = vadd.f32 %v4429, %v4430
      %v4432 = vsel %vm2473, %v4388, 0.0
      %v4433 = vadd.f32 %v4431, %v4432
      %v4434 = vsel %vm2473, %v4389, 0.0
      %v4435 = vadd.f32 %v4433, %v4434
      %v4436 = vsel %vm2473, %v4390, 0.0
      %v4437 = vadd.f32 %v4435, %v4436
      %v4438 = vsel %vm2473, %v4391, 0.0
      %v4439 = vadd.f32 %v4437, %v4438
      %v4440 = vsel %vm2473, %v4392, 0.0
      %v4441 = vadd.f32 %v4439, %v4440
      %v4442 = vsel %vm2473, %v4393, 0.0
      %v4443 = vadd.f32 %v4441, %v4442
      %v4444 = vsel %vm2473, %v4394, 0.0
      %v4445 = vadd.f32 %v4443, %v4444
      %v4446 = vsel %vm2473, %v4395, 0.0
      %v4447 = vadd.f32 %v4445, %v4446
      %v4448 = vsel %vm2473, %v4396, 0.0
      %v4449 = vadd.f32 %v4447, %v4448
      %v4450 = vsel %vm2473, %v4397, 0.0
      %v4451 = vadd.f32 %v4449, %v4450
      %v4452 = vsel %vm2473, %v4398, 0.0
      %v4453 = vadd.f32 %v4451, %v4452
      %v4454 = vsel %vm2473, %v4399, 0.0
      %v4455 = vadd.f32 %v4453, %v4454
      %v4456 = vsel %vm2473, %v4400, 0.0
      %v4457 = vadd.f32 %v4455, %v4456
      %v4458 = vsel %vm2473, %v4401, 0.0
      %v4459 = vadd.f32 %v4457, %v4458
      %v4460 = vsel %vm2473, %v4402, 0.0
      %v4461 = vadd.f32 %v4459, %v4460
      %v4462 = vsel %vm2473, %v4403, 0.0
      %v4463 = vadd.f32 %v4461, %v4462
      %v4464 = vsel %vm2473, %v4404, 0.0
      %v4465 = vadd.f32 %v4463, %v4464
      %v4466 = vsel %vm2473, %v4405, 0.0
      %v4467 = vadd.f32 %v4465, %v4466
      %v4468 = vsel %vm2473, %v4406, 0.0
      %v4469 = vadd.f32 %v4467, %v4468
      %v4470 = vrot.slane %v4469, 4
      %v4471 = vadd.f32 %v4469, %v4470
      %v4472 = vrot.slane %v4471, 2
      %v4473 = vadd.f32 %v4471, %v4472
      %v4474 = vrot.slane %v4473, 1
      %v4475 = vadd.f32 %v4473, %v4474
      %4476 = vst.msk [vmem:[%s458] sm:$0x1] %vm4201, %v4475
      %v4477 = vpack.c.bf16 %v2806, %v2803
      %v4478 = vpack.c.bf16 %v2814, %v2811
      %v4479 = vpack.c.bf16 %v2822, %v2819
      %v4480 = vpack.c.bf16 %v2830, %v2827
      %v4481 = vpack.c.bf16 %v2838, %v2835
      %v4482 = vpack.c.bf16 %v2846, %v2843
      %v4483 = vpack.c.bf16 %v2854, %v2851
      %v4484 = vpack.c.bf16 %v2862, %v2859
      %v4485 = vpack.c.bf16 %v2870, %v2867
      %v4486 = vpack.c.bf16 %v2878, %v2875
      %v4487 = vpack.c.bf16 %v2886, %v2883
      %v4488 = vpack.c.bf16 %v2894, %v2891
      %v4489 = vpack.c.bf16 %v2902, %v2899
      %v4490 = vpack.c.bf16 %v2910, %v2907
      %v4491 = vpack.c.bf16 %v2918, %v2915
      %v4492 = vpack.c.bf16 %v2926, %v2923
      %v4509 = vunpack.c.l.b16 %v4477
      %v4510 = vunpack.c.h.b16 %v4477
      %v4511 = vunpack.c.l.b16 %v4478
      %v4512 = vunpack.c.h.b16 %v4478
      %v4513 = vunpack.c.l.b16 %v4479
      %v4514 = vunpack.c.h.b16 %v4479
      %v4515 = vunpack.c.l.b16 %v4480
      %v4516 = vunpack.c.h.b16 %v4480
      %v4517 = vunpack.c.l.b16 %v4481
      %v4518 = vunpack.c.h.b16 %v4481
      %v4519 = vunpack.c.l.b16 %v4482
      %v4520 = vunpack.c.h.b16 %v4482
      %v4521 = vunpack.c.l.b16 %v4483
      %v4522 = vunpack.c.h.b16 %v4483
      %v4523 = vunpack.c.l.b16 %v4484
      %v4524 = vunpack.c.h.b16 %v4484
      %v4525 = vunpack.c.l.b16 %v4485
      %v4526 = vunpack.c.h.b16 %v4485
      %v4527 = vunpack.c.l.b16 %v4486
      %v4528 = vunpack.c.h.b16 %v4486
      %v4529 = vunpack.c.l.b16 %v4487
      %v4530 = vunpack.c.h.b16 %v4487
      %v4531 = vunpack.c.l.b16 %v4488
      %v4532 = vunpack.c.h.b16 %v4488
      %v4533 = vunpack.c.l.b16 %v4489
      %v4534 = vunpack.c.h.b16 %v4489
      %v4535 = vunpack.c.l.b16 %v4490
      %v4536 = vunpack.c.h.b16 %v4490
      %v4537 = vunpack.c.l.b16 %v4491
      %v4538 = vunpack.c.h.b16 %v4491
      %v4539 = vunpack.c.l.b16 %v4492
      %v4540 = vunpack.c.h.b16 %v4492
      %v4541 = vpack.c.b16 %v4509, %v4509
      %v4542 = vpack.c.b16 %v4510, %v4510
      %v4543 = vpack.c.b16 %v4511, %v4511
      %v4544 = vpack.c.b16 %v4512, %v4512
      %v4545 = vpack.c.b16 %v4513, %v4513
      %v4546 = vpack.c.b16 %v4514, %v4514
      %v4547 = vpack.c.b16 %v4515, %v4515
      %v4548 = vpack.c.b16 %v4516, %v4516
      %v4549 = vpack.c.b16 %v4517, %v4517
      %v4550 = vpack.c.b16 %v4518, %v4518
      %v4551 = vpack.c.b16 %v4519, %v4519
      %v4552 = vpack.c.b16 %v4520, %v4520
      %v4553 = vpack.c.b16 %v4521, %v4521
      %v4554 = vpack.c.b16 %v4522, %v4522
      %v4555 = vpack.c.b16 %v4523, %v4523
      %v4556 = vpack.c.b16 %v4524, %v4524
      %v4557 = vpack.c.b16 %v4525, %v4525
      %v4558 = vpack.c.b16 %v4526, %v4526
      %v4559 = vpack.c.b16 %v4527, %v4527
      %v4560 = vpack.c.b16 %v4528, %v4528
      %v4561 = vpack.c.b16 %v4529, %v4529
      %v4562 = vpack.c.b16 %v4530, %v4530
      %v4563 = vpack.c.b16 %v4531, %v4531
      %v4564 = vpack.c.b16 %v4532, %v4532
      %v4565 = vpack.c.b16 %v4533, %v4533
      %v4566 = vpack.c.b16 %v4534, %v4534
      %v4567 = vpack.c.b16 %v4535, %v4535
      %v4568 = vpack.c.b16 %v4536, %v4536
      %v4569 = vpack.c.b16 %v4537, %v4537
      %v4570 = vpack.c.b16 %v4538, %v4538
      %v4571 = vpack.c.b16 %v4539, %v4539
      %v4572 = vpack.c.b16 %v4540, %v4540
      %vm4605 = vcmask 60416
      %4606 = vst.msk [vmem:[%s441] sm:$0xf] %vm4605, %v4541
      %4607 = vst.msk [vmem:[%s441 + $0x4] sm:$0xf] %vm4605, %v4542
      %4608 = vst.msk [vmem:[%s441 + $0x8] sm:$0xf] %vm4605, %v4543
      %4609 = vst.msk [vmem:[%s441 + $0xc] sm:$0xf] %vm4605, %v4544
      %4610 = vst.msk [vmem:[%s441 + $0x10] sm:$0xf] %vm4605, %v4545
      %4611 = vst.msk [vmem:[%s441 + $0x14] sm:$0xf] %vm4605, %v4546
      %4612 = vst.msk [vmem:[%s441 + $0x18] sm:$0xf] %vm4605, %v4547
      %4613 = vst.msk [vmem:[%s441 + $0x1c] sm:$0xf] %vm4605, %v4548
      %4614 = vst.msk [vmem:[%s441 + $0x20] sm:$0xf] %vm4605, %v4549
      %4615 = vst.msk [vmem:[%s441 + $0x24] sm:$0xf] %vm4605, %v4550
      %4616 = vst.msk [vmem:[%s441 + $0x28] sm:$0xf] %vm4605, %v4551
      %4617 = vst.msk [vmem:[%s441 + $0x2c] sm:$0xf] %vm4605, %v4552
      %4618 = vst.msk [vmem:[%s441 + $0x30] sm:$0xf] %vm4605, %v4553
      %4619 = vst.msk [vmem:[%s441 + $0x34] sm:$0xf] %vm4605, %v4554
      %4620 = vst.msk [vmem:[%s441 + $0x38] sm:$0xf] %vm4605, %v4555
      %4621 = vst.msk [vmem:[%s441 + $0x3c] sm:$0xf] %vm4605, %v4556
      %4622 = vst.msk [vmem:[%s441 + $0x40] sm:$0xf] %vm4605, %v4557
      %4623 = vst.msk [vmem:[%s441 + $0x44] sm:$0xf] %vm4605, %v4558
      %4624 = vst.msk [vmem:[%s441 + $0x48] sm:$0xf] %vm4605, %v4559
      %4625 = vst.msk [vmem:[%s441 + $0x4c] sm:$0xf] %vm4605, %v4560
      %4626 = vst.msk [vmem:[%s441 + $0x50] sm:$0xf] %vm4605, %v4561
      %4627 = vst.msk [vmem:[%s441 + $0x54] sm:$0xf] %vm4605, %v4562
      %4628 = vst.msk [vmem:[%s441 + $0x58] sm:$0xf] %vm4605, %v4563
      %4629 = vst.msk [vmem:[%s441 + $0x5c] sm:$0xf] %vm4605, %v4564
      %4630 = vst.msk [vmem:[%s441 + $0x60] sm:$0xf] %vm4605, %v4565
      %4631 = vst.msk [vmem:[%s441 + $0x64] sm:$0xf] %vm4605, %v4566
      %4632 = vst.msk [vmem:[%s441 + $0x68] sm:$0xf] %vm4605, %v4567
      %4633 = vst.msk [vmem:[%s441 + $0x6c] sm:$0xf] %vm4605, %v4568
      %4634 = vst.msk [vmem:[%s441 + $0x70] sm:$0xf] %vm4605, %v4569
      %4635 = vst.msk [vmem:[%s441 + $0x74] sm:$0xf] %vm4605, %v4570
      %4636 = vst.msk [vmem:[%s441 + $0x78] sm:$0xf] %vm4605, %v4571
      %4637 = vst.msk [vmem:[%s441 + $0x7c] sm:$0xf] %vm4605, %v4572
      %v4638 = vpack.c.bf16 %v4009, %v4006
      %v4639 = vpack.c.bf16 %v4017, %v4014
      %v4640 = vpack.c.bf16 %v4025, %v4022
      %v4641 = vpack.c.bf16 %v4033, %v4030
      %v4642 = vpack.c.bf16 %v4041, %v4038
      %v4643 = vpack.c.bf16 %v4049, %v4046
      %v4644 = vpack.c.bf16 %v4057, %v4054
      %v4645 = vpack.c.bf16 %v4065, %v4062
      %v4646 = vpack.c.bf16 %v4073, %v4070
      %v4647 = vpack.c.bf16 %v4081, %v4078
      %v4648 = vpack.c.bf16 %v4089, %v4086
      %v4649 = vpack.c.bf16 %v4097, %v4094
      %v4650 = vpack.c.bf16 %v4105, %v4102
      %v4651 = vpack.c.bf16 %v4113, %v4110
      %v4652 = vpack.c.bf16 %v4121, %v4118
      %v4653 = vpack.c.bf16 %v4129, %v4126
      %v4670 = vunpack.c.l.b16 %v4638
      %v4671 = vunpack.c.h.b16 %v4638
      %v4672 = vunpack.c.l.b16 %v4639
      %v4673 = vunpack.c.h.b16 %v4639
      %v4674 = vunpack.c.l.b16 %v4640
      %v4675 = vunpack.c.h.b16 %v4640
      %v4676 = vunpack.c.l.b16 %v4641
      %v4677 = vunpack.c.h.b16 %v4641
      %v4678 = vunpack.c.l.b16 %v4642
      %v4679 = vunpack.c.h.b16 %v4642
      %v4680 = vunpack.c.l.b16 %v4643
      %v4681 = vunpack.c.h.b16 %v4643
      %v4682 = vunpack.c.l.b16 %v4644
      %v4683 = vunpack.c.h.b16 %v4644
      %v4684 = vunpack.c.l.b16 %v4645
      %v4685 = vunpack.c.h.b16 %v4645
      %v4686 = vunpack.c.l.b16 %v4646
      %v4687 = vunpack.c.h.b16 %v4646
      %v4688 = vunpack.c.l.b16 %v4647
      %v4689 = vunpack.c.h.b16 %v4647
      %v4690 = vunpack.c.l.b16 %v4648
      %v4691 = vunpack.c.h.b16 %v4648
      %v4692 = vunpack.c.l.b16 %v4649
      %v4693 = vunpack.c.h.b16 %v4649
      %v4694 = vunpack.c.l.b16 %v4650
      %v4695 = vunpack.c.h.b16 %v4650
      %v4696 = vunpack.c.l.b16 %v4651
      %v4697 = vunpack.c.h.b16 %v4651
      %v4698 = vunpack.c.l.b16 %v4652
      %v4699 = vunpack.c.h.b16 %v4652
      %v4700 = vunpack.c.l.b16 %v4653
      %v4701 = vunpack.c.h.b16 %v4653
      %v4702 = vpack.c.b16 %v4670, %v4670
      %v4703 = vpack.c.b16 %v4671, %v4671
      %v4704 = vpack.c.b16 %v4672, %v4672
      %v4705 = vpack.c.b16 %v4673, %v4673
      %v4706 = vpack.c.b16 %v4674, %v4674
      %v4707 = vpack.c.b16 %v4675, %v4675
      %v4708 = vpack.c.b16 %v4676, %v4676
      %v4709 = vpack.c.b16 %v4677, %v4677
      %v4710 = vpack.c.b16 %v4678, %v4678
      %v4711 = vpack.c.b16 %v4679, %v4679
      %v4712 = vpack.c.b16 %v4680, %v4680
      %v4713 = vpack.c.b16 %v4681, %v4681
      %v4714 = vpack.c.b16 %v4682, %v4682
      %v4715 = vpack.c.b16 %v4683, %v4683
      %v4716 = vpack.c.b16 %v4684, %v4684
      %v4717 = vpack.c.b16 %v4685, %v4685
      %v4718 = vpack.c.b16 %v4686, %v4686
      %v4719 = vpack.c.b16 %v4687, %v4687
      %v4720 = vpack.c.b16 %v4688, %v4688
      %v4721 = vpack.c.b16 %v4689, %v4689
      %v4722 = vpack.c.b16 %v4690, %v4690
      %v4723 = vpack.c.b16 %v4691, %v4691
      %v4724 = vpack.c.b16 %v4692, %v4692
      %v4725 = vpack.c.b16 %v4693, %v4693
      %v4726 = vpack.c.b16 %v4694, %v4694
      %v4727 = vpack.c.b16 %v4695, %v4695
      %v4728 = vpack.c.b16 %v4696, %v4696
      %v4729 = vpack.c.b16 %v4697, %v4697
      %v4730 = vpack.c.b16 %v4698, %v4698
      %v4731 = vpack.c.b16 %v4699, %v4699
      %v4732 = vpack.c.b16 %v4700, %v4700
      %v4733 = vpack.c.b16 %v4701, %v4701
      %4766 = vst.msk [vmem:[%s446] sm:$0xf] %vm4605, %v4702
      %4767 = vst.msk [vmem:[%s446 + $0x4] sm:$0xf] %vm4605, %v4703
      %4768 = vst.msk [vmem:[%s446 + $0x8] sm:$0xf] %vm4605, %v4704
      %4769 = vst.msk [vmem:[%s446 + $0xc] sm:$0xf] %vm4605, %v4705
      %4770 = vst.msk [vmem:[%s446 + $0x10] sm:$0xf] %vm4605, %v4706
      %4771 = vst.msk [vmem:[%s446 + $0x14] sm:$0xf] %vm4605, %v4707
      %4772 = vst.msk [vmem:[%s446 + $0x18] sm:$0xf] %vm4605, %v4708
      %4773 = vst.msk [vmem:[%s446 + $0x1c] sm:$0xf] %vm4605, %v4709
      %4774 = vst.msk [vmem:[%s446 + $0x20] sm:$0xf] %vm4605, %v4710
      %4775 = vst.msk [vmem:[%s446 + $0x24] sm:$0xf] %vm4605, %v4711
      %4776 = vst.msk [vmem:[%s446 + $0x28] sm:$0xf] %vm4605, %v4712
      %4777 = vst.msk [vmem:[%s446 + $0x2c] sm:$0xf] %vm4605, %v4713
      %4778 = vst.msk [vmem:[%s446 + $0x30] sm:$0xf] %vm4605, %v4714
      %4779 = vst.msk [vmem:[%s446 + $0x34] sm:$0xf] %vm4605, %v4715
      %4780 = vst.msk [vmem:[%s446 + $0x38] sm:$0xf] %vm4605, %v4716
      %4781 = vst.msk [vmem:[%s446 + $0x3c] sm:$0xf] %vm4605, %v4717
      %4782 = vst.msk [vmem:[%s446 + $0x40] sm:$0xf] %vm4605, %v4718
      %4783 = vst.msk [vmem:[%s446 + $0x44] sm:$0xf] %vm4605, %v4719
      %4784 = vst.msk [vmem:[%s446 + $0x48] sm:$0xf] %vm4605, %v4720
      %4785 = vst.msk [vmem:[%s446 + $0x4c] sm:$0xf] %vm4605, %v4721
      %4786 = vst.msk [vmem:[%s446 + $0x50] sm:$0xf] %vm4605, %v4722
      %4787 = vst.msk [vmem:[%s446 + $0x54] sm:$0xf] %vm4605, %v4723
      %4788 = vst.msk [vmem:[%s446 + $0x58] sm:$0xf] %vm4605, %v4724
      %4789 = vst.msk [vmem:[%s446 + $0x5c] sm:$0xf] %vm4605, %v4725
      %4790 = vst.msk [vmem:[%s446 + $0x60] sm:$0xf] %vm4605, %v4726
      %4791 = vst.msk [vmem:[%s446 + $0x64] sm:$0xf] %vm4605, %v4727
      %4792 = vst.msk [vmem:[%s446 + $0x68] sm:$0xf] %vm4605, %v4728
      %4793 = vst.msk [vmem:[%s446 + $0x6c] sm:$0xf] %vm4605, %v4729
      %4794 = vst.msk [vmem:[%s446 + $0x70] sm:$0xf] %vm4605, %v4730
      %4795 = vst.msk [vmem:[%s446 + $0x74] sm:$0xf] %vm4605, %v4731
      %4796 = vst.msk [vmem:[%s446 + $0x78] sm:$0xf] %vm4605, %v4732
      %4797 = vst.msk [vmem:[%s446 + $0x7c] sm:$0xf] %vm4605, %v4733
      %p4798 = scmp.lt.s32.totalorder %s24, 1
      %s4799 = scalar_select %p4798, %s24, 1
      %s4800 = smul.addr %s4799, 32
      %s4801 = smul.addr %s4800, 4
      %s4802 = scalar_lea.vmem %s7, %s4801
      %p4803 = scmp.lt.s32.totalorder %s24, 1
      %s4804 = scalar_select %p4803, %s24, 1
      %s4805 = smul.addr %s4804, 32
      %s4806 = smul.addr %s4805, 4
      %s4807 = scalar_lea.vmem %s8, %s4806
      %p4808 = scmp.lt.s32.totalorder %s24, 1
      %s4809 = scalar_select %p4808, %s24, 1
      %s4810 = scalar_lea.vmem %s9, %s4809
      %p4811 = scmp.lt.s32.totalorder %s24, 1
      %s4812 = scalar_select %p4811, %s24, 1
      %s4813 = scalar_lea.vmem %s10, %s4812
      %p4814 = scmp.lt.s32.totalorder %s24, 1
      %s4815 = scalar_select %p4814, %s24, 1
      %s4816 = scalar_lea.vmem %s11, %s4815
      %p4817 = scmp.lt.s32.totalorder %s24, 1
      %s4818 = scalar_select %p4817, %s24, 1
      %s4819 = scalar_lea.vmem %s12, %s4818
      // Predicated region
      $region49: #{residual_conv_forward.2} parent=47 // pred_check
        %p4820 = pneg %p194
      $region50: #{residual_conv_forward.2} parent=47 // pred_check_branch
        %4822 = sbr.rel (%p4820) target = $region52
      $region51: #{residual_conv_forward.2} parent=47 // pred_region
        _
      $region52: #{residual_conv_forward.2} parent=47 // pred_fallthru
        _
      // Predicated region
      $region53: #{residual_conv_forward.2} parent=47 // pred_check
        %p4823 = pneg %p220
      $region54: #{residual_conv_forward.2} parent=47 // pred_check_branch
        %4825 = sbr.rel (%p4823) target = $region56
      $region55: #{residual_conv_forward.2} parent=47 // pred_region
        _
      $region56: #{residual_conv_forward.2} parent=47 // pred_fallthru
        _
      // Predicated region
      $region57: #{residual_conv_forward.2} parent=47 // pred_check
        %p4826 = pneg %p246
      $region58: #{residual_conv_forward.2} parent=47 // pred_check_branch
        %4828 = sbr.rel (%p4826) target = $region60
      $region59: #{residual_conv_forward.2} parent=47 // pred_region
        _
      $region60: #{residual_conv_forward.2} parent=47 // pred_fallthru
        _
      // Predicated region
      $region61: #{residual_conv_forward.2} parent=47 // pred_check
        %p4829 = pneg %p272
      $region62: #{residual_conv_forward.2} parent=47 // pred_check_branch
        %4831 = sbr.rel (%p4829) target = $region64
      $region63: #{residual_conv_forward.2} parent=47 // pred_region
        _
      $region64: #{residual_conv_forward.2} parent=47 // pred_fallthru
        _
      // Predicated region
      $region65: #{residual_conv_forward.2} parent=47 // pred_check
        %p4832 = pneg %p298
      $region66: #{residual_conv_forward.2} parent=47 // pred_check_branch
        %4834 = sbr.rel (%p4832) target = $region68
      $region67: #{residual_conv_forward.2} parent=47 // pred_region
        _
      $region68: #{residual_conv_forward.2} parent=47 // pred_fallthru
        _
      // Predicated region
      $region69: #{residual_conv_forward.2} parent=47 // pred_check
        %p4835 = pneg %p324
      $region70: #{residual_conv_forward.2} parent=47 // pred_check_branch
        %4837 = sbr.rel (%p4835) target = $region72
      $region71: #{residual_conv_forward.2} parent=47 // pred_region
        _
      $region72: #{residual_conv_forward.2} parent=47 // pred_fallthru
        _
    $region48: #{residual_conv_forward.2} parent=5 // pred_fallthru
      _
    %p4838 = scmp.le.s32.totalorder 2, %s19
    // Predicated region
    $region73: #{residual_conv_forward.2} parent=5 // pred_check
      %p4839 = pneg %p4838
    $region74: #{residual_conv_forward.2} parent=5 // pred_check_branch
      %4841 = sbr.rel (%p4839) target = $region76
    $region75: #{residual_conv_forward.2} parent=5 // pred_region
      %s4842 = ssub.s32 %s19, 2
      // Predicated region
      $region77: #{residual_conv_forward.2} parent=75 // pred_check
        %p4843 = pneg %p200
      $region78: #{residual_conv_forward.2} parent=75 // pred_check_branch
        %4845 = sbr.rel (%p4843) target = $region80
      $region79: #{residual_conv_forward.2} parent=75 // pred_region
        %p4846 = scmp.lt.s32.totalorder %s25, 1
        %s4847 = scalar_select %p4846, %s25, 1
        %s4848 = smul.addr %s4847, 32
        %s4849 = smul.addr %s4848, 4
        %s4850 = scalar_lea.vmem %s7, %s4849
      $region80: #{residual_conv_forward.2} parent=75 // pred_fallthru
        _
      // Predicated region
      $region81: #{residual_conv_forward.2} parent=75 // pred_check
        %p4851 = pneg %p226
      $region82: #{residual_conv_forward.2} parent=75 // pred_check_branch
        %4853 = sbr.rel (%p4851) target = $region84
      $region83: #{residual_conv_forward.2} parent=75 // pred_region
        %p4854 = scmp.lt.s32.totalorder %s25, 1
        %s4855 = scalar_select %p4854, %s25, 1
        %s4856 = smul.addr %s4855, 32
        %s4857 = smul.addr %s4856, 4
        %s4858 = scalar_lea.vmem %s8, %s4857
      $region84: #{residual_conv_forward.2} parent=75 // pred_fallthru
        _
      // Predicated region
      $region85: #{residual_conv_forward.2} parent=75 // pred_check
        %p4859 = pneg %p252
      $region86: #{residual_conv_forward.2} parent=75 // pred_check_branch
        %4861 = sbr.rel (%p4859) target = $region88
      $region87: #{residual_conv_forward.2} parent=75 // pred_region
        %p4862 = scmp.lt.s32.totalorder %s25, 1
        %s4863 = scalar_select %p4862, %s25, 1
        %s4864 = scalar_lea.vmem %s9, %s4863
      $region88: #{residual_conv_forward.2} parent=75 // pred_fallthru
        _
      // Predicated region
      $region89: #{residual_conv_forward.2} parent=75 // pred_check
        %p4865 = pneg %p278
      $region90: #{residual_conv_forward.2} parent=75 // pred_check_branch
        %4867 = sbr.rel (%p4865) target = $region92
      $region91: #{residual_conv_forward.2} parent=75 // pred_region
        %p4868 = scmp.lt.s32.totalorder %s25, 1
        %s4869 = scalar_select %p4868, %s25, 1
        %s4870 = scalar_lea.vmem %s10, %s4869
      $region92: #{residual_conv_forward.2} parent=75 // pred_fallthru
        _
      // Predicated region
      $region93: #{residual_conv_forward.2} parent=75 // pred_check
        %p4871 = pneg %p304
      $region94: #{residual_conv_forward.2} parent=75 // pred_check_branch
        %4873 = sbr.rel (%p4871) target = $region96
      $region95: #{residual_conv_forward.2} parent=75 // pred_region
        %p4874 = scmp.lt.s32.totalorder %s25, 1
        %s4875 = scalar_select %p4874, %s25, 1
        %s4876 = scalar_lea.vmem %s11, %s4875
      $region96: #{residual_conv_forward.2} parent=75 // pred_fallthru
        _
      // Predicated region
      $region97: #{residual_conv_forward.2} parent=75 // pred_check
        %p4877 = pneg %p330
      $region98: #{residual_conv_forward.2} parent=75 // pred_check_branch
        %4879 = sbr.rel (%p4877) target = $region100
      $region99: #{residual_conv_forward.2} parent=75 // pred_region
        %p4880 = scmp.lt.s32.totalorder %s25, 1
        %s4881 = scalar_select %p4880, %s25, 1
        %s4882 = scalar_lea.vmem %s12, %s4881
      $region100: #{residual_conv_forward.2} parent=75 // pred_fallthru
        _
    $region76: #{residual_conv_forward.2} parent=5 // pred_fallthru
      _
  $region6: #{residual_conv_forward.2} parent=0 // loop_footer
    %s23 = sadd.s32 1, %s19
  $region7: #{residual_conv_forward.2} parent=0 // loop_footer_branch
    %18 = sbr.rel target = $region3
  $region8: #{residual_conv_forward.2} parent=0 // loop_exit
    _

</llo_original>
